<compile_context>
chip_gen: v5e
topology: v5e:2x2
jax: 0.10.0
libtpu: 0.0.40
codegen_flags: <defaults>
</compile_context>

<pallas_src>
import functools

import jax
import jax.numpy as jnp
from jax import lax
from jax.experimental import pallas as pl
from jax.experimental.pallas import tpu as pltpu

_EPS = 1e-5


def _bottleneck_ir_kernel(x_ref, bn1_s_ref, bn1_b_ref, w1_ref, alpha_ref,
                          w2f_ref, bias_ref, out_ref,
                          pad1_ref, pad2_ref, patch1_ref, patch2_ref,
                          *, B, H, W, Cin, D, Ho, Wo, stride, conv_shortcut):
    f32 = jnp.float32

    # Zero only the 1-wide halo of the padded scratch buffers; the interior is fully
    # overwritten below.  Done every step (tiny) so the batch axis stays megacore
    # parallel without relying on a program_id==0 init.
    def zero_halo(ref, c):
        zrow = jnp.zeros((B, 1, W + 2, c), f32)
        zcol = jnp.zeros((B, H + 2, 1, c), f32)
        ref[:, 0:1, :, :] = zrow
        ref[:, H + 1:H + 2, :, :] = zrow
        ref[:, :, 0:1, :] = zcol
        ref[:, :, W + 1:W + 2, :] = zcol

    zero_halo(pad1_ref, Cin)
    zero_halo(pad2_ref, D)

    # ---- residual branch: BN1 -> conv3x3(s=1, p=1) -> PReLU -> conv3x3(stride, p=1);
    #      BN2 scale is pre-folded into the conv-#2 weight, its shift applied as `bias`.
    x_f32 = x_ref[...].astype(f32)                           # (B, H, W, Cin)
    xbn = x_f32 * bn1_s_ref[...] + bn1_b_ref[...]
    pad1_ref[:, 1:H + 1, 1:W + 1, :] = xbn

    # conv #1: one batch-stacked im2col matmul, (B*H*W, 9*Cin) @ (9*Cin, D).
    for t in range(9):
        dh, dw = t // 3, t % 3
        patch1_ref[:, t * Cin:(t + 1) * Cin] = (
            pad1_ref[:, dh:dh + H, dw:dw + W, :]
            .reshape(B * H * W, Cin).astype(jnp.bfloat16))
    acc1 = jnp.dot(patch1_ref[...], w1_ref[...], preferred_element_type=f32)

    # PReLU with per-output-channel slope (f32 elementwise).
    y1 = jnp.where(acc1 >= 0.0, acc1, alpha_ref[...] * acc1)
    pad2_ref[:, 1:H + 1, 1:W + 1, :] = y1.reshape(B, H, W, D)

    # conv #2 (+ fused 1x1 shortcut): one matmul, (B*Ho*Wo, K2) @ (K2, D).
    for t in range(9):
        dh, dw = t // 3, t % 3
        if stride == 1:
            win = pad2_ref[:, dh:dh + Ho, dw:dw + Wo, :]
        else:
            win = pad2_ref[:, pl.ds(dh, Ho, stride=stride),
                           pl.ds(dw, Wo, stride=stride), :]
        patch2_ref[:, t * D:(t + 1) * D] = (
            win.reshape(B * Ho * Wo, D).astype(jnp.bfloat16))

    # Shortcut input: MaxPool2d(1, stride) == strided subsample of the raw (pre-BN) x.
    if stride == 1:
        xs = x_f32
    else:
        xs = x_ref[:, pl.ds(0, Ho, stride=stride),
                   pl.ds(0, Wo, stride=stride), :].astype(f32)
    xs = xs.reshape(B * Ho * Wo, Cin)

    if conv_shortcut:
        # 1x1-conv + BN shortcut fused into the same matmul: append xs on the K dim.
        patch2_ref[:, 9 * D:9 * D + Cin] = xs.astype(jnp.bfloat16)

    acc2 = jnp.dot(patch2_ref[...], w2f_ref[...], preferred_element_type=f32)
    out = acc2 + bias_ref[...]                               # (B*Ho*Wo, D)
    if not conv_shortcut:
        out = out + xs                                       # exact f32 identity shortcut

    # Lane-dense NCHW-flat output: (B, D, Ho*Wo).  Per-image 2-D transpose on the XLU.
    out3 = out.reshape(B, Ho * Wo, D)
    for b in range(B):
        out_ref[b, :, :] = out3[b].T.astype(out_ref.dtype)


def _fold_bn(gamma, beta, mean, var):
    scale = gamma / jnp.sqrt(var + _EPS)
    shift = beta - mean * scale
    return scale, shift


def _pick_batch_tile(n, max_tile=8):
    divisors = [t for t in range(1, min(n, max_tile) + 1) if n % t == 0]
    # Prefer the largest tile that still leaves >= 2 grid steps (keeps both v7x
    # TensorCores busy); otherwise take the largest divisor.
    preferred = [t for t in divisors if n // t >= 2]
    return max(preferred) if preferred else max(divisors)


def bottleneck_ir_forward(x_nchw, params, stride, batch_tile=None):
    """Pallas bottleneck_IR.forward.  x_nchw: (N, Cin, H, W) -> (N, D, Ho, Wo)."""
    N, Cin, H, W = x_nchw.shape
    D = params["w1"].shape[0]
    Ho = (H - 1) // stride + 1
    Wo = (W - 1) // stride + 1
    conv_shortcut = params.get("wsc") is not None
    if not conv_shortcut:
        assert Cin == D

    B = batch_tile if batch_tile is not None else _pick_batch_tile(N)
    assert N % B == 0
    grid = (N // B,)

    s1, b1 = _fold_bn(params["bn1_gamma"], params["bn1_beta"],
                      params["bn1_mean"], params["bn1_var"])
    s2, b2 = _fold_bn(params["bn2_gamma"], params["bn2_beta"],
                      params["bn2_mean"], params["bn2_var"])

    # NCHW -> NHWC for the kernel input (channels on lanes for the im2col matmuls).
    x_nhwc = jnp.transpose(x_nchw, (0, 2, 3, 1))

    # OIHW -> im2col weights.  BN2 / BN-shortcut scales folded in f32, then cast bf16.
    w1_k = jnp.transpose(params["w1"], (2, 3, 1, 0)).reshape(9 * Cin, D).astype(jnp.bfloat16)
    w2_f = jnp.transpose(params["w2"], (2, 3, 1, 0)).reshape(9 * D, D) * s2[None, :]
    if conv_shortcut:
        ssc, bsc = _fold_bn(params["bnsc_gamma"], params["bnsc_beta"],
                            params["bnsc_mean"], params["bnsc_var"])
        wsc_f = jnp.transpose(params["wsc"][:, :, 0, 0], (1, 0)) * ssc[None, :]
        w2f_k = jnp.concatenate([w2_f, wsc_f], axis=0).astype(jnp.bfloat16)  # (9D+Cin, D)
        bias = (b2 + bsc).reshape(1, D).astype(jnp.float32)
        k2 = 9 * D + Cin
    else:
        w2f_k = w2_f.astype(jnp.bfloat16)
        bias = b2.reshape(1, D).astype(jnp.float32)
        k2 = 9 * D

    operands = [
        x_nhwc,
        s1.reshape(1, 1, Cin).astype(jnp.float32),
        b1.reshape(1, 1, Cin).astype(jnp.float32),
        w1_k,
        params["alpha"].reshape(1, D).astype(jnp.float32),
        w2f_k,
        bias,
    ]
    in_specs = [
        pl.BlockSpec((B, H, W, Cin), lambda i: (i, 0, 0, 0)),
        pl.BlockSpec((1, 1, Cin), lambda i: (0, 0, 0)),
        pl.BlockSpec((1, 1, Cin), lambda i: (0, 0, 0)),
        pl.BlockSpec((9 * Cin, D), lambda i: (0, 0)),
        pl.BlockSpec((1, D), lambda i: (0, 0)),
        pl.BlockSpec((k2, D), lambda i: (0, 0)),
        pl.BlockSpec((1, D), lambda i: (0, 0)),
    ]

    kernel = functools.partial(
        _bottleneck_ir_kernel, B=B, H=H, W=W, Cin=Cin, D=D, Ho=Ho, Wo=Wo,
        stride=stride, conv_shortcut=conv_shortcut)

    scratch_shapes = [
        pltpu.VMEM((B, H + 2, W + 2, Cin), jnp.float32),   # padded BN1 output
        pltpu.VMEM((B, H + 2, W + 2, D), jnp.float32),     # padded PReLU output
        pltpu.VMEM((B * H * W, 9 * Cin), jnp.bfloat16),    # im2col patch, conv #1
        pltpu.VMEM((B * Ho * Wo, k2), jnp.bfloat16),       # im2col patch, conv #2 (+sc)
    ]

    # Rough VMEM budget: scratch + double-buffered input/output blocks.  Only raise the
    # scoped limit when whole-image blocks outgrow defaults; stay under v7x's 64 MiB.
    itemsize = jnp.dtype(x_nchw.dtype).itemsize
    scratch_bytes = (B * (H + 2) * (W + 2) * (Cin + D) * 4
                     + B * H * W * 9 * Cin * 2 + B * Ho * Wo * k2 * 2)
    block_bytes = 2 * (B * H * W * Cin + B * D * Ho * Wo) * itemsize
    vmem_need = scratch_bytes + 2 * block_bytes
    compiler_kwargs = {"dimension_semantics": ("parallel",)}
    if vmem_need > 24 * (1 << 20):
        compiler_kwargs["vmem_limit_bytes"] = int(min(60 * (1 << 20), 2 * vmem_need))

    out_flat = pl.pallas_call(
        kernel,
        out_shape=jax.ShapeDtypeStruct((N, D, Ho * Wo), x_nchw.dtype),
        grid_spec=pltpu.PrefetchScalarGridSpec(
            num_scalar_prefetch=0,
            grid=grid,
            in_specs=in_specs,
            out_specs=pl.BlockSpec((B, D, Ho * Wo), lambda i: (i, 0, 0)),
            scratch_shapes=scratch_shapes,
        ),
        compiler_params=pltpu.CompilerParams(**compiler_kwargs),
    )(*operands)
    # NCHW-flat -> NCHW is a free reshape (no transpose, no extra HBM round trip).
    return out_flat.reshape(N, D, Ho, Wo)


def _reference_forward(x, params, stride):
    """Pure-JAX (lax.conv, f32) reference with identical eval-mode BN semantics."""
    def bn(y, g, b, m, v):
        g = g[None, :, None, None]; b = b[None, :, None, None]
        m = m[None, :, None, None]; v = v[None, :, None, None]
        return (y - m) / jnp.sqrt(v + _EPS) * g + b

    dn = ("NCHW", "OIHW", "NCHW")
    y = bn(x, params["bn1_gamma"], params["bn1_beta"], params["bn1_mean"], params["bn1_var"])
    y = lax.conv_general_dilated(y, params["w1"], (1, 1), ((1, 1), (1, 1)),
                                 dimension_numbers=dn)
    a = params["alpha"][None, :, None, None]
    y = jnp.where(y >= 0, y, a * y)
    y = lax.conv_general_dilated(y, params["w2"], (stride, stride), ((1, 1), (1, 1)),
                                 dimension_numbers=dn)
    res = bn(y, params["bn2_gamma"], params["bn2_beta"], params["bn2_mean"], params["bn2_var"])

    if params.get("wsc") is None:
        sc = x[:, :, ::stride, ::stride]
    else:
        sc = lax.conv_general_dilated(x, params["wsc"], (stride, stride),
                                      ((0, 0), (0, 0)), dimension_numbers=dn)
        sc = bn(sc, params["bnsc_gamma"], params["bnsc_beta"],
                params["bnsc_mean"], params["bnsc_var"])
    return res + sc


def _make_params(key, in_channel, depth):
    ks = jax.random.split(key, 16)
    p = {
        "w1": 0.1 * jax.random.normal(ks[0], (depth, in_channel, 3, 3), jnp.float32),
        "bn1_gamma": jax.random.uniform(ks[1], (in_channel,), jnp.float32, 0.5, 1.5),
        "bn1_beta": 0.1 * jax.random.normal(ks[2], (in_channel,), jnp.float32),
        "bn1_mean": 0.1 * jax.random.normal(ks[3], (in_channel,), jnp.float32),
        "bn1_var": jax.random.uniform(ks[4], (in_channel,), jnp.float32, 0.5, 1.5),
        "alpha": jax.random.uniform(ks[5], (depth,), jnp.float32, 0.1, 0.4),
        "w2": 0.1 * jax.random.normal(ks[6], (depth, depth, 3, 3), jnp.float32),
        "bn2_gamma": jax.random.uniform(ks[7], (depth,), jnp.float32, 0.5, 1.5),
        "bn2_beta": 0.1 * jax.random.normal(ks[8], (depth,), jnp.float32),
        "bn2_mean": 0.1 * jax.random.normal(ks[9], (depth,), jnp.float32),
        "bn2_var": jax.random.uniform(ks[10], (depth,), jnp.float32, 0.5, 1.5),
    }
    if in_channel == depth:
        p["wsc"] = None
    else:
        p["wsc"] = 0.1 * jax.random.normal(ks[11], (depth, in_channel, 1, 1), jnp.float32)
        p["bnsc_gamma"] = jax.random.uniform(ks[12], (depth,), jnp.float32, 0.5, 1.5)
        p["bnsc_beta"] = 0.1 * jax.random.normal(ks[13], (depth,), jnp.float32)
        p["bnsc_mean"] = 0.1 * jax.random.normal(ks[14], (depth,), jnp.float32)
        p["bnsc_var"] = jax.random.uniform(ks[15], (depth,), jnp.float32, 0.5, 1.5)
    return p


if __name__ == "__main__":
    key = jax.random.PRNGKey(0)

    # Case 1: bottleneck_IR(4, 8, 2)  -> conv1x1+BN shortcut (fused into conv#2 matmul).
    # Case 2: bottleneck_IR(8, 8, 2)  -> MaxPool2d(1,2) shortcut (strided subsample).
    # Case 3: bottleneck_IR(8, 8, 1)  -> identity shortcut, stride 1 path.
    cases = [(4, 8, 2), (8, 8, 2), (8, 8, 1)]
    N, H, W = 4, 16, 16    # N=4 -> batch_tile=2, grid=2 (both v7x TCs busy)

    for idx, (in_channel, depth, stride) in enumerate(cases):
        k_x, k_p, key = jax.random.split(key, 3)
        x = jax.random.normal(k_x, (N, in_channel, H, W), jnp.float32)
        params = _make_params(k_p, in_channel, depth)

        out = bottleneck_ir_forward(x, params, stride)
        out = jax.block_until_ready(out)

        ref = _reference_forward(x, params, stride)
        Ho = (H - 1) // stride + 1
        assert out.shape == ref.shape == (N, depth, Ho, Ho)
        # bf16 matmul inputs (f32 accumulation) -> slightly relaxed tolerance.
        assert jnp.allclose(out, ref, rtol=3e-2, atol=3e-2), (
            idx, float(jnp.max(jnp.abs(out - ref))))

    print("KERNEL_OK")
</pallas_src>

<mosaic_0001>
module attributes {stable_mosaic.version = 11 : i64} {
  func.func @_bottleneck_ir_kernel(%arg0: i32, %arg1: memref<2x16x16x4xf32, #tpu.memory_space<vmem>>, %arg2: memref<1x1x4xf32, #tpu.memory_space<vmem>>, %arg3: memref<1x1x4xf32, #tpu.memory_space<vmem>>, %arg4: memref<36x8xbf16, #tpu.memory_space<vmem>>, %arg5: memref<1x8xf32, #tpu.memory_space<vmem>>, %arg6: memref<76x8xbf16, #tpu.memory_space<vmem>>, %arg7: memref<1x8xf32, #tpu.memory_space<vmem>>, %arg8: memref<2x8x64xf32, #tpu.memory_space<vmem>>, %arg9: memref<2x18x18x4xf32, #tpu.memory_space<vmem>>, %arg10: memref<2x18x18x8xf32, #tpu.memory_space<vmem>>, %arg11: memref<512x36xbf16, #tpu.memory_space<vmem>>, %arg12: memref<128x76xbf16, #tpu.memory_space<vmem>>) attributes {dimension_semantics = [#tpu.dimension_semantics<parallel>], iteration_bounds = array<i64: 2>, scalar_prefetch = 0 : i64, scratch_operands = 4 : i64, tpu.core_type = #tpu.core_type<tc>, window_params = [{transform_indices = @transform_0, window_bounds = array<i64: 2, 16, 16, 4>}, {pipeline_mode = #tpu.pipeline_mode<synchronous>, transform_indices = @transform_1, window_bounds = array<i64: 1, 1, 4>}, {pipeline_mode = #tpu.pipeline_mode<synchronous>, transform_indices = @transform_2, window_bounds = array<i64: 1, 1, 4>}, {pipeline_mode = #tpu.pipeline_mode<synchronous>, transform_indices = @transform_3, window_bounds = array<i64: 36, 8>}, {pipeline_mode = #tpu.pipeline_mode<synchronous>, transform_indices = @transform_4, window_bounds = array<i64: 1, 8>}, {pipeline_mode = #tpu.pipeline_mode<synchronous>, transform_indices = @transform_5, window_bounds = array<i64: 76, 8>}, {pipeline_mode = #tpu.pipeline_mode<synchronous>, transform_indices = @transform_6, window_bounds = array<i64: 1, 8>}, {transform_indices = @transform_7, window_bounds = array<i64: 2, 8, 64>}]} {
    %cst = arith.constant 0.000000e+00 : f32
    %0 = vector.broadcast %cst : f32 to vector<2x1x18x4xf32>
    %cst_0 = arith.constant 0.000000e+00 : f32
    %1 = vector.broadcast %cst_0 : f32 to vector<2x18x1x4xf32>
    %c0 = arith.constant 0 : index
    %c0_1 = arith.constant 0 : index
    %c0_2 = arith.constant 0 : index
    %c0_3 = arith.constant 0 : index
    %2 = vector.load %arg9[%c0, %c0_1, %c0_2, %c0_3] : memref<2x18x18x4xf32, #tpu.memory_space<vmem>>, vector<2x1x18x4xf32>
    tpu.vector_store %arg9[%c0, %c0_1, %c0_2, %c0_3], %0 {strides = array<i32>} : memref<2x18x18x4xf32, #tpu.memory_space<vmem>>, vector<2x1x18x4xf32>,
    %c0_4 = arith.constant 0 : index
    %c17 = arith.constant 17 : index
    %c0_5 = arith.constant 0 : index
    %c0_6 = arith.constant 0 : index
    %3 = vector.load %arg9[%c0_4, %c17, %c0_5, %c0_6] : memref<2x18x18x4xf32, #tpu.memory_space<vmem>>, vector<2x1x18x4xf32>
    tpu.vector_store %arg9[%c0_4, %c17, %c0_5, %c0_6], %0 {strides = array<i32>} : memref<2x18x18x4xf32, #tpu.memory_space<vmem>>, vector<2x1x18x4xf32>,
    %c0_7 = arith.constant 0 : index
    %c0_8 = arith.constant 0 : index
    %c0_9 = arith.constant 0 : index
    %c0_10 = arith.constant 0 : index
    %4 = vector.load %arg9[%c0_7, %c0_8, %c0_9, %c0_10] : memref<2x18x18x4xf32, #tpu.memory_space<vmem>>, vector<2x18x1x4xf32>
    tpu.vector_store %arg9[%c0_7, %c0_8, %c0_9, %c0_10], %1 {strides = array<i32>} : memref<2x18x18x4xf32, #tpu.memory_space<vmem>>, vector<2x18x1x4xf32>,
    %c0_11 = arith.constant 0 : index
    %c0_12 = arith.constant 0 : index
    %c17_13 = arith.constant 17 : index
    %c0_14 = arith.constant 0 : index
    %5 = vector.load %arg9[%c0_11, %c0_12, %c17_13, %c0_14] : memref<2x18x18x4xf32, #tpu.memory_space<vmem>>, vector<2x18x1x4xf32>
    tpu.vector_store %arg9[%c0_11, %c0_12, %c17_13, %c0_14], %1 {strides = array<i32>} : memref<2x18x18x4xf32, #tpu.memory_space<vmem>>, vector<2x18x1x4xf32>,
    %cst_15 = arith.constant 0.000000e+00 : f32
    %6 = vector.broadcast %cst_15 : f32 to vector<2x1x18x8xf32>
    %cst_16 = arith.constant 0.000000e+00 : f32
    %7 = vector.broadcast %cst_16 : f32 to vector<2x18x1x8xf32>
    %c0_17 = arith.constant 0 : index
    %c0_18 = arith.constant 0 : index
    %c0_19 = arith.constant 0 : index
    %c0_20 = arith.constant 0 : index
    %8 = vector.load %arg10[%c0_17, %c0_18, %c0_19, %c0_20] : memref<2x18x18x8xf32, #tpu.memory_space<vmem>>, vector<2x1x18x8xf32>
    tpu.vector_store %arg10[%c0_17, %c0_18, %c0_19, %c0_20], %6 {strides = array<i32>} : memref<2x18x18x8xf32, #tpu.memory_space<vmem>>, vector<2x1x18x8xf32>,
    %c0_21 = arith.constant 0 : index
    %c17_22 = arith.constant 17 : index
    %c0_23 = arith.constant 0 : index
    %c0_24 = arith.constant 0 : index
    %9 = vector.load %arg10[%c0_21, %c17_22, %c0_23, %c0_24] : memref<2x18x18x8xf32, #tpu.memory_space<vmem>>, vector<2x1x18x8xf32>
    tpu.vector_store %arg10[%c0_21, %c17_22, %c0_23, %c0_24], %6 {strides = array<i32>} : memref<2x18x18x8xf32, #tpu.memory_space<vmem>>, vector<2x1x18x8xf32>,
    %c0_25 = arith.constant 0 : index
    %c0_26 = arith.constant 0 : index
    %c0_27 = arith.constant 0 : index
    %c0_28 = arith.constant 0 : index
    %10 = vector.load %arg10[%c0_25, %c0_26, %c0_27, %c0_28] : memref<2x18x18x8xf32, #tpu.memory_space<vmem>>, vector<2x18x1x8xf32>
    tpu.vector_store %arg10[%c0_25, %c0_26, %c0_27, %c0_28], %7 {strides = array<i32>} : memref<2x18x18x8xf32, #tpu.memory_space<vmem>>, vector<2x18x1x8xf32>,
    %c0_29 = arith.constant 0 : index
    %c0_30 = arith.constant 0 : index
    %c17_31 = arith.constant 17 : index
    %c0_32 = arith.constant 0 : index
    %11 = vector.load %arg10[%c0_29, %c0_30, %c17_31, %c0_32] : memref<2x18x18x8xf32, #tpu.memory_space<vmem>>, vector<2x18x1x8xf32>
    tpu.vector_store %arg10[%c0_29, %c0_30, %c17_31, %c0_32], %7 {strides = array<i32>} : memref<2x18x18x8xf32, #tpu.memory_space<vmem>>, vector<2x18x1x8xf32>,
    %c0_33 = arith.constant 0 : index
    %c0_34 = arith.constant 0 : index
    %c0_35 = arith.constant 0 : index
    %c0_36 = arith.constant 0 : index
    %12 = vector.load %arg1[%c0_33, %c0_34, %c0_35, %c0_36] : memref<2x16x16x4xf32, #tpu.memory_space<vmem>>, vector<2x16x16x4xf32>
    %c0_37 = arith.constant 0 : index
    %c0_38 = arith.constant 0 : index
    %c0_39 = arith.constant 0 : index
    %13 = vector.load %arg2[%c0_37, %c0_38, %c0_39] : memref<1x1x4xf32, #tpu.memory_space<vmem>>, vector<1x1x4xf32>
    %14 = vector.shape_cast %13 : vector<1x1x4xf32> to vector<1x1x1x4xf32>
    %15 = vector.broadcast %14 : vector<1x1x1x4xf32> to vector<2x16x16x4xf32>
    %16 = arith.mulf %12, %15 : vector<2x16x16x4xf32>
    %c0_40 = arith.constant 0 : index
    %c0_41 = arith.constant 0 : index
    %c0_42 = arith.constant 0 : index
    %17 = vector.load %arg3[%c0_40, %c0_41, %c0_42] : memref<1x1x4xf32, #tpu.memory_space<vmem>>, vector<1x1x4xf32>
    %18 = vector.shape_cast %17 : vector<1x1x4xf32> to vector<1x1x1x4xf32>
    %19 = vector.broadcast %18 : vector<1x1x1x4xf32> to vector<2x16x16x4xf32>
    %20 = arith.addf %16, %19 : vector<2x16x16x4xf32>
    %c0_43 = arith.constant 0 : index
    %c1 = arith.constant 1 : index
    %c1_44 = arith.constant 1 : index
    %c0_45 = arith.constant 0 : index
    %21 = vector.load %arg9[%c0_43, %c1, %c1_44, %c0_45] : memref<2x18x18x4xf32, #tpu.memory_space<vmem>>, vector<2x16x16x4xf32>
    tpu.vector_store %arg9[%c0_43, %c1, %c1_44, %c0_45], %20 {strides = array<i32>} : memref<2x18x18x4xf32, #tpu.memory_space<vmem>>, vector<2x16x16x4xf32>,
    %c0_46 = arith.constant 0 : index
    %c0_47 = arith.constant 0 : index
    %c0_48 = arith.constant 0 : index
    %c0_49 = arith.constant 0 : index
    %22 = vector.load %arg9[%c0_46, %c0_47, %c0_48, %c0_49] : memref<2x18x18x4xf32, #tpu.memory_space<vmem>>, vector<2x16x16x4xf32>
    %23 = vector.shape_cast %22 : vector<2x16x16x4xf32> to vector<512x4xf32>
    %24 = arith.truncf %23 : vector<512x4xf32> to vector<512x4xbf16>
    %c0_50 = arith.constant 0 : index
    %c0_51 = arith.constant 0 : index
    %25 = vector.load %arg11[%c0_50, %c0_51] : memref<512x36xbf16, #tpu.memory_space<vmem>>, vector<512x4xbf16>
    tpu.vector_store %arg11[%c0_50, %c0_51], %24 {strides = array<i32>} : memref<512x36xbf16, #tpu.memory_space<vmem>>, vector<512x4xbf16>,
    %c0_52 = arith.constant 0 : index
    %c0_53 = arith.constant 0 : index
    %c1_54 = arith.constant 1 : index
    %c0_55 = arith.constant 0 : index
    %26 = vector.load %arg9[%c0_52, %c0_53, %c1_54, %c0_55] : memref<2x18x18x4xf32, #tpu.memory_space<vmem>>, vector<2x16x16x4xf32>
    %27 = vector.shape_cast %26 : vector<2x16x16x4xf32> to vector<512x4xf32>
    %28 = arith.truncf %27 : vector<512x4xf32> to vector<512x4xbf16>
    %c0_56 = arith.constant 0 : index
    %c4 = arith.constant 4 : index
    %29 = vector.load %arg11[%c0_56, %c4] : memref<512x36xbf16, #tpu.memory_space<vmem>>, vector<512x4xbf16>
    tpu.vector_store %arg11[%c0_56, %c4], %28 {strides = array<i32>} : memref<512x36xbf16, #tpu.memory_space<vmem>>, vector<512x4xbf16>,
    %c0_57 = arith.constant 0 : index
    %c0_58 = arith.constant 0 : index
    %c2 = arith.constant 2 : index
    %c0_59 = arith.constant 0 : index
    %30 = vector.load %arg9[%c0_57, %c0_58, %c2, %c0_59] : memref<2x18x18x4xf32, #tpu.memory_space<vmem>>, vector<2x16x16x4xf32>
    %31 = vector.shape_cast %30 : vector<2x16x16x4xf32> to vector<512x4xf32>
    %32 = arith.truncf %31 : vector<512x4xf32> to vector<512x4xbf16>
    %c0_60 = arith.constant 0 : index
    %c8 = arith.constant 8 : index
    %33 = vector.load %arg11[%c0_60, %c8] : memref<512x36xbf16, #tpu.memory_space<vmem>>, vector<512x4xbf16>
    tpu.vector_store %arg11[%c0_60, %c8], %32 {strides = array<i32>} : memref<512x36xbf16, #tpu.memory_space<vmem>>, vector<512x4xbf16>,
    %c0_61 = arith.constant 0 : index
    %c1_62 = arith.constant 1 : index
    %c0_63 = arith.constant 0 : index
    %c0_64 = arith.constant 0 : index
    %34 = vector.load %arg9[%c0_61, %c1_62, %c0_63, %c0_64] : memref<2x18x18x4xf32, #tpu.memory_space<vmem>>, vector<2x16x16x4xf32>
    %35 = vector.shape_cast %34 : vector<2x16x16x4xf32> to vector<512x4xf32>
    %36 = arith.truncf %35 : vector<512x4xf32> to vector<512x4xbf16>
    %c0_65 = arith.constant 0 : index
    %c12 = arith.constant 12 : index
    %37 = vector.load %arg11[%c0_65, %c12] : memref<512x36xbf16, #tpu.memory_space<vmem>>, vector<512x4xbf16>
    tpu.vector_store %arg11[%c0_65, %c12], %36 {strides = array<i32>} : memref<512x36xbf16, #tpu.memory_space<vmem>>, vector<512x4xbf16>,
    %c0_66 = arith.constant 0 : index
    %c1_67 = arith.constant 1 : index
    %c1_68 = arith.constant 1 : index
    %c0_69 = arith.constant 0 : index
    %38 = vector.load %arg9[%c0_66, %c1_67, %c1_68, %c0_69] : memref<2x18x18x4xf32, #tpu.memory_space<vmem>>, vector<2x16x16x4xf32>
    %39 = vector.shape_cast %38 : vector<2x16x16x4xf32> to vector<512x4xf32>
    %40 = arith.truncf %39 : vector<512x4xf32> to vector<512x4xbf16>
    %c0_70 = arith.constant 0 : index
    %c16 = arith.constant 16 : index
    %41 = vector.load %arg11[%c0_70, %c16] : memref<512x36xbf16, #tpu.memory_space<vmem>>, vector<512x4xbf16>
    tpu.vector_store %arg11[%c0_70, %c16], %40 {strides = array<i32>} : memref<512x36xbf16, #tpu.memory_space<vmem>>, vector<512x4xbf16>,
    %c0_71 = arith.constant 0 : index
    %c1_72 = arith.constant 1 : index
    %c2_73 = arith.constant 2 : index
    %c0_74 = arith.constant 0 : index
    %42 = vector.load %arg9[%c0_71, %c1_72, %c2_73, %c0_74] : memref<2x18x18x4xf32, #tpu.memory_space<vmem>>, vector<2x16x16x4xf32>
    %43 = vector.shape_cast %42 : vector<2x16x16x4xf32> to vector<512x4xf32>
    %44 = arith.truncf %43 : vector<512x4xf32> to vector<512x4xbf16>
    %c0_75 = arith.constant 0 : index
    %c20 = arith.constant 20 : index
    %45 = vector.load %arg11[%c0_75, %c20] : memref<512x36xbf16, #tpu.memory_space<vmem>>, vector<512x4xbf16>
    tpu.vector_store %arg11[%c0_75, %c20], %44 {strides = array<i32>} : memref<512x36xbf16, #tpu.memory_space<vmem>>, vector<512x4xbf16>,
    %c0_76 = arith.constant 0 : index
    %c2_77 = arith.constant 2 : index
    %c0_78 = arith.constant 0 : index
    %c0_79 = arith.constant 0 : index
    %46 = vector.load %arg9[%c0_76, %c2_77, %c0_78, %c0_79] : memref<2x18x18x4xf32, #tpu.memory_space<vmem>>, vector<2x16x16x4xf32>
    %47 = vector.shape_cast %46 : vector<2x16x16x4xf32> to vector<512x4xf32>
    %48 = arith.truncf %47 : vector<512x4xf32> to vector<512x4xbf16>
    %c0_80 = arith.constant 0 : index
    %c24 = arith.constant 24 : index
    %49 = vector.load %arg11[%c0_80, %c24] : memref<512x36xbf16, #tpu.memory_space<vmem>>, vector<512x4xbf16>
    tpu.vector_store %arg11[%c0_80, %c24], %48 {strides = array<i32>} : memref<512x36xbf16, #tpu.memory_space<vmem>>, vector<512x4xbf16>,
    %c0_81 = arith.constant 0 : index
    %c2_82 = arith.constant 2 : index
    %c1_83 = arith.constant 1 : index
    %c0_84 = arith.constant 0 : index
    %50 = vector.load %arg9[%c0_81, %c2_82, %c1_83, %c0_84] : memref<2x18x18x4xf32, #tpu.memory_space<vmem>>, vector<2x16x16x4xf32>
    %51 = vector.shape_cast %50 : vector<2x16x16x4xf32> to vector<512x4xf32>
    %52 = arith.truncf %51 : vector<512x4xf32> to vector<512x4xbf16>
    %c0_85 = arith.constant 0 : index
    %c28 = arith.constant 28 : index
    %53 = vector.load %arg11[%c0_85, %c28] : memref<512x36xbf16, #tpu.memory_space<vmem>>, vector<512x4xbf16>
    tpu.vector_store %arg11[%c0_85, %c28], %52 {strides = array<i32>} : memref<512x36xbf16, #tpu.memory_space<vmem>>, vector<512x4xbf16>,
    %c0_86 = arith.constant 0 : index
    %c2_87 = arith.constant 2 : index
    %c2_88 = arith.constant 2 : index
    %c0_89 = arith.constant 0 : index
    %54 = vector.load %arg9[%c0_86, %c2_87, %c2_88, %c0_89] : memref<2x18x18x4xf32, #tpu.memory_space<vmem>>, vector<2x16x16x4xf32>
    %55 = vector.shape_cast %54 : vector<2x16x16x4xf32> to vector<512x4xf32>
    %56 = arith.truncf %55 : vector<512x4xf32> to vector<512x4xbf16>
    %c0_90 = arith.constant 0 : index
    %c32 = arith.constant 32 : index
    %57 = vector.load %arg11[%c0_90, %c32] : memref<512x36xbf16, #tpu.memory_space<vmem>>, vector<512x4xbf16>
    tpu.vector_store %arg11[%c0_90, %c32], %56 {strides = array<i32>} : memref<512x36xbf16, #tpu.memory_space<vmem>>, vector<512x4xbf16>,
    %c0_91 = arith.constant 0 : index
    %c0_92 = arith.constant 0 : index
    %58 = vector.load %arg11[%c0_91, %c0_92] : memref<512x36xbf16, #tpu.memory_space<vmem>>, vector<512x36xbf16>
    %c0_93 = arith.constant 0 : index
    %c0_94 = arith.constant 0 : index
    %59 = vector.load %arg4[%c0_93, %c0_94] : memref<36x8xbf16, #tpu.memory_space<vmem>>, vector<36x8xbf16>
    %cst_95 = arith.constant dense<0.000000e+00> : vector<512x8xf32>
    %60 = tpu.matmul %58, %59, %cst_95 {dimension_numbers = #tpu.dot_dimension_numbers<[1], [0], [0], [1], [0, 0, 1, 1], [], []>} : vector<512x36xbf16>, vector<36x8xbf16>, vector<512x8xf32> -> vector<512x8xf32>
    %cst_96 = arith.constant 0.000000e+00 : f32
    %61 = vector.broadcast %cst_96 : f32 to vector<512x8xf32>
    %62 = arith.cmpf oge, %60, %61 : vector<512x8xf32>
    %c0_97 = arith.constant 0 : index
    %c0_98 = arith.constant 0 : index
    %63 = vector.load %arg5[%c0_97, %c0_98] : memref<1x8xf32, #tpu.memory_space<vmem>>, vector<1x8xf32>
    %64 = vector.broadcast %63 : vector<1x8xf32> to vector<512x8xf32>
    %65 = arith.mulf %64, %60 : vector<512x8xf32>
    %66 = arith.select %62, %60, %65 : vector<512x8xi1>, vector<512x8xf32>
    %67 = vector.shape_cast %66 : vector<512x8xf32> to vector<2x16x16x8xf32>
    %c0_99 = arith.constant 0 : index
    %c1_100 = arith.constant 1 : index
    %c1_101 = arith.constant 1 : index
    %c0_102 = arith.constant 0 : index
    %68 = vector.load %arg10[%c0_99, %c1_100, %c1_101, %c0_102] : memref<2x18x18x8xf32, #tpu.memory_space<vmem>>, vector<2x16x16x8xf32>
    tpu.vector_store %arg10[%c0_99, %c1_100, %c1_101, %c0_102], %67 {strides = array<i32>} : memref<2x18x18x8xf32, #tpu.memory_space<vmem>>, vector<2x16x16x8xf32>,
    %c0_103 = arith.constant 0 : index
    %c0_104 = arith.constant 0 : index
    %c0_105 = arith.constant 0 : index
    %c0_106 = arith.constant 0 : index
    %69 = tpu.strided_load %arg10[%c0_103, %c0_104, %c0_105, %c0_106] {strides = array<i32: 1, 2, 2, 1>} : memref<2x18x18x8xf32, #tpu.memory_space<vmem>>, vector<2x8x8x8xf32>
    %70 = vector.shape_cast %69 : vector<2x8x8x8xf32> to vector<128x8xf32>
    %71 = arith.truncf %70 : vector<128x8xf32> to vector<128x8xbf16>
    %c0_107 = arith.constant 0 : index
    %c0_108 = arith.constant 0 : index
    %72 = vector.load %arg12[%c0_107, %c0_108] : memref<128x76xbf16, #tpu.memory_space<vmem>>, vector<128x8xbf16>
    tpu.vector_store %arg12[%c0_107, %c0_108], %71 {strides = array<i32>} : memref<128x76xbf16, #tpu.memory_space<vmem>>, vector<128x8xbf16>,
    %c0_109 = arith.constant 0 : index
    %c0_110 = arith.constant 0 : index
    %c1_111 = arith.constant 1 : index
    %c0_112 = arith.constant 0 : index
    %73 = tpu.strided_load %arg10[%c0_109, %c0_110, %c1_111, %c0_112] {strides = array<i32: 1, 2, 2, 1>} : memref<2x18x18x8xf32, #tpu.memory_space<vmem>>, vector<2x8x8x8xf32>
    %74 = vector.shape_cast %73 : vector<2x8x8x8xf32> to vector<128x8xf32>
    %75 = arith.truncf %74 : vector<128x8xf32> to vector<128x8xbf16>
    %c0_113 = arith.constant 0 : index
    %c8_114 = arith.constant 8 : index
    %76 = vector.load %arg12[%c0_113, %c8_114] : memref<128x76xbf16, #tpu.memory_space<vmem>>, vector<128x8xbf16>
    tpu.vector_store %arg12[%c0_113, %c8_114], %75 {strides = array<i32>} : memref<128x76xbf16, #tpu.memory_space<vmem>>, vector<128x8xbf16>,
    %c0_115 = arith.constant 0 : index
    %c0_116 = arith.constant 0 : index
    %c2_117 = arith.constant 2 : index
    %c0_118 = arith.constant 0 : index
    %77 = tpu.strided_load %arg10[%c0_115, %c0_116, %c2_117, %c0_118] {strides = array<i32: 1, 2, 2, 1>} : memref<2x18x18x8xf32, #tpu.memory_space<vmem>>, vector<2x8x8x8xf32>
    %78 = vector.shape_cast %77 : vector<2x8x8x8xf32> to vector<128x8xf32>
    %79 = arith.truncf %78 : vector<128x8xf32> to vector<128x8xbf16>
    %c0_119 = arith.constant 0 : index
    %c16_120 = arith.constant 16 : index
    %80 = vector.load %arg12[%c0_119, %c16_120] : memref<128x76xbf16, #tpu.memory_space<vmem>>, vector<128x8xbf16>
    tpu.vector_store %arg12[%c0_119, %c16_120], %79 {strides = array<i32>} : memref<128x76xbf16, #tpu.memory_space<vmem>>, vector<128x8xbf16>,
    %c0_121 = arith.constant 0 : index
    %c1_122 = arith.constant 1 : index
    %c0_123 = arith.constant 0 : index
    %c0_124 = arith.constant 0 : index
    %81 = tpu.strided_load %arg10[%c0_121, %c1_122, %c0_123, %c0_124] {strides = array<i32: 1, 2, 2, 1>} : memref<2x18x18x8xf32, #tpu.memory_space<vmem>>, vector<2x8x8x8xf32>
    %82 = vector.shape_cast %81 : vector<2x8x8x8xf32> to vector<128x8xf32>
    %83 = arith.truncf %82 : vector<128x8xf32> to vector<128x8xbf16>
    %c0_125 = arith.constant 0 : index
    %c24_126 = arith.constant 24 : index
    %84 = vector.load %arg12[%c0_125, %c24_126] : memref<128x76xbf16, #tpu.memory_space<vmem>>, vector<128x8xbf16>
    tpu.vector_store %arg12[%c0_125, %c24_126], %83 {strides = array<i32>} : memref<128x76xbf16, #tpu.memory_space<vmem>>, vector<128x8xbf16>,
    %c0_127 = arith.constant 0 : index
    %c1_128 = arith.constant 1 : index
    %c1_129 = arith.constant 1 : index
    %c0_130 = arith.constant 0 : index
    %85 = tpu.strided_load %arg10[%c0_127, %c1_128, %c1_129, %c0_130] {strides = array<i32: 1, 2, 2, 1>} : memref<2x18x18x8xf32, #tpu.memory_space<vmem>>, vector<2x8x8x8xf32>
    %86 = vector.shape_cast %85 : vector<2x8x8x8xf32> to vector<128x8xf32>
    %87 = arith.truncf %86 : vector<128x8xf32> to vector<128x8xbf16>
    %c0_131 = arith.constant 0 : index
    %c32_132 = arith.constant 32 : index
    %88 = vector.load %arg12[%c0_131, %c32_132] : memref<128x76xbf16, #tpu.memory_space<vmem>>, vector<128x8xbf16>
    tpu.vector_store %arg12[%c0_131, %c32_132], %87 {strides = array<i32>} : memref<128x76xbf16, #tpu.memory_space<vmem>>, vector<128x8xbf16>,
    %c0_133 = arith.constant 0 : index
    %c1_134 = arith.constant 1 : index
    %c2_135 = arith.constant 2 : index
    %c0_136 = arith.constant 0 : index
    %89 = tpu.strided_load %arg10[%c0_133, %c1_134, %c2_135, %c0_136] {strides = array<i32: 1, 2, 2, 1>} : memref<2x18x18x8xf32, #tpu.memory_space<vmem>>, vector<2x8x8x8xf32>
    %90 = vector.shape_cast %89 : vector<2x8x8x8xf32> to vector<128x8xf32>
    %91 = arith.truncf %90 : vector<128x8xf32> to vector<128x8xbf16>
    %c0_137 = arith.constant 0 : index
    %c40 = arith.constant 40 : index
    %92 = vector.load %arg12[%c0_137, %c40] : memref<128x76xbf16, #tpu.memory_space<vmem>>, vector<128x8xbf16>
    tpu.vector_store %arg12[%c0_137, %c40], %91 {strides = array<i32>} : memref<128x76xbf16, #tpu.memory_space<vmem>>, vector<128x8xbf16>,
    %c0_138 = arith.constant 0 : index
    %c2_139 = arith.constant 2 : index
    %c0_140 = arith.constant 0 : index
    %c0_141 = arith.constant 0 : index
    %93 = tpu.strided_load %arg10[%c0_138, %c2_139, %c0_140, %c0_141] {strides = array<i32: 1, 2, 2, 1>} : memref<2x18x18x8xf32, #tpu.memory_space<vmem>>, vector<2x8x8x8xf32>
    %94 = vector.shape_cast %93 : vector<2x8x8x8xf32> to vector<128x8xf32>
    %95 = arith.truncf %94 : vector<128x8xf32> to vector<128x8xbf16>
    %c0_142 = arith.constant 0 : index
    %c48 = arith.constant 48 : index
    %96 = vector.load %arg12[%c0_142, %c48] : memref<128x76xbf16, #tpu.memory_space<vmem>>, vector<128x8xbf16>
    tpu.vector_store %arg12[%c0_142, %c48], %95 {strides = array<i32>} : memref<128x76xbf16, #tpu.memory_space<vmem>>, vector<128x8xbf16>,
    %c0_143 = arith.constant 0 : index
    %c2_144 = arith.constant 2 : index
    %c1_145 = arith.constant 1 : index
    %c0_146 = arith.constant 0 : index
    %97 = tpu.strided_load %arg10[%c0_143, %c2_144, %c1_145, %c0_146] {strides = array<i32: 1, 2, 2, 1>} : memref<2x18x18x8xf32, #tpu.memory_space<vmem>>, vector<2x8x8x8xf32>
    %98 = vector.shape_cast %97 : vector<2x8x8x8xf32> to vector<128x8xf32>
    %99 = arith.truncf %98 : vector<128x8xf32> to vector<128x8xbf16>
    %c0_147 = arith.constant 0 : index
    %c56 = arith.constant 56 : index
    %100 = vector.load %arg12[%c0_147, %c56] : memref<128x76xbf16, #tpu.memory_space<vmem>>, vector<128x8xbf16>
    tpu.vector_store %arg12[%c0_147, %c56], %99 {strides = array<i32>} : memref<128x76xbf16, #tpu.memory_space<vmem>>, vector<128x8xbf16>,
    %c0_148 = arith.constant 0 : index
    %c2_149 = arith.constant 2 : index
    %c2_150 = arith.constant 2 : index
    %c0_151 = arith.constant 0 : index
    %101 = tpu.strided_load %arg10[%c0_148, %c2_149, %c2_150, %c0_151] {strides = array<i32: 1, 2, 2, 1>} : memref<2x18x18x8xf32, #tpu.memory_space<vmem>>, vector<2x8x8x8xf32>
    %102 = vector.shape_cast %101 : vector<2x8x8x8xf32> to vector<128x8xf32>
    %103 = arith.truncf %102 : vector<128x8xf32> to vector<128x8xbf16>
    %c0_152 = arith.constant 0 : index
    %c64 = arith.constant 64 : index
    %104 = vector.load %arg12[%c0_152, %c64] : memref<128x76xbf16, #tpu.memory_space<vmem>>, vector<128x8xbf16>
    tpu.vector_store %arg12[%c0_152, %c64], %103 {strides = array<i32>} : memref<128x76xbf16, #tpu.memory_space<vmem>>, vector<128x8xbf16>,
    %c0_153 = arith.constant 0 : index
    %c0_154 = arith.constant 0 : index
    %c0_155 = arith.constant 0 : index
    %c0_156 = arith.constant 0 : index
    %105 = tpu.strided_load %arg1[%c0_153, %c0_154, %c0_155, %c0_156] {strides = array<i32: 1, 2, 2, 1>} : memref<2x16x16x4xf32, #tpu.memory_space<vmem>>, vector<2x8x8x4xf32>
    %106 = vector.shape_cast %105 : vector<2x8x8x4xf32> to vector<128x4xf32>
    %107 = arith.truncf %106 : vector<128x4xf32> to vector<128x4xbf16>
    %c0_157 = arith.constant 0 : index
    %c72 = arith.constant 72 : index
    %108 = vector.load %arg12[%c0_157, %c72] : memref<128x76xbf16, #tpu.memory_space<vmem>>, vector<128x4xbf16>
    tpu.vector_store %arg12[%c0_157, %c72], %107 {strides = array<i32>} : memref<128x76xbf16, #tpu.memory_space<vmem>>, vector<128x4xbf16>,
    %c0_158 = arith.constant 0 : index
    %c0_159 = arith.constant 0 : index
    %109 = vector.load %arg12[%c0_158, %c0_159] : memref<128x76xbf16, #tpu.memory_space<vmem>>, vector<128x76xbf16>
    %c0_160 = arith.constant 0 : index
    %c0_161 = arith.constant 0 : index
    %110 = vector.load %arg6[%c0_160, %c0_161] : memref<76x8xbf16, #tpu.memory_space<vmem>>, vector<76x8xbf16>
    %cst_162 = arith.constant dense<0.000000e+00> : vector<128x8xf32>
    %111 = tpu.matmul %109, %110, %cst_162 {dimension_numbers = #tpu.dot_dimension_numbers<[1], [0], [0], [1], [0, 0, 1, 1], [], []>} : vector<128x76xbf16>, vector<76x8xbf16>, vector<128x8xf32> -> vector<128x8xf32>
    %c0_163 = arith.constant 0 : index
    %c0_164 = arith.constant 0 : index
    %112 = vector.load %arg7[%c0_163, %c0_164] : memref<1x8xf32, #tpu.memory_space<vmem>>, vector<1x8xf32>
    %113 = vector.broadcast %112 : vector<1x8xf32> to vector<128x8xf32>
    %114 = arith.addf %111, %113 : vector<128x8xf32>
    %115 = vector.shape_cast %114 : vector<128x8xf32> to vector<2x64x8xf32>
    %116 = vector.extract_strided_slice %115 {offsets = [0, 0, 0], sizes = [1, 64, 8], strides = [1, 1, 1]} : vector<2x64x8xf32> to vector<1x64x8xf32>
    %117 = vector.shape_cast %116 : vector<1x64x8xf32> to vector<64x8xf32>
    %118 = tpu.transpose %117, [1, 0] : vector<64x8xf32> -> vector<8x64xf32>
    %c0_165 = arith.constant 0 : index
    %c0_166 = arith.constant 0 : index
    %c0_167 = arith.constant 0 : index
    %119 = vector.load %arg8[%c0_165, %c0_166, %c0_167] : memref<2x8x64xf32, #tpu.memory_space<vmem>>, vector<1x8x64xf32>
    %120 = vector.shape_cast %119 : vector<1x8x64xf32> to vector<8x64xf32>
    %121 = vector.shape_cast %118 : vector<8x64xf32> to vector<1x8x64xf32>
    tpu.vector_store %arg8[%c0_165, %c0_166, %c0_167], %121 {strides = array<i32>} : memref<2x8x64xf32, #tpu.memory_space<vmem>>, vector<1x8x64xf32>,
    %122 = vector.extract_strided_slice %115 {offsets = [1, 0, 0], sizes = [1, 64, 8], strides = [1, 1, 1]} : vector<2x64x8xf32> to vector<1x64x8xf32>
    %123 = vector.shape_cast %122 : vector<1x64x8xf32> to vector<64x8xf32>
    %124 = tpu.transpose %123, [1, 0] : vector<64x8xf32> -> vector<8x64xf32>
    %c1_168 = arith.constant 1 : index
    %c0_169 = arith.constant 0 : index
    %c0_170 = arith.constant 0 : index
    %125 = vector.load %arg8[%c1_168, %c0_169, %c0_170] : memref<2x8x64xf32, #tpu.memory_space<vmem>>, vector<1x8x64xf32>
    %126 = vector.shape_cast %125 : vector<1x8x64xf32> to vector<8x64xf32>
    %127 = vector.shape_cast %124 : vector<8x64xf32> to vector<1x8x64xf32>
    tpu.vector_store %arg8[%c1_168, %c0_169, %c0_170], %127 {strides = array<i32>} : memref<2x8x64xf32, #tpu.memory_space<vmem>>, vector<1x8x64xf32>,
    return
  }
  func.func @transform_0(%arg0: i32) -> (i32, i32, i32, i32) {
    %c0_i32 = arith.constant 0 : i32
    %c0_i32_0 = arith.constant 0 : i32
    %c0_i32_1 = arith.constant 0 : i32
    %c0_i32_2 = arith.constant 0 : i32
    return %arg0, %c0_i32, %c0_i32_0, %c0_i32_1 : i32, i32, i32, i32
  }
  func.func @transform_1(%arg0: i32) -> (i32, i32, i32) {
    %c0_i32 = arith.constant 0 : i32
    %c0_i32_0 = arith.constant 0 : i32
    %c0_i32_1 = arith.constant 0 : i32
    %c0_i32_2 = arith.constant 0 : i32
    return %c0_i32, %c0_i32_0, %c0_i32_1 : i32, i32, i32
  }
  func.func @transform_2(%arg0: i32) -> (i32, i32, i32) {
    %c0_i32 = arith.constant 0 : i32
    %c0_i32_0 = arith.constant 0 : i32
    %c0_i32_1 = arith.constant 0 : i32
    %c0_i32_2 = arith.constant 0 : i32
    return %c0_i32, %c0_i32_0, %c0_i32_1 : i32, i32, i32
  }
  func.func @transform_3(%arg0: i32) -> (i32, i32) {
    %c0_i32 = arith.constant 0 : i32
    %c0_i32_0 = arith.constant 0 : i32
    %c0_i32_1 = arith.constant 0 : i32
    return %c0_i32, %c0_i32_0 : i32, i32
  }
  func.func @transform_4(%arg0: i32) -> (i32, i32) {
    %c0_i32 = arith.constant 0 : i32
    %c0_i32_0 = arith.constant 0 : i32
    %c0_i32_1 = arith.constant 0 : i32
    return %c0_i32, %c0_i32_0 : i32, i32
  }
  func.func @transform_5(%arg0: i32) -> (i32, i32) {
    %c0_i32 = arith.constant 0 : i32
    %c0_i32_0 = arith.constant 0 : i32
    %c0_i32_1 = arith.constant 0 : i32
    return %c0_i32, %c0_i32_0 : i32, i32
  }
  func.func @transform_6(%arg0: i32) -> (i32, i32) {
    %c0_i32 = arith.constant 0 : i32
    %c0_i32_0 = arith.constant 0 : i32
    %c0_i32_1 = arith.constant 0 : i32
    return %c0_i32, %c0_i32_0 : i32, i32
  }
  func.func @transform_7(%arg0: i32) -> (i32, i32, i32) {
    %c0_i32 = arith.constant 0 : i32
    %c0_i32_0 = arith.constant 0 : i32
    %c0_i32_1 = arith.constant 0 : i32
    return %arg0, %c0_i32, %c0_i32_0 : i32, i32, i32
  }
}

</mosaic_0001>

<llo_original>
// kernel: tpu_custom_call.1
$region0: #{tpu_custom_call.1}
  #allocation0 [shape = 'u32[]', space=smem, size = 0x4, offset = 0x4, fixed_abs, tag = 'smem constant byte address 0x4 - core index']
  #allocation1 [shape = 'u32[72,128]{1,0:T(1,128)}', space=vmem, size = 0x9000, scoped, tag = 'internal scratch']
  #allocation2 [shape = 'f32[2,18,18,4]{3,2,1,0:T(8,128)}', space=vmem, size = 0x6c000, scoped, tag = 'scratch operand']
  #allocation3 [shape = 'f32[2,18,18,8]{3,2,1,0:T(8,128)}', space=vmem, size = 0x6c000, scoped, tag = 'scratch operand']
  #allocation4 [shape = 'bf16[512,36]{1,0:T(8,128)(2,1)}', space=vmem, size = 0x20000, scoped, tag = 'scratch operand']
  #allocation5 [shape = 'bf16[128,76]{1,0:T(8,128)(2,1)}', space=vmem, size = 0x8000, scoped, tag = 'scratch operand']
  %s0 = inlined_call_operand.vmem [shape: f32[4,16,16,4], index: 0, kind: input, shape index: {}]
  %s1 = inlined_call_operand.vmem [shape: f32[1,1,4], index: 1, kind: input, shape index: {}]
  %s2 = inlined_call_operand.vmem [shape: f32[1,1,4], index: 2, kind: input, shape index: {}]
  %s3 = inlined_call_operand.vmem [shape: bf16[36,8], index: 3, kind: input, shape index: {}]
  %s4 = inlined_call_operand.vmem [shape: f32[1,8], index: 4, kind: input, shape index: {}]
  %s5 = inlined_call_operand.vmem [shape: bf16[76,8], index: 5, kind: input, shape index: {}]
  %s6 = inlined_call_operand.vmem [shape: f32[1,8], index: 6, kind: input, shape index: {}]
  %s7 = inlined_call_operand.hbm [shape: f32[4,8,64], index: 7, kind: output, shape index: {}]
  %s8 = sld [smem:[#allocation0]]
  $region61: #{tpu_custom_call.1} parent=0
    _
  %s10 = ssub.s32 1, %s8
  %s11 = scalar_select 0, %s10, %s8
  $region1: #{tpu_custom_call.1} parent=0
    #allocation6 [shape = 'u8[16384]{0}', space=vmem, size = 0x4000, scoped, tag = 'output window, operand 0']
    #allocation7 [shape = 's32[2]{0}', space=sflag, size = 0x8, scoped, tag = 'scoped memory for tpu_custom_call.1']
    %12 = vsyncpa [#allocation7], 0
    %s13 = scalar_lea.sflag [#allocation7], 1
    %14 = vsyncpa %s13, 0
    loop: start=0, step=1, limit=4
    $region2: #{tpu_custom_call.1} parent=1 // loop_pre_header
      _
    $region3: #{tpu_custom_call.1} parent=1 // loop_header
      %s16 = sphi 0, %s20
      %p17 = scmp.ge.s32.totalorder %s16, 4
      %s26 = sphi 0, %s28
      %s29 = sphi 0, %s26
      %s30 = sphi 0, %s29
      %s46 = sphi 0, %s30
      %s50 = sphi 0, %s50
      %s52 = sphi 0, %s50
      %s53 = sphi 0, %s52
      %s67 = sphi 0, %s53
      %s71 = sphi 0, %s71
      %s73 = sphi 0, %s71
      %s74 = sphi 0, %s73
      %s88 = sphi 0, %s74
      %s92 = sphi 0, %s92
      %s94 = sphi 0, %s92
      %s95 = sphi 0, %s94
      %s109 = sphi 0, %s95
      %s113 = sphi 0, %s113
      %s115 = sphi 0, %s113
      %s116 = sphi 0, %s115
      %s130 = sphi 0, %s116
      %s134 = sphi 0, %s134
      %s136 = sphi 0, %s134
      %s137 = sphi 0, %s136
      %s151 = sphi 0, %s137
      %s155 = sphi 0, %s155
      %s157 = sphi 0, %s155
      %s158 = sphi 0, %s157
      %s172 = sphi 0, %s158
      %s178 = sphi 0, %s180
      %s181 = sphi 0, %s178
      %s182 = sphi 0, %s181
      %s198 = sphi 0, %s182
    $region4: #{tpu_custom_call.1} parent=1 // loop_header_branch
      %19 = sbr.rel (%p17) target = $region8
    $region5: #{tpu_custom_call.1} parent=1 // loop_body
      %s21 = ssub.s32 %s16, 1
      %s22 = ssub.s32 %s16, 2
      %s23 = sadd.s32 %s16, 1
      %s24 = ssub.s32 %s16, %s23
      %p25 = scmp.eq.s32.totalorder %s24, 0
      %s27 = sadd.s32 %s26, 1
      %s28 = scalar_select %p25, %s26, %s27
      %p31 = pneg %p25
      %p32 = scmp.eq.s32.totalorder %s16, 1
      %p33 = por %p31, %p32
      %p34 = scmp.ne.s32.totalorder %s26, %s29
      %p35 = scmp.eq.s32.totalorder %s16, 0
      %p36 = por %p34, %p35
      %p37 = scmp.ne.s32.totalorder %s26, %s29
      %p38 = scmp.eq.s32.totalorder %s21, 1
      %p39 = por %p37, %p38
      %p40 = scmp.ne.s32.totalorder %s29, %s30
      %p41 = scmp.eq.s32.totalorder %s21, 0
      %p42 = por %p40, %p41
      %p43 = scmp.ne.s32.totalorder %s29, %s30
      %p44 = scmp.eq.s32.totalorder %s22, 1
      %p45 = por %p43, %p44
      %p47 = scmp.ne.s32.totalorder %s30, %s46
      %p48 = scmp.eq.s32.totalorder %s22, 0
      %p49 = por %p47, %p48
      %s51 = sadd.s32 %s50, 1
      %p54 = scmp.eq.s32.totalorder %s16, 1
      %p55 = scmp.ne.s32.totalorder %s50, %s52
      %p56 = scmp.eq.s32.totalorder %s16, 0
      %p57 = por %p55, %p56
      %p58 = scmp.ne.s32.totalorder %s50, %s52
      %p59 = scmp.eq.s32.totalorder %s21, 1
      %p60 = por %p58, %p59
      %p61 = scmp.ne.s32.totalorder %s52, %s53
      %p62 = scmp.eq.s32.totalorder %s21, 0
      %p63 = por %p61, %p62
      %p64 = scmp.ne.s32.totalorder %s52, %s53
      %p65 = scmp.eq.s32.totalorder %s22, 1
      %p66 = por %p64, %p65
      %p68 = scmp.ne.s32.totalorder %s53, %s67
      %p69 = scmp.eq.s32.totalorder %s22, 0
      %p70 = por %p68, %p69
      %s72 = sadd.s32 %s71, 1
      %p75 = scmp.eq.s32.totalorder %s16, 1
      %p76 = scmp.ne.s32.totalorder %s71, %s73
      %p77 = scmp.eq.s32.totalorder %s16, 0
      %p78 = por %p76, %p77
      %p79 = scmp.ne.s32.totalorder %s71, %s73
      %p80 = scmp.eq.s32.totalorder %s21, 1
      %p81 = por %p79, %p80
      %p82 = scmp.ne.s32.totalorder %s73, %s74
      %p83 = scmp.eq.s32.totalorder %s21, 0
      %p84 = por %p82, %p83
      %p85 = scmp.ne.s32.totalorder %s73, %s74
      %p86 = scmp.eq.s32.totalorder %s22, 1
      %p87 = por %p85, %p86
      %p89 = scmp.ne.s32.totalorder %s74, %s88
      %p90 = scmp.eq.s32.totalorder %s22, 0
      %p91 = por %p89, %p90
      %s93 = sadd.s32 %s92, 1
      %p96 = scmp.eq.s32.totalorder %s16, 1
      %p97 = scmp.ne.s32.totalorder %s92, %s94
      %p98 = scmp.eq.s32.totalorder %s16, 0
      %p99 = por %p97, %p98
      %p100 = scmp.ne.s32.totalorder %s92, %s94
      %p101 = scmp.eq.s32.totalorder %s21, 1
      %p102 = por %p100, %p101
      %p103 = scmp.ne.s32.totalorder %s94, %s95
      %p104 = scmp.eq.s32.totalorder %s21, 0
      %p105 = por %p103, %p104
      %p106 = scmp.ne.s32.totalorder %s94, %s95
      %p107 = scmp.eq.s32.totalorder %s22, 1
      %p108 = por %p106, %p107
      %p110 = scmp.ne.s32.totalorder %s95, %s109
      %p111 = scmp.eq.s32.totalorder %s22, 0
      %p112 = por %p110, %p111
      %s114 = sadd.s32 %s113, 1
      %p117 = scmp.eq.s32.totalorder %s16, 1
      %p118 = scmp.ne.s32.totalorder %s113, %s115
      %p119 = scmp.eq.s32.totalorder %s16, 0
      %p120 = por %p118, %p119
      %p121 = scmp.ne.s32.totalorder %s113, %s115
      %p122 = scmp.eq.s32.totalorder %s21, 1
      %p123 = por %p121, %p122
      %p124 = scmp.ne.s32.totalorder %s115, %s116
      %p125 = scmp.eq.s32.totalorder %s21, 0
      %p126 = por %p124, %p125
      %p127 = scmp.ne.s32.totalorder %s115, %s116
      %p128 = scmp.eq.s32.totalorder %s22, 1
      %p129 = por %p127, %p128
      %p131 = scmp.ne.s32.totalorder %s116, %s130
      %p132 = scmp.eq.s32.totalorder %s22, 0
      %p133 = por %p131, %p132
      %s135 = sadd.s32 %s134, 1
      %p138 = scmp.eq.s32.totalorder %s16, 1
      %p139 = scmp.ne.s32.totalorder %s134, %s136
      %p140 = scmp.eq.s32.totalorder %s16, 0
      %p141 = por %p139, %p140
      %p142 = scmp.ne.s32.totalorder %s134, %s136
      %p143 = scmp.eq.s32.totalorder %s21, 1
      %p144 = por %p142, %p143
      %p145 = scmp.ne.s32.totalorder %s136, %s137
      %p146 = scmp.eq.s32.totalorder %s21, 0
      %p147 = por %p145, %p146
      %p148 = scmp.ne.s32.totalorder %s136, %s137
      %p149 = scmp.eq.s32.totalorder %s22, 1
      %p150 = por %p148, %p149
      %p152 = scmp.ne.s32.totalorder %s137, %s151
      %p153 = scmp.eq.s32.totalorder %s22, 0
      %p154 = por %p152, %p153
      %s156 = sadd.s32 %s155, 1
      %p159 = scmp.eq.s32.totalorder %s16, 1
      %p160 = scmp.ne.s32.totalorder %s155, %s157
      %p161 = scmp.eq.s32.totalorder %s16, 0
      %p162 = por %p160, %p161
      %p163 = scmp.ne.s32.totalorder %s155, %s157
      %p164 = scmp.eq.s32.totalorder %s21, 1
      %p165 = por %p163, %p164
      %p166 = scmp.ne.s32.totalorder %s157, %s158
      %p167 = scmp.eq.s32.totalorder %s21, 0
      %p168 = por %p166, %p167
      %p169 = scmp.ne.s32.totalorder %s157, %s158
      %p170 = scmp.eq.s32.totalorder %s22, 1
      %p171 = por %p169, %p170
      %p173 = scmp.ne.s32.totalorder %s158, %s172
      %p174 = scmp.eq.s32.totalorder %s22, 0
      %p175 = por %p173, %p174
      %s176 = ssub.s32 %s16, %s23
      %p177 = scmp.eq.s32.totalorder %s176, 0
      %s179 = sadd.s32 %s178, 1
      %s180 = scalar_select %p177, %s178, %s179
      %p183 = pneg %p177
      %p184 = scmp.eq.s32.totalorder %s16, 1
      %p185 = por %p183, %p184
      %p186 = scmp.ne.s32.totalorder %s178, %s181
      %p187 = scmp.eq.s32.totalorder %s16, 0
      %p188 = por %p186, %p187
      %p189 = scmp.ne.s32.totalorder %s178, %s181
      %p190 = scmp.eq.s32.totalorder %s21, 1
      %p191 = por %p189, %p190
      %p192 = scmp.ne.s32.totalorder %s181, %s182
      %p193 = scmp.eq.s32.totalorder %s21, 0
      %p194 = por %p192, %p193
      %p195 = scmp.ne.s32.totalorder %s181, %s182
      %p196 = scmp.eq.s32.totalorder %s22, 1
      %p197 = por %p195, %p196
      %p199 = scmp.ne.s32.totalorder %s182, %s198
      %p200 = scmp.eq.s32.totalorder %s22, 0
      %p201 = por %p199, %p200
      %p202 = scmp.le.s32.totalorder 1, %s16
      %p203 = scmp.lt.s32.totalorder %s16, 3
      %p204 = pnand %p202, %p203
      %p205 = pneg %p204
      // Predicated region
      $region9: #{tpu_custom_call.1} parent=5 // pred_check
        _
      $region10: #{tpu_custom_call.1} parent=5 // pred_check_branch
        %207 = sbr.rel (%p204) target = $region12
      $region11: #{tpu_custom_call.1} parent=5 // pred_region
        %s208 = ssub.s32 %s16, 1
        // Predicated region
        $region13: #{tpu_custom_call.1} parent=11 // pred_check
          %p209 = pneg %p63
        $region14: #{tpu_custom_call.1} parent=11 // pred_check_branch
          %211 = sbr.rel (%p209) target = $region16
        $region15: #{tpu_custom_call.1} parent=11 // pred_region
          _
        $region16: #{tpu_custom_call.1} parent=11 // pred_fallthru
          _
        // Predicated region
        $region17: #{tpu_custom_call.1} parent=11 // pred_check
          %p212 = pneg %p84
        $region18: #{tpu_custom_call.1} parent=11 // pred_check_branch
          %214 = sbr.rel (%p212) target = $region20
        $region19: #{tpu_custom_call.1} parent=11 // pred_region
          _
        $region20: #{tpu_custom_call.1} parent=11 // pred_fallthru
          _
        // Predicated region
        $region21: #{tpu_custom_call.1} parent=11 // pred_check
          %p215 = pneg %p105
        $region22: #{tpu_custom_call.1} parent=11 // pred_check_branch
          %217 = sbr.rel (%p215) target = $region24
        $region23: #{tpu_custom_call.1} parent=11 // pred_region
          _
        $region24: #{tpu_custom_call.1} parent=11 // pred_fallthru
          _
        // Predicated region
        $region25: #{tpu_custom_call.1} parent=11 // pred_check
          %p218 = pneg %p126
        $region26: #{tpu_custom_call.1} parent=11 // pred_check_branch
          %220 = sbr.rel (%p218) target = $region28
        $region27: #{tpu_custom_call.1} parent=11 // pred_region
          _
        $region28: #{tpu_custom_call.1} parent=11 // pred_fallthru
          _
        // Predicated region
        $region29: #{tpu_custom_call.1} parent=11 // pred_check
          %p221 = pneg %p147
        $region30: #{tpu_custom_call.1} parent=11 // pred_check_branch
          %223 = sbr.rel (%p221) target = $region32
        $region31: #{tpu_custom_call.1} parent=11 // pred_region
          _
        $region32: #{tpu_custom_call.1} parent=11 // pred_fallthru
          _
        // Predicated region
        $region33: #{tpu_custom_call.1} parent=11 // pred_check
          %p224 = pneg %p168
        $region34: #{tpu_custom_call.1} parent=11 // pred_check_branch
          %226 = sbr.rel (%p224) target = $region36
        $region35: #{tpu_custom_call.1} parent=11 // pred_region
          _
        $region36: #{tpu_custom_call.1} parent=11 // pred_fallthru
          _
      $region12: #{tpu_custom_call.1} parent=5 // pred_fallthru
        _
      %p227 = scmp.lt.s32.totalorder %s16, 2
      // Predicated region
      $region37: #{tpu_custom_call.1} parent=5 // pred_check
        %p228 = pneg %p227
      $region38: #{tpu_custom_call.1} parent=5 // pred_check_branch
        %230 = sbr.rel (%p228) target = $region40
      $region39: #{tpu_custom_call.1} parent=5 // pred_region
        // Predicated region
        $region41: #{tpu_custom_call.1} parent=39 // pred_check
          %p231 = pneg %p36
        $region42: #{tpu_custom_call.1} parent=39 // pred_check_branch
          %233 = sbr.rel (%p231) target = $region44
        $region43: #{tpu_custom_call.1} parent=39 // pred_region
          %s234 = smul.u32 2, %s16
          %p235 = scmp.lt.s32.totalorder %s234, 3
          %s236 = scalar_select %p235, %s234, 3
          %s237 = smul.addr %s236, 32
          %s238 = smul.addr %s237, 8
          %s239 = scalar_lea.vmem %s0, %s238
          %s240 = smul.u32 2, %s16
        $region44: #{tpu_custom_call.1} parent=39 // pred_fallthru
          _
      $region40: #{tpu_custom_call.1} parent=5 // pred_fallthru
        _
      %p241 = scmp.le.s32.totalorder 1, %s16
      %p242 = scmp.lt.s32.totalorder %s16, 3
      %p243 = pnand %p241, %p242
      %p244 = pneg %p243
      // Predicated region
      $region45: #{tpu_custom_call.1} parent=5 // pred_check
        _
      $region46: #{tpu_custom_call.1} parent=5 // pred_check_branch
        %246 = sbr.rel (%p243) target = $region48
      $region47: #{tpu_custom_call.1} parent=5 // pred_region
        %s247 = ssub.s32 %s16, 1
        %s248 = smul.u32 2, %s21
        %p249 = scmp.lt.s32.totalorder %s248, 3
        %s250 = scalar_select %p249, %s248, 3
        %s251 = smul.addr %s250, 32
        %s252 = smul.addr %s251, 8
        %s253 = scalar_lea.vmem %s0, %s252
        %p254 = pneg %p42
        %p255 = pneg %p39
        %p256 = pneg %p63
        %p257 = pneg %p60
        %p258 = pneg %p84
        %p259 = pneg %p81
        %p260 = pneg %p105
        %p261 = pneg %p102
        %p262 = pneg %p126
        %p263 = pneg %p123
        %p264 = pneg %p147
        %p265 = pneg %p144
        %p266 = pneg %p168
        %p267 = pneg %p165
        %p268 = pneg %p194
        %p269 = pneg %p191
        %s270 = sand.u32 %s181, 1
        %s271 = scalar_lea.sflag [#allocation7], %s270
        %s272 = sand.u32 %s181, 1
        %s273 = smul.addr %s272, 16
        %s274 = scalar_lea.vmem [#allocation6], %s273
        %s275 = smul.u32 2, %s21
        %p276 = scmp.lt.s32.totalorder %s275, 3
        %s277 = scalar_select %p276, %s275, 3
        %s278 = smul.addr %s277, 32
        %s279 = smul.addr %s278, 8
        %s280 = scalar_lea.vmem %s0, %s279
        %s281 = smul.u32 2, %s21
        %s282 = smul.u32 2, %s21
        %vm284 = vcmask 31744
        %285 = vst.msk [vmem:[#allocation2] sm:$0xff] %vm284, 0.0
        %286 = vst.msk [vmem:[#allocation2 + $0x8] sm:$0xff] %vm284, 0.0
        %vm287 = vcmask 25600
        %288 = vst.msk [vmem:[#allocation2 + $0x10] sm:$0x3] %vm287, 0.0
        %289 = vst.msk [vmem:[#allocation2 + $0x1b0] sm:$0xff] %vm284, 0.0
        %290 = vst.msk [vmem:[#allocation2 + $0x1b8] sm:$0xff] %vm284, 0.0
        %291 = vst.msk [vmem:[#allocation2 + $0x1c0] sm:$0x3] %vm287, 0.0
        %s292 = scalar_lea.vmem [#allocation2], 408
        %293 = vst.msk [vmem:[%s292] sm:$0xff] %vm284, 0.0
        %294 = vst.msk [vmem:[%s292 + $0x8] sm:$0xff] %vm284, 0.0
        %295 = vst.msk [vmem:[%s292 + $0x10] sm:$0x3] %vm287, 0.0
        %296 = vst.msk [vmem:[%s292 + $0x1b0] sm:$0xff] %vm284, 0.0
        %297 = vst.msk [vmem:[%s292 + $0x1b8] sm:$0xff] %vm284, 0.0
        %298 = vst.msk [vmem:[%s292 + $0x1c0] sm:$0x3] %vm287, 0.0
        %vm299 = vcmask 24576
        %300 = vst.msk [vmem:[#allocation2] sm:$0x1] %vm299, 0.0
        %301 = vst.msk [vmem:[#allocation2 + $0x18] sm:$0x1] %vm299, 0.0
        %302 = vst.msk [vmem:[#allocation2 + $0x30] sm:$0x1] %vm299, 0.0
        %303 = vst.msk [vmem:[#allocation2 + $0x48] sm:$0x1] %vm299, 0.0
        %304 = vst.msk [vmem:[#allocation2 + $0x60] sm:$0x1] %vm299, 0.0
        %305 = vst.msk [vmem:[#allocation2 + $0x78] sm:$0x1] %vm299, 0.0
        %306 = vst.msk [vmem:[#allocation2 + $0x90] sm:$0x1] %vm299, 0.0
        %307 = vst.msk [vmem:[#allocation2 + $0xa8] sm:$0x1] %vm299, 0.0
        %308 = vst.msk [vmem:[#allocation2 + $0xc0] sm:$0x1] %vm299, 0.0
        %309 = vst.msk [vmem:[#allocation2 + $0xd8] sm:$0x1] %vm299, 0.0
        %310 = vst.msk [vmem:[#allocation2 + $0xf0] sm:$0x1] %vm299, 0.0
        %311 = vst.msk [vmem:[#allocation2 + $0x108] sm:$0x1] %vm299, 0.0
        %312 = vst.msk [vmem:[#allocation2 + $0x120] sm:$0x1] %vm299, 0.0
        %313 = vst.msk [vmem:[#allocation2 + $0x138] sm:$0x1] %vm299, 0.0
        %314 = vst.msk [vmem:[#allocation2 + $0x150] sm:$0x1] %vm299, 0.0
        %315 = vst.msk [vmem:[#allocation2 + $0x168] sm:$0x1] %vm299, 0.0
        %316 = vst.msk [vmem:[#allocation2 + $0x180] sm:$0x1] %vm299, 0.0
        %317 = vst.msk [vmem:[#allocation2 + $0x198] sm:$0x1] %vm299, 0.0
        %318 = vst.msk [vmem:[#allocation2 + $0x1b0] sm:$0x1] %vm299, 0.0
        %319 = vst.msk [vmem:[#allocation2 + $0x1c8] sm:$0x1] %vm299, 0.0
        %320 = vst.msk [vmem:[#allocation2 + $0x1e0] sm:$0x1] %vm299, 0.0
        %321 = vst.msk [vmem:[#allocation2 + $0x1f8] sm:$0x1] %vm299, 0.0
        %322 = vst.msk [vmem:[#allocation2 + $0x210] sm:$0x1] %vm299, 0.0
        %323 = vst.msk [vmem:[#allocation2 + $0x228] sm:$0x1] %vm299, 0.0
        %324 = vst.msk [vmem:[#allocation2 + $0x240] sm:$0x1] %vm299, 0.0
        %325 = vst.msk [vmem:[#allocation2 + $0x258] sm:$0x1] %vm299, 0.0
        %326 = vst.msk [vmem:[#allocation2 + $0x270] sm:$0x1] %vm299, 0.0
        %327 = vst.msk [vmem:[#allocation2 + $0x288] sm:$0x1] %vm299, 0.0
        %328 = vst.msk [vmem:[#allocation2 + $0x2a0] sm:$0x1] %vm299, 0.0
        %329 = vst.msk [vmem:[#allocation2 + $0x2b8] sm:$0x1] %vm299, 0.0
        %330 = vst.msk [vmem:[#allocation2 + $0x2d0] sm:$0x1] %vm299, 0.0
        %331 = vst.msk [vmem:[#allocation2 + $0x2e8] sm:$0x1] %vm299, 0.0
        %332 = vst.msk [vmem:[#allocation2 + $0x300] sm:$0x1] %vm299, 0.0
        %333 = vst.msk [vmem:[#allocation2 + $0x318] sm:$0x1] %vm299, 0.0
        %334 = vst.msk [vmem:[#allocation2 + $0x330] sm:$0x1] %vm299, 0.0
        %335 = vst.msk [vmem:[#allocation2 + $0x348] sm:$0x1] %vm299, 0.0
        %336 = vst.msk [vmem:[#allocation2 + $0x11] sm:$0x1] %vm299, 0.0
        %337 = vst.msk [vmem:[#allocation2 + $0x29] sm:$0x1] %vm299, 0.0
        %338 = vst.msk [vmem:[#allocation2 + $0x41] sm:$0x1] %vm299, 0.0
        %339 = vst.msk [vmem:[#allocation2 + $0x59] sm:$0x1] %vm299, 0.0
        %340 = vst.msk [vmem:[#allocation2 + $0x71] sm:$0x1] %vm299, 0.0
        %341 = vst.msk [vmem:[#allocation2 + $0x89] sm:$0x1] %vm299, 0.0
        %342 = vst.msk [vmem:[#allocation2 + $0xa1] sm:$0x1] %vm299, 0.0
        %343 = vst.msk [vmem:[#allocation2 + $0xb9] sm:$0x1] %vm299, 0.0
        %344 = vst.msk [vmem:[#allocation2 + $0xd1] sm:$0x1] %vm299, 0.0
        %345 = vst.msk [vmem:[#allocation2 + $0xe9] sm:$0x1] %vm299, 0.0
        %346 = vst.msk [vmem:[#allocation2 + $0x101] sm:$0x1] %vm299, 0.0
        %347 = vst.msk [vmem:[#allocation2 + $0x119] sm:$0x1] %vm299, 0.0
        %348 = vst.msk [vmem:[#allocation2 + $0x131] sm:$0x1] %vm299, 0.0
        %349 = vst.msk [vmem:[#allocation2 + $0x149] sm:$0x1] %vm299, 0.0
        %350 = vst.msk [vmem:[#allocation2 + $0x161] sm:$0x1] %vm299, 0.0
        %351 = vst.msk [vmem:[#allocation2 + $0x179] sm:$0x1] %vm299, 0.0
        %352 = vst.msk [vmem:[#allocation2 + $0x191] sm:$0x1] %vm299, 0.0
        %353 = vst.msk [vmem:[#allocation2 + $0x1a9] sm:$0x1] %vm299, 0.0
        %354 = vst.msk [vmem:[#allocation2 + $0x1c1] sm:$0x1] %vm299, 0.0
        %355 = vst.msk [vmem:[#allocation2 + $0x1d9] sm:$0x1] %vm299, 0.0
        %356 = vst.msk [vmem:[#allocation2 + $0x1f1] sm:$0x1] %vm299, 0.0
        %357 = vst.msk [vmem:[#allocation2 + $0x209] sm:$0x1] %vm299, 0.0
        %358 = vst.msk [vmem:[#allocation2 + $0x221] sm:$0x1] %vm299, 0.0
        %359 = vst.msk [vmem:[#allocation2 + $0x239] sm:$0x1] %vm299, 0.0
        %360 = vst.msk [vmem:[#allocation2 + $0x251] sm:$0x1] %vm299, 0.0
        %361 = vst.msk [vmem:[#allocation2 + $0x269] sm:$0x1] %vm299, 0.0
        %362 = vst.msk [vmem:[#allocation2 + $0x281] sm:$0x1] %vm299, 0.0
        %363 = vst.msk [vmem:[#allocation2 + $0x299] sm:$0x1] %vm299, 0.0
        %364 = vst.msk [vmem:[#allocation2 + $0x2b1] sm:$0x1] %vm299, 0.0
        %365 = vst.msk [vmem:[#allocation2 + $0x2c9] sm:$0x1] %vm299, 0.0
        %366 = vst.msk [vmem:[#allocation2 + $0x2e1] sm:$0x1] %vm299, 0.0
        %367 = vst.msk [vmem:[#allocation2 + $0x2f9] sm:$0x1] %vm299, 0.0
        %368 = vst.msk [vmem:[#allocation2 + $0x311] sm:$0x1] %vm299, 0.0
        %369 = vst.msk [vmem:[#allocation2 + $0x329] sm:$0x1] %vm299, 0.0
        %370 = vst.msk [vmem:[#allocation2 + $0x341] sm:$0x1] %vm299, 0.0
        %371 = vst.msk [vmem:[#allocation2 + $0x359] sm:$0x1] %vm299, 0.0
        %vm372 = vcmask 64512
        %373 = vst.msk [vmem:[#allocation3] sm:$0xff] %vm372, 0.0
        %374 = vst.msk [vmem:[#allocation3 + $0x8] sm:$0xff] %vm372, 0.0
        %vm375 = vcmask 58368
        %376 = vst.msk [vmem:[#allocation3 + $0x10] sm:$0x3] %vm375, 0.0
        %377 = vst.msk [vmem:[#allocation3 + $0x1b0] sm:$0xff] %vm372, 0.0
        %378 = vst.msk [vmem:[#allocation3 + $0x1b8] sm:$0xff] %vm372, 0.0
        %379 = vst.msk [vmem:[#allocation3 + $0x1c0] sm:$0x3] %vm375, 0.0
        %s380 = scalar_lea.vmem [#allocation3], 408
        %381 = vst.msk [vmem:[%s380] sm:$0xff] %vm372, 0.0
        %382 = vst.msk [vmem:[%s380 + $0x8] sm:$0xff] %vm372, 0.0
        %383 = vst.msk [vmem:[%s380 + $0x10] sm:$0x3] %vm375, 0.0
        %384 = vst.msk [vmem:[%s380 + $0x1b0] sm:$0xff] %vm372, 0.0
        %385 = vst.msk [vmem:[%s380 + $0x1b8] sm:$0xff] %vm372, 0.0
        %386 = vst.msk [vmem:[%s380 + $0x1c0] sm:$0x3] %vm375, 0.0
        %vm387 = vcmask 57344
        %388 = vst.msk [vmem:[#allocation3] sm:$0x1] %vm387, 0.0
        %389 = vst.msk [vmem:[#allocation3 + $0x18] sm:$0x1] %vm387, 0.0
        %390 = vst.msk [vmem:[#allocation3 + $0x30] sm:$0x1] %vm387, 0.0
        %391 = vst.msk [vmem:[#allocation3 + $0x48] sm:$0x1] %vm387, 0.0
        %392 = vst.msk [vmem:[#allocation3 + $0x60] sm:$0x1] %vm387, 0.0
        %393 = vst.msk [vmem:[#allocation3 + $0x78] sm:$0x1] %vm387, 0.0
        %394 = vst.msk [vmem:[#allocation3 + $0x90] sm:$0x1] %vm387, 0.0
        %395 = vst.msk [vmem:[#allocation3 + $0xa8] sm:$0x1] %vm387, 0.0
        %396 = vst.msk [vmem:[#allocation3 + $0xc0] sm:$0x1] %vm387, 0.0
        %397 = vst.msk [vmem:[#allocation3 + $0xd8] sm:$0x1] %vm387, 0.0
        %398 = vst.msk [vmem:[#allocation3 + $0xf0] sm:$0x1] %vm387, 0.0
        %399 = vst.msk [vmem:[#allocation3 + $0x108] sm:$0x1] %vm387, 0.0
        %400 = vst.msk [vmem:[#allocation3 + $0x120] sm:$0x1] %vm387, 0.0
        %401 = vst.msk [vmem:[#allocation3 + $0x138] sm:$0x1] %vm387, 0.0
        %402 = vst.msk [vmem:[#allocation3 + $0x150] sm:$0x1] %vm387, 0.0
        %403 = vst.msk [vmem:[#allocation3 + $0x168] sm:$0x1] %vm387, 0.0
        %404 = vst.msk [vmem:[#allocation3 + $0x180] sm:$0x1] %vm387, 0.0
        %405 = vst.msk [vmem:[#allocation3 + $0x198] sm:$0x1] %vm387, 0.0
        %406 = vst.msk [vmem:[#allocation3 + $0x1b0] sm:$0x1] %vm387, 0.0
        %407 = vst.msk [vmem:[#allocation3 + $0x1c8] sm:$0x1] %vm387, 0.0
        %408 = vst.msk [vmem:[#allocation3 + $0x1e0] sm:$0x1] %vm387, 0.0
        %409 = vst.msk [vmem:[#allocation3 + $0x1f8] sm:$0x1] %vm387, 0.0
        %410 = vst.msk [vmem:[#allocation3 + $0x210] sm:$0x1] %vm387, 0.0
        %411 = vst.msk [vmem:[#allocation3 + $0x228] sm:$0x1] %vm387, 0.0
        %412 = vst.msk [vmem:[#allocation3 + $0x240] sm:$0x1] %vm387, 0.0
        %413 = vst.msk [vmem:[#allocation3 + $0x258] sm:$0x1] %vm387, 0.0
        %414 = vst.msk [vmem:[#allocation3 + $0x270] sm:$0x1] %vm387, 0.0
        %415 = vst.msk [vmem:[#allocation3 + $0x288] sm:$0x1] %vm387, 0.0
        %416 = vst.msk [vmem:[#allocation3 + $0x2a0] sm:$0x1] %vm387, 0.0
        %417 = vst.msk [vmem:[#allocation3 + $0x2b8] sm:$0x1] %vm387, 0.0
        %418 = vst.msk [vmem:[#allocation3 + $0x2d0] sm:$0x1] %vm387, 0.0
        %419 = vst.msk [vmem:[#allocation3 + $0x2e8] sm:$0x1] %vm387, 0.0
        %420 = vst.msk [vmem:[#allocation3 + $0x300] sm:$0x1] %vm387, 0.0
        %421 = vst.msk [vmem:[#allocation3 + $0x318] sm:$0x1] %vm387, 0.0
        %422 = vst.msk [vmem:[#allocation3 + $0x330] sm:$0x1] %vm387, 0.0
        %423 = vst.msk [vmem:[#allocation3 + $0x348] sm:$0x1] %vm387, 0.0
        %424 = vst.msk [vmem:[#allocation3 + $0x11] sm:$0x1] %vm387, 0.0
        %425 = vst.msk [vmem:[#allocation3 + $0x29] sm:$0x1] %vm387, 0.0
        %426 = vst.msk [vmem:[#allocation3 + $0x41] sm:$0x1] %vm387, 0.0
        %427 = vst.msk [vmem:[#allocation3 + $0x59] sm:$0x1] %vm387, 0.0
        %428 = vst.msk [vmem:[#allocation3 + $0x71] sm:$0x1] %vm387, 0.0
        %429 = vst.msk [vmem:[#allocation3 + $0x89] sm:$0x1] %vm387, 0.0
        %430 = vst.msk [vmem:[#allocation3 + $0xa1] sm:$0x1] %vm387, 0.0
        %431 = vst.msk [vmem:[#allocation3 + $0xb9] sm:$0x1] %vm387, 0.0
        %432 = vst.msk [vmem:[#allocation3 + $0xd1] sm:$0x1] %vm387, 0.0
        %433 = vst.msk [vmem:[#allocation3 + $0xe9] sm:$0x1] %vm387, 0.0
        %434 = vst.msk [vmem:[#allocation3 + $0x101] sm:$0x1] %vm387, 0.0
        %435 = vst.msk [vmem:[#allocation3 + $0x119] sm:$0x1] %vm387, 0.0
        %436 = vst.msk [vmem:[#allocation3 + $0x131] sm:$0x1] %vm387, 0.0
        %437 = vst.msk [vmem:[#allocation3 + $0x149] sm:$0x1] %vm387, 0.0
        %438 = vst.msk [vmem:[#allocation3 + $0x161] sm:$0x1] %vm387, 0.0
        %439 = vst.msk [vmem:[#allocation3 + $0x179] sm:$0x1] %vm387, 0.0
        %440 = vst.msk [vmem:[#allocation3 + $0x191] sm:$0x1] %vm387, 0.0
        %441 = vst.msk [vmem:[#allocation3 + $0x1a9] sm:$0x1] %vm387, 0.0
        %442 = vst.msk [vmem:[#allocation3 + $0x1c1] sm:$0x1] %vm387, 0.0
        %443 = vst.msk [vmem:[#allocation3 + $0x1d9] sm:$0x1] %vm387, 0.0
        %444 = vst.msk [vmem:[#allocation3 + $0x1f1] sm:$0x1] %vm387, 0.0
        %445 = vst.msk [vmem:[#allocation3 + $0x209] sm:$0x1] %vm387, 0.0
        %446 = vst.msk [vmem:[#allocation3 + $0x221] sm:$0x1] %vm387, 0.0
        %447 = vst.msk [vmem:[#allocation3 + $0x239] sm:$0x1] %vm387, 0.0
        %448 = vst.msk [vmem:[#allocation3 + $0x251] sm:$0x1] %vm387, 0.0
        %449 = vst.msk [vmem:[#allocation3 + $0x269] sm:$0x1] %vm387, 0.0
        %450 = vst.msk [vmem:[#allocation3 + $0x281] sm:$0x1] %vm387, 0.0
        %451 = vst.msk [vmem:[#allocation3 + $0x299] sm:$0x1] %vm387, 0.0
        %452 = vst.msk [vmem:[#allocation3 + $0x2b1] sm:$0x1] %vm387, 0.0
        %453 = vst.msk [vmem:[#allocation3 + $0x2c9] sm:$0x1] %vm387, 0.0
        %454 = vst.msk [vmem:[#allocation3 + $0x2e1] sm:$0x1] %vm387, 0.0
        %455 = vst.msk [vmem:[#allocation3 + $0x2f9] sm:$0x1] %vm387, 0.0
        %456 = vst.msk [vmem:[#allocation3 + $0x311] sm:$0x1] %vm387, 0.0
        %457 = vst.msk [vmem:[#allocation3 + $0x329] sm:$0x1] %vm387, 0.0
        %458 = vst.msk [vmem:[#allocation3 + $0x341] sm:$0x1] %vm387, 0.0
        %459 = vst.msk [vmem:[#allocation3 + $0x359] sm:$0x1] %vm387, 0.0
        %v460 = vld [vmem:[%s280] sm:$0xff]
        %v461 = vld [vmem:[%s280 + $0x8] sm:$0xff]
        %v462 = vld [vmem:[%s280 + $0x10] sm:$0xff]
        %v463 = vld [vmem:[%s280 + $0x18] sm:$0xff]
        %v464 = vld [vmem:[%s280 + $0x20] sm:$0xff]
        %v465 = vld [vmem:[%s280 + $0x28] sm:$0xff]
        %v466 = vld [vmem:[%s280 + $0x30] sm:$0xff]
        %v467 = vld [vmem:[%s280 + $0x38] sm:$0xff]
        %v468 = vld [vmem:[%s280 + $0x40] sm:$0xff]
        %v469 = vld [vmem:[%s280 + $0x48] sm:$0xff]
        %v470 = vld [vmem:[%s280 + $0x50] sm:$0xff]
        %v471 = vld [vmem:[%s280 + $0x58] sm:$0xff]
        %v472 = vld [vmem:[%s280 + $0x60] sm:$0xff]
        %v473 = vld [vmem:[%s280 + $0x68] sm:$0xff]
        %v474 = vld [vmem:[%s280 + $0x70] sm:$0xff]
        %v475 = vld [vmem:[%s280 + $0x78] sm:$0xff]
        %v476 = vld [vmem:[%s280 + $0x80] sm:$0xff]
        %v477 = vld [vmem:[%s280 + $0x88] sm:$0xff]
        %v478 = vld [vmem:[%s280 + $0x90] sm:$0xff]
        %v479 = vld [vmem:[%s280 + $0x98] sm:$0xff]
        %v480 = vld [vmem:[%s280 + $0xa0] sm:$0xff]
        %v481 = vld [vmem:[%s280 + $0xa8] sm:$0xff]
        %v482 = vld [vmem:[%s280 + $0xb0] sm:$0xff]
        %v483 = vld [vmem:[%s280 + $0xb8] sm:$0xff]
        %v484 = vld [vmem:[%s280 + $0xc0] sm:$0xff]
        %v485 = vld [vmem:[%s280 + $0xc8] sm:$0xff]
        %v486 = vld [vmem:[%s280 + $0xd0] sm:$0xff]
        %v487 = vld [vmem:[%s280 + $0xd8] sm:$0xff]
        %v488 = vld [vmem:[%s280 + $0xe0] sm:$0xff]
        %v489 = vld [vmem:[%s280 + $0xe8] sm:$0xff]
        %v490 = vld [vmem:[%s280 + $0xf0] sm:$0xff]
        %v491 = vld [vmem:[%s280 + $0xf8] sm:$0xff]
        %v492 = vld [vmem:[%s280 + $0x100] sm:$0xff]
        %v493 = vld [vmem:[%s280 + $0x108] sm:$0xff]
        %v494 = vld [vmem:[%s280 + $0x110] sm:$0xff]
        %v495 = vld [vmem:[%s280 + $0x118] sm:$0xff]
        %v496 = vld [vmem:[%s280 + $0x120] sm:$0xff]
        %v497 = vld [vmem:[%s280 + $0x128] sm:$0xff]
        %v498 = vld [vmem:[%s280 + $0x130] sm:$0xff]
        %v499 = vld [vmem:[%s280 + $0x138] sm:$0xff]
        %v500 = vld [vmem:[%s280 + $0x140] sm:$0xff]
        %v501 = vld [vmem:[%s280 + $0x148] sm:$0xff]
        %v502 = vld [vmem:[%s280 + $0x150] sm:$0xff]
        %v503 = vld [vmem:[%s280 + $0x158] sm:$0xff]
        %v504 = vld [vmem:[%s280 + $0x160] sm:$0xff]
        %v505 = vld [vmem:[%s280 + $0x168] sm:$0xff]
        %v506 = vld [vmem:[%s280 + $0x170] sm:$0xff]
        %v507 = vld [vmem:[%s280 + $0x178] sm:$0xff]
        %v508 = vld [vmem:[%s280 + $0x180] sm:$0xff]
        %v509 = vld [vmem:[%s280 + $0x188] sm:$0xff]
        %v510 = vld [vmem:[%s280 + $0x190] sm:$0xff]
        %v511 = vld [vmem:[%s280 + $0x198] sm:$0xff]
        %v512 = vld [vmem:[%s280 + $0x1a0] sm:$0xff]
        %v513 = vld [vmem:[%s280 + $0x1a8] sm:$0xff]
        %v514 = vld [vmem:[%s280 + $0x1b0] sm:$0xff]
        %v515 = vld [vmem:[%s280 + $0x1b8] sm:$0xff]
        %v516 = vld [vmem:[%s280 + $0x1c0] sm:$0xff]
        %v517 = vld [vmem:[%s280 + $0x1c8] sm:$0xff]
        %v518 = vld [vmem:[%s280 + $0x1d0] sm:$0xff]
        %v519 = vld [vmem:[%s280 + $0x1d8] sm:$0xff]
        %v520 = vld [vmem:[%s280 + $0x1e0] sm:$0xff]
        %v521 = vld [vmem:[%s280 + $0x1e8] sm:$0xff]
        %v522 = vld [vmem:[%s280 + $0x1f0] sm:$0xff]
        %v523 = vld [vmem:[%s280 + $0x1f8] sm:$0xff]
        %v524 = vld [vmem:[%s1] sm:$0x1]
        %v526 = vperm.slane %v524, 0
        %v528 = vmul.f32 %v460, %v526
        %v529 = vmul.f32 %v461, %v526
        %v530 = vmul.f32 %v462, %v526
        %v531 = vmul.f32 %v463, %v526
        %v532 = vmul.f32 %v464, %v526
        %v533 = vmul.f32 %v465, %v526
        %v534 = vmul.f32 %v466, %v526
        %v535 = vmul.f32 %v467, %v526
        %v536 = vmul.f32 %v468, %v526
        %v537 = vmul.f32 %v469, %v526
        %v538 = vmul.f32 %v470, %v526
        %v539 = vmul.f32 %v471, %v526
        %v540 = vmul.f32 %v472, %v526
        %v541 = vmul.f32 %v473, %v526
        %v542 = vmul.f32 %v474, %v526
        %v543 = vmul.f32 %v475, %v526
        %v544 = vmul.f32 %v476, %v526
        %v545 = vmul.f32 %v477, %v526
        %v546 = vmul.f32 %v478, %v526
        %v547 = vmul.f32 %v479, %v526
        %v548 = vmul.f32 %v480, %v526
        %v549 = vmul.f32 %v481, %v526
        %v550 = vmul.f32 %v482, %v526
        %v551 = vmul.f32 %v483, %v526
        %v552 = vmul.f32 %v484, %v526
        %v553 = vmul.f32 %v485, %v526
        %v554 = vmul.f32 %v486, %v526
        %v555 = vmul.f32 %v487, %v526
        %v556 = vmul.f32 %v488, %v526
        %v557 = vmul.f32 %v489, %v526
        %v558 = vmul.f32 %v490, %v526
        %v559 = vmul.f32 %v491, %v526
        %v560 = vmul.f32 %v492, %v526
        %v561 = vmul.f32 %v493, %v526
        %v562 = vmul.f32 %v494, %v526
        %v563 = vmul.f32 %v495, %v526
        %v564 = vmul.f32 %v496, %v526
        %v565 = vmul.f32 %v497, %v526
        %v566 = vmul.f32 %v498, %v526
        %v567 = vmul.f32 %v499, %v526
        %v568 = vmul.f32 %v500, %v526
        %v569 = vmul.f32 %v501, %v526
        %v570 = vmul.f32 %v502, %v526
        %v571 = vmul.f32 %v503, %v526
        %v572 = vmul.f32 %v504, %v526
        %v573 = vmul.f32 %v505, %v526
        %v574 = vmul.f32 %v506, %v526
        %v575 = vmul.f32 %v507, %v526
        %v576 = vmul.f32 %v508, %v526
        %v577 = vmul.f32 %v509, %v526
        %v578 = vmul.f32 %v510, %v526
        %v579 = vmul.f32 %v511, %v526
        %v580 = vmul.f32 %v512, %v526
        %v581 = vmul.f32 %v513, %v526
        %v582 = vmul.f32 %v514, %v526
        %v583 = vmul.f32 %v515, %v526
        %v584 = vmul.f32 %v516, %v526
        %v585 = vmul.f32 %v517, %v526
        %v586 = vmul.f32 %v518, %v526
        %v587 = vmul.f32 %v519, %v526
        %v588 = vmul.f32 %v520, %v526
        %v589 = vmul.f32 %v521, %v526
        %v590 = vmul.f32 %v522, %v526
        %v591 = vmul.f32 %v523, %v526
        %v592 = vld [vmem:[%s2] sm:$0x1]
        %v594 = vperm.slane %v592, 0
        %v596 = vadd.f32 %v528, %v594
        %v597 = vadd.f32 %v529, %v594
        %v598 = vadd.f32 %v530, %v594
        %v599 = vadd.f32 %v531, %v594
        %v600 = vadd.f32 %v532, %v594
        %v601 = vadd.f32 %v533, %v594
        %v602 = vadd.f32 %v534, %v594
        %v603 = vadd.f32 %v535, %v594
        %v604 = vadd.f32 %v536, %v594
        %v605 = vadd.f32 %v537, %v594
        %v606 = vadd.f32 %v538, %v594
        %v607 = vadd.f32 %v539, %v594
        %v608 = vadd.f32 %v540, %v594
        %v609 = vadd.f32 %v541, %v594
        %v610 = vadd.f32 %v542, %v594
        %v611 = vadd.f32 %v543, %v594
        %v612 = vadd.f32 %v544, %v594
        %v613 = vadd.f32 %v545, %v594
        %v614 = vadd.f32 %v546, %v594
        %v615 = vadd.f32 %v547, %v594
        %v616 = vadd.f32 %v548, %v594
        %v617 = vadd.f32 %v549, %v594
        %v618 = vadd.f32 %v550, %v594
        %v619 = vadd.f32 %v551, %v594
        %v620 = vadd.f32 %v552, %v594
        %v621 = vadd.f32 %v553, %v594
        %v622 = vadd.f32 %v554, %v594
        %v623 = vadd.f32 %v555, %v594
        %v624 = vadd.f32 %v556, %v594
        %v625 = vadd.f32 %v557, %v594
        %v626 = vadd.f32 %v558, %v594
        %v627 = vadd.f32 %v559, %v594
        %v628 = vadd.f32 %v560, %v594
        %v629 = vadd.f32 %v561, %v594
        %v630 = vadd.f32 %v562, %v594
        %v631 = vadd.f32 %v563, %v594
        %v632 = vadd.f32 %v564, %v594
        %v633 = vadd.f32 %v565, %v594
        %v634 = vadd.f32 %v566, %v594
        %v635 = vadd.f32 %v567, %v594
        %v636 = vadd.f32 %v568, %v594
        %v637 = vadd.f32 %v569, %v594
        %v638 = vadd.f32 %v570, %v594
        %v639 = vadd.f32 %v571, %v594
        %v640 = vadd.f32 %v572, %v594
        %v641 = vadd.f32 %v573, %v594
        %v642 = vadd.f32 %v574, %v594
        %v643 = vadd.f32 %v575, %v594
        %v644 = vadd.f32 %v576, %v594
        %v645 = vadd.f32 %v577, %v594
        %v646 = vadd.f32 %v578, %v594
        %v647 = vadd.f32 %v579, %v594
        %v648 = vadd.f32 %v580, %v594
        %v649 = vadd.f32 %v581, %v594
        %v650 = vadd.f32 %v582, %v594
        %v651 = vadd.f32 %v583, %v594
        %v652 = vadd.f32 %v584, %v594
        %v653 = vadd.f32 %v585, %v594
        %v654 = vadd.f32 %v586, %v594
        %v655 = vadd.f32 %v587, %v594
        %v656 = vadd.f32 %v588, %v594
        %v657 = vadd.f32 %v589, %v594
        %v658 = vadd.f32 %v590, %v594
        %v659 = vadd.f32 %v591, %v594
        %s660 = scalar_lea.vmem [#allocation2], 24
        %661 = vst.msk [vmem:[%s660 + $0x1] sm:$0xff] %vm284, %v596
        %662 = vst.msk [vmem:[%s660 + $0x9] sm:$0xff] %vm284, %v597
        %663 = vst.msk [vmem:[%s660 + $0x19] sm:$0xff] %vm284, %v598
        %664 = vst.msk [vmem:[%s660 + $0x21] sm:$0xff] %vm284, %v599
        %665 = vst.msk [vmem:[%s660 + $0x31] sm:$0xff] %vm284, %v600
        %666 = vst.msk [vmem:[%s660 + $0x39] sm:$0xff] %vm284, %v601
        %667 = vst.msk [vmem:[%s660 + $0x49] sm:$0xff] %vm284, %v602
        %668 = vst.msk [vmem:[%s660 + $0x51] sm:$0xff] %vm284, %v603
        %669 = vst.msk [vmem:[%s660 + $0x61] sm:$0xff] %vm284, %v604
        %670 = vst.msk [vmem:[%s660 + $0x69] sm:$0xff] %vm284, %v605
        %671 = vst.msk [vmem:[%s660 + $0x79] sm:$0xff] %vm284, %v606
        %672 = vst.msk [vmem:[%s660 + $0x81] sm:$0xff] %vm284, %v607
        %673 = vst.msk [vmem:[%s660 + $0x91] sm:$0xff] %vm284, %v608
        %674 = vst.msk [vmem:[%s660 + $0x99] sm:$0xff] %vm284, %v609
        %675 = vst.msk [vmem:[%s660 + $0xa9] sm:$0xff] %vm284, %v610
        %676 = vst.msk [vmem:[%s660 + $0xb1] sm:$0xff] %vm284, %v611
        %677 = vst.msk [vmem:[%s660 + $0xc1] sm:$0xff] %vm284, %v612
        %678 = vst.msk [vmem:[%s660 + $0xc9] sm:$0xff] %vm284, %v613
        %679 = vst.msk [vmem:[%s660 + $0xd9] sm:$0xff] %vm284, %v614
        %680 = vst.msk [vmem:[%s660 + $0xe1] sm:$0xff] %vm284, %v615
        %681 = vst.msk [vmem:[%s660 + $0xf1] sm:$0xff] %vm284, %v616
        %682 = vst.msk [vmem:[%s660 + $0xf9] sm:$0xff] %vm284, %v617
        %683 = vst.msk [vmem:[%s660 + $0x109] sm:$0xff] %vm284, %v618
        %684 = vst.msk [vmem:[%s660 + $0x111] sm:$0xff] %vm284, %v619
        %685 = vst.msk [vmem:[%s660 + $0x121] sm:$0xff] %vm284, %v620
        %686 = vst.msk [vmem:[%s660 + $0x129] sm:$0xff] %vm284, %v621
        %687 = vst.msk [vmem:[%s660 + $0x139] sm:$0xff] %vm284, %v622
        %688 = vst.msk [vmem:[%s660 + $0x141] sm:$0xff] %vm284, %v623
        %689 = vst.msk [vmem:[%s660 + $0x151] sm:$0xff] %vm284, %v624
        %690 = vst.msk [vmem:[%s660 + $0x159] sm:$0xff] %vm284, %v625
        %691 = vst.msk [vmem:[%s660 + $0x169] sm:$0xff] %vm284, %v626
        %692 = vst.msk [vmem:[%s660 + $0x171] sm:$0xff] %vm284, %v627
        %693 = vst.msk [vmem:[%s660 + $0x1b1] sm:$0xff] %vm284, %v628
        %694 = vst.msk [vmem:[%s660 + $0x1b9] sm:$0xff] %vm284, %v629
        %695 = vst.msk [vmem:[%s660 + $0x1c9] sm:$0xff] %vm284, %v630
        %696 = vst.msk [vmem:[%s660 + $0x1d1] sm:$0xff] %vm284, %v631
        %697 = vst.msk [vmem:[%s660 + $0x1e1] sm:$0xff] %vm284, %v632
        %698 = vst.msk [vmem:[%s660 + $0x1e9] sm:$0xff] %vm284, %v633
        %699 = vst.msk [vmem:[%s660 + $0x1f9] sm:$0xff] %vm284, %v634
        %700 = vst.msk [vmem:[%s660 + $0x201] sm:$0xff] %vm284, %v635
        %701 = vst.msk [vmem:[%s660 + $0x211] sm:$0xff] %vm284, %v636
        %702 = vst.msk [vmem:[%s660 + $0x219] sm:$0xff] %vm284, %v637
        %703 = vst.msk [vmem:[%s660 + $0x229] sm:$0xff] %vm284, %v638
        %704 = vst.msk [vmem:[%s660 + $0x231] sm:$0xff] %vm284, %v639
        %705 = vst.msk [vmem:[%s660 + $0x241] sm:$0xff] %vm284, %v640
        %706 = vst.msk [vmem:[%s660 + $0x249] sm:$0xff] %vm284, %v641
        %707 = vst.msk [vmem:[%s660 + $0x259] sm:$0xff] %vm284, %v642
        %708 = vst.msk [vmem:[%s660 + $0x261] sm:$0xff] %vm284, %v643
        %709 = vst.msk [vmem:[%s660 + $0x271] sm:$0xff] %vm284, %v644
        %710 = vst.msk [vmem:[%s660 + $0x279] sm:$0xff] %vm284, %v645
        %711 = vst.msk [vmem:[%s660 + $0x289] sm:$0xff] %vm284, %v646
        %712 = vst.msk [vmem:[%s660 + $0x291] sm:$0xff] %vm284, %v647
        %713 = vst.msk [vmem:[%s660 + $0x2a1] sm:$0xff] %vm284, %v648
        %714 = vst.msk [vmem:[%s660 + $0x2a9] sm:$0xff] %vm284, %v649
        %715 = vst.msk [vmem:[%s660 + $0x2b9] sm:$0xff] %vm284, %v650
        %716 = vst.msk [vmem:[%s660 + $0x2c1] sm:$0xff] %vm284, %v651
        %717 = vst.msk [vmem:[%s660 + $0x2d1] sm:$0xff] %vm284, %v652
        %718 = vst.msk [vmem:[%s660 + $0x2d9] sm:$0xff] %vm284, %v653
        %719 = vst.msk [vmem:[%s660 + $0x2e9] sm:$0xff] %vm284, %v654
        %720 = vst.msk [vmem:[%s660 + $0x2f1] sm:$0xff] %vm284, %v655
        %721 = vst.msk [vmem:[%s660 + $0x301] sm:$0xff] %vm284, %v656
        %722 = vst.msk [vmem:[%s660 + $0x309] sm:$0xff] %vm284, %v657
        %723 = vst.msk [vmem:[%s660 + $0x319] sm:$0xff] %vm284, %v658
        %724 = vst.msk [vmem:[%s660 + $0x321] sm:$0xff] %vm284, %v659
        %v725 = vld [vmem:[#allocation2] sm:$0xff]
        %v726 = vld [vmem:[#allocation2 + $0x8] sm:$0xff]
        %v727 = vld [vmem:[#allocation2 + $0x18] sm:$0xff]
        %v728 = vld [vmem:[#allocation2 + $0x20] sm:$0xff]
        %v729 = vld [vmem:[#allocation2 + $0x30] sm:$0xff]
        %v730 = vld [vmem:[#allocation2 + $0x38] sm:$0xff]
        %v731 = vld [vmem:[#allocation2 + $0x48] sm:$0xff]
        %v732 = vld [vmem:[#allocation2 + $0x50] sm:$0xff]
        %v733 = vld [vmem:[#allocation2 + $0x60] sm:$0xff]
        %v734 = vld [vmem:[#allocation2 + $0x68] sm:$0xff]
        %v735 = vld [vmem:[#allocation2 + $0x78] sm:$0xff]
        %v736 = vld [vmem:[#allocation2 + $0x80] sm:$0xff]
        %v737 = vld [vmem:[#allocation2 + $0x90] sm:$0xff]
        %v738 = vld [vmem:[#allocation2 + $0x98] sm:$0xff]
        %v739 = vld [vmem:[#allocation2 + $0xa8] sm:$0xff]
        %v740 = vld [vmem:[#allocation2 + $0xb0] sm:$0xff]
        %v741 = vld [vmem:[#allocation2 + $0xc0] sm:$0xff]
        %v742 = vld [vmem:[#allocation2 + $0xc8] sm:$0xff]
        %v743 = vld [vmem:[#allocation2 + $0xd8] sm:$0xff]
        %v744 = vld [vmem:[#allocation2 + $0xe0] sm:$0xff]
        %v745 = vld [vmem:[#allocation2 + $0xf0] sm:$0xff]
        %v746 = vld [vmem:[#allocation2 + $0xf8] sm:$0xff]
        %v747 = vld [vmem:[#allocation2 + $0x108] sm:$0xff]
        %v748 = vld [vmem:[#allocation2 + $0x110] sm:$0xff]
        %v749 = vld [vmem:[#allocation2 + $0x120] sm:$0xff]
        %v750 = vld [vmem:[#allocation2 + $0x128] sm:$0xff]
        %v751 = vld [vmem:[#allocation2 + $0x138] sm:$0xff]
        %v752 = vld [vmem:[#allocation2 + $0x140] sm:$0xff]
        %v753 = vld [vmem:[#allocation2 + $0x150] sm:$0xff]
        %v754 = vld [vmem:[#allocation2 + $0x158] sm:$0xff]
        %v755 = vld [vmem:[#allocation2 + $0x168] sm:$0xff]
        %v756 = vld [vmem:[#allocation2 + $0x170] sm:$0xff]
        %v757 = vld [vmem:[#allocation2 + $0x1b0] sm:$0xff]
        %v758 = vld [vmem:[#allocation2 + $0x1b8] sm:$0xff]
        %v759 = vld [vmem:[#allocation2 + $0x1c8] sm:$0xff]
        %v760 = vld [vmem:[#allocation2 + $0x1d0] sm:$0xff]
        %v761 = vld [vmem:[#allocation2 + $0x1e0] sm:$0xff]
        %v762 = vld [vmem:[#allocation2 + $0x1e8] sm:$0xff]
        %v763 = vld [vmem:[#allocation2 + $0x1f8] sm:$0xff]
        %v764 = vld [vmem:[#allocation2 + $0x200] sm:$0xff]
        %v765 = vld [vmem:[#allocation2 + $0x210] sm:$0xff]
        %v766 = vld [vmem:[#allocation2 + $0x218] sm:$0xff]
        %v767 = vld [vmem:[#allocation2 + $0x228] sm:$0xff]
        %v768 = vld [vmem:[#allocation2 + $0x230] sm:$0xff]
        %v769 = vld [vmem:[#allocation2 + $0x240] sm:$0xff]
        %v770 = vld [vmem:[#allocation2 + $0x248] sm:$0xff]
        %v771 = vld [vmem:[#allocation2 + $0x258] sm:$0xff]
        %v772 = vld [vmem:[#allocation2 + $0x260] sm:$0xff]
        %v773 = vld [vmem:[#allocation2 + $0x270] sm:$0xff]
        %v774 = vld [vmem:[#allocation2 + $0x278] sm:$0xff]
        %v775 = vld [vmem:[#allocation2 + $0x288] sm:$0xff]
        %v776 = vld [vmem:[#allocation2 + $0x290] sm:$0xff]
        %v777 = vld [vmem:[#allocation2 + $0x2a0] sm:$0xff]
        %v778 = vld [vmem:[#allocation2 + $0x2a8] sm:$0xff]
        %v779 = vld [vmem:[#allocation2 + $0x2b8] sm:$0xff]
        %v780 = vld [vmem:[#allocation2 + $0x2c0] sm:$0xff]
        %v781 = vld [vmem:[#allocation2 + $0x2d0] sm:$0xff]
        %v782 = vld [vmem:[#allocation2 + $0x2d8] sm:$0xff]
        %v783 = vld [vmem:[#allocation2 + $0x2e8] sm:$0xff]
        %v784 = vld [vmem:[#allocation2 + $0x2f0] sm:$0xff]
        %v785 = vld [vmem:[#allocation2 + $0x300] sm:$0xff]
        %v786 = vld [vmem:[#allocation2 + $0x308] sm:$0xff]
        %v787 = vld [vmem:[#allocation2 + $0x318] sm:$0xff]
        %v788 = vld [vmem:[#allocation2 + $0x320] sm:$0xff]
        %v789 = vpack.c.bf16 %v725, %v725
        %v790 = vpack.c.bf16 %v726, %v726
        %v791 = vpack.c.bf16 %v727, %v727
        %v792 = vpack.c.bf16 %v728, %v728
        %v793 = vpack.c.bf16 %v729, %v729
        %v794 = vpack.c.bf16 %v730, %v730
        %v795 = vpack.c.bf16 %v731, %v731
        %v796 = vpack.c.bf16 %v732, %v732
        %v797 = vpack.c.bf16 %v733, %v733
        %v798 = vpack.c.bf16 %v734, %v734
        %v799 = vpack.c.bf16 %v735, %v735
        %v800 = vpack.c.bf16 %v736, %v736
        %v801 = vpack.c.bf16 %v737, %v737
        %v802 = vpack.c.bf16 %v738, %v738
        %v803 = vpack.c.bf16 %v739, %v739
        %v804 = vpack.c.bf16 %v740, %v740
        %v805 = vpack.c.bf16 %v741, %v741
        %v806 = vpack.c.bf16 %v742, %v742
        %v807 = vpack.c.bf16 %v743, %v743
        %v808 = vpack.c.bf16 %v744, %v744
        %v809 = vpack.c.bf16 %v745, %v745
        %v810 = vpack.c.bf16 %v746, %v746
        %v811 = vpack.c.bf16 %v747, %v747
        %v812 = vpack.c.bf16 %v748, %v748
        %v813 = vpack.c.bf16 %v749, %v749
        %v814 = vpack.c.bf16 %v750, %v750
        %v815 = vpack.c.bf16 %v751, %v751
        %v816 = vpack.c.bf16 %v752, %v752
        %v817 = vpack.c.bf16 %v753, %v753
        %v818 = vpack.c.bf16 %v754, %v754
        %v819 = vpack.c.bf16 %v755, %v755
        %v820 = vpack.c.bf16 %v756, %v756
        %v821 = vpack.c.bf16 %v757, %v757
        %v822 = vpack.c.bf16 %v758, %v758
        %v823 = vpack.c.bf16 %v759, %v759
        %v824 = vpack.c.bf16 %v760, %v760
        %v825 = vpack.c.bf16 %v761, %v761
        %v826 = vpack.c.bf16 %v762, %v762
        %v827 = vpack.c.bf16 %v763, %v763
        %v828 = vpack.c.bf16 %v764, %v764
        %v829 = vpack.c.bf16 %v765, %v765
        %v830 = vpack.c.bf16 %v766, %v766
        %v831 = vpack.c.bf16 %v767, %v767
        %v832 = vpack.c.bf16 %v768, %v768
        %v833 = vpack.c.bf16 %v769, %v769
        %v834 = vpack.c.bf16 %v770, %v770
        %v835 = vpack.c.bf16 %v771, %v771
        %v836 = vpack.c.bf16 %v772, %v772
        %v837 = vpack.c.bf16 %v773, %v773
        %v838 = vpack.c.bf16 %v774, %v774
        %v839 = vpack.c.bf16 %v775, %v775
        %v840 = vpack.c.bf16 %v776, %v776
        %v841 = vpack.c.bf16 %v777, %v777
        %v842 = vpack.c.bf16 %v778, %v778
        %v843 = vpack.c.bf16 %v779, %v779
        %v844 = vpack.c.bf16 %v780, %v780
        %v845 = vpack.c.bf16 %v781, %v781
        %v846 = vpack.c.bf16 %v782, %v782
        %v847 = vpack.c.bf16 %v783, %v783
        %v848 = vpack.c.bf16 %v784, %v784
        %v849 = vpack.c.bf16 %v785, %v785
        %v850 = vpack.c.bf16 %v786, %v786
        %v851 = vpack.c.bf16 %v787, %v787
        %v852 = vpack.c.bf16 %v788, %v788
        %vm853 = vcmask 27648
        %854 = vst.msk [vmem:[#allocation4] sm:$0xf] %vm853, %v789
        %855 = vst.msk [vmem:[#allocation4 + $0x4] sm:$0xf] %vm853, %v790
        %856 = vst.msk [vmem:[#allocation4 + $0x8] sm:$0xf] %vm853, %v791
        %857 = vst.msk [vmem:[#allocation4 + $0xc] sm:$0xf] %vm853, %v792
        %858 = vst.msk [vmem:[#allocation4 + $0x10] sm:$0xf] %vm853, %v793
        %859 = vst.msk [vmem:[#allocation4 + $0x14] sm:$0xf] %vm853, %v794
        %860 = vst.msk [vmem:[#allocation4 + $0x18] sm:$0xf] %vm853, %v795
        %861 = vst.msk [vmem:[#allocation4 + $0x1c] sm:$0xf] %vm853, %v796
        %862 = vst.msk [vmem:[#allocation4 + $0x20] sm:$0xf] %vm853, %v797
        %863 = vst.msk [vmem:[#allocation4 + $0x24] sm:$0xf] %vm853, %v798
        %864 = vst.msk [vmem:[#allocation4 + $0x28] sm:$0xf] %vm853, %v799
        %865 = vst.msk [vmem:[#allocation4 + $0x2c] sm:$0xf] %vm853, %v800
        %866 = vst.msk [vmem:[#allocation4 + $0x30] sm:$0xf] %vm853, %v801
        %867 = vst.msk [vmem:[#allocation4 + $0x34] sm:$0xf] %vm853, %v802
        %868 = vst.msk [vmem:[#allocation4 + $0x38] sm:$0xf] %vm853, %v803
        %869 = vst.msk [vmem:[#allocation4 + $0x3c] sm:$0xf] %vm853, %v804
        %870 = vst.msk [vmem:[#allocation4 + $0x40] sm:$0xf] %vm853, %v805
        %871 = vst.msk [vmem:[#allocation4 + $0x44] sm:$0xf] %vm853, %v806
        %872 = vst.msk [vmem:[#allocation4 + $0x48] sm:$0xf] %vm853, %v807
        %873 = vst.msk [vmem:[#allocation4 + $0x4c] sm:$0xf] %vm853, %v808
        %874 = vst.msk [vmem:[#allocation4 + $0x50] sm:$0xf] %vm853, %v809
        %875 = vst.msk [vmem:[#allocation4 + $0x54] sm:$0xf] %vm853, %v810
        %876 = vst.msk [vmem:[#allocation4 + $0x58] sm:$0xf] %vm853, %v811
        %877 = vst.msk [vmem:[#allocation4 + $0x5c] sm:$0xf] %vm853, %v812
        %878 = vst.msk [vmem:[#allocation4 + $0x60] sm:$0xf] %vm853, %v813
        %879 = vst.msk [vmem:[#allocation4 + $0x64] sm:$0xf] %vm853, %v814
        %880 = vst.msk [vmem:[#allocation4 + $0x68] sm:$0xf] %vm853, %v815
        %881 = vst.msk [vmem:[#allocation4 + $0x6c] sm:$0xf] %vm853, %v816
        %882 = vst.msk [vmem:[#allocation4 + $0x70] sm:$0xf] %vm853, %v817
        %883 = vst.msk [vmem:[#allocation4 + $0x74] sm:$0xf] %vm853, %v818
        %884 = vst.msk [vmem:[#allocation4 + $0x78] sm:$0xf] %vm853, %v819
        %885 = vst.msk [vmem:[#allocation4 + $0x7c] sm:$0xf] %vm853, %v820
        %886 = vst.msk [vmem:[#allocation4 + $0x80] sm:$0xf] %vm853, %v821
        %887 = vst.msk [vmem:[#allocation4 + $0x84] sm:$0xf] %vm853, %v822
        %888 = vst.msk [vmem:[#allocation4 + $0x88] sm:$0xf] %vm853, %v823
        %889 = vst.msk [vmem:[#allocation4 + $0x8c] sm:$0xf] %vm853, %v824
        %890 = vst.msk [vmem:[#allocation4 + $0x90] sm:$0xf] %vm853, %v825
        %891 = vst.msk [vmem:[#allocation4 + $0x94] sm:$0xf] %vm853, %v826
        %892 = vst.msk [vmem:[#allocation4 + $0x98] sm:$0xf] %vm853, %v827
        %893 = vst.msk [vmem:[#allocation4 + $0x9c] sm:$0xf] %vm853, %v828
        %894 = vst.msk [vmem:[#allocation4 + $0xa0] sm:$0xf] %vm853, %v829
        %895 = vst.msk [vmem:[#allocation4 + $0xa4] sm:$0xf] %vm853, %v830
        %896 = vst.msk [vmem:[#allocation4 + $0xa8] sm:$0xf] %vm853, %v831
        %897 = vst.msk [vmem:[#allocation4 + $0xac] sm:$0xf] %vm853, %v832
        %898 = vst.msk [vmem:[#allocation4 + $0xb0] sm:$0xf] %vm853, %v833
        %899 = vst.msk [vmem:[#allocation4 + $0xb4] sm:$0xf] %vm853, %v834
        %900 = vst.msk [vmem:[#allocation4 + $0xb8] sm:$0xf] %vm853, %v835
        %901 = vst.msk [vmem:[#allocation4 + $0xbc] sm:$0xf] %vm853, %v836
        %902 = vst.msk [vmem:[#allocation4 + $0xc0] sm:$0xf] %vm853, %v837
        %903 = vst.msk [vmem:[#allocation4 + $0xc4] sm:$0xf] %vm853, %v838
        %904 = vst.msk [vmem:[#allocation4 + $0xc8] sm:$0xf] %vm853, %v839
        %905 = vst.msk [vmem:[#allocation4 + $0xcc] sm:$0xf] %vm853, %v840
        %906 = vst.msk [vmem:[#allocation4 + $0xd0] sm:$0xf] %vm853, %v841
        %907 = vst.msk [vmem:[#allocation4 + $0xd4] sm:$0xf] %vm853, %v842
        %908 = vst.msk [vmem:[#allocation4 + $0xd8] sm:$0xf] %vm853, %v843
        %909 = vst.msk [vmem:[#allocation4 + $0xdc] sm:$0xf] %vm853, %v844
        %910 = vst.msk [vmem:[#allocation4 + $0xe0] sm:$0xf] %vm853, %v845
        %911 = vst.msk [vmem:[#allocation4 + $0xe4] sm:$0xf] %vm853, %v846
        %912 = vst.msk [vmem:[#allocation4 + $0xe8] sm:$0xf] %vm853, %v847
        %913 = vst.msk [vmem:[#allocation4 + $0xec] sm:$0xf] %vm853, %v848
        %914 = vst.msk [vmem:[#allocation4 + $0xf0] sm:$0xf] %vm853, %v849
        %915 = vst.msk [vmem:[#allocation4 + $0xf4] sm:$0xf] %vm853, %v850
        %916 = vst.msk [vmem:[#allocation4 + $0xf8] sm:$0xf] %vm853, %v851
        %917 = vst.msk [vmem:[#allocation4 + $0xfc] sm:$0xf] %vm853, %v852
        %v918 = vld [vmem:[#allocation2 + $0x1] sm:$0xff]
        %v919 = vld [vmem:[#allocation2 + $0x9] sm:$0xff]
        %v920 = vld [vmem:[#allocation2 + $0x19] sm:$0xff]
        %v921 = vld [vmem:[#allocation2 + $0x21] sm:$0xff]
        %v922 = vld [vmem:[#allocation2 + $0x31] sm:$0xff]
        %v923 = vld [vmem:[#allocation2 + $0x39] sm:$0xff]
        %v924 = vld [vmem:[#allocation2 + $0x49] sm:$0xff]
        %v925 = vld [vmem:[#allocation2 + $0x51] sm:$0xff]
        %v926 = vld [vmem:[#allocation2 + $0x61] sm:$0xff]
        %v927 = vld [vmem:[#allocation2 + $0x69] sm:$0xff]
        %v928 = vld [vmem:[#allocation2 + $0x79] sm:$0xff]
        %v929 = vld [vmem:[#allocation2 + $0x81] sm:$0xff]
        %v930 = vld [vmem:[#allocation2 + $0x91] sm:$0xff]
        %v931 = vld [vmem:[#allocation2 + $0x99] sm:$0xff]
        %v932 = vld [vmem:[#allocation2 + $0xa9] sm:$0xff]
        %v933 = vld [vmem:[#allocation2 + $0xb1] sm:$0xff]
        %v934 = vld [vmem:[#allocation2 + $0xc1] sm:$0xff]
        %v935 = vld [vmem:[#allocation2 + $0xc9] sm:$0xff]
        %v936 = vld [vmem:[#allocation2 + $0xd9] sm:$0xff]
        %v937 = vld [vmem:[#allocation2 + $0xe1] sm:$0xff]
        %v938 = vld [vmem:[#allocation2 + $0xf1] sm:$0xff]
        %v939 = vld [vmem:[#allocation2 + $0xf9] sm:$0xff]
        %v940 = vld [vmem:[#allocation2 + $0x109] sm:$0xff]
        %v941 = vld [vmem:[#allocation2 + $0x111] sm:$0xff]
        %v942 = vld [vmem:[#allocation2 + $0x121] sm:$0xff]
        %v943 = vld [vmem:[#allocation2 + $0x129] sm:$0xff]
        %v944 = vld [vmem:[#allocation2 + $0x139] sm:$0xff]
        %v945 = vld [vmem:[#allocation2 + $0x141] sm:$0xff]
        %v946 = vld [vmem:[#allocation2 + $0x151] sm:$0xff]
        %v947 = vld [vmem:[#allocation2 + $0x159] sm:$0xff]
        %v948 = vld [vmem:[#allocation2 + $0x169] sm:$0xff]
        %v949 = vld [vmem:[#allocation2 + $0x171] sm:$0xff]
        %v950 = vld [vmem:[#allocation2 + $0x1b1] sm:$0xff]
        %v951 = vld [vmem:[#allocation2 + $0x1b9] sm:$0xff]
        %v952 = vld [vmem:[#allocation2 + $0x1c9] sm:$0xff]
        %v953 = vld [vmem:[#allocation2 + $0x1d1] sm:$0xff]
        %v954 = vld [vmem:[#allocation2 + $0x1e1] sm:$0xff]
        %v955 = vld [vmem:[#allocation2 + $0x1e9] sm:$0xff]
        %v956 = vld [vmem:[#allocation2 + $0x1f9] sm:$0xff]
        %v957 = vld [vmem:[#allocation2 + $0x201] sm:$0xff]
        %v958 = vld [vmem:[#allocation2 + $0x211] sm:$0xff]
        %v959 = vld [vmem:[#allocation2 + $0x219] sm:$0xff]
        %v960 = vld [vmem:[#allocation2 + $0x229] sm:$0xff]
        %v961 = vld [vmem:[#allocation2 + $0x231] sm:$0xff]
        %v962 = vld [vmem:[#allocation2 + $0x241] sm:$0xff]
        %v963 = vld [vmem:[#allocation2 + $0x249] sm:$0xff]
        %v964 = vld [vmem:[#allocation2 + $0x259] sm:$0xff]
        %v965 = vld [vmem:[#allocation2 + $0x261] sm:$0xff]
        %v966 = vld [vmem:[#allocation2 + $0x271] sm:$0xff]
        %v967 = vld [vmem:[#allocation2 + $0x279] sm:$0xff]
        %v968 = vld [vmem:[#allocation2 + $0x289] sm:$0xff]
        %v969 = vld [vmem:[#allocation2 + $0x291] sm:$0xff]
        %v970 = vld [vmem:[#allocation2 + $0x2a1] sm:$0xff]
        %v971 = vld [vmem:[#allocation2 + $0x2a9] sm:$0xff]
        %v972 = vld [vmem:[#allocation2 + $0x2b9] sm:$0xff]
        %v973 = vld [vmem:[#allocation2 + $0x2c1] sm:$0xff]
        %v974 = vld [vmem:[#allocation2 + $0x2d1] sm:$0xff]
        %v975 = vld [vmem:[#allocation2 + $0x2d9] sm:$0xff]
        %v976 = vld [vmem:[#allocation2 + $0x2e9] sm:$0xff]
        %v977 = vld [vmem:[#allocation2 + $0x2f1] sm:$0xff]
        %v978 = vld [vmem:[#allocation2 + $0x301] sm:$0xff]
        %v979 = vld [vmem:[#allocation2 + $0x309] sm:$0xff]
        %v980 = vld [vmem:[#allocation2 + $0x319] sm:$0xff]
        %v981 = vld [vmem:[#allocation2 + $0x321] sm:$0xff]
        %v982 = vpack.c.bf16 %v918, %v918
        %v983 = vpack.c.bf16 %v919, %v919
        %v984 = vpack.c.bf16 %v920, %v920
        %v985 = vpack.c.bf16 %v921, %v921
        %v986 = vpack.c.bf16 %v922, %v922
        %v987 = vpack.c.bf16 %v923, %v923
        %v988 = vpack.c.bf16 %v924, %v924
        %v989 = vpack.c.bf16 %v925, %v925
        %v990 = vpack.c.bf16 %v926, %v926
        %v991 = vpack.c.bf16 %v927, %v927
        %v992 = vpack.c.bf16 %v928, %v928
        %v993 = vpack.c.bf16 %v929, %v929
        %v994 = vpack.c.bf16 %v930, %v930
        %v995 = vpack.c.bf16 %v931, %v931
        %v996 = vpack.c.bf16 %v932, %v932
        %v997 = vpack.c.bf16 %v933, %v933
        %v998 = vpack.c.bf16 %v934, %v934
        %v999 = vpack.c.bf16 %v935, %v935
        %v1000 = vpack.c.bf16 %v936, %v936
        %v1001 = vpack.c.bf16 %v937, %v937
        %v1002 = vpack.c.bf16 %v938, %v938
        %v1003 = vpack.c.bf16 %v939, %v939
        %v1004 = vpack.c.bf16 %v940, %v940
        %v1005 = vpack.c.bf16 %v941, %v941
        %v1006 = vpack.c.bf16 %v942, %v942
        %v1007 = vpack.c.bf16 %v943, %v943
        %v1008 = vpack.c.bf16 %v944, %v944
        %v1009 = vpack.c.bf16 %v945, %v945
        %v1010 = vpack.c.bf16 %v946, %v946
        %v1011 = vpack.c.bf16 %v947, %v947
        %v1012 = vpack.c.bf16 %v948, %v948
        %v1013 = vpack.c.bf16 %v949, %v949
        %v1014 = vpack.c.bf16 %v950, %v950
        %v1015 = vpack.c.bf16 %v951, %v951
        %v1016 = vpack.c.bf16 %v952, %v952
        %v1017 = vpack.c.bf16 %v953, %v953
        %v1018 = vpack.c.bf16 %v954, %v954
        %v1019 = vpack.c.bf16 %v955, %v955
        %v1020 = vpack.c.bf16 %v956, %v956
        %v1021 = vpack.c.bf16 %v957, %v957
        %v1022 = vpack.c.bf16 %v958, %v958
        %v1023 = vpack.c.bf16 %v959, %v959
        %v1024 = vpack.c.bf16 %v960, %v960
        %v1025 = vpack.c.bf16 %v961, %v961
        %v1026 = vpack.c.bf16 %v962, %v962
        %v1027 = vpack.c.bf16 %v963, %v963
        %v1028 = vpack.c.bf16 %v964, %v964
        %v1029 = vpack.c.bf16 %v965, %v965
        %v1030 = vpack.c.bf16 %v966, %v966
        %v1031 = vpack.c.bf16 %v967, %v967
        %v1032 = vpack.c.bf16 %v968, %v968
        %v1033 = vpack.c.bf16 %v969, %v969
        %v1034 = vpack.c.bf16 %v970, %v970
        %v1035 = vpack.c.bf16 %v971, %v971
        %v1036 = vpack.c.bf16 %v972, %v972
        %v1037 = vpack.c.bf16 %v973, %v973
        %v1038 = vpack.c.bf16 %v974, %v974
        %v1039 = vpack.c.bf16 %v975, %v975
        %v1040 = vpack.c.bf16 %v976, %v976
        %v1041 = vpack.c.bf16 %v977, %v977
        %v1042 = vpack.c.bf16 %v978, %v978
        %v1043 = vpack.c.bf16 %v979, %v979
        %v1044 = vpack.c.bf16 %v980, %v980
        %v1045 = vpack.c.bf16 %v981, %v981
        %1110 = vrot.lane.b32.xlu0 %v982, 4
        %v1111 = vpop.permute.xlu0 %1110
        %1112 = vrot.lane.b32.xlu0 %v983, 4
        %v1113 = vpop.permute.xlu0 %1112
        %1114 = vrot.lane.b32.xlu0 %v984, 4
        %v1115 = vpop.permute.xlu0 %1114
        %1116 = vrot.lane.b32.xlu0 %v985, 4
        %v1117 = vpop.permute.xlu0 %1116
        %1118 = vrot.lane.b32.xlu0 %v986, 4
        %v1119 = vpop.permute.xlu0 %1118
        %1120 = vrot.lane.b32.xlu0 %v987, 4
        %v1121 = vpop.permute.xlu0 %1120
        %1122 = vrot.lane.b32.xlu0 %v988, 4
        %v1123 = vpop.permute.xlu0 %1122
        %1124 = vrot.lane.b32.xlu0 %v989, 4
        %v1125 = vpop.permute.xlu0 %1124
        %1126 = vrot.lane.b32.xlu0 %v990, 4
        %v1127 = vpop.permute.xlu0 %1126
        %1128 = vrot.lane.b32.xlu0 %v991, 4
        %v1129 = vpop.permute.xlu0 %1128
        %1130 = vrot.lane.b32.xlu0 %v992, 4
        %v1131 = vpop.permute.xlu0 %1130
        %1132 = vrot.lane.b32.xlu0 %v993, 4
        %v1133 = vpop.permute.xlu0 %1132
        %1134 = vrot.lane.b32.xlu0 %v994, 4
        %v1135 = vpop.permute.xlu0 %1134
        %1136 = vrot.lane.b32.xlu0 %v995, 4
        %v1137 = vpop.permute.xlu0 %1136
        %1138 = vrot.lane.b32.xlu0 %v996, 4
        %v1139 = vpop.permute.xlu0 %1138
        %1140 = vrot.lane.b32.xlu0 %v997, 4
        %v1141 = vpop.permute.xlu0 %1140
        %1142 = vrot.lane.b32.xlu0 %v998, 4
        %v1143 = vpop.permute.xlu0 %1142
        %1144 = vrot.lane.b32.xlu0 %v999, 4
        %v1145 = vpop.permute.xlu0 %1144
        %1146 = vrot.lane.b32.xlu0 %v1000, 4
        %v1147 = vpop.permute.xlu0 %1146
        %1148 = vrot.lane.b32.xlu0 %v1001, 4
        %v1149 = vpop.permute.xlu0 %1148
        %1150 = vrot.lane.b32.xlu0 %v1002, 4
        %v1151 = vpop.permute.xlu0 %1150
        %1152 = vrot.lane.b32.xlu0 %v1003, 4
        %v1153 = vpop.permute.xlu0 %1152
        %1154 = vrot.lane.b32.xlu0 %v1004, 4
        %v1155 = vpop.permute.xlu0 %1154
        %1156 = vrot.lane.b32.xlu0 %v1005, 4
        %v1157 = vpop.permute.xlu0 %1156
        %1158 = vrot.lane.b32.xlu0 %v1006, 4
        %v1159 = vpop.permute.xlu0 %1158
        %1160 = vrot.lane.b32.xlu0 %v1007, 4
        %v1161 = vpop.permute.xlu0 %1160
        %1162 = vrot.lane.b32.xlu0 %v1008, 4
        %v1163 = vpop.permute.xlu0 %1162
        %1164 = vrot.lane.b32.xlu0 %v1009, 4
        %v1165 = vpop.permute.xlu0 %1164
        %1166 = vrot.lane.b32.xlu0 %v1010, 4
        %v1167 = vpop.permute.xlu0 %1166
        %1168 = vrot.lane.b32.xlu0 %v1011, 4
        %v1169 = vpop.permute.xlu0 %1168
        %1170 = vrot.lane.b32.xlu0 %v1012, 4
        %v1171 = vpop.permute.xlu0 %1170
        %1172 = vrot.lane.b32.xlu0 %v1013, 4
        %v1173 = vpop.permute.xlu0 %1172
        %1174 = vrot.lane.b32.xlu0 %v1014, 4
        %v1175 = vpop.permute.xlu0 %1174
        %1176 = vrot.lane.b32.xlu0 %v1015, 4
        %v1177 = vpop.permute.xlu0 %1176
        %1178 = vrot.lane.b32.xlu0 %v1016, 4
        %v1179 = vpop.permute.xlu0 %1178
        %1180 = vrot.lane.b32.xlu0 %v1017, 4
        %v1181 = vpop.permute.xlu0 %1180
        %1182 = vrot.lane.b32.xlu0 %v1018, 4
        %v1183 = vpop.permute.xlu0 %1182
        %1184 = vrot.lane.b32.xlu0 %v1019, 4
        %v1185 = vpop.permute.xlu0 %1184
        %1186 = vrot.lane.b32.xlu0 %v1020, 4
        %v1187 = vpop.permute.xlu0 %1186
        %1188 = vrot.lane.b32.xlu0 %v1021, 4
        %v1189 = vpop.permute.xlu0 %1188
        %1190 = vrot.lane.b32.xlu0 %v1022, 4
        %v1191 = vpop.permute.xlu0 %1190
        %1192 = vrot.lane.b32.xlu0 %v1023, 4
        %v1193 = vpop.permute.xlu0 %1192
        %1194 = vrot.lane.b32.xlu0 %v1024, 4
        %v1195 = vpop.permute.xlu0 %1194
        %1196 = vrot.lane.b32.xlu0 %v1025, 4
        %v1197 = vpop.permute.xlu0 %1196
        %1198 = vrot.lane.b32.xlu0 %v1026, 4
        %v1199 = vpop.permute.xlu0 %1198
        %1200 = vrot.lane.b32.xlu0 %v1027, 4
        %v1201 = vpop.permute.xlu0 %1200
        %1202 = vrot.lane.b32.xlu0 %v1028, 4
        %v1203 = vpop.permute.xlu0 %1202
        %1204 = vrot.lane.b32.xlu0 %v1029, 4
        %v1205 = vpop.permute.xlu0 %1204
        %1206 = vrot.lane.b32.xlu0 %v1030, 4
        %v1207 = vpop.permute.xlu0 %1206
        %1208 = vrot.lane.b32.xlu0 %v1031, 4
        %v1209 = vpop.permute.xlu0 %1208
        %1210 = vrot.lane.b32.xlu0 %v1032, 4
        %v1211 = vpop.permute.xlu0 %1210
        %1212 = vrot.lane.b32.xlu0 %v1033, 4
        %v1213 = vpop.permute.xlu0 %1212
        %1214 = vrot.lane.b32.xlu0 %v1034, 4
        %v1215 = vpop.permute.xlu0 %1214
        %1216 = vrot.lane.b32.xlu0 %v1035, 4
        %v1217 = vpop.permute.xlu0 %1216
        %1218 = vrot.lane.b32.xlu0 %v1036, 4
        %v1219 = vpop.permute.xlu0 %1218
        %1220 = vrot.lane.b32.xlu0 %v1037, 4
        %v1221 = vpop.permute.xlu0 %1220
        %1222 = vrot.lane.b32.xlu0 %v1038, 4
        %v1223 = vpop.permute.xlu0 %1222
        %1224 = vrot.lane.b32.xlu0 %v1039, 4
        %v1225 = vpop.permute.xlu0 %1224
        %1226 = vrot.lane.b32.xlu0 %v1040, 4
        %v1227 = vpop.permute.xlu0 %1226
        %1228 = vrot.lane.b32.xlu0 %v1041, 4
        %v1229 = vpop.permute.xlu0 %1228
        %1230 = vrot.lane.b32.xlu0 %v1042, 4
        %v1231 = vpop.permute.xlu0 %1230
        %1232 = vrot.lane.b32.xlu0 %v1043, 4
        %v1233 = vpop.permute.xlu0 %1232
        %1234 = vrot.lane.b32.xlu0 %v1044, 4
        %v1235 = vpop.permute.xlu0 %1234
        %1236 = vrot.lane.b32.xlu0 %v1045, 4
        %v1237 = vpop.permute.xlu0 %1236
        %vm1302 = vcmask 60448
        %1303 = vst.msk [vmem:[#allocation4] sm:$0xf] %vm1302, %v1111
        %1304 = vst.msk [vmem:[#allocation4 + $0x4] sm:$0xf] %vm1302, %v1113
        %1305 = vst.msk [vmem:[#allocation4 + $0x8] sm:$0xf] %vm1302, %v1115
        %1306 = vst.msk [vmem:[#allocation4 + $0xc] sm:$0xf] %vm1302, %v1117
        %1307 = vst.msk [vmem:[#allocation4 + $0x10] sm:$0xf] %vm1302, %v1119
        %1308 = vst.msk [vmem:[#allocation4 + $0x14] sm:$0xf] %vm1302, %v1121
        %1309 = vst.msk [vmem:[#allocation4 + $0x18] sm:$0xf] %vm1302, %v1123
        %1310 = vst.msk [vmem:[#allocation4 + $0x1c] sm:$0xf] %vm1302, %v1125
        %1311 = vst.msk [vmem:[#allocation4 + $0x20] sm:$0xf] %vm1302, %v1127
        %1312 = vst.msk [vmem:[#allocation4 + $0x24] sm:$0xf] %vm1302, %v1129
        %1313 = vst.msk [vmem:[#allocation4 + $0x28] sm:$0xf] %vm1302, %v1131
        %1314 = vst.msk [vmem:[#allocation4 + $0x2c] sm:$0xf] %vm1302, %v1133
        %1315 = vst.msk [vmem:[#allocation4 + $0x30] sm:$0xf] %vm1302, %v1135
        %1316 = vst.msk [vmem:[#allocation4 + $0x34] sm:$0xf] %vm1302, %v1137
        %1317 = vst.msk [vmem:[#allocation4 + $0x38] sm:$0xf] %vm1302, %v1139
        %1318 = vst.msk [vmem:[#allocation4 + $0x3c] sm:$0xf] %vm1302, %v1141
        %1319 = vst.msk [vmem:[#allocation4 + $0x40] sm:$0xf] %vm1302, %v1143
        %1320 = vst.msk [vmem:[#allocation4 + $0x44] sm:$0xf] %vm1302, %v1145
        %1321 = vst.msk [vmem:[#allocation4 + $0x48] sm:$0xf] %vm1302, %v1147
        %1322 = vst.msk [vmem:[#allocation4 + $0x4c] sm:$0xf] %vm1302, %v1149
        %1323 = vst.msk [vmem:[#allocation4 + $0x50] sm:$0xf] %vm1302, %v1151
        %1324 = vst.msk [vmem:[#allocation4 + $0x54] sm:$0xf] %vm1302, %v1153
        %1325 = vst.msk [vmem:[#allocation4 + $0x58] sm:$0xf] %vm1302, %v1155
        %1326 = vst.msk [vmem:[#allocation4 + $0x5c] sm:$0xf] %vm1302, %v1157
        %1327 = vst.msk [vmem:[#allocation4 + $0x60] sm:$0xf] %vm1302, %v1159
        %1328 = vst.msk [vmem:[#allocation4 + $0x64] sm:$0xf] %vm1302, %v1161
        %1329 = vst.msk [vmem:[#allocation4 + $0x68] sm:$0xf] %vm1302, %v1163
        %1330 = vst.msk [vmem:[#allocation4 + $0x6c] sm:$0xf] %vm1302, %v1165
        %1331 = vst.msk [vmem:[#allocation4 + $0x70] sm:$0xf] %vm1302, %v1167
        %1332 = vst.msk [vmem:[#allocation4 + $0x74] sm:$0xf] %vm1302, %v1169
        %1333 = vst.msk [vmem:[#allocation4 + $0x78] sm:$0xf] %vm1302, %v1171
        %1334 = vst.msk [vmem:[#allocation4 + $0x7c] sm:$0xf] %vm1302, %v1173
        %1335 = vst.msk [vmem:[#allocation4 + $0x80] sm:$0xf] %vm1302, %v1175
        %1336 = vst.msk [vmem:[#allocation4 + $0x84] sm:$0xf] %vm1302, %v1177
        %1337 = vst.msk [vmem:[#allocation4 + $0x88] sm:$0xf] %vm1302, %v1179
        %1338 = vst.msk [vmem:[#allocation4 + $0x8c] sm:$0xf] %vm1302, %v1181
        %1339 = vst.msk [vmem:[#allocation4 + $0x90] sm:$0xf] %vm1302, %v1183
        %1340 = vst.msk [vmem:[#allocation4 + $0x94] sm:$0xf] %vm1302, %v1185
        %1341 = vst.msk [vmem:[#allocation4 + $0x98] sm:$0xf] %vm1302, %v1187
        %1342 = vst.msk [vmem:[#allocation4 + $0x9c] sm:$0xf] %vm1302, %v1189
        %1343 = vst.msk [vmem:[#allocation4 + $0xa0] sm:$0xf] %vm1302, %v1191
        %1344 = vst.msk [vmem:[#allocation4 + $0xa4] sm:$0xf] %vm1302, %v1193
        %1345 = vst.msk [vmem:[#allocation4 + $0xa8] sm:$0xf] %vm1302, %v1195
        %1346 = vst.msk [vmem:[#allocation4 + $0xac] sm:$0xf] %vm1302, %v1197
        %1347 = vst.msk [vmem:[#allocation4 + $0xb0] sm:$0xf] %vm1302, %v1199
        %1348 = vst.msk [vmem:[#allocation4 + $0xb4] sm:$0xf] %vm1302, %v1201
        %1349 = vst.msk [vmem:[#allocation4 + $0xb8] sm:$0xf] %vm1302, %v1203
        %1350 = vst.msk [vmem:[#allocation4 + $0xbc] sm:$0xf] %vm1302, %v1205
        %1351 = vst.msk [vmem:[#allocation4 + $0xc0] sm:$0xf] %vm1302, %v1207
        %1352 = vst.msk [vmem:[#allocation4 + $0xc4] sm:$0xf] %vm1302, %v1209
        %1353 = vst.msk [vmem:[#allocation4 + $0xc8] sm:$0xf] %vm1302, %v1211
        %1354 = vst.msk [vmem:[#allocation4 + $0xcc] sm:$0xf] %vm1302, %v1213
        %1355 = vst.msk [vmem:[#allocation4 + $0xd0] sm:$0xf] %vm1302, %v1215
        %1356 = vst.msk [vmem:[#allocation4 + $0xd4] sm:$0xf] %vm1302, %v1217
        %1357 = vst.msk [vmem:[#allocation4 + $0xd8] sm:$0xf] %vm1302, %v1219
        %1358 = vst.msk [vmem:[#allocation4 + $0xdc] sm:$0xf] %vm1302, %v1221
        %1359 = vst.msk [vmem:[#allocation4 + $0xe0] sm:$0xf] %vm1302, %v1223
        %1360 = vst.msk [vmem:[#allocation4 + $0xe4] sm:$0xf] %vm1302, %v1225
        %1361 = vst.msk [vmem:[#allocation4 + $0xe8] sm:$0xf] %vm1302, %v1227
        %1362 = vst.msk [vmem:[#allocation4 + $0xec] sm:$0xf] %vm1302, %v1229
        %1363 = vst.msk [vmem:[#allocation4 + $0xf0] sm:$0xf] %vm1302, %v1231
        %1364 = vst.msk [vmem:[#allocation4 + $0xf4] sm:$0xf] %vm1302, %v1233
        %1365 = vst.msk [vmem:[#allocation4 + $0xf8] sm:$0xf] %vm1302, %v1235
        %1366 = vst.msk [vmem:[#allocation4 + $0xfc] sm:$0xf] %vm1302, %v1237
        %v1367 = vld [vmem:[#allocation2 + $0x2] sm:$0xff]
        %v1368 = vld [vmem:[#allocation2 + $0xa] sm:$0xff]
        %v1369 = vld [vmem:[#allocation2 + $0x1a] sm:$0xff]
        %v1370 = vld [vmem:[#allocation2 + $0x22] sm:$0xff]
        %v1371 = vld [vmem:[#allocation2 + $0x32] sm:$0xff]
        %v1372 = vld [vmem:[#allocation2 + $0x3a] sm:$0xff]
        %v1373 = vld [vmem:[#allocation2 + $0x4a] sm:$0xff]
        %v1374 = vld [vmem:[#allocation2 + $0x52] sm:$0xff]
        %v1375 = vld [vmem:[#allocation2 + $0x62] sm:$0xff]
        %v1376 = vld [vmem:[#allocation2 + $0x6a] sm:$0xff]
        %v1377 = vld [vmem:[#allocation2 + $0x7a] sm:$0xff]
        %v1378 = vld [vmem:[#allocation2 + $0x82] sm:$0xff]
        %v1379 = vld [vmem:[#allocation2 + $0x92] sm:$0xff]
        %v1380 = vld [vmem:[#allocation2 + $0x9a] sm:$0xff]
        %v1381 = vld [vmem:[#allocation2 + $0xaa] sm:$0xff]
        %v1382 = vld [vmem:[#allocation2 + $0xb2] sm:$0xff]
        %v1383 = vld [vmem:[#allocation2 + $0xc2] sm:$0xff]
        %v1384 = vld [vmem:[#allocation2 + $0xca] sm:$0xff]
        %v1385 = vld [vmem:[#allocation2 + $0xda] sm:$0xff]
        %v1386 = vld [vmem:[#allocation2 + $0xe2] sm:$0xff]
        %v1387 = vld [vmem:[#allocation2 + $0xf2] sm:$0xff]
        %v1388 = vld [vmem:[#allocation2 + $0xfa] sm:$0xff]
        %v1389 = vld [vmem:[#allocation2 + $0x10a] sm:$0xff]
        %v1390 = vld [vmem:[#allocation2 + $0x112] sm:$0xff]
        %v1391 = vld [vmem:[#allocation2 + $0x122] sm:$0xff]
        %v1392 = vld [vmem:[#allocation2 + $0x12a] sm:$0xff]
        %v1393 = vld [vmem:[#allocation2 + $0x13a] sm:$0xff]
        %v1394 = vld [vmem:[#allocation2 + $0x142] sm:$0xff]
        %v1395 = vld [vmem:[#allocation2 + $0x152] sm:$0xff]
        %v1396 = vld [vmem:[#allocation2 + $0x15a] sm:$0xff]
        %v1397 = vld [vmem:[#allocation2 + $0x16a] sm:$0xff]
        %v1398 = vld [vmem:[#allocation2 + $0x172] sm:$0xff]
        %v1399 = vld [vmem:[#allocation2 + $0x1b2] sm:$0xff]
        %v1400 = vld [vmem:[#allocation2 + $0x1ba] sm:$0xff]
        %v1401 = vld [vmem:[#allocation2 + $0x1ca] sm:$0xff]
        %v1402 = vld [vmem:[#allocation2 + $0x1d2] sm:$0xff]
        %v1403 = vld [vmem:[#allocation2 + $0x1e2] sm:$0xff]
        %v1404 = vld [vmem:[#allocation2 + $0x1ea] sm:$0xff]
        %v1405 = vld [vmem:[#allocation2 + $0x1fa] sm:$0xff]
        %v1406 = vld [vmem:[#allocation2 + $0x202] sm:$0xff]
        %v1407 = vld [vmem:[#allocation2 + $0x212] sm:$0xff]
        %v1408 = vld [vmem:[#allocation2 + $0x21a] sm:$0xff]
        %v1409 = vld [vmem:[#allocation2 + $0x22a] sm:$0xff]
        %v1410 = vld [vmem:[#allocation2 + $0x232] sm:$0xff]
        %v1411 = vld [vmem:[#allocation2 + $0x242] sm:$0xff]
        %v1412 = vld [vmem:[#allocation2 + $0x24a] sm:$0xff]
        %v1413 = vld [vmem:[#allocation2 + $0x25a] sm:$0xff]
        %v1414 = vld [vmem:[#allocation2 + $0x262] sm:$0xff]
        %v1415 = vld [vmem:[#allocation2 + $0x272] sm:$0xff]
        %v1416 = vld [vmem:[#allocation2 + $0x27a] sm:$0xff]
        %v1417 = vld [vmem:[#allocation2 + $0x28a] sm:$0xff]
        %v1418 = vld [vmem:[#allocation2 + $0x292] sm:$0xff]
        %v1419 = vld [vmem:[#allocation2 + $0x2a2] sm:$0xff]
        %v1420 = vld [vmem:[#allocation2 + $0x2aa] sm:$0xff]
        %v1421 = vld [vmem:[#allocation2 + $0x2ba] sm:$0xff]
        %v1422 = vld [vmem:[#allocation2 + $0x2c2] sm:$0xff]
        %v1423 = vld [vmem:[#allocation2 + $0x2d2] sm:$0xff]
        %v1424 = vld [vmem:[#allocation2 + $0x2da] sm:$0xff]
        %v1425 = vld [vmem:[#allocation2 + $0x2ea] sm:$0xff]
        %v1426 = vld [vmem:[#allocation2 + $0x2f2] sm:$0xff]
        %v1427 = vld [vmem:[#allocation2 + $0x302] sm:$0xff]
        %v1428 = vld [vmem:[#allocation2 + $0x30a] sm:$0xff]
        %v1429 = vld [vmem:[#allocation2 + $0x31a] sm:$0xff]
        %v1430 = vld [vmem:[#allocation2 + $0x322] sm:$0xff]
        %v1431 = vpack.c.bf16 %v1367, %v1367
        %v1432 = vpack.c.bf16 %v1368, %v1368
        %v1433 = vpack.c.bf16 %v1369, %v1369
        %v1434 = vpack.c.bf16 %v1370, %v1370
        %v1435 = vpack.c.bf16 %v1371, %v1371
        %v1436 = vpack.c.bf16 %v1372, %v1372
        %v1437 = vpack.c.bf16 %v1373, %v1373
        %v1438 = vpack.c.bf16 %v1374, %v1374
        %v1439 = vpack.c.bf16 %v1375, %v1375
        %v1440 = vpack.c.bf16 %v1376, %v1376
        %v1441 = vpack.c.bf16 %v1377, %v1377
        %v1442 = vpack.c.bf16 %v1378, %v1378
        %v1443 = vpack.c.bf16 %v1379, %v1379
        %v1444 = vpack.c.bf16 %v1380, %v1380
        %v1445 = vpack.c.bf16 %v1381, %v1381
        %v1446 = vpack.c.bf16 %v1382, %v1382
        %v1447 = vpack.c.bf16 %v1383, %v1383
        %v1448 = vpack.c.bf16 %v1384, %v1384
        %v1449 = vpack.c.bf16 %v1385, %v1385
        %v1450 = vpack.c.bf16 %v1386, %v1386
        %v1451 = vpack.c.bf16 %v1387, %v1387
        %v1452 = vpack.c.bf16 %v1388, %v1388
        %v1453 = vpack.c.bf16 %v1389, %v1389
        %v1454 = vpack.c.bf16 %v1390, %v1390
        %v1455 = vpack.c.bf16 %v1391, %v1391
        %v1456 = vpack.c.bf16 %v1392, %v1392
        %v1457 = vpack.c.bf16 %v1393, %v1393
        %v1458 = vpack.c.bf16 %v1394, %v1394
        %v1459 = vpack.c.bf16 %v1395, %v1395
        %v1460 = vpack.c.bf16 %v1396, %v1396
        %v1461 = vpack.c.bf16 %v1397, %v1397
        %v1462 = vpack.c.bf16 %v1398, %v1398
        %v1463 = vpack.c.bf16 %v1399, %v1399
        %v1464 = vpack.c.bf16 %v1400, %v1400
        %v1465 = vpack.c.bf16 %v1401, %v1401
        %v1466 = vpack.c.bf16 %v1402, %v1402
        %v1467 = vpack.c.bf16 %v1403, %v1403
        %v1468 = vpack.c.bf16 %v1404, %v1404
        %v1469 = vpack.c.bf16 %v1405, %v1405
        %v1470 = vpack.c.bf16 %v1406, %v1406
        %v1471 = vpack.c.bf16 %v1407, %v1407
        %v1472 = vpack.c.bf16 %v1408, %v1408
        %v1473 = vpack.c.bf16 %v1409, %v1409
        %v1474 = vpack.c.bf16 %v1410, %v1410
        %v1475 = vpack.c.bf16 %v1411, %v1411
        %v1476 = vpack.c.bf16 %v1412, %v1412
        %v1477 = vpack.c.bf16 %v1413, %v1413
        %v1478 = vpack.c.bf16 %v1414, %v1414
        %v1479 = vpack.c.bf16 %v1415, %v1415
        %v1480 = vpack.c.bf16 %v1416, %v1416
        %v1481 = vpack.c.bf16 %v1417, %v1417
        %v1482 = vpack.c.bf16 %v1418, %v1418
        %v1483 = vpack.c.bf16 %v1419, %v1419
        %v1484 = vpack.c.bf16 %v1420, %v1420
        %v1485 = vpack.c.bf16 %v1421, %v1421
        %v1486 = vpack.c.bf16 %v1422, %v1422
        %v1487 = vpack.c.bf16 %v1423, %v1423
        %v1488 = vpack.c.bf16 %v1424, %v1424
        %v1489 = vpack.c.bf16 %v1425, %v1425
        %v1490 = vpack.c.bf16 %v1426, %v1426
        %v1491 = vpack.c.bf16 %v1427, %v1427
        %v1492 = vpack.c.bf16 %v1428, %v1428
        %v1493 = vpack.c.bf16 %v1429, %v1429
        %v1494 = vpack.c.bf16 %v1430, %v1430
        %1559 = vrot.lane.b32.xlu0 %v1431, 8
        %v1560 = vpop.permute.xlu0 %1559
        %1561 = vrot.lane.b32.xlu0 %v1432, 8
        %v1562 = vpop.permute.xlu0 %1561
        %1563 = vrot.lane.b32.xlu0 %v1433, 8
        %v1564 = vpop.permute.xlu0 %1563
        %1565 = vrot.lane.b32.xlu0 %v1434, 8
        %v1566 = vpop.permute.xlu0 %1565
        %1567 = vrot.lane.b32.xlu0 %v1435, 8
        %v1568 = vpop.permute.xlu0 %1567
        %1569 = vrot.lane.b32.xlu0 %v1436, 8
        %v1570 = vpop.permute.xlu0 %1569
        %1571 = vrot.lane.b32.xlu0 %v1437, 8
        %v1572 = vpop.permute.xlu0 %1571
        %1573 = vrot.lane.b32.xlu0 %v1438, 8
        %v1574 = vpop.permute.xlu0 %1573
        %1575 = vrot.lane.b32.xlu0 %v1439, 8
        %v1576 = vpop.permute.xlu0 %1575
        %1577 = vrot.lane.b32.xlu0 %v1440, 8
        %v1578 = vpop.permute.xlu0 %1577
        %1579 = vrot.lane.b32.xlu0 %v1441, 8
        %v1580 = vpop.permute.xlu0 %1579
        %1581 = vrot.lane.b32.xlu0 %v1442, 8
        %v1582 = vpop.permute.xlu0 %1581
        %1583 = vrot.lane.b32.xlu0 %v1443, 8
        %v1584 = vpop.permute.xlu0 %1583
        %1585 = vrot.lane.b32.xlu0 %v1444, 8
        %v1586 = vpop.permute.xlu0 %1585
        %1587 = vrot.lane.b32.xlu0 %v1445, 8
        %v1588 = vpop.permute.xlu0 %1587
        %1589 = vrot.lane.b32.xlu0 %v1446, 8
        %v1590 = vpop.permute.xlu0 %1589
        %1591 = vrot.lane.b32.xlu0 %v1447, 8
        %v1592 = vpop.permute.xlu0 %1591
        %1593 = vrot.lane.b32.xlu0 %v1448, 8
        %v1594 = vpop.permute.xlu0 %1593
        %1595 = vrot.lane.b32.xlu0 %v1449, 8
        %v1596 = vpop.permute.xlu0 %1595
        %1597 = vrot.lane.b32.xlu0 %v1450, 8
        %v1598 = vpop.permute.xlu0 %1597
        %1599 = vrot.lane.b32.xlu0 %v1451, 8
        %v1600 = vpop.permute.xlu0 %1599
        %1601 = vrot.lane.b32.xlu0 %v1452, 8
        %v1602 = vpop.permute.xlu0 %1601
        %1603 = vrot.lane.b32.xlu0 %v1453, 8
        %v1604 = vpop.permute.xlu0 %1603
        %1605 = vrot.lane.b32.xlu0 %v1454, 8
        %v1606 = vpop.permute.xlu0 %1605
        %1607 = vrot.lane.b32.xlu0 %v1455, 8
        %v1608 = vpop.permute.xlu0 %1607
        %1609 = vrot.lane.b32.xlu0 %v1456, 8
        %v1610 = vpop.permute.xlu0 %1609
        %1611 = vrot.lane.b32.xlu0 %v1457, 8
        %v1612 = vpop.permute.xlu0 %1611
        %1613 = vrot.lane.b32.xlu0 %v1458, 8
        %v1614 = vpop.permute.xlu0 %1613
        %1615 = vrot.lane.b32.xlu0 %v1459, 8
        %v1616 = vpop.permute.xlu0 %1615
        %1617 = vrot.lane.b32.xlu0 %v1460, 8
        %v1618 = vpop.permute.xlu0 %1617
        %1619 = vrot.lane.b32.xlu0 %v1461, 8
        %v1620 = vpop.permute.xlu0 %1619
        %1621 = vrot.lane.b32.xlu0 %v1462, 8
        %v1622 = vpop.permute.xlu0 %1621
        %1623 = vrot.lane.b32.xlu0 %v1463, 8
        %v1624 = vpop.permute.xlu0 %1623
        %1625 = vrot.lane.b32.xlu0 %v1464, 8
        %v1626 = vpop.permute.xlu0 %1625
        %1627 = vrot.lane.b32.xlu0 %v1465, 8
        %v1628 = vpop.permute.xlu0 %1627
        %1629 = vrot.lane.b32.xlu0 %v1466, 8
        %v1630 = vpop.permute.xlu0 %1629
        %1631 = vrot.lane.b32.xlu0 %v1467, 8
        %v1632 = vpop.permute.xlu0 %1631
        %1633 = vrot.lane.b32.xlu0 %v1468, 8
        %v1634 = vpop.permute.xlu0 %1633
        %1635 = vrot.lane.b32.xlu0 %v1469, 8
        %v1636 = vpop.permute.xlu0 %1635
        %1637 = vrot.lane.b32.xlu0 %v1470, 8
        %v1638 = vpop.permute.xlu0 %1637
        %1639 = vrot.lane.b32.xlu0 %v1471, 8
        %v1640 = vpop.permute.xlu0 %1639
        %1641 = vrot.lane.b32.xlu0 %v1472, 8
        %v1642 = vpop.permute.xlu0 %1641
        %1643 = vrot.lane.b32.xlu0 %v1473, 8
        %v1644 = vpop.permute.xlu0 %1643
        %1645 = vrot.lane.b32.xlu0 %v1474, 8
        %v1646 = vpop.permute.xlu0 %1645
        %1647 = vrot.lane.b32.xlu0 %v1475, 8
        %v1648 = vpop.permute.xlu0 %1647
        %1649 = vrot.lane.b32.xlu0 %v1476, 8
        %v1650 = vpop.permute.xlu0 %1649
        %1651 = vrot.lane.b32.xlu0 %v1477, 8
        %v1652 = vpop.permute.xlu0 %1651
        %1653 = vrot.lane.b32.xlu0 %v1478, 8
        %v1654 = vpop.permute.xlu0 %1653
        %1655 = vrot.lane.b32.xlu0 %v1479, 8
        %v1656 = vpop.permute.xlu0 %1655
        %1657 = vrot.lane.b32.xlu0 %v1480, 8
        %v1658 = vpop.permute.xlu0 %1657
        %1659 = vrot.lane.b32.xlu0 %v1481, 8
        %v1660 = vpop.permute.xlu0 %1659
        %1661 = vrot.lane.b32.xlu0 %v1482, 8
        %v1662 = vpop.permute.xlu0 %1661
        %1663 = vrot.lane.b32.xlu0 %v1483, 8
        %v1664 = vpop.permute.xlu0 %1663
        %1665 = vrot.lane.b32.xlu0 %v1484, 8
        %v1666 = vpop.permute.xlu0 %1665
        %1667 = vrot.lane.b32.xlu0 %v1485, 8
        %v1668 = vpop.permute.xlu0 %1667
        %1669 = vrot.lane.b32.xlu0 %v1486, 8
        %v1670 = vpop.permute.xlu0 %1669
        %1671 = vrot.lane.b32.xlu0 %v1487, 8
        %v1672 = vpop.permute.xlu0 %1671
        %1673 = vrot.lane.b32.xlu0 %v1488, 8
        %v1674 = vpop.permute.xlu0 %1673
        %1675 = vrot.lane.b32.xlu0 %v1489, 8
        %v1676 = vpop.permute.xlu0 %1675
        %1677 = vrot.lane.b32.xlu0 %v1490, 8
        %v1678 = vpop.permute.xlu0 %1677
        %1679 = vrot.lane.b32.xlu0 %v1491, 8
        %v1680 = vpop.permute.xlu0 %1679
        %1681 = vrot.lane.b32.xlu0 %v1492, 8
        %v1682 = vpop.permute.xlu0 %1681
        %1683 = vrot.lane.b32.xlu0 %v1493, 8
        %v1684 = vpop.permute.xlu0 %1683
        %1685 = vrot.lane.b32.xlu0 %v1494, 8
        %v1686 = vpop.permute.xlu0 %1685
        %vm1751 = vcmask 93248
        %1752 = vst.msk [vmem:[#allocation4] sm:$0xf] %vm1751, %v1560
        %1753 = vst.msk [vmem:[#allocation4 + $0x4] sm:$0xf] %vm1751, %v1562
        %1754 = vst.msk [vmem:[#allocation4 + $0x8] sm:$0xf] %vm1751, %v1564
        %1755 = vst.msk [vmem:[#allocation4 + $0xc] sm:$0xf] %vm1751, %v1566
        %1756 = vst.msk [vmem:[#allocation4 + $0x10] sm:$0xf] %vm1751, %v1568
        %1757 = vst.msk [vmem:[#allocation4 + $0x14] sm:$0xf] %vm1751, %v1570
        %1758 = vst.msk [vmem:[#allocation4 + $0x18] sm:$0xf] %vm1751, %v1572
        %1759 = vst.msk [vmem:[#allocation4 + $0x1c] sm:$0xf] %vm1751, %v1574
        %1760 = vst.msk [vmem:[#allocation4 + $0x20] sm:$0xf] %vm1751, %v1576
        %1761 = vst.msk [vmem:[#allocation4 + $0x24] sm:$0xf] %vm1751, %v1578
        %1762 = vst.msk [vmem:[#allocation4 + $0x28] sm:$0xf] %vm1751, %v1580
        %1763 = vst.msk [vmem:[#allocation4 + $0x2c] sm:$0xf] %vm1751, %v1582
        %1764 = vst.msk [vmem:[#allocation4 + $0x30] sm:$0xf] %vm1751, %v1584
        %1765 = vst.msk [vmem:[#allocation4 + $0x34] sm:$0xf] %vm1751, %v1586
        %1766 = vst.msk [vmem:[#allocation4 + $0x38] sm:$0xf] %vm1751, %v1588
        %1767 = vst.msk [vmem:[#allocation4 + $0x3c] sm:$0xf] %vm1751, %v1590
        %1768 = vst.msk [vmem:[#allocation4 + $0x40] sm:$0xf] %vm1751, %v1592
        %1769 = vst.msk [vmem:[#allocation4 + $0x44] sm:$0xf] %vm1751, %v1594
        %1770 = vst.msk [vmem:[#allocation4 + $0x48] sm:$0xf] %vm1751, %v1596
        %1771 = vst.msk [vmem:[#allocation4 + $0x4c] sm:$0xf] %vm1751, %v1598
        %1772 = vst.msk [vmem:[#allocation4 + $0x50] sm:$0xf] %vm1751, %v1600
        %1773 = vst.msk [vmem:[#allocation4 + $0x54] sm:$0xf] %vm1751, %v1602
        %1774 = vst.msk [vmem:[#allocation4 + $0x58] sm:$0xf] %vm1751, %v1604
        %1775 = vst.msk [vmem:[#allocation4 + $0x5c] sm:$0xf] %vm1751, %v1606
        %1776 = vst.msk [vmem:[#allocation4 + $0x60] sm:$0xf] %vm1751, %v1608
        %1777 = vst.msk [vmem:[#allocation4 + $0x64] sm:$0xf] %vm1751, %v1610
        %1778 = vst.msk [vmem:[#allocation4 + $0x68] sm:$0xf] %vm1751, %v1612
        %1779 = vst.msk [vmem:[#allocation4 + $0x6c] sm:$0xf] %vm1751, %v1614
        %1780 = vst.msk [vmem:[#allocation4 + $0x70] sm:$0xf] %vm1751, %v1616
        %1781 = vst.msk [vmem:[#allocation4 + $0x74] sm:$0xf] %vm1751, %v1618
        %1782 = vst.msk [vmem:[#allocation4 + $0x78] sm:$0xf] %vm1751, %v1620
        %1783 = vst.msk [vmem:[#allocation4 + $0x7c] sm:$0xf] %vm1751, %v1622
        %1784 = vst.msk [vmem:[#allocation4 + $0x80] sm:$0xf] %vm1751, %v1624
        %1785 = vst.msk [vmem:[#allocation4 + $0x84] sm:$0xf] %vm1751, %v1626
        %1786 = vst.msk [vmem:[#allocation4 + $0x88] sm:$0xf] %vm1751, %v1628
        %1787 = vst.msk [vmem:[#allocation4 + $0x8c] sm:$0xf] %vm1751, %v1630
        %1788 = vst.msk [vmem:[#allocation4 + $0x90] sm:$0xf] %vm1751, %v1632
        %1789 = vst.msk [vmem:[#allocation4 + $0x94] sm:$0xf] %vm1751, %v1634
        %1790 = vst.msk [vmem:[#allocation4 + $0x98] sm:$0xf] %vm1751, %v1636
        %1791 = vst.msk [vmem:[#allocation4 + $0x9c] sm:$0xf] %vm1751, %v1638
        %1792 = vst.msk [vmem:[#allocation4 + $0xa0] sm:$0xf] %vm1751, %v1640
        %1793 = vst.msk [vmem:[#allocation4 + $0xa4] sm:$0xf] %vm1751, %v1642
        %1794 = vst.msk [vmem:[#allocation4 + $0xa8] sm:$0xf] %vm1751, %v1644
        %1795 = vst.msk [vmem:[#allocation4 + $0xac] sm:$0xf] %vm1751, %v1646
        %1796 = vst.msk [vmem:[#allocation4 + $0xb0] sm:$0xf] %vm1751, %v1648
        %1797 = vst.msk [vmem:[#allocation4 + $0xb4] sm:$0xf] %vm1751, %v1650
        %1798 = vst.msk [vmem:[#allocation4 + $0xb8] sm:$0xf] %vm1751, %v1652
        %1799 = vst.msk [vmem:[#allocation4 + $0xbc] sm:$0xf] %vm1751, %v1654
        %1800 = vst.msk [vmem:[#allocation4 + $0xc0] sm:$0xf] %vm1751, %v1656
        %1801 = vst.msk [vmem:[#allocation4 + $0xc4] sm:$0xf] %vm1751, %v1658
        %1802 = vst.msk [vmem:[#allocation4 + $0xc8] sm:$0xf] %vm1751, %v1660
        %1803 = vst.msk [vmem:[#allocation4 + $0xcc] sm:$0xf] %vm1751, %v1662
        %1804 = vst.msk [vmem:[#allocation4 + $0xd0] sm:$0xf] %vm1751, %v1664
        %1805 = vst.msk [vmem:[#allocation4 + $0xd4] sm:$0xf] %vm1751, %v1666
        %1806 = vst.msk [vmem:[#allocation4 + $0xd8] sm:$0xf] %vm1751, %v1668
        %1807 = vst.msk [vmem:[#allocation4 + $0xdc] sm:$0xf] %vm1751, %v1670
        %1808 = vst.msk [vmem:[#allocation4 + $0xe0] sm:$0xf] %vm1751, %v1672
        %1809 = vst.msk [vmem:[#allocation4 + $0xe4] sm:$0xf] %vm1751, %v1674
        %1810 = vst.msk [vmem:[#allocation4 + $0xe8] sm:$0xf] %vm1751, %v1676
        %1811 = vst.msk [vmem:[#allocation4 + $0xec] sm:$0xf] %vm1751, %v1678
        %1812 = vst.msk [vmem:[#allocation4 + $0xf0] sm:$0xf] %vm1751, %v1680
        %1813 = vst.msk [vmem:[#allocation4 + $0xf4] sm:$0xf] %vm1751, %v1682
        %1814 = vst.msk [vmem:[#allocation4 + $0xf8] sm:$0xf] %vm1751, %v1684
        %1815 = vst.msk [vmem:[#allocation4 + $0xfc] sm:$0xf] %vm1751, %v1686
        %v1816 = vld [vmem:[%s660] sm:$0xff]
        %v1817 = vld [vmem:[%s660 + $0x8] sm:$0xff]
        %v1818 = vld [vmem:[%s660 + $0x18] sm:$0xff]
        %v1819 = vld [vmem:[%s660 + $0x20] sm:$0xff]
        %v1820 = vld [vmem:[%s660 + $0x30] sm:$0xff]
        %v1821 = vld [vmem:[%s660 + $0x38] sm:$0xff]
        %v1822 = vld [vmem:[%s660 + $0x48] sm:$0xff]
        %v1823 = vld [vmem:[%s660 + $0x50] sm:$0xff]
        %v1824 = vld [vmem:[%s660 + $0x60] sm:$0xff]
        %v1825 = vld [vmem:[%s660 + $0x68] sm:$0xff]
        %v1826 = vld [vmem:[%s660 + $0x78] sm:$0xff]
        %v1827 = vld [vmem:[%s660 + $0x80] sm:$0xff]
        %v1828 = vld [vmem:[%s660 + $0x90] sm:$0xff]
        %v1829 = vld [vmem:[%s660 + $0x98] sm:$0xff]
        %v1830 = vld [vmem:[%s660 + $0xa8] sm:$0xff]
        %v1831 = vld [vmem:[%s660 + $0xb0] sm:$0xff]
        %v1832 = vld [vmem:[%s660 + $0xc0] sm:$0xff]
        %v1833 = vld [vmem:[%s660 + $0xc8] sm:$0xff]
        %v1834 = vld [vmem:[%s660 + $0xd8] sm:$0xff]
        %v1835 = vld [vmem:[%s660 + $0xe0] sm:$0xff]
        %v1836 = vld [vmem:[%s660 + $0xf0] sm:$0xff]
        %v1837 = vld [vmem:[%s660 + $0xf8] sm:$0xff]
        %v1838 = vld [vmem:[%s660 + $0x108] sm:$0xff]
        %v1839 = vld [vmem:[%s660 + $0x110] sm:$0xff]
        %v1840 = vld [vmem:[%s660 + $0x120] sm:$0xff]
        %v1841 = vld [vmem:[%s660 + $0x128] sm:$0xff]
        %v1842 = vld [vmem:[%s660 + $0x138] sm:$0xff]
        %v1843 = vld [vmem:[%s660 + $0x140] sm:$0xff]
        %v1844 = vld [vmem:[%s660 + $0x150] sm:$0xff]
        %v1845 = vld [vmem:[%s660 + $0x158] sm:$0xff]
        %v1846 = vld [vmem:[%s660 + $0x168] sm:$0xff]
        %v1847 = vld [vmem:[%s660 + $0x170] sm:$0xff]
        %v1848 = vld [vmem:[%s660 + $0x1b0] sm:$0xff]
        %v1849 = vld [vmem:[%s660 + $0x1b8] sm:$0xff]
        %v1850 = vld [vmem:[%s660 + $0x1c8] sm:$0xff]
        %v1851 = vld [vmem:[%s660 + $0x1d0] sm:$0xff]
        %v1852 = vld [vmem:[%s660 + $0x1e0] sm:$0xff]
        %v1853 = vld [vmem:[%s660 + $0x1e8] sm:$0xff]
        %v1854 = vld [vmem:[%s660 + $0x1f8] sm:$0xff]
        %v1855 = vld [vmem:[%s660 + $0x200] sm:$0xff]
        %v1856 = vld [vmem:[%s660 + $0x210] sm:$0xff]
        %v1857 = vld [vmem:[%s660 + $0x218] sm:$0xff]
        %v1858 = vld [vmem:[%s660 + $0x228] sm:$0xff]
        %v1859 = vld [vmem:[%s660 + $0x230] sm:$0xff]
        %v1860 = vld [vmem:[%s660 + $0x240] sm:$0xff]
        %v1861 = vld [vmem:[%s660 + $0x248] sm:$0xff]
        %v1862 = vld [vmem:[%s660 + $0x258] sm:$0xff]
        %v1863 = vld [vmem:[%s660 + $0x260] sm:$0xff]
        %v1864 = vld [vmem:[%s660 + $0x270] sm:$0xff]
        %v1865 = vld [vmem:[%s660 + $0x278] sm:$0xff]
        %v1866 = vld [vmem:[%s660 + $0x288] sm:$0xff]
        %v1867 = vld [vmem:[%s660 + $0x290] sm:$0xff]
        %v1868 = vld [vmem:[%s660 + $0x2a0] sm:$0xff]
        %v1869 = vld [vmem:[%s660 + $0x2a8] sm:$0xff]
        %v1870 = vld [vmem:[%s660 + $0x2b8] sm:$0xff]
        %v1871 = vld [vmem:[%s660 + $0x2c0] sm:$0xff]
        %v1872 = vld [vmem:[%s660 + $0x2d0] sm:$0xff]
        %v1873 = vld [vmem:[%s660 + $0x2d8] sm:$0xff]
        %v1874 = vld [vmem:[%s660 + $0x2e8] sm:$0xff]
        %v1875 = vld [vmem:[%s660 + $0x2f0] sm:$0xff]
        %v1876 = vld [vmem:[%s660 + $0x300] sm:$0xff]
        %v1877 = vld [vmem:[%s660 + $0x308] sm:$0xff]
        %v1878 = vld [vmem:[%s660 + $0x318] sm:$0xff]
        %v1879 = vld [vmem:[%s660 + $0x320] sm:$0xff]
        %v1880 = vpack.c.bf16 %v1816, %v1816
        %v1881 = vpack.c.bf16 %v1817, %v1817
        %v1882 = vpack.c.bf16 %v1818, %v1818
        %v1883 = vpack.c.bf16 %v1819, %v1819
        %v1884 = vpack.c.bf16 %v1820, %v1820
        %v1885 = vpack.c.bf16 %v1821, %v1821
        %v1886 = vpack.c.bf16 %v1822, %v1822
        %v1887 = vpack.c.bf16 %v1823, %v1823
        %v1888 = vpack.c.bf16 %v1824, %v1824
        %v1889 = vpack.c.bf16 %v1825, %v1825
        %v1890 = vpack.c.bf16 %v1826, %v1826
        %v1891 = vpack.c.bf16 %v1827, %v1827
        %v1892 = vpack.c.bf16 %v1828, %v1828
        %v1893 = vpack.c.bf16 %v1829, %v1829
        %v1894 = vpack.c.bf16 %v1830, %v1830
        %v1895 = vpack.c.bf16 %v1831, %v1831
        %v1896 = vpack.c.bf16 %v1832, %v1832
        %v1897 = vpack.c.bf16 %v1833, %v1833
        %v1898 = vpack.c.bf16 %v1834, %v1834
        %v1899 = vpack.c.bf16 %v1835, %v1835
        %v1900 = vpack.c.bf16 %v1836, %v1836
        %v1901 = vpack.c.bf16 %v1837, %v1837
        %v1902 = vpack.c.bf16 %v1838, %v1838
        %v1903 = vpack.c.bf16 %v1839, %v1839
        %v1904 = vpack.c.bf16 %v1840, %v1840
        %v1905 = vpack.c.bf16 %v1841, %v1841
        %v1906 = vpack.c.bf16 %v1842, %v1842
        %v1907 = vpack.c.bf16 %v1843, %v1843
        %v1908 = vpack.c.bf16 %v1844, %v1844
        %v1909 = vpack.c.bf16 %v1845, %v1845
        %v1910 = vpack.c.bf16 %v1846, %v1846
        %v1911 = vpack.c.bf16 %v1847, %v1847
        %v1912 = vpack.c.bf16 %v1848, %v1848
        %v1913 = vpack.c.bf16 %v1849, %v1849
        %v1914 = vpack.c.bf16 %v1850, %v1850
        %v1915 = vpack.c.bf16 %v1851, %v1851
        %v1916 = vpack.c.bf16 %v1852, %v1852
        %v1917 = vpack.c.bf16 %v1853, %v1853
        %v1918 = vpack.c.bf16 %v1854, %v1854
        %v1919 = vpack.c.bf16 %v1855, %v1855
        %v1920 = vpack.c.bf16 %v1856, %v1856
        %v1921 = vpack.c.bf16 %v1857, %v1857
        %v1922 = vpack.c.bf16 %v1858, %v1858
        %v1923 = vpack.c.bf16 %v1859, %v1859
        %v1924 = vpack.c.bf16 %v1860, %v1860
        %v1925 = vpack.c.bf16 %v1861, %v1861
        %v1926 = vpack.c.bf16 %v1862, %v1862
        %v1927 = vpack.c.bf16 %v1863, %v1863
        %v1928 = vpack.c.bf16 %v1864, %v1864
        %v1929 = vpack.c.bf16 %v1865, %v1865
        %v1930 = vpack.c.bf16 %v1866, %v1866
        %v1931 = vpack.c.bf16 %v1867, %v1867
        %v1932 = vpack.c.bf16 %v1868, %v1868
        %v1933 = vpack.c.bf16 %v1869, %v1869
        %v1934 = vpack.c.bf16 %v1870, %v1870
        %v1935 = vpack.c.bf16 %v1871, %v1871
        %v1936 = vpack.c.bf16 %v1872, %v1872
        %v1937 = vpack.c.bf16 %v1873, %v1873
        %v1938 = vpack.c.bf16 %v1874, %v1874
        %v1939 = vpack.c.bf16 %v1875, %v1875
        %v1940 = vpack.c.bf16 %v1876, %v1876
        %v1941 = vpack.c.bf16 %v1877, %v1877
        %v1942 = vpack.c.bf16 %v1878, %v1878
        %v1943 = vpack.c.bf16 %v1879, %v1879
        %2008 = vrot.lane.b32.xlu0 %v1880, 12
        %v2009 = vpop.permute.xlu0 %2008
        %2010 = vrot.lane.b32.xlu0 %v1881, 12
        %v2011 = vpop.permute.xlu0 %2010
        %2012 = vrot.lane.b32.xlu0 %v1882, 12
        %v2013 = vpop.permute.xlu0 %2012
        %2014 = vrot.lane.b32.xlu0 %v1883, 12
        %v2015 = vpop.permute.xlu0 %2014
        %2016 = vrot.lane.b32.xlu0 %v1884, 12
        %v2017 = vpop.permute.xlu0 %2016
        %2018 = vrot.lane.b32.xlu0 %v1885, 12
        %v2019 = vpop.permute.xlu0 %2018
        %2020 = vrot.lane.b32.xlu0 %v1886, 12
        %v2021 = vpop.permute.xlu0 %2020
        %2022 = vrot.lane.b32.xlu0 %v1887, 12
        %v2023 = vpop.permute.xlu0 %2022
        %2024 = vrot.lane.b32.xlu0 %v1888, 12
        %v2025 = vpop.permute.xlu0 %2024
        %2026 = vrot.lane.b32.xlu0 %v1889, 12
        %v2027 = vpop.permute.xlu0 %2026
        %2028 = vrot.lane.b32.xlu0 %v1890, 12
        %v2029 = vpop.permute.xlu0 %2028
        %2030 = vrot.lane.b32.xlu0 %v1891, 12
        %v2031 = vpop.permute.xlu0 %2030
        %2032 = vrot.lane.b32.xlu0 %v1892, 12
        %v2033 = vpop.permute.xlu0 %2032
        %2034 = vrot.lane.b32.xlu0 %v1893, 12
        %v2035 = vpop.permute.xlu0 %2034
        %2036 = vrot.lane.b32.xlu0 %v1894, 12
        %v2037 = vpop.permute.xlu0 %2036
        %2038 = vrot.lane.b32.xlu0 %v1895, 12
        %v2039 = vpop.permute.xlu0 %2038
        %2040 = vrot.lane.b32.xlu0 %v1896, 12
        %v2041 = vpop.permute.xlu0 %2040
        %2042 = vrot.lane.b32.xlu0 %v1897, 12
        %v2043 = vpop.permute.xlu0 %2042
        %2044 = vrot.lane.b32.xlu0 %v1898, 12
        %v2045 = vpop.permute.xlu0 %2044
        %2046 = vrot.lane.b32.xlu0 %v1899, 12
        %v2047 = vpop.permute.xlu0 %2046
        %2048 = vrot.lane.b32.xlu0 %v1900, 12
        %v2049 = vpop.permute.xlu0 %2048
        %2050 = vrot.lane.b32.xlu0 %v1901, 12
        %v2051 = vpop.permute.xlu0 %2050
        %2052 = vrot.lane.b32.xlu0 %v1902, 12
        %v2053 = vpop.permute.xlu0 %2052
        %2054 = vrot.lane.b32.xlu0 %v1903, 12
        %v2055 = vpop.permute.xlu0 %2054
        %2056 = vrot.lane.b32.xlu0 %v1904, 12
        %v2057 = vpop.permute.xlu0 %2056
        %2058 = vrot.lane.b32.xlu0 %v1905, 12
        %v2059 = vpop.permute.xlu0 %2058
        %2060 = vrot.lane.b32.xlu0 %v1906, 12
        %v2061 = vpop.permute.xlu0 %2060
        %2062 = vrot.lane.b32.xlu0 %v1907, 12
        %v2063 = vpop.permute.xlu0 %2062
        %2064 = vrot.lane.b32.xlu0 %v1908, 12
        %v2065 = vpop.permute.xlu0 %2064
        %2066 = vrot.lane.b32.xlu0 %v1909, 12
        %v2067 = vpop.permute.xlu0 %2066
        %2068 = vrot.lane.b32.xlu0 %v1910, 12
        %v2069 = vpop.permute.xlu0 %2068
        %2070 = vrot.lane.b32.xlu0 %v1911, 12
        %v2071 = vpop.permute.xlu0 %2070
        %2072 = vrot.lane.b32.xlu0 %v1912, 12
        %v2073 = vpop.permute.xlu0 %2072
        %2074 = vrot.lane.b32.xlu0 %v1913, 12
        %v2075 = vpop.permute.xlu0 %2074
        %2076 = vrot.lane.b32.xlu0 %v1914, 12
        %v2077 = vpop.permute.xlu0 %2076
        %2078 = vrot.lane.b32.xlu0 %v1915, 12
        %v2079 = vpop.permute.xlu0 %2078
        %2080 = vrot.lane.b32.xlu0 %v1916, 12
        %v2081 = vpop.permute.xlu0 %2080
        %2082 = vrot.lane.b32.xlu0 %v1917, 12
        %v2083 = vpop.permute.xlu0 %2082
        %2084 = vrot.lane.b32.xlu0 %v1918, 12
        %v2085 = vpop.permute.xlu0 %2084
        %2086 = vrot.lane.b32.xlu0 %v1919, 12
        %v2087 = vpop.permute.xlu0 %2086
        %2088 = vrot.lane.b32.xlu0 %v1920, 12
        %v2089 = vpop.permute.xlu0 %2088
        %2090 = vrot.lane.b32.xlu0 %v1921, 12
        %v2091 = vpop.permute.xlu0 %2090
        %2092 = vrot.lane.b32.xlu0 %v1922, 12
        %v2093 = vpop.permute.xlu0 %2092
        %2094 = vrot.lane.b32.xlu0 %v1923, 12
        %v2095 = vpop.permute.xlu0 %2094
        %2096 = vrot.lane.b32.xlu0 %v1924, 12
        %v2097 = vpop.permute.xlu0 %2096
        %2098 = vrot.lane.b32.xlu0 %v1925, 12
        %v2099 = vpop.permute.xlu0 %2098
        %2100 = vrot.lane.b32.xlu0 %v1926, 12
        %v2101 = vpop.permute.xlu0 %2100
        %2102 = vrot.lane.b32.xlu0 %v1927, 12
        %v2103 = vpop.permute.xlu0 %2102
        %2104 = vrot.lane.b32.xlu0 %v1928, 12
        %v2105 = vpop.permute.xlu0 %2104
        %2106 = vrot.lane.b32.xlu0 %v1929, 12
        %v2107 = vpop.permute.xlu0 %2106
        %2108 = vrot.lane.b32.xlu0 %v1930, 12
        %v2109 = vpop.permute.xlu0 %2108
        %2110 = vrot.lane.b32.xlu0 %v1931, 12
        %v2111 = vpop.permute.xlu0 %2110
        %2112 = vrot.lane.b32.xlu0 %v1932, 12
        %v2113 = vpop.permute.xlu0 %2112
        %2114 = vrot.lane.b32.xlu0 %v1933, 12
        %v2115 = vpop.permute.xlu0 %2114
        %2116 = vrot.lane.b32.xlu0 %v1934, 12
        %v2117 = vpop.permute.xlu0 %2116
        %2118 = vrot.lane.b32.xlu0 %v1935, 12
        %v2119 = vpop.permute.xlu0 %2118
        %2120 = vrot.lane.b32.xlu0 %v1936, 12
        %v2121 = vpop.permute.xlu0 %2120
        %2122 = vrot.lane.b32.xlu0 %v1937, 12
        %v2123 = vpop.permute.xlu0 %2122
        %2124 = vrot.lane.b32.xlu0 %v1938, 12
        %v2125 = vpop.permute.xlu0 %2124
        %2126 = vrot.lane.b32.xlu0 %v1939, 12
        %v2127 = vpop.permute.xlu0 %2126
        %2128 = vrot.lane.b32.xlu0 %v1940, 12
        %v2129 = vpop.permute.xlu0 %2128
        %2130 = vrot.lane.b32.xlu0 %v1941, 12
        %v2131 = vpop.permute.xlu0 %2130
        %2132 = vrot.lane.b32.xlu0 %v1942, 12
        %v2133 = vpop.permute.xlu0 %2132
        %2134 = vrot.lane.b32.xlu0 %v1943, 12
        %v2135 = vpop.permute.xlu0 %2134
        %vm2200 = vcmask 126048
        %2201 = vst.msk [vmem:[#allocation4] sm:$0xf] %vm2200, %v2009
        %2202 = vst.msk [vmem:[#allocation4 + $0x4] sm:$0xf] %vm2200, %v2011
        %2203 = vst.msk [vmem:[#allocation4 + $0x8] sm:$0xf] %vm2200, %v2013
        %2204 = vst.msk [vmem:[#allocation4 + $0xc] sm:$0xf] %vm2200, %v2015
        %2205 = vst.msk [vmem:[#allocation4 + $0x10] sm:$0xf] %vm2200, %v2017
        %2206 = vst.msk [vmem:[#allocation4 + $0x14] sm:$0xf] %vm2200, %v2019
        %2207 = vst.msk [vmem:[#allocation4 + $0x18] sm:$0xf] %vm2200, %v2021
        %2208 = vst.msk [vmem:[#allocation4 + $0x1c] sm:$0xf] %vm2200, %v2023
        %2209 = vst.msk [vmem:[#allocation4 + $0x20] sm:$0xf] %vm2200, %v2025
        %2210 = vst.msk [vmem:[#allocation4 + $0x24] sm:$0xf] %vm2200, %v2027
        %2211 = vst.msk [vmem:[#allocation4 + $0x28] sm:$0xf] %vm2200, %v2029
        %2212 = vst.msk [vmem:[#allocation4 + $0x2c] sm:$0xf] %vm2200, %v2031
        %2213 = vst.msk [vmem:[#allocation4 + $0x30] sm:$0xf] %vm2200, %v2033
        %2214 = vst.msk [vmem:[#allocation4 + $0x34] sm:$0xf] %vm2200, %v2035
        %2215 = vst.msk [vmem:[#allocation4 + $0x38] sm:$0xf] %vm2200, %v2037
        %2216 = vst.msk [vmem:[#allocation4 + $0x3c] sm:$0xf] %vm2200, %v2039
        %2217 = vst.msk [vmem:[#allocation4 + $0x40] sm:$0xf] %vm2200, %v2041
        %2218 = vst.msk [vmem:[#allocation4 + $0x44] sm:$0xf] %vm2200, %v2043
        %2219 = vst.msk [vmem:[#allocation4 + $0x48] sm:$0xf] %vm2200, %v2045
        %2220 = vst.msk [vmem:[#allocation4 + $0x4c] sm:$0xf] %vm2200, %v2047
        %2221 = vst.msk [vmem:[#allocation4 + $0x50] sm:$0xf] %vm2200, %v2049
        %2222 = vst.msk [vmem:[#allocation4 + $0x54] sm:$0xf] %vm2200, %v2051
        %2223 = vst.msk [vmem:[#allocation4 + $0x58] sm:$0xf] %vm2200, %v2053
        %2224 = vst.msk [vmem:[#allocation4 + $0x5c] sm:$0xf] %vm2200, %v2055
        %2225 = vst.msk [vmem:[#allocation4 + $0x60] sm:$0xf] %vm2200, %v2057
        %2226 = vst.msk [vmem:[#allocation4 + $0x64] sm:$0xf] %vm2200, %v2059
        %2227 = vst.msk [vmem:[#allocation4 + $0x68] sm:$0xf] %vm2200, %v2061
        %2228 = vst.msk [vmem:[#allocation4 + $0x6c] sm:$0xf] %vm2200, %v2063
        %2229 = vst.msk [vmem:[#allocation4 + $0x70] sm:$0xf] %vm2200, %v2065
        %2230 = vst.msk [vmem:[#allocation4 + $0x74] sm:$0xf] %vm2200, %v2067
        %2231 = vst.msk [vmem:[#allocation4 + $0x78] sm:$0xf] %vm2200, %v2069
        %2232 = vst.msk [vmem:[#allocation4 + $0x7c] sm:$0xf] %vm2200, %v2071
        %2233 = vst.msk [vmem:[#allocation4 + $0x80] sm:$0xf] %vm2200, %v2073
        %2234 = vst.msk [vmem:[#allocation4 + $0x84] sm:$0xf] %vm2200, %v2075
        %2235 = vst.msk [vmem:[#allocation4 + $0x88] sm:$0xf] %vm2200, %v2077
        %2236 = vst.msk [vmem:[#allocation4 + $0x8c] sm:$0xf] %vm2200, %v2079
        %2237 = vst.msk [vmem:[#allocation4 + $0x90] sm:$0xf] %vm2200, %v2081
        %2238 = vst.msk [vmem:[#allocation4 + $0x94] sm:$0xf] %vm2200, %v2083
        %2239 = vst.msk [vmem:[#allocation4 + $0x98] sm:$0xf] %vm2200, %v2085
        %2240 = vst.msk [vmem:[#allocation4 + $0x9c] sm:$0xf] %vm2200, %v2087
        %2241 = vst.msk [vmem:[#allocation4 + $0xa0] sm:$0xf] %vm2200, %v2089
        %2242 = vst.msk [vmem:[#allocation4 + $0xa4] sm:$0xf] %vm2200, %v2091
        %2243 = vst.msk [vmem:[#allocation4 + $0xa8] sm:$0xf] %vm2200, %v2093
        %2244 = vst.msk [vmem:[#allocation4 + $0xac] sm:$0xf] %vm2200, %v2095
        %2245 = vst.msk [vmem:[#allocation4 + $0xb0] sm:$0xf] %vm2200, %v2097
        %2246 = vst.msk [vmem:[#allocation4 + $0xb4] sm:$0xf] %vm2200, %v2099
        %2247 = vst.msk [vmem:[#allocation4 + $0xb8] sm:$0xf] %vm2200, %v2101
        %2248 = vst.msk [vmem:[#allocation4 + $0xbc] sm:$0xf] %vm2200, %v2103
        %2249 = vst.msk [vmem:[#allocation4 + $0xc0] sm:$0xf] %vm2200, %v2105
        %2250 = vst.msk [vmem:[#allocation4 + $0xc4] sm:$0xf] %vm2200, %v2107
        %2251 = vst.msk [vmem:[#allocation4 + $0xc8] sm:$0xf] %vm2200, %v2109
        %2252 = vst.msk [vmem:[#allocation4 + $0xcc] sm:$0xf] %vm2200, %v2111
        %2253 = vst.msk [vmem:[#allocation4 + $0xd0] sm:$0xf] %vm2200, %v2113
        %2254 = vst.msk [vmem:[#allocation4 + $0xd4] sm:$0xf] %vm2200, %v2115
        %2255 = vst.msk [vmem:[#allocation4 + $0xd8] sm:$0xf] %vm2200, %v2117
        %2256 = vst.msk [vmem:[#allocation4 + $0xdc] sm:$0xf] %vm2200, %v2119
        %2257 = vst.msk [vmem:[#allocation4 + $0xe0] sm:$0xf] %vm2200, %v2121
        %2258 = vst.msk [vmem:[#allocation4 + $0xe4] sm:$0xf] %vm2200, %v2123
        %2259 = vst.msk [vmem:[#allocation4 + $0xe8] sm:$0xf] %vm2200, %v2125
        %2260 = vst.msk [vmem:[#allocation4 + $0xec] sm:$0xf] %vm2200, %v2127
        %2261 = vst.msk [vmem:[#allocation4 + $0xf0] sm:$0xf] %vm2200, %v2129
        %2262 = vst.msk [vmem:[#allocation4 + $0xf4] sm:$0xf] %vm2200, %v2131
        %2263 = vst.msk [vmem:[#allocation4 + $0xf8] sm:$0xf] %vm2200, %v2133
        %2264 = vst.msk [vmem:[#allocation4 + $0xfc] sm:$0xf] %vm2200, %v2135
        %v2265 = vld [vmem:[%s660 + $0x1] sm:$0xff]
        %v2266 = vld [vmem:[%s660 + $0x9] sm:$0xff]
        %v2267 = vld [vmem:[%s660 + $0x19] sm:$0xff]
        %v2268 = vld [vmem:[%s660 + $0x21] sm:$0xff]
        %v2269 = vld [vmem:[%s660 + $0x31] sm:$0xff]
        %v2270 = vld [vmem:[%s660 + $0x39] sm:$0xff]
        %v2271 = vld [vmem:[%s660 + $0x49] sm:$0xff]
        %v2272 = vld [vmem:[%s660 + $0x51] sm:$0xff]
        %v2273 = vld [vmem:[%s660 + $0x61] sm:$0xff]
        %v2274 = vld [vmem:[%s660 + $0x69] sm:$0xff]
        %v2275 = vld [vmem:[%s660 + $0x79] sm:$0xff]
        %v2276 = vld [vmem:[%s660 + $0x81] sm:$0xff]
        %v2277 = vld [vmem:[%s660 + $0x91] sm:$0xff]
        %v2278 = vld [vmem:[%s660 + $0x99] sm:$0xff]
        %v2279 = vld [vmem:[%s660 + $0xa9] sm:$0xff]
        %v2280 = vld [vmem:[%s660 + $0xb1] sm:$0xff]
        %v2281 = vld [vmem:[%s660 + $0xc1] sm:$0xff]
        %v2282 = vld [vmem:[%s660 + $0xc9] sm:$0xff]
        %v2283 = vld [vmem:[%s660 + $0xd9] sm:$0xff]
        %v2284 = vld [vmem:[%s660 + $0xe1] sm:$0xff]
        %v2285 = vld [vmem:[%s660 + $0xf1] sm:$0xff]
        %v2286 = vld [vmem:[%s660 + $0xf9] sm:$0xff]
        %v2287 = vld [vmem:[%s660 + $0x109] sm:$0xff]
        %v2288 = vld [vmem:[%s660 + $0x111] sm:$0xff]
        %v2289 = vld [vmem:[%s660 + $0x121] sm:$0xff]
        %v2290 = vld [vmem:[%s660 + $0x129] sm:$0xff]
        %v2291 = vld [vmem:[%s660 + $0x139] sm:$0xff]
        %v2292 = vld [vmem:[%s660 + $0x141] sm:$0xff]
        %v2293 = vld [vmem:[%s660 + $0x151] sm:$0xff]
        %v2294 = vld [vmem:[%s660 + $0x159] sm:$0xff]
        %v2295 = vld [vmem:[%s660 + $0x169] sm:$0xff]
        %v2296 = vld [vmem:[%s660 + $0x171] sm:$0xff]
        %v2297 = vld [vmem:[%s660 + $0x1b1] sm:$0xff]
        %v2298 = vld [vmem:[%s660 + $0x1b9] sm:$0xff]
        %v2299 = vld [vmem:[%s660 + $0x1c9] sm:$0xff]
        %v2300 = vld [vmem:[%s660 + $0x1d1] sm:$0xff]
        %v2301 = vld [vmem:[%s660 + $0x1e1] sm:$0xff]
        %v2302 = vld [vmem:[%s660 + $0x1e9] sm:$0xff]
        %v2303 = vld [vmem:[%s660 + $0x1f9] sm:$0xff]
        %v2304 = vld [vmem:[%s660 + $0x201] sm:$0xff]
        %v2305 = vld [vmem:[%s660 + $0x211] sm:$0xff]
        %v2306 = vld [vmem:[%s660 + $0x219] sm:$0xff]
        %v2307 = vld [vmem:[%s660 + $0x229] sm:$0xff]
        %v2308 = vld [vmem:[%s660 + $0x231] sm:$0xff]
        %v2309 = vld [vmem:[%s660 + $0x241] sm:$0xff]
        %v2310 = vld [vmem:[%s660 + $0x249] sm:$0xff]
        %v2311 = vld [vmem:[%s660 + $0x259] sm:$0xff]
        %v2312 = vld [vmem:[%s660 + $0x261] sm:$0xff]
        %v2313 = vld [vmem:[%s660 + $0x271] sm:$0xff]
        %v2314 = vld [vmem:[%s660 + $0x279] sm:$0xff]
        %v2315 = vld [vmem:[%s660 + $0x289] sm:$0xff]
        %v2316 = vld [vmem:[%s660 + $0x291] sm:$0xff]
        %v2317 = vld [vmem:[%s660 + $0x2a1] sm:$0xff]
        %v2318 = vld [vmem:[%s660 + $0x2a9] sm:$0xff]
        %v2319 = vld [vmem:[%s660 + $0x2b9] sm:$0xff]
        %v2320 = vld [vmem:[%s660 + $0x2c1] sm:$0xff]
        %v2321 = vld [vmem:[%s660 + $0x2d1] sm:$0xff]
        %v2322 = vld [vmem:[%s660 + $0x2d9] sm:$0xff]
        %v2323 = vld [vmem:[%s660 + $0x2e9] sm:$0xff]
        %v2324 = vld [vmem:[%s660 + $0x2f1] sm:$0xff]
        %v2325 = vld [vmem:[%s660 + $0x301] sm:$0xff]
        %v2326 = vld [vmem:[%s660 + $0x309] sm:$0xff]
        %v2327 = vld [vmem:[%s660 + $0x319] sm:$0xff]
        %v2328 = vld [vmem:[%s660 + $0x321] sm:$0xff]
        %v2329 = vpack.c.bf16 %v2265, %v2265
        %v2330 = vpack.c.bf16 %v2266, %v2266
        %v2331 = vpack.c.bf16 %v2267, %v2267
        %v2332 = vpack.c.bf16 %v2268, %v2268
        %v2333 = vpack.c.bf16 %v2269, %v2269
        %v2334 = vpack.c.bf16 %v2270, %v2270
        %v2335 = vpack.c.bf16 %v2271, %v2271
        %v2336 = vpack.c.bf16 %v2272, %v2272
        %v2337 = vpack.c.bf16 %v2273, %v2273
        %v2338 = vpack.c.bf16 %v2274, %v2274
        %v2339 = vpack.c.bf16 %v2275, %v2275
        %v2340 = vpack.c.bf16 %v2276, %v2276
        %v2341 = vpack.c.bf16 %v2277, %v2277
        %v2342 = vpack.c.bf16 %v2278, %v2278
        %v2343 = vpack.c.bf16 %v2279, %v2279
        %v2344 = vpack.c.bf16 %v2280, %v2280
        %v2345 = vpack.c.bf16 %v2281, %v2281
        %v2346 = vpack.c.bf16 %v2282, %v2282
        %v2347 = vpack.c.bf16 %v2283, %v2283
        %v2348 = vpack.c.bf16 %v2284, %v2284
        %v2349 = vpack.c.bf16 %v2285, %v2285
        %v2350 = vpack.c.bf16 %v2286, %v2286
        %v2351 = vpack.c.bf16 %v2287, %v2287
        %v2352 = vpack.c.bf16 %v2288, %v2288
        %v2353 = vpack.c.bf16 %v2289, %v2289
        %v2354 = vpack.c.bf16 %v2290, %v2290
        %v2355 = vpack.c.bf16 %v2291, %v2291
        %v2356 = vpack.c.bf16 %v2292, %v2292
        %v2357 = vpack.c.bf16 %v2293, %v2293
        %v2358 = vpack.c.bf16 %v2294, %v2294
        %v2359 = vpack.c.bf16 %v2295, %v2295
        %v2360 = vpack.c.bf16 %v2296, %v2296
        %v2361 = vpack.c.bf16 %v2297, %v2297
        %v2362 = vpack.c.bf16 %v2298, %v2298
        %v2363 = vpack.c.bf16 %v2299, %v2299
        %v2364 = vpack.c.bf16 %v2300, %v2300
        %v2365 = vpack.c.bf16 %v2301, %v2301
        %v2366 = vpack.c.bf16 %v2302, %v2302
        %v2367 = vpack.c.bf16 %v2303, %v2303
        %v2368 = vpack.c.bf16 %v2304, %v2304
        %v2369 = vpack.c.bf16 %v2305, %v2305
        %v2370 = vpack.c.bf16 %v2306, %v2306
        %v2371 = vpack.c.bf16 %v2307, %v2307
        %v2372 = vpack.c.bf16 %v2308, %v2308
        %v2373 = vpack.c.bf16 %v2309, %v2309
        %v2374 = vpack.c.bf16 %v2310, %v2310
        %v2375 = vpack.c.bf16 %v2311, %v2311
        %v2376 = vpack.c.bf16 %v2312, %v2312
        %v2377 = vpack.c.bf16 %v2313, %v2313
        %v2378 = vpack.c.bf16 %v2314, %v2314
        %v2379 = vpack.c.bf16 %v2315, %v2315
        %v2380 = vpack.c.bf16 %v2316, %v2316
        %v2381 = vpack.c.bf16 %v2317, %v2317
        %v2382 = vpack.c.bf16 %v2318, %v2318
        %v2383 = vpack.c.bf16 %v2319, %v2319
        %v2384 = vpack.c.bf16 %v2320, %v2320
        %v2385 = vpack.c.bf16 %v2321, %v2321
        %v2386 = vpack.c.bf16 %v2322, %v2322
        %v2387 = vpack.c.bf16 %v2323, %v2323
        %v2388 = vpack.c.bf16 %v2324, %v2324
        %v2389 = vpack.c.bf16 %v2325, %v2325
        %v2390 = vpack.c.bf16 %v2326, %v2326
        %v2391 = vpack.c.bf16 %v2327, %v2327
        %v2392 = vpack.c.bf16 %v2328, %v2328
        %2457 = vrot.lane.b32.xlu0 %v2329, 16
        %v2458 = vpop.permute.xlu0 %2457
        %2459 = vrot.lane.b32.xlu0 %v2330, 16
        %v2460 = vpop.permute.xlu0 %2459
        %2461 = vrot.lane.b32.xlu0 %v2331, 16
        %v2462 = vpop.permute.xlu0 %2461
        %2463 = vrot.lane.b32.xlu0 %v2332, 16
        %v2464 = vpop.permute.xlu0 %2463
        %2465 = vrot.lane.b32.xlu0 %v2333, 16
        %v2466 = vpop.permute.xlu0 %2465
        %2467 = vrot.lane.b32.xlu0 %v2334, 16
        %v2468 = vpop.permute.xlu0 %2467
        %2469 = vrot.lane.b32.xlu0 %v2335, 16
        %v2470 = vpop.permute.xlu0 %2469
        %2471 = vrot.lane.b32.xlu0 %v2336, 16
        %v2472 = vpop.permute.xlu0 %2471
        %2473 = vrot.lane.b32.xlu0 %v2337, 16
        %v2474 = vpop.permute.xlu0 %2473
        %2475 = vrot.lane.b32.xlu0 %v2338, 16
        %v2476 = vpop.permute.xlu0 %2475
        %2477 = vrot.lane.b32.xlu0 %v2339, 16
        %v2478 = vpop.permute.xlu0 %2477
        %2479 = vrot.lane.b32.xlu0 %v2340, 16
        %v2480 = vpop.permute.xlu0 %2479
        %2481 = vrot.lane.b32.xlu0 %v2341, 16
        %v2482 = vpop.permute.xlu0 %2481
        %2483 = vrot.lane.b32.xlu0 %v2342, 16
        %v2484 = vpop.permute.xlu0 %2483
        %2485 = vrot.lane.b32.xlu0 %v2343, 16
        %v2486 = vpop.permute.xlu0 %2485
        %2487 = vrot.lane.b32.xlu0 %v2344, 16
        %v2488 = vpop.permute.xlu0 %2487
        %2489 = vrot.lane.b32.xlu0 %v2345, 16
        %v2490 = vpop.permute.xlu0 %2489
        %2491 = vrot.lane.b32.xlu0 %v2346, 16
        %v2492 = vpop.permute.xlu0 %2491
        %2493 = vrot.lane.b32.xlu0 %v2347, 16
        %v2494 = vpop.permute.xlu0 %2493
        %2495 = vrot.lane.b32.xlu0 %v2348, 16
        %v2496 = vpop.permute.xlu0 %2495
        %2497 = vrot.lane.b32.xlu0 %v2349, 16
        %v2498 = vpop.permute.xlu0 %2497
        %2499 = vrot.lane.b32.xlu0 %v2350, 16
        %v2500 = vpop.permute.xlu0 %2499
        %2501 = vrot.lane.b32.xlu0 %v2351, 16
        %v2502 = vpop.permute.xlu0 %2501
        %2503 = vrot.lane.b32.xlu0 %v2352, 16
        %v2504 = vpop.permute.xlu0 %2503
        %2505 = vrot.lane.b32.xlu0 %v2353, 16
        %v2506 = vpop.permute.xlu0 %2505
        %2507 = vrot.lane.b32.xlu0 %v2354, 16
        %v2508 = vpop.permute.xlu0 %2507
        %2509 = vrot.lane.b32.xlu0 %v2355, 16
        %v2510 = vpop.permute.xlu0 %2509
        %2511 = vrot.lane.b32.xlu0 %v2356, 16
        %v2512 = vpop.permute.xlu0 %2511
        %2513 = vrot.lane.b32.xlu0 %v2357, 16
        %v2514 = vpop.permute.xlu0 %2513
        %2515 = vrot.lane.b32.xlu0 %v2358, 16
        %v2516 = vpop.permute.xlu0 %2515
        %2517 = vrot.lane.b32.xlu0 %v2359, 16
        %v2518 = vpop.permute.xlu0 %2517
        %2519 = vrot.lane.b32.xlu0 %v2360, 16
        %v2520 = vpop.permute.xlu0 %2519
        %2521 = vrot.lane.b32.xlu0 %v2361, 16
        %v2522 = vpop.permute.xlu0 %2521
        %2523 = vrot.lane.b32.xlu0 %v2362, 16
        %v2524 = vpop.permute.xlu0 %2523
        %2525 = vrot.lane.b32.xlu0 %v2363, 16
        %v2526 = vpop.permute.xlu0 %2525
        %2527 = vrot.lane.b32.xlu0 %v2364, 16
        %v2528 = vpop.permute.xlu0 %2527
        %2529 = vrot.lane.b32.xlu0 %v2365, 16
        %v2530 = vpop.permute.xlu0 %2529
        %2531 = vrot.lane.b32.xlu0 %v2366, 16
        %v2532 = vpop.permute.xlu0 %2531
        %2533 = vrot.lane.b32.xlu0 %v2367, 16
        %v2534 = vpop.permute.xlu0 %2533
        %2535 = vrot.lane.b32.xlu0 %v2368, 16
        %v2536 = vpop.permute.xlu0 %2535
        %2537 = vrot.lane.b32.xlu0 %v2369, 16
        %v2538 = vpop.permute.xlu0 %2537
        %2539 = vrot.lane.b32.xlu0 %v2370, 16
        %v2540 = vpop.permute.xlu0 %2539
        %2541 = vrot.lane.b32.xlu0 %v2371, 16
        %v2542 = vpop.permute.xlu0 %2541
        %2543 = vrot.lane.b32.xlu0 %v2372, 16
        %v2544 = vpop.permute.xlu0 %2543
        %2545 = vrot.lane.b32.xlu0 %v2373, 16
        %v2546 = vpop.permute.xlu0 %2545
        %2547 = vrot.lane.b32.xlu0 %v2374, 16
        %v2548 = vpop.permute.xlu0 %2547
        %2549 = vrot.lane.b32.xlu0 %v2375, 16
        %v2550 = vpop.permute.xlu0 %2549
        %2551 = vrot.lane.b32.xlu0 %v2376, 16
        %v2552 = vpop.permute.xlu0 %2551
        %2553 = vrot.lane.b32.xlu0 %v2377, 16
        %v2554 = vpop.permute.xlu0 %2553
        %2555 = vrot.lane.b32.xlu0 %v2378, 16
        %v2556 = vpop.permute.xlu0 %2555
        %2557 = vrot.lane.b32.xlu0 %v2379, 16
        %v2558 = vpop.permute.xlu0 %2557
        %2559 = vrot.lane.b32.xlu0 %v2380, 16
        %v2560 = vpop.permute.xlu0 %2559
        %2561 = vrot.lane.b32.xlu0 %v2381, 16
        %v2562 = vpop.permute.xlu0 %2561
        %2563 = vrot.lane.b32.xlu0 %v2382, 16
        %v2564 = vpop.permute.xlu0 %2563
        %2565 = vrot.lane.b32.xlu0 %v2383, 16
        %v2566 = vpop.permute.xlu0 %2565
        %2567 = vrot.lane.b32.xlu0 %v2384, 16
        %v2568 = vpop.permute.xlu0 %2567
        %2569 = vrot.lane.b32.xlu0 %v2385, 16
        %v2570 = vpop.permute.xlu0 %2569
        %2571 = vrot.lane.b32.xlu0 %v2386, 16
        %v2572 = vpop.permute.xlu0 %2571
        %2573 = vrot.lane.b32.xlu0 %v2387, 16
        %v2574 = vpop.permute.xlu0 %2573
        %2575 = vrot.lane.b32.xlu0 %v2388, 16
        %v2576 = vpop.permute.xlu0 %2575
        %2577 = vrot.lane.b32.xlu0 %v2389, 16
        %v2578 = vpop.permute.xlu0 %2577
        %2579 = vrot.lane.b32.xlu0 %v2390, 16
        %v2580 = vpop.permute.xlu0 %2579
        %2581 = vrot.lane.b32.xlu0 %v2391, 16
        %v2582 = vpop.permute.xlu0 %2581
        %2583 = vrot.lane.b32.xlu0 %v2392, 16
        %v2584 = vpop.permute.xlu0 %2583
        %vm2649 = vcmask 158848
        %2650 = vst.msk [vmem:[#allocation4] sm:$0xf] %vm2649, %v2458
        %2651 = vst.msk [vmem:[#allocation4 + $0x4] sm:$0xf] %vm2649, %v2460
        %2652 = vst.msk [vmem:[#allocation4 + $0x8] sm:$0xf] %vm2649, %v2462
        %2653 = vst.msk [vmem:[#allocation4 + $0xc] sm:$0xf] %vm2649, %v2464
        %2654 = vst.msk [vmem:[#allocation4 + $0x10] sm:$0xf] %vm2649, %v2466
        %2655 = vst.msk [vmem:[#allocation4 + $0x14] sm:$0xf] %vm2649, %v2468
        %2656 = vst.msk [vmem:[#allocation4 + $0x18] sm:$0xf] %vm2649, %v2470
        %2657 = vst.msk [vmem:[#allocation4 + $0x1c] sm:$0xf] %vm2649, %v2472
        %2658 = vst.msk [vmem:[#allocation4 + $0x20] sm:$0xf] %vm2649, %v2474
        %2659 = vst.msk [vmem:[#allocation4 + $0x24] sm:$0xf] %vm2649, %v2476
        %2660 = vst.msk [vmem:[#allocation4 + $0x28] sm:$0xf] %vm2649, %v2478
        %2661 = vst.msk [vmem:[#allocation4 + $0x2c] sm:$0xf] %vm2649, %v2480
        %2662 = vst.msk [vmem:[#allocation4 + $0x30] sm:$0xf] %vm2649, %v2482
        %2663 = vst.msk [vmem:[#allocation4 + $0x34] sm:$0xf] %vm2649, %v2484
        %2664 = vst.msk [vmem:[#allocation4 + $0x38] sm:$0xf] %vm2649, %v2486
        %2665 = vst.msk [vmem:[#allocation4 + $0x3c] sm:$0xf] %vm2649, %v2488
        %2666 = vst.msk [vmem:[#allocation4 + $0x40] sm:$0xf] %vm2649, %v2490
        %2667 = vst.msk [vmem:[#allocation4 + $0x44] sm:$0xf] %vm2649, %v2492
        %2668 = vst.msk [vmem:[#allocation4 + $0x48] sm:$0xf] %vm2649, %v2494
        %2669 = vst.msk [vmem:[#allocation4 + $0x4c] sm:$0xf] %vm2649, %v2496
        %2670 = vst.msk [vmem:[#allocation4 + $0x50] sm:$0xf] %vm2649, %v2498
        %2671 = vst.msk [vmem:[#allocation4 + $0x54] sm:$0xf] %vm2649, %v2500
        %2672 = vst.msk [vmem:[#allocation4 + $0x58] sm:$0xf] %vm2649, %v2502
        %2673 = vst.msk [vmem:[#allocation4 + $0x5c] sm:$0xf] %vm2649, %v2504
        %2674 = vst.msk [vmem:[#allocation4 + $0x60] sm:$0xf] %vm2649, %v2506
        %2675 = vst.msk [vmem:[#allocation4 + $0x64] sm:$0xf] %vm2649, %v2508
        %2676 = vst.msk [vmem:[#allocation4 + $0x68] sm:$0xf] %vm2649, %v2510
        %2677 = vst.msk [vmem:[#allocation4 + $0x6c] sm:$0xf] %vm2649, %v2512
        %2678 = vst.msk [vmem:[#allocation4 + $0x70] sm:$0xf] %vm2649, %v2514
        %2679 = vst.msk [vmem:[#allocation4 + $0x74] sm:$0xf] %vm2649, %v2516
        %2680 = vst.msk [vmem:[#allocation4 + $0x78] sm:$0xf] %vm2649, %v2518
        %2681 = vst.msk [vmem:[#allocation4 + $0x7c] sm:$0xf] %vm2649, %v2520
        %2682 = vst.msk [vmem:[#allocation4 + $0x80] sm:$0xf] %vm2649, %v2522
        %2683 = vst.msk [vmem:[#allocation4 + $0x84] sm:$0xf] %vm2649, %v2524
        %2684 = vst.msk [vmem:[#allocation4 + $0x88] sm:$0xf] %vm2649, %v2526
        %2685 = vst.msk [vmem:[#allocation4 + $0x8c] sm:$0xf] %vm2649, %v2528
        %2686 = vst.msk [vmem:[#allocation4 + $0x90] sm:$0xf] %vm2649, %v2530
        %2687 = vst.msk [vmem:[#allocation4 + $0x94] sm:$0xf] %vm2649, %v2532
        %2688 = vst.msk [vmem:[#allocation4 + $0x98] sm:$0xf] %vm2649, %v2534
        %2689 = vst.msk [vmem:[#allocation4 + $0x9c] sm:$0xf] %vm2649, %v2536
        %2690 = vst.msk [vmem:[#allocation4 + $0xa0] sm:$0xf] %vm2649, %v2538
        %2691 = vst.msk [vmem:[#allocation4 + $0xa4] sm:$0xf] %vm2649, %v2540
        %2692 = vst.msk [vmem:[#allocation4 + $0xa8] sm:$0xf] %vm2649, %v2542
        %2693 = vst.msk [vmem:[#allocation4 + $0xac] sm:$0xf] %vm2649, %v2544
        %2694 = vst.msk [vmem:[#allocation4 + $0xb0] sm:$0xf] %vm2649, %v2546
        %2695 = vst.msk [vmem:[#allocation4 + $0xb4] sm:$0xf] %vm2649, %v2548
        %2696 = vst.msk [vmem:[#allocation4 + $0xb8] sm:$0xf] %vm2649, %v2550
        %2697 = vst.msk [vmem:[#allocation4 + $0xbc] sm:$0xf] %vm2649, %v2552
        %2698 = vst.msk [vmem:[#allocation4 + $0xc0] sm:$0xf] %vm2649, %v2554
        %2699 = vst.msk [vmem:[#allocation4 + $0xc4] sm:$0xf] %vm2649, %v2556
        %2700 = vst.msk [vmem:[#allocation4 + $0xc8] sm:$0xf] %vm2649, %v2558
        %2701 = vst.msk [vmem:[#allocation4 + $0xcc] sm:$0xf] %vm2649, %v2560
        %2702 = vst.msk [vmem:[#allocation4 + $0xd0] sm:$0xf] %vm2649, %v2562
        %2703 = vst.msk [vmem:[#allocation4 + $0xd4] sm:$0xf] %vm2649, %v2564
        %2704 = vst.msk [vmem:[#allocation4 + $0xd8] sm:$0xf] %vm2649, %v2566
        %2705 = vst.msk [vmem:[#allocation4 + $0xdc] sm:$0xf] %vm2649, %v2568
        %2706 = vst.msk [vmem:[#allocation4 + $0xe0] sm:$0xf] %vm2649, %v2570
        %2707 = vst.msk [vmem:[#allocation4 + $0xe4] sm:$0xf] %vm2649, %v2572
        %2708 = vst.msk [vmem:[#allocation4 + $0xe8] sm:$0xf] %vm2649, %v2574
        %2709 = vst.msk [vmem:[#allocation4 + $0xec] sm:$0xf] %vm2649, %v2576
        %2710 = vst.msk [vmem:[#allocation4 + $0xf0] sm:$0xf] %vm2649, %v2578
        %2711 = vst.msk [vmem:[#allocation4 + $0xf4] sm:$0xf] %vm2649, %v2580
        %2712 = vst.msk [vmem:[#allocation4 + $0xf8] sm:$0xf] %vm2649, %v2582
        %2713 = vst.msk [vmem:[#allocation4 + $0xfc] sm:$0xf] %vm2649, %v2584
        %v2714 = vld [vmem:[%s660 + $0x2] sm:$0xff]
        %v2715 = vld [vmem:[%s660 + $0xa] sm:$0xff]
        %v2716 = vld [vmem:[%s660 + $0x1a] sm:$0xff]
        %v2717 = vld [vmem:[%s660 + $0x22] sm:$0xff]
        %v2718 = vld [vmem:[%s660 + $0x32] sm:$0xff]
        %v2719 = vld [vmem:[%s660 + $0x3a] sm:$0xff]
        %v2720 = vld [vmem:[%s660 + $0x4a] sm:$0xff]
        %v2721 = vld [vmem:[%s660 + $0x52] sm:$0xff]
        %v2722 = vld [vmem:[%s660 + $0x62] sm:$0xff]
        %v2723 = vld [vmem:[%s660 + $0x6a] sm:$0xff]
        %v2724 = vld [vmem:[%s660 + $0x7a] sm:$0xff]
        %v2725 = vld [vmem:[%s660 + $0x82] sm:$0xff]
        %v2726 = vld [vmem:[%s660 + $0x92] sm:$0xff]
        %v2727 = vld [vmem:[%s660 + $0x9a] sm:$0xff]
        %v2728 = vld [vmem:[%s660 + $0xaa] sm:$0xff]
        %v2729 = vld [vmem:[%s660 + $0xb2] sm:$0xff]
        %v2730 = vld [vmem:[%s660 + $0xc2] sm:$0xff]
        %v2731 = vld [vmem:[%s660 + $0xca] sm:$0xff]
        %v2732 = vld [vmem:[%s660 + $0xda] sm:$0xff]
        %v2733 = vld [vmem:[%s660 + $0xe2] sm:$0xff]
        %v2734 = vld [vmem:[%s660 + $0xf2] sm:$0xff]
        %v2735 = vld [vmem:[%s660 + $0xfa] sm:$0xff]
        %v2736 = vld [vmem:[%s660 + $0x10a] sm:$0xff]
        %v2737 = vld [vmem:[%s660 + $0x112] sm:$0xff]
        %v2738 = vld [vmem:[%s660 + $0x122] sm:$0xff]
        %v2739 = vld [vmem:[%s660 + $0x12a] sm:$0xff]
        %v2740 = vld [vmem:[%s660 + $0x13a] sm:$0xff]
        %v2741 = vld [vmem:[%s660 + $0x142] sm:$0xff]
        %v2742 = vld [vmem:[%s660 + $0x152] sm:$0xff]
        %v2743 = vld [vmem:[%s660 + $0x15a] sm:$0xff]
        %v2744 = vld [vmem:[%s660 + $0x16a] sm:$0xff]
        %v2745 = vld [vmem:[%s660 + $0x172] sm:$0xff]
        %v2746 = vld [vmem:[%s660 + $0x1b2] sm:$0xff]
        %v2747 = vld [vmem:[%s660 + $0x1ba] sm:$0xff]
        %v2748 = vld [vmem:[%s660 + $0x1ca] sm:$0xff]
        %v2749 = vld [vmem:[%s660 + $0x1d2] sm:$0xff]
        %v2750 = vld [vmem:[%s660 + $0x1e2] sm:$0xff]
        %v2751 = vld [vmem:[%s660 + $0x1ea] sm:$0xff]
        %v2752 = vld [vmem:[%s660 + $0x1fa] sm:$0xff]
        %v2753 = vld [vmem:[%s660 + $0x202] sm:$0xff]
        %v2754 = vld [vmem:[%s660 + $0x212] sm:$0xff]
        %v2755 = vld [vmem:[%s660 + $0x21a] sm:$0xff]
        %v2756 = vld [vmem:[%s660 + $0x22a] sm:$0xff]
        %v2757 = vld [vmem:[%s660 + $0x232] sm:$0xff]
        %v2758 = vld [vmem:[%s660 + $0x242] sm:$0xff]
        %v2759 = vld [vmem:[%s660 + $0x24a] sm:$0xff]
        %v2760 = vld [vmem:[%s660 + $0x25a] sm:$0xff]
        %v2761 = vld [vmem:[%s660 + $0x262] sm:$0xff]
        %v2762 = vld [vmem:[%s660 + $0x272] sm:$0xff]
        %v2763 = vld [vmem:[%s660 + $0x27a] sm:$0xff]
        %v2764 = vld [vmem:[%s660 + $0x28a] sm:$0xff]
        %v2765 = vld [vmem:[%s660 + $0x292] sm:$0xff]
        %v2766 = vld [vmem:[%s660 + $0x2a2] sm:$0xff]
        %v2767 = vld [vmem:[%s660 + $0x2aa] sm:$0xff]
        %v2768 = vld [vmem:[%s660 + $0x2ba] sm:$0xff]
        %v2769 = vld [vmem:[%s660 + $0x2c2] sm:$0xff]
        %v2770 = vld [vmem:[%s660 + $0x2d2] sm:$0xff]
        %v2771 = vld [vmem:[%s660 + $0x2da] sm:$0xff]
        %v2772 = vld [vmem:[%s660 + $0x2ea] sm:$0xff]
        %v2773 = vld [vmem:[%s660 + $0x2f2] sm:$0xff]
        %v2774 = vld [vmem:[%s660 + $0x302] sm:$0xff]
        %v2775 = vld [vmem:[%s660 + $0x30a] sm:$0xff]
        %v2776 = vld [vmem:[%s660 + $0x31a] sm:$0xff]
        %v2777 = vld [vmem:[%s660 + $0x322] sm:$0xff]
        %v2778 = vpack.c.bf16 %v2714, %v2714
        %v2779 = vpack.c.bf16 %v2715, %v2715
        %v2780 = vpack.c.bf16 %v2716, %v2716
        %v2781 = vpack.c.bf16 %v2717, %v2717
        %v2782 = vpack.c.bf16 %v2718, %v2718
        %v2783 = vpack.c.bf16 %v2719, %v2719
        %v2784 = vpack.c.bf16 %v2720, %v2720
        %v2785 = vpack.c.bf16 %v2721, %v2721
        %v2786 = vpack.c.bf16 %v2722, %v2722
        %v2787 = vpack.c.bf16 %v2723, %v2723
        %v2788 = vpack.c.bf16 %v2724, %v2724
        %v2789 = vpack.c.bf16 %v2725, %v2725
        %v2790 = vpack.c.bf16 %v2726, %v2726
        %v2791 = vpack.c.bf16 %v2727, %v2727
        %v2792 = vpack.c.bf16 %v2728, %v2728
        %v2793 = vpack.c.bf16 %v2729, %v2729
        %v2794 = vpack.c.bf16 %v2730, %v2730
        %v2795 = vpack.c.bf16 %v2731, %v2731
        %v2796 = vpack.c.bf16 %v2732, %v2732
        %v2797 = vpack.c.bf16 %v2733, %v2733
        %v2798 = vpack.c.bf16 %v2734, %v2734
        %v2799 = vpack.c.bf16 %v2735, %v2735
        %v2800 = vpack.c.bf16 %v2736, %v2736
        %v2801 = vpack.c.bf16 %v2737, %v2737
        %v2802 = vpack.c.bf16 %v2738, %v2738
        %v2803 = vpack.c.bf16 %v2739, %v2739
        %v2804 = vpack.c.bf16 %v2740, %v2740
        %v2805 = vpack.c.bf16 %v2741, %v2741
        %v2806 = vpack.c.bf16 %v2742, %v2742
        %v2807 = vpack.c.bf16 %v2743, %v2743
        %v2808 = vpack.c.bf16 %v2744, %v2744
        %v2809 = vpack.c.bf16 %v2745, %v2745
        %v2810 = vpack.c.bf16 %v2746, %v2746
        %v2811 = vpack.c.bf16 %v2747, %v2747
        %v2812 = vpack.c.bf16 %v2748, %v2748
        %v2813 = vpack.c.bf16 %v2749, %v2749
        %v2814 = vpack.c.bf16 %v2750, %v2750
        %v2815 = vpack.c.bf16 %v2751, %v2751
        %v2816 = vpack.c.bf16 %v2752, %v2752
        %v2817 = vpack.c.bf16 %v2753, %v2753
        %v2818 = vpack.c.bf16 %v2754, %v2754
        %v2819 = vpack.c.bf16 %v2755, %v2755
        %v2820 = vpack.c.bf16 %v2756, %v2756
        %v2821 = vpack.c.bf16 %v2757, %v2757
        %v2822 = vpack.c.bf16 %v2758, %v2758
        %v2823 = vpack.c.bf16 %v2759, %v2759
        %v2824 = vpack.c.bf16 %v2760, %v2760
        %v2825 = vpack.c.bf16 %v2761, %v2761
        %v2826 = vpack.c.bf16 %v2762, %v2762
        %v2827 = vpack.c.bf16 %v2763, %v2763
        %v2828 = vpack.c.bf16 %v2764, %v2764
        %v2829 = vpack.c.bf16 %v2765, %v2765
        %v2830 = vpack.c.bf16 %v2766, %v2766
        %v2831 = vpack.c.bf16 %v2767, %v2767
        %v2832 = vpack.c.bf16 %v2768, %v2768
        %v2833 = vpack.c.bf16 %v2769, %v2769
        %v2834 = vpack.c.bf16 %v2770, %v2770
        %v2835 = vpack.c.bf16 %v2771, %v2771
        %v2836 = vpack.c.bf16 %v2772, %v2772
        %v2837 = vpack.c.bf16 %v2773, %v2773
        %v2838 = vpack.c.bf16 %v2774, %v2774
        %v2839 = vpack.c.bf16 %v2775, %v2775
        %v2840 = vpack.c.bf16 %v2776, %v2776
        %v2841 = vpack.c.bf16 %v2777, %v2777
        %2906 = vrot.lane.b32.xlu0 %v2778, 20
        %v2907 = vpop.permute.xlu0 %2906
        %2908 = vrot.lane.b32.xlu0 %v2779, 20
        %v2909 = vpop.permute.xlu0 %2908
        %2910 = vrot.lane.b32.xlu0 %v2780, 20
        %v2911 = vpop.permute.xlu0 %2910
        %2912 = vrot.lane.b32.xlu0 %v2781, 20
        %v2913 = vpop.permute.xlu0 %2912
        %2914 = vrot.lane.b32.xlu0 %v2782, 20
        %v2915 = vpop.permute.xlu0 %2914
        %2916 = vrot.lane.b32.xlu0 %v2783, 20
        %v2917 = vpop.permute.xlu0 %2916
        %2918 = vrot.lane.b32.xlu0 %v2784, 20
        %v2919 = vpop.permute.xlu0 %2918
        %2920 = vrot.lane.b32.xlu0 %v2785, 20
        %v2921 = vpop.permute.xlu0 %2920
        %2922 = vrot.lane.b32.xlu0 %v2786, 20
        %v2923 = vpop.permute.xlu0 %2922
        %2924 = vrot.lane.b32.xlu0 %v2787, 20
        %v2925 = vpop.permute.xlu0 %2924
        %2926 = vrot.lane.b32.xlu0 %v2788, 20
        %v2927 = vpop.permute.xlu0 %2926
        %2928 = vrot.lane.b32.xlu0 %v2789, 20
        %v2929 = vpop.permute.xlu0 %2928
        %2930 = vrot.lane.b32.xlu0 %v2790, 20
        %v2931 = vpop.permute.xlu0 %2930
        %2932 = vrot.lane.b32.xlu0 %v2791, 20
        %v2933 = vpop.permute.xlu0 %2932
        %2934 = vrot.lane.b32.xlu0 %v2792, 20
        %v2935 = vpop.permute.xlu0 %2934
        %2936 = vrot.lane.b32.xlu0 %v2793, 20
        %v2937 = vpop.permute.xlu0 %2936
        %2938 = vrot.lane.b32.xlu0 %v2794, 20
        %v2939 = vpop.permute.xlu0 %2938
        %2940 = vrot.lane.b32.xlu0 %v2795, 20
        %v2941 = vpop.permute.xlu0 %2940
        %2942 = vrot.lane.b32.xlu0 %v2796, 20
        %v2943 = vpop.permute.xlu0 %2942
        %2944 = vrot.lane.b32.xlu0 %v2797, 20
        %v2945 = vpop.permute.xlu0 %2944
        %2946 = vrot.lane.b32.xlu0 %v2798, 20
        %v2947 = vpop.permute.xlu0 %2946
        %2948 = vrot.lane.b32.xlu0 %v2799, 20
        %v2949 = vpop.permute.xlu0 %2948
        %2950 = vrot.lane.b32.xlu0 %v2800, 20
        %v2951 = vpop.permute.xlu0 %2950
        %2952 = vrot.lane.b32.xlu0 %v2801, 20
        %v2953 = vpop.permute.xlu0 %2952
        %2954 = vrot.lane.b32.xlu0 %v2802, 20
        %v2955 = vpop.permute.xlu0 %2954
        %2956 = vrot.lane.b32.xlu0 %v2803, 20
        %v2957 = vpop.permute.xlu0 %2956
        %2958 = vrot.lane.b32.xlu0 %v2804, 20
        %v2959 = vpop.permute.xlu0 %2958
        %2960 = vrot.lane.b32.xlu0 %v2805, 20
        %v2961 = vpop.permute.xlu0 %2960
        %2962 = vrot.lane.b32.xlu0 %v2806, 20
        %v2963 = vpop.permute.xlu0 %2962
        %2964 = vrot.lane.b32.xlu0 %v2807, 20
        %v2965 = vpop.permute.xlu0 %2964
        %2966 = vrot.lane.b32.xlu0 %v2808, 20
        %v2967 = vpop.permute.xlu0 %2966
        %2968 = vrot.lane.b32.xlu0 %v2809, 20
        %v2969 = vpop.permute.xlu0 %2968
        %2970 = vrot.lane.b32.xlu0 %v2810, 20
        %v2971 = vpop.permute.xlu0 %2970
        %2972 = vrot.lane.b32.xlu0 %v2811, 20
        %v2973 = vpop.permute.xlu0 %2972
        %2974 = vrot.lane.b32.xlu0 %v2812, 20
        %v2975 = vpop.permute.xlu0 %2974
        %2976 = vrot.lane.b32.xlu0 %v2813, 20
        %v2977 = vpop.permute.xlu0 %2976
        %2978 = vrot.lane.b32.xlu0 %v2814, 20
        %v2979 = vpop.permute.xlu0 %2978
        %2980 = vrot.lane.b32.xlu0 %v2815, 20
        %v2981 = vpop.permute.xlu0 %2980
        %2982 = vrot.lane.b32.xlu0 %v2816, 20
        %v2983 = vpop.permute.xlu0 %2982
        %2984 = vrot.lane.b32.xlu0 %v2817, 20
        %v2985 = vpop.permute.xlu0 %2984
        %2986 = vrot.lane.b32.xlu0 %v2818, 20
        %v2987 = vpop.permute.xlu0 %2986
        %2988 = vrot.lane.b32.xlu0 %v2819, 20
        %v2989 = vpop.permute.xlu0 %2988
        %2990 = vrot.lane.b32.xlu0 %v2820, 20
        %v2991 = vpop.permute.xlu0 %2990
        %2992 = vrot.lane.b32.xlu0 %v2821, 20
        %v2993 = vpop.permute.xlu0 %2992
        %2994 = vrot.lane.b32.xlu0 %v2822, 20
        %v2995 = vpop.permute.xlu0 %2994
        %2996 = vrot.lane.b32.xlu0 %v2823, 20
        %v2997 = vpop.permute.xlu0 %2996
        %2998 = vrot.lane.b32.xlu0 %v2824, 20
        %v2999 = vpop.permute.xlu0 %2998
        %3000 = vrot.lane.b32.xlu0 %v2825, 20
        %v3001 = vpop.permute.xlu0 %3000
        %3002 = vrot.lane.b32.xlu0 %v2826, 20
        %v3003 = vpop.permute.xlu0 %3002
        %3004 = vrot.lane.b32.xlu0 %v2827, 20
        %v3005 = vpop.permute.xlu0 %3004
        %3006 = vrot.lane.b32.xlu0 %v2828, 20
        %v3007 = vpop.permute.xlu0 %3006
        %3008 = vrot.lane.b32.xlu0 %v2829, 20
        %v3009 = vpop.permute.xlu0 %3008
        %3010 = vrot.lane.b32.xlu0 %v2830, 20
        %v3011 = vpop.permute.xlu0 %3010
        %3012 = vrot.lane.b32.xlu0 %v2831, 20
        %v3013 = vpop.permute.xlu0 %3012
        %3014 = vrot.lane.b32.xlu0 %v2832, 20
        %v3015 = vpop.permute.xlu0 %3014
        %3016 = vrot.lane.b32.xlu0 %v2833, 20
        %v3017 = vpop.permute.xlu0 %3016
        %3018 = vrot.lane.b32.xlu0 %v2834, 20
        %v3019 = vpop.permute.xlu0 %3018
        %3020 = vrot.lane.b32.xlu0 %v2835, 20
        %v3021 = vpop.permute.xlu0 %3020
        %3022 = vrot.lane.b32.xlu0 %v2836, 20
        %v3023 = vpop.permute.xlu0 %3022
        %3024 = vrot.lane.b32.xlu0 %v2837, 20
        %v3025 = vpop.permute.xlu0 %3024
        %3026 = vrot.lane.b32.xlu0 %v2838, 20
        %v3027 = vpop.permute.xlu0 %3026
        %3028 = vrot.lane.b32.xlu0 %v2839, 20
        %v3029 = vpop.permute.xlu0 %3028
        %3030 = vrot.lane.b32.xlu0 %v2840, 20
        %v3031 = vpop.permute.xlu0 %3030
        %3032 = vrot.lane.b32.xlu0 %v2841, 20
        %v3033 = vpop.permute.xlu0 %3032
        %vm3098 = vcmask 191648
        %3099 = vst.msk [vmem:[#allocation4] sm:$0xf] %vm3098, %v2907
        %3100 = vst.msk [vmem:[#allocation4 + $0x4] sm:$0xf] %vm3098, %v2909
        %3101 = vst.msk [vmem:[#allocation4 + $0x8] sm:$0xf] %vm3098, %v2911
        %3102 = vst.msk [vmem:[#allocation4 + $0xc] sm:$0xf] %vm3098, %v2913
        %3103 = vst.msk [vmem:[#allocation4 + $0x10] sm:$0xf] %vm3098, %v2915
        %3104 = vst.msk [vmem:[#allocation4 + $0x14] sm:$0xf] %vm3098, %v2917
        %3105 = vst.msk [vmem:[#allocation4 + $0x18] sm:$0xf] %vm3098, %v2919
        %3106 = vst.msk [vmem:[#allocation4 + $0x1c] sm:$0xf] %vm3098, %v2921
        %3107 = vst.msk [vmem:[#allocation4 + $0x20] sm:$0xf] %vm3098, %v2923
        %3108 = vst.msk [vmem:[#allocation4 + $0x24] sm:$0xf] %vm3098, %v2925
        %3109 = vst.msk [vmem:[#allocation4 + $0x28] sm:$0xf] %vm3098, %v2927
        %3110 = vst.msk [vmem:[#allocation4 + $0x2c] sm:$0xf] %vm3098, %v2929
        %3111 = vst.msk [vmem:[#allocation4 + $0x30] sm:$0xf] %vm3098, %v2931
        %3112 = vst.msk [vmem:[#allocation4 + $0x34] sm:$0xf] %vm3098, %v2933
        %3113 = vst.msk [vmem:[#allocation4 + $0x38] sm:$0xf] %vm3098, %v2935
        %3114 = vst.msk [vmem:[#allocation4 + $0x3c] sm:$0xf] %vm3098, %v2937
        %3115 = vst.msk [vmem:[#allocation4 + $0x40] sm:$0xf] %vm3098, %v2939
        %3116 = vst.msk [vmem:[#allocation4 + $0x44] sm:$0xf] %vm3098, %v2941
        %3117 = vst.msk [vmem:[#allocation4 + $0x48] sm:$0xf] %vm3098, %v2943
        %3118 = vst.msk [vmem:[#allocation4 + $0x4c] sm:$0xf] %vm3098, %v2945
        %3119 = vst.msk [vmem:[#allocation4 + $0x50] sm:$0xf] %vm3098, %v2947
        %3120 = vst.msk [vmem:[#allocation4 + $0x54] sm:$0xf] %vm3098, %v2949
        %3121 = vst.msk [vmem:[#allocation4 + $0x58] sm:$0xf] %vm3098, %v2951
        %3122 = vst.msk [vmem:[#allocation4 + $0x5c] sm:$0xf] %vm3098, %v2953
        %3123 = vst.msk [vmem:[#allocation4 + $0x60] sm:$0xf] %vm3098, %v2955
        %3124 = vst.msk [vmem:[#allocation4 + $0x64] sm:$0xf] %vm3098, %v2957
        %3125 = vst.msk [vmem:[#allocation4 + $0x68] sm:$0xf] %vm3098, %v2959
        %3126 = vst.msk [vmem:[#allocation4 + $0x6c] sm:$0xf] %vm3098, %v2961
        %3127 = vst.msk [vmem:[#allocation4 + $0x70] sm:$0xf] %vm3098, %v2963
        %3128 = vst.msk [vmem:[#allocation4 + $0x74] sm:$0xf] %vm3098, %v2965
        %3129 = vst.msk [vmem:[#allocation4 + $0x78] sm:$0xf] %vm3098, %v2967
        %3130 = vst.msk [vmem:[#allocation4 + $0x7c] sm:$0xf] %vm3098, %v2969
        %3131 = vst.msk [vmem:[#allocation4 + $0x80] sm:$0xf] %vm3098, %v2971
        %3132 = vst.msk [vmem:[#allocation4 + $0x84] sm:$0xf] %vm3098, %v2973
        %3133 = vst.msk [vmem:[#allocation4 + $0x88] sm:$0xf] %vm3098, %v2975
        %3134 = vst.msk [vmem:[#allocation4 + $0x8c] sm:$0xf] %vm3098, %v2977
        %3135 = vst.msk [vmem:[#allocation4 + $0x90] sm:$0xf] %vm3098, %v2979
        %3136 = vst.msk [vmem:[#allocation4 + $0x94] sm:$0xf] %vm3098, %v2981
        %3137 = vst.msk [vmem:[#allocation4 + $0x98] sm:$0xf] %vm3098, %v2983
        %3138 = vst.msk [vmem:[#allocation4 + $0x9c] sm:$0xf] %vm3098, %v2985
        %3139 = vst.msk [vmem:[#allocation4 + $0xa0] sm:$0xf] %vm3098, %v2987
        %3140 = vst.msk [vmem:[#allocation4 + $0xa4] sm:$0xf] %vm3098, %v2989
        %3141 = vst.msk [vmem:[#allocation4 + $0xa8] sm:$0xf] %vm3098, %v2991
        %3142 = vst.msk [vmem:[#allocation4 + $0xac] sm:$0xf] %vm3098, %v2993
        %3143 = vst.msk [vmem:[#allocation4 + $0xb0] sm:$0xf] %vm3098, %v2995
        %3144 = vst.msk [vmem:[#allocation4 + $0xb4] sm:$0xf] %vm3098, %v2997
        %3145 = vst.msk [vmem:[#allocation4 + $0xb8] sm:$0xf] %vm3098, %v2999
        %3146 = vst.msk [vmem:[#allocation4 + $0xbc] sm:$0xf] %vm3098, %v3001
        %3147 = vst.msk [vmem:[#allocation4 + $0xc0] sm:$0xf] %vm3098, %v3003
        %3148 = vst.msk [vmem:[#allocation4 + $0xc4] sm:$0xf] %vm3098, %v3005
        %3149 = vst.msk [vmem:[#allocation4 + $0xc8] sm:$0xf] %vm3098, %v3007
        %3150 = vst.msk [vmem:[#allocation4 + $0xcc] sm:$0xf] %vm3098, %v3009
        %3151 = vst.msk [vmem:[#allocation4 + $0xd0] sm:$0xf] %vm3098, %v3011
        %3152 = vst.msk [vmem:[#allocation4 + $0xd4] sm:$0xf] %vm3098, %v3013
        %3153 = vst.msk [vmem:[#allocation4 + $0xd8] sm:$0xf] %vm3098, %v3015
        %3154 = vst.msk [vmem:[#allocation4 + $0xdc] sm:$0xf] %vm3098, %v3017
        %3155 = vst.msk [vmem:[#allocation4 + $0xe0] sm:$0xf] %vm3098, %v3019
        %3156 = vst.msk [vmem:[#allocation4 + $0xe4] sm:$0xf] %vm3098, %v3021
        %3157 = vst.msk [vmem:[#allocation4 + $0xe8] sm:$0xf] %vm3098, %v3023
        %3158 = vst.msk [vmem:[#allocation4 + $0xec] sm:$0xf] %vm3098, %v3025
        %3159 = vst.msk [vmem:[#allocation4 + $0xf0] sm:$0xf] %vm3098, %v3027
        %3160 = vst.msk [vmem:[#allocation4 + $0xf4] sm:$0xf] %vm3098, %v3029
        %3161 = vst.msk [vmem:[#allocation4 + $0xf8] sm:$0xf] %vm3098, %v3031
        %3162 = vst.msk [vmem:[#allocation4 + $0xfc] sm:$0xf] %vm3098, %v3033
        %s3163 = scalar_lea.vmem [#allocation2], 48
        %v3164 = vld [vmem:[%s3163] sm:$0xff]
        %v3165 = vld [vmem:[%s3163 + $0x8] sm:$0xff]
        %v3166 = vld [vmem:[%s3163 + $0x18] sm:$0xff]
        %v3167 = vld [vmem:[%s3163 + $0x20] sm:$0xff]
        %v3168 = vld [vmem:[%s3163 + $0x30] sm:$0xff]
        %v3169 = vld [vmem:[%s3163 + $0x38] sm:$0xff]
        %v3170 = vld [vmem:[%s3163 + $0x48] sm:$0xff]
        %v3171 = vld [vmem:[%s3163 + $0x50] sm:$0xff]
        %v3172 = vld [vmem:[%s3163 + $0x60] sm:$0xff]
        %v3173 = vld [vmem:[%s3163 + $0x68] sm:$0xff]
        %v3174 = vld [vmem:[%s3163 + $0x78] sm:$0xff]
        %v3175 = vld [vmem:[%s3163 + $0x80] sm:$0xff]
        %v3176 = vld [vmem:[%s3163 + $0x90] sm:$0xff]
        %v3177 = vld [vmem:[%s3163 + $0x98] sm:$0xff]
        %v3178 = vld [vmem:[%s3163 + $0xa8] sm:$0xff]
        %v3179 = vld [vmem:[%s3163 + $0xb0] sm:$0xff]
        %v3180 = vld [vmem:[%s3163 + $0xc0] sm:$0xff]
        %v3181 = vld [vmem:[%s3163 + $0xc8] sm:$0xff]
        %v3182 = vld [vmem:[%s3163 + $0xd8] sm:$0xff]
        %v3183 = vld [vmem:[%s3163 + $0xe0] sm:$0xff]
        %v3184 = vld [vmem:[%s3163 + $0xf0] sm:$0xff]
        %v3185 = vld [vmem:[%s3163 + $0xf8] sm:$0xff]
        %v3186 = vld [vmem:[%s3163 + $0x108] sm:$0xff]
        %v3187 = vld [vmem:[%s3163 + $0x110] sm:$0xff]
        %v3188 = vld [vmem:[%s3163 + $0x120] sm:$0xff]
        %v3189 = vld [vmem:[%s3163 + $0x128] sm:$0xff]
        %v3190 = vld [vmem:[%s3163 + $0x138] sm:$0xff]
        %v3191 = vld [vmem:[%s3163 + $0x140] sm:$0xff]
        %v3192 = vld [vmem:[%s3163 + $0x150] sm:$0xff]
        %v3193 = vld [vmem:[%s3163 + $0x158] sm:$0xff]
        %v3194 = vld [vmem:[%s3163 + $0x168] sm:$0xff]
        %v3195 = vld [vmem:[%s3163 + $0x170] sm:$0xff]
        %v3196 = vld [vmem:[%s3163 + $0x1b0] sm:$0xff]
        %v3197 = vld [vmem:[%s3163 + $0x1b8] sm:$0xff]
        %v3198 = vld [vmem:[%s3163 + $0x1c8] sm:$0xff]
        %v3199 = vld [vmem:[%s3163 + $0x1d0] sm:$0xff]
        %v3200 = vld [vmem:[%s3163 + $0x1e0] sm:$0xff]
        %v3201 = vld [vmem:[%s3163 + $0x1e8] sm:$0xff]
        %v3202 = vld [vmem:[%s3163 + $0x1f8] sm:$0xff]
        %v3203 = vld [vmem:[%s3163 + $0x200] sm:$0xff]
        %v3204 = vld [vmem:[%s3163 + $0x210] sm:$0xff]
        %v3205 = vld [vmem:[%s3163 + $0x218] sm:$0xff]
        %v3206 = vld [vmem:[%s3163 + $0x228] sm:$0xff]
        %v3207 = vld [vmem:[%s3163 + $0x230] sm:$0xff]
        %v3208 = vld [vmem:[%s3163 + $0x240] sm:$0xff]
        %v3209 = vld [vmem:[%s3163 + $0x248] sm:$0xff]
        %v3210 = vld [vmem:[%s3163 + $0x258] sm:$0xff]
        %v3211 = vld [vmem:[%s3163 + $0x260] sm:$0xff]
        %v3212 = vld [vmem:[%s3163 + $0x270] sm:$0xff]
        %v3213 = vld [vmem:[%s3163 + $0x278] sm:$0xff]
        %v3214 = vld [vmem:[%s3163 + $0x288] sm:$0xff]
        %v3215 = vld [vmem:[%s3163 + $0x290] sm:$0xff]
        %v3216 = vld [vmem:[%s3163 + $0x2a0] sm:$0xff]
        %v3217 = vld [vmem:[%s3163 + $0x2a8] sm:$0xff]
        %v3218 = vld [vmem:[%s3163 + $0x2b8] sm:$0xff]
        %v3219 = vld [vmem:[%s3163 + $0x2c0] sm:$0xff]
        %v3220 = vld [vmem:[%s3163 + $0x2d0] sm:$0xff]
        %v3221 = vld [vmem:[%s3163 + $0x2d8] sm:$0xff]
        %v3222 = vld [vmem:[%s3163 + $0x2e8] sm:$0xff]
        %v3223 = vld [vmem:[%s3163 + $0x2f0] sm:$0xff]
        %v3224 = vld [vmem:[%s3163 + $0x300] sm:$0xff]
        %v3225 = vld [vmem:[%s3163 + $0x308] sm:$0xff]
        %v3226 = vld [vmem:[%s3163 + $0x318] sm:$0xff]
        %v3227 = vld [vmem:[%s3163 + $0x320] sm:$0xff]
        %v3228 = vpack.c.bf16 %v3164, %v3164
        %v3229 = vpack.c.bf16 %v3165, %v3165
        %v3230 = vpack.c.bf16 %v3166, %v3166
        %v3231 = vpack.c.bf16 %v3167, %v3167
        %v3232 = vpack.c.bf16 %v3168, %v3168
        %v3233 = vpack.c.bf16 %v3169, %v3169
        %v3234 = vpack.c.bf16 %v3170, %v3170
        %v3235 = vpack.c.bf16 %v3171, %v3171
        %v3236 = vpack.c.bf16 %v3172, %v3172
        %v3237 = vpack.c.bf16 %v3173, %v3173
        %v3238 = vpack.c.bf16 %v3174, %v3174
        %v3239 = vpack.c.bf16 %v3175, %v3175
        %v3240 = vpack.c.bf16 %v3176, %v3176
        %v3241 = vpack.c.bf16 %v3177, %v3177
        %v3242 = vpack.c.bf16 %v3178, %v3178
        %v3243 = vpack.c.bf16 %v3179, %v3179
        %v3244 = vpack.c.bf16 %v3180, %v3180
        %v3245 = vpack.c.bf16 %v3181, %v3181
        %v3246 = vpack.c.bf16 %v3182, %v3182
        %v3247 = vpack.c.bf16 %v3183, %v3183
        %v3248 = vpack.c.bf16 %v3184, %v3184
        %v3249 = vpack.c.bf16 %v3185, %v3185
        %v3250 = vpack.c.bf16 %v3186, %v3186
        %v3251 = vpack.c.bf16 %v3187, %v3187
        %v3252 = vpack.c.bf16 %v3188, %v3188
        %v3253 = vpack.c.bf16 %v3189, %v3189
        %v3254 = vpack.c.bf16 %v3190, %v3190
        %v3255 = vpack.c.bf16 %v3191, %v3191
        %v3256 = vpack.c.bf16 %v3192, %v3192
        %v3257 = vpack.c.bf16 %v3193, %v3193
        %v3258 = vpack.c.bf16 %v3194, %v3194
        %v3259 = vpack.c.bf16 %v3195, %v3195
        %v3260 = vpack.c.bf16 %v3196, %v3196
        %v3261 = vpack.c.bf16 %v3197, %v3197
        %v3262 = vpack.c.bf16 %v3198, %v3198
        %v3263 = vpack.c.bf16 %v3199, %v3199
        %v3264 = vpack.c.bf16 %v3200, %v3200
        %v3265 = vpack.c.bf16 %v3201, %v3201
        %v3266 = vpack.c.bf16 %v3202, %v3202
        %v3267 = vpack.c.bf16 %v3203, %v3203
        %v3268 = vpack.c.bf16 %v3204, %v3204
        %v3269 = vpack.c.bf16 %v3205, %v3205
        %v3270 = vpack.c.bf16 %v3206, %v3206
        %v3271 = vpack.c.bf16 %v3207, %v3207
        %v3272 = vpack.c.bf16 %v3208, %v3208
        %v3273 = vpack.c.bf16 %v3209, %v3209
        %v3274 = vpack.c.bf16 %v3210, %v3210
        %v3275 = vpack.c.bf16 %v3211, %v3211
        %v3276 = vpack.c.bf16 %v3212, %v3212
        %v3277 = vpack.c.bf16 %v3213, %v3213
        %v3278 = vpack.c.bf16 %v3214, %v3214
        %v3279 = vpack.c.bf16 %v3215, %v3215
        %v3280 = vpack.c.bf16 %v3216, %v3216
        %v3281 = vpack.c.bf16 %v3217, %v3217
        %v3282 = vpack.c.bf16 %v3218, %v3218
        %v3283 = vpack.c.bf16 %v3219, %v3219
        %v3284 = vpack.c.bf16 %v3220, %v3220
        %v3285 = vpack.c.bf16 %v3221, %v3221
        %v3286 = vpack.c.bf16 %v3222, %v3222
        %v3287 = vpack.c.bf16 %v3223, %v3223
        %v3288 = vpack.c.bf16 %v3224, %v3224
        %v3289 = vpack.c.bf16 %v3225, %v3225
        %v3290 = vpack.c.bf16 %v3226, %v3226
        %v3291 = vpack.c.bf16 %v3227, %v3227
        %3356 = vrot.lane.b32.xlu0 %v3228, 24
        %v3357 = vpop.permute.xlu0 %3356
        %3358 = vrot.lane.b32.xlu0 %v3229, 24
        %v3359 = vpop.permute.xlu0 %3358
        %3360 = vrot.lane.b32.xlu0 %v3230, 24
        %v3361 = vpop.permute.xlu0 %3360
        %3362 = vrot.lane.b32.xlu0 %v3231, 24
        %v3363 = vpop.permute.xlu0 %3362
        %3364 = vrot.lane.b32.xlu0 %v3232, 24
        %v3365 = vpop.permute.xlu0 %3364
        %3366 = vrot.lane.b32.xlu0 %v3233, 24
        %v3367 = vpop.permute.xlu0 %3366
        %3368 = vrot.lane.b32.xlu0 %v3234, 24
        %v3369 = vpop.permute.xlu0 %3368
        %3370 = vrot.lane.b32.xlu0 %v3235, 24
        %v3371 = vpop.permute.xlu0 %3370
        %3372 = vrot.lane.b32.xlu0 %v3236, 24
        %v3373 = vpop.permute.xlu0 %3372
        %3374 = vrot.lane.b32.xlu0 %v3237, 24
        %v3375 = vpop.permute.xlu0 %3374
        %3376 = vrot.lane.b32.xlu0 %v3238, 24
        %v3377 = vpop.permute.xlu0 %3376
        %3378 = vrot.lane.b32.xlu0 %v3239, 24
        %v3379 = vpop.permute.xlu0 %3378
        %3380 = vrot.lane.b32.xlu0 %v3240, 24
        %v3381 = vpop.permute.xlu0 %3380
        %3382 = vrot.lane.b32.xlu0 %v3241, 24
        %v3383 = vpop.permute.xlu0 %3382
        %3384 = vrot.lane.b32.xlu0 %v3242, 24
        %v3385 = vpop.permute.xlu0 %3384
        %3386 = vrot.lane.b32.xlu0 %v3243, 24
        %v3387 = vpop.permute.xlu0 %3386
        %3388 = vrot.lane.b32.xlu0 %v3244, 24
        %v3389 = vpop.permute.xlu0 %3388
        %3390 = vrot.lane.b32.xlu0 %v3245, 24
        %v3391 = vpop.permute.xlu0 %3390
        %3392 = vrot.lane.b32.xlu0 %v3246, 24
        %v3393 = vpop.permute.xlu0 %3392
        %3394 = vrot.lane.b32.xlu0 %v3247, 24
        %v3395 = vpop.permute.xlu0 %3394
        %3396 = vrot.lane.b32.xlu0 %v3248, 24
        %v3397 = vpop.permute.xlu0 %3396
        %3398 = vrot.lane.b32.xlu0 %v3249, 24
        %v3399 = vpop.permute.xlu0 %3398
        %3400 = vrot.lane.b32.xlu0 %v3250, 24
        %v3401 = vpop.permute.xlu0 %3400
        %3402 = vrot.lane.b32.xlu0 %v3251, 24
        %v3403 = vpop.permute.xlu0 %3402
        %3404 = vrot.lane.b32.xlu0 %v3252, 24
        %v3405 = vpop.permute.xlu0 %3404
        %3406 = vrot.lane.b32.xlu0 %v3253, 24
        %v3407 = vpop.permute.xlu0 %3406
        %3408 = vrot.lane.b32.xlu0 %v3254, 24
        %v3409 = vpop.permute.xlu0 %3408
        %3410 = vrot.lane.b32.xlu0 %v3255, 24
        %v3411 = vpop.permute.xlu0 %3410
        %3412 = vrot.lane.b32.xlu0 %v3256, 24
        %v3413 = vpop.permute.xlu0 %3412
        %3414 = vrot.lane.b32.xlu0 %v3257, 24
        %v3415 = vpop.permute.xlu0 %3414
        %3416 = vrot.lane.b32.xlu0 %v3258, 24
        %v3417 = vpop.permute.xlu0 %3416
        %3418 = vrot.lane.b32.xlu0 %v3259, 24
        %v3419 = vpop.permute.xlu0 %3418
        %3420 = vrot.lane.b32.xlu0 %v3260, 24
        %v3421 = vpop.permute.xlu0 %3420
        %3422 = vrot.lane.b32.xlu0 %v3261, 24
        %v3423 = vpop.permute.xlu0 %3422
        %3424 = vrot.lane.b32.xlu0 %v3262, 24
        %v3425 = vpop.permute.xlu0 %3424
        %3426 = vrot.lane.b32.xlu0 %v3263, 24
        %v3427 = vpop.permute.xlu0 %3426
        %3428 = vrot.lane.b32.xlu0 %v3264, 24
        %v3429 = vpop.permute.xlu0 %3428
        %3430 = vrot.lane.b32.xlu0 %v3265, 24
        %v3431 = vpop.permute.xlu0 %3430
        %3432 = vrot.lane.b32.xlu0 %v3266, 24
        %v3433 = vpop.permute.xlu0 %3432
        %3434 = vrot.lane.b32.xlu0 %v3267, 24
        %v3435 = vpop.permute.xlu0 %3434
        %3436 = vrot.lane.b32.xlu0 %v3268, 24
        %v3437 = vpop.permute.xlu0 %3436
        %3438 = vrot.lane.b32.xlu0 %v3269, 24
        %v3439 = vpop.permute.xlu0 %3438
        %3440 = vrot.lane.b32.xlu0 %v3270, 24
        %v3441 = vpop.permute.xlu0 %3440
        %3442 = vrot.lane.b32.xlu0 %v3271, 24
        %v3443 = vpop.permute.xlu0 %3442
        %3444 = vrot.lane.b32.xlu0 %v3272, 24
        %v3445 = vpop.permute.xlu0 %3444
        %3446 = vrot.lane.b32.xlu0 %v3273, 24
        %v3447 = vpop.permute.xlu0 %3446
        %3448 = vrot.lane.b32.xlu0 %v3274, 24
        %v3449 = vpop.permute.xlu0 %3448
        %3450 = vrot.lane.b32.xlu0 %v3275, 24
        %v3451 = vpop.permute.xlu0 %3450
        %3452 = vrot.lane.b32.xlu0 %v3276, 24
        %v3453 = vpop.permute.xlu0 %3452
        %3454 = vrot.lane.b32.xlu0 %v3277, 24
        %v3455 = vpop.permute.xlu0 %3454
        %3456 = vrot.lane.b32.xlu0 %v3278, 24
        %v3457 = vpop.permute.xlu0 %3456
        %3458 = vrot.lane.b32.xlu0 %v3279, 24
        %v3459 = vpop.permute.xlu0 %3458
        %3460 = vrot.lane.b32.xlu0 %v3280, 24
        %v3461 = vpop.permute.xlu0 %3460
        %3462 = vrot.lane.b32.xlu0 %v3281, 24
        %v3463 = vpop.permute.xlu0 %3462
        %3464 = vrot.lane.b32.xlu0 %v3282, 24
        %v3465 = vpop.permute.xlu0 %3464
        %3466 = vrot.lane.b32.xlu0 %v3283, 24
        %v3467 = vpop.permute.xlu0 %3466
        %3468 = vrot.lane.b32.xlu0 %v3284, 24
        %v3469 = vpop.permute.xlu0 %3468
        %3470 = vrot.lane.b32.xlu0 %v3285, 24
        %v3471 = vpop.permute.xlu0 %3470
        %3472 = vrot.lane.b32.xlu0 %v3286, 24
        %v3473 = vpop.permute.xlu0 %3472
        %3474 = vrot.lane.b32.xlu0 %v3287, 24
        %v3475 = vpop.permute.xlu0 %3474
        %3476 = vrot.lane.b32.xlu0 %v3288, 24
        %v3477 = vpop.permute.xlu0 %3476
        %3478 = vrot.lane.b32.xlu0 %v3289, 24
        %v3479 = vpop.permute.xlu0 %3478
        %3480 = vrot.lane.b32.xlu0 %v3290, 24
        %v3481 = vpop.permute.xlu0 %3480
        %3482 = vrot.lane.b32.xlu0 %v3291, 24
        %v3483 = vpop.permute.xlu0 %3482
        %vm3548 = vcmask 224448
        %3549 = vst.msk [vmem:[#allocation4] sm:$0xf] %vm3548, %v3357
        %3550 = vst.msk [vmem:[#allocation4 + $0x4] sm:$0xf] %vm3548, %v3359
        %3551 = vst.msk [vmem:[#allocation4 + $0x8] sm:$0xf] %vm3548, %v3361
        %3552 = vst.msk [vmem:[#allocation4 + $0xc] sm:$0xf] %vm3548, %v3363
        %3553 = vst.msk [vmem:[#allocation4 + $0x10] sm:$0xf] %vm3548, %v3365
        %3554 = vst.msk [vmem:[#allocation4 + $0x14] sm:$0xf] %vm3548, %v3367
        %3555 = vst.msk [vmem:[#allocation4 + $0x18] sm:$0xf] %vm3548, %v3369
        %3556 = vst.msk [vmem:[#allocation4 + $0x1c] sm:$0xf] %vm3548, %v3371
        %3557 = vst.msk [vmem:[#allocation4 + $0x20] sm:$0xf] %vm3548, %v3373
        %3558 = vst.msk [vmem:[#allocation4 + $0x24] sm:$0xf] %vm3548, %v3375
        %3559 = vst.msk [vmem:[#allocation4 + $0x28] sm:$0xf] %vm3548, %v3377
        %3560 = vst.msk [vmem:[#allocation4 + $0x2c] sm:$0xf] %vm3548, %v3379
        %3561 = vst.msk [vmem:[#allocation4 + $0x30] sm:$0xf] %vm3548, %v3381
        %3562 = vst.msk [vmem:[#allocation4 + $0x34] sm:$0xf] %vm3548, %v3383
        %3563 = vst.msk [vmem:[#allocation4 + $0x38] sm:$0xf] %vm3548, %v3385
        %3564 = vst.msk [vmem:[#allocation4 + $0x3c] sm:$0xf] %vm3548, %v3387
        %3565 = vst.msk [vmem:[#allocation4 + $0x40] sm:$0xf] %vm3548, %v3389
        %3566 = vst.msk [vmem:[#allocation4 + $0x44] sm:$0xf] %vm3548, %v3391
        %3567 = vst.msk [vmem:[#allocation4 + $0x48] sm:$0xf] %vm3548, %v3393
        %3568 = vst.msk [vmem:[#allocation4 + $0x4c] sm:$0xf] %vm3548, %v3395
        %3569 = vst.msk [vmem:[#allocation4 + $0x50] sm:$0xf] %vm3548, %v3397
        %3570 = vst.msk [vmem:[#allocation4 + $0x54] sm:$0xf] %vm3548, %v3399
        %3571 = vst.msk [vmem:[#allocation4 + $0x58] sm:$0xf] %vm3548, %v3401
        %3572 = vst.msk [vmem:[#allocation4 + $0x5c] sm:$0xf] %vm3548, %v3403
        %3573 = vst.msk [vmem:[#allocation4 + $0x60] sm:$0xf] %vm3548, %v3405
        %3574 = vst.msk [vmem:[#allocation4 + $0x64] sm:$0xf] %vm3548, %v3407
        %3575 = vst.msk [vmem:[#allocation4 + $0x68] sm:$0xf] %vm3548, %v3409
        %3576 = vst.msk [vmem:[#allocation4 + $0x6c] sm:$0xf] %vm3548, %v3411
        %3577 = vst.msk [vmem:[#allocation4 + $0x70] sm:$0xf] %vm3548, %v3413
        %3578 = vst.msk [vmem:[#allocation4 + $0x74] sm:$0xf] %vm3548, %v3415
        %3579 = vst.msk [vmem:[#allocation4 + $0x78] sm:$0xf] %vm3548, %v3417
        %3580 = vst.msk [vmem:[#allocation4 + $0x7c] sm:$0xf] %vm3548, %v3419
        %3581 = vst.msk [vmem:[#allocation4 + $0x80] sm:$0xf] %vm3548, %v3421
        %3582 = vst.msk [vmem:[#allocation4 + $0x84] sm:$0xf] %vm3548, %v3423
        %3583 = vst.msk [vmem:[#allocation4 + $0x88] sm:$0xf] %vm3548, %v3425
        %3584 = vst.msk [vmem:[#allocation4 + $0x8c] sm:$0xf] %vm3548, %v3427
        %3585 = vst.msk [vmem:[#allocation4 + $0x90] sm:$0xf] %vm3548, %v3429
        %3586 = vst.msk [vmem:[#allocation4 + $0x94] sm:$0xf] %vm3548, %v3431
        %3587 = vst.msk [vmem:[#allocation4 + $0x98] sm:$0xf] %vm3548, %v3433
        %3588 = vst.msk [vmem:[#allocation4 + $0x9c] sm:$0xf] %vm3548, %v3435
        %3589 = vst.msk [vmem:[#allocation4 + $0xa0] sm:$0xf] %vm3548, %v3437
        %3590 = vst.msk [vmem:[#allocation4 + $0xa4] sm:$0xf] %vm3548, %v3439
        %3591 = vst.msk [vmem:[#allocation4 + $0xa8] sm:$0xf] %vm3548, %v3441
        %3592 = vst.msk [vmem:[#allocation4 + $0xac] sm:$0xf] %vm3548, %v3443
        %3593 = vst.msk [vmem:[#allocation4 + $0xb0] sm:$0xf] %vm3548, %v3445
        %3594 = vst.msk [vmem:[#allocation4 + $0xb4] sm:$0xf] %vm3548, %v3447
        %3595 = vst.msk [vmem:[#allocation4 + $0xb8] sm:$0xf] %vm3548, %v3449
        %3596 = vst.msk [vmem:[#allocation4 + $0xbc] sm:$0xf] %vm3548, %v3451
        %3597 = vst.msk [vmem:[#allocation4 + $0xc0] sm:$0xf] %vm3548, %v3453
        %3598 = vst.msk [vmem:[#allocation4 + $0xc4] sm:$0xf] %vm3548, %v3455
        %3599 = vst.msk [vmem:[#allocation4 + $0xc8] sm:$0xf] %vm3548, %v3457
        %3600 = vst.msk [vmem:[#allocation4 + $0xcc] sm:$0xf] %vm3548, %v3459
        %3601 = vst.msk [vmem:[#allocation4 + $0xd0] sm:$0xf] %vm3548, %v3461
        %3602 = vst.msk [vmem:[#allocation4 + $0xd4] sm:$0xf] %vm3548, %v3463
        %3603 = vst.msk [vmem:[#allocation4 + $0xd8] sm:$0xf] %vm3548, %v3465
        %3604 = vst.msk [vmem:[#allocation4 + $0xdc] sm:$0xf] %vm3548, %v3467
        %3605 = vst.msk [vmem:[#allocation4 + $0xe0] sm:$0xf] %vm3548, %v3469
        %3606 = vst.msk [vmem:[#allocation4 + $0xe4] sm:$0xf] %vm3548, %v3471
        %3607 = vst.msk [vmem:[#allocation4 + $0xe8] sm:$0xf] %vm3548, %v3473
        %3608 = vst.msk [vmem:[#allocation4 + $0xec] sm:$0xf] %vm3548, %v3475
        %3609 = vst.msk [vmem:[#allocation4 + $0xf0] sm:$0xf] %vm3548, %v3477
        %3610 = vst.msk [vmem:[#allocation4 + $0xf4] sm:$0xf] %vm3548, %v3479
        %3611 = vst.msk [vmem:[#allocation4 + $0xf8] sm:$0xf] %vm3548, %v3481
        %3612 = vst.msk [vmem:[#allocation4 + $0xfc] sm:$0xf] %vm3548, %v3483
        %v3613 = vld [vmem:[%s3163 + $0x1] sm:$0xff]
        %v3614 = vld [vmem:[%s3163 + $0x9] sm:$0xff]
        %v3615 = vld [vmem:[%s3163 + $0x19] sm:$0xff]
        %v3616 = vld [vmem:[%s3163 + $0x21] sm:$0xff]
        %v3617 = vld [vmem:[%s3163 + $0x31] sm:$0xff]
        %v3618 = vld [vmem:[%s3163 + $0x39] sm:$0xff]
        %v3619 = vld [vmem:[%s3163 + $0x49] sm:$0xff]
        %v3620 = vld [vmem:[%s3163 + $0x51] sm:$0xff]
        %v3621 = vld [vmem:[%s3163 + $0x61] sm:$0xff]
        %v3622 = vld [vmem:[%s3163 + $0x69] sm:$0xff]
        %v3623 = vld [vmem:[%s3163 + $0x79] sm:$0xff]
        %v3624 = vld [vmem:[%s3163 + $0x81] sm:$0xff]
        %v3625 = vld [vmem:[%s3163 + $0x91] sm:$0xff]
        %v3626 = vld [vmem:[%s3163 + $0x99] sm:$0xff]
        %v3627 = vld [vmem:[%s3163 + $0xa9] sm:$0xff]
        %v3628 = vld [vmem:[%s3163 + $0xb1] sm:$0xff]
        %v3629 = vld [vmem:[%s3163 + $0xc1] sm:$0xff]
        %v3630 = vld [vmem:[%s3163 + $0xc9] sm:$0xff]
        %v3631 = vld [vmem:[%s3163 + $0xd9] sm:$0xff]
        %v3632 = vld [vmem:[%s3163 + $0xe1] sm:$0xff]
        %v3633 = vld [vmem:[%s3163 + $0xf1] sm:$0xff]
        %v3634 = vld [vmem:[%s3163 + $0xf9] sm:$0xff]
        %v3635 = vld [vmem:[%s3163 + $0x109] sm:$0xff]
        %v3636 = vld [vmem:[%s3163 + $0x111] sm:$0xff]
        %v3637 = vld [vmem:[%s3163 + $0x121] sm:$0xff]
        %v3638 = vld [vmem:[%s3163 + $0x129] sm:$0xff]
        %v3639 = vld [vmem:[%s3163 + $0x139] sm:$0xff]
        %v3640 = vld [vmem:[%s3163 + $0x141] sm:$0xff]
        %v3641 = vld [vmem:[%s3163 + $0x151] sm:$0xff]
        %v3642 = vld [vmem:[%s3163 + $0x159] sm:$0xff]
        %v3643 = vld [vmem:[%s3163 + $0x169] sm:$0xff]
        %v3644 = vld [vmem:[%s3163 + $0x171] sm:$0xff]
        %v3645 = vld [vmem:[%s3163 + $0x1b1] sm:$0xff]
        %v3646 = vld [vmem:[%s3163 + $0x1b9] sm:$0xff]
        %v3647 = vld [vmem:[%s3163 + $0x1c9] sm:$0xff]
        %v3648 = vld [vmem:[%s3163 + $0x1d1] sm:$0xff]
        %v3649 = vld [vmem:[%s3163 + $0x1e1] sm:$0xff]
        %v3650 = vld [vmem:[%s3163 + $0x1e9] sm:$0xff]
        %v3651 = vld [vmem:[%s3163 + $0x1f9] sm:$0xff]
        %v3652 = vld [vmem:[%s3163 + $0x201] sm:$0xff]
        %v3653 = vld [vmem:[%s3163 + $0x211] sm:$0xff]
        %v3654 = vld [vmem:[%s3163 + $0x219] sm:$0xff]
        %v3655 = vld [vmem:[%s3163 + $0x229] sm:$0xff]
        %v3656 = vld [vmem:[%s3163 + $0x231] sm:$0xff]
        %v3657 = vld [vmem:[%s3163 + $0x241] sm:$0xff]
        %v3658 = vld [vmem:[%s3163 + $0x249] sm:$0xff]
        %v3659 = vld [vmem:[%s3163 + $0x259] sm:$0xff]
        %v3660 = vld [vmem:[%s3163 + $0x261] sm:$0xff]
        %v3661 = vld [vmem:[%s3163 + $0x271] sm:$0xff]
        %v3662 = vld [vmem:[%s3163 + $0x279] sm:$0xff]
        %v3663 = vld [vmem:[%s3163 + $0x289] sm:$0xff]
        %v3664 = vld [vmem:[%s3163 + $0x291] sm:$0xff]
        %v3665 = vld [vmem:[%s3163 + $0x2a1] sm:$0xff]
        %v3666 = vld [vmem:[%s3163 + $0x2a9] sm:$0xff]
        %v3667 = vld [vmem:[%s3163 + $0x2b9] sm:$0xff]
        %v3668 = vld [vmem:[%s3163 + $0x2c1] sm:$0xff]
        %v3669 = vld [vmem:[%s3163 + $0x2d1] sm:$0xff]
        %v3670 = vld [vmem:[%s3163 + $0x2d9] sm:$0xff]
        %v3671 = vld [vmem:[%s3163 + $0x2e9] sm:$0xff]
        %v3672 = vld [vmem:[%s3163 + $0x2f1] sm:$0xff]
        %v3673 = vld [vmem:[%s3163 + $0x301] sm:$0xff]
        %v3674 = vld [vmem:[%s3163 + $0x309] sm:$0xff]
        %v3675 = vld [vmem:[%s3163 + $0x319] sm:$0xff]
        %v3676 = vld [vmem:[%s3163 + $0x321] sm:$0xff]
        %v3677 = vpack.c.bf16 %v3613, %v3613
        %v3678 = vpack.c.bf16 %v3614, %v3614
        %v3679 = vpack.c.bf16 %v3615, %v3615
        %v3680 = vpack.c.bf16 %v3616, %v3616
        %v3681 = vpack.c.bf16 %v3617, %v3617
        %v3682 = vpack.c.bf16 %v3618, %v3618
        %v3683 = vpack.c.bf16 %v3619, %v3619
        %v3684 = vpack.c.bf16 %v3620, %v3620
        %v3685 = vpack.c.bf16 %v3621, %v3621
        %v3686 = vpack.c.bf16 %v3622, %v3622
        %v3687 = vpack.c.bf16 %v3623, %v3623
        %v3688 = vpack.c.bf16 %v3624, %v3624
        %v3689 = vpack.c.bf16 %v3625, %v3625
        %v3690 = vpack.c.bf16 %v3626, %v3626
        %v3691 = vpack.c.bf16 %v3627, %v3627
        %v3692 = vpack.c.bf16 %v3628, %v3628
        %v3693 = vpack.c.bf16 %v3629, %v3629
        %v3694 = vpack.c.bf16 %v3630, %v3630
        %v3695 = vpack.c.bf16 %v3631, %v3631
        %v3696 = vpack.c.bf16 %v3632, %v3632
        %v3697 = vpack.c.bf16 %v3633, %v3633
        %v3698 = vpack.c.bf16 %v3634, %v3634
        %v3699 = vpack.c.bf16 %v3635, %v3635
        %v3700 = vpack.c.bf16 %v3636, %v3636
        %v3701 = vpack.c.bf16 %v3637, %v3637
        %v3702 = vpack.c.bf16 %v3638, %v3638
        %v3703 = vpack.c.bf16 %v3639, %v3639
        %v3704 = vpack.c.bf16 %v3640, %v3640
        %v3705 = vpack.c.bf16 %v3641, %v3641
        %v3706 = vpack.c.bf16 %v3642, %v3642
        %v3707 = vpack.c.bf16 %v3643, %v3643
        %v3708 = vpack.c.bf16 %v3644, %v3644
        %v3709 = vpack.c.bf16 %v3645, %v3645
        %v3710 = vpack.c.bf16 %v3646, %v3646
        %v3711 = vpack.c.bf16 %v3647, %v3647
        %v3712 = vpack.c.bf16 %v3648, %v3648
        %v3713 = vpack.c.bf16 %v3649, %v3649
        %v3714 = vpack.c.bf16 %v3650, %v3650
        %v3715 = vpack.c.bf16 %v3651, %v3651
        %v3716 = vpack.c.bf16 %v3652, %v3652
        %v3717 = vpack.c.bf16 %v3653, %v3653
        %v3718 = vpack.c.bf16 %v3654, %v3654
        %v3719 = vpack.c.bf16 %v3655, %v3655
        %v3720 = vpack.c.bf16 %v3656, %v3656
        %v3721 = vpack.c.bf16 %v3657, %v3657
        %v3722 = vpack.c.bf16 %v3658, %v3658
        %v3723 = vpack.c.bf16 %v3659, %v3659
        %v3724 = vpack.c.bf16 %v3660, %v3660
        %v3725 = vpack.c.bf16 %v3661, %v3661
        %v3726 = vpack.c.bf16 %v3662, %v3662
        %v3727 = vpack.c.bf16 %v3663, %v3663
        %v3728 = vpack.c.bf16 %v3664, %v3664
        %v3729 = vpack.c.bf16 %v3665, %v3665
        %v3730 = vpack.c.bf16 %v3666, %v3666
        %v3731 = vpack.c.bf16 %v3667, %v3667
        %v3732 = vpack.c.bf16 %v3668, %v3668
        %v3733 = vpack.c.bf16 %v3669, %v3669
        %v3734 = vpack.c.bf16 %v3670, %v3670
        %v3735 = vpack.c.bf16 %v3671, %v3671
        %v3736 = vpack.c.bf16 %v3672, %v3672
        %v3737 = vpack.c.bf16 %v3673, %v3673
        %v3738 = vpack.c.bf16 %v3674, %v3674
        %v3739 = vpack.c.bf16 %v3675, %v3675
        %v3740 = vpack.c.bf16 %v3676, %v3676
        %3805 = vrot.lane.b32.xlu0 %v3677, 28
        %v3806 = vpop.permute.xlu0 %3805
        %3807 = vrot.lane.b32.xlu0 %v3678, 28
        %v3808 = vpop.permute.xlu0 %3807
        %3809 = vrot.lane.b32.xlu0 %v3679, 28
        %v3810 = vpop.permute.xlu0 %3809
        %3811 = vrot.lane.b32.xlu0 %v3680, 28
        %v3812 = vpop.permute.xlu0 %3811
        %3813 = vrot.lane.b32.xlu0 %v3681, 28
        %v3814 = vpop.permute.xlu0 %3813
        %3815 = vrot.lane.b32.xlu0 %v3682, 28
        %v3816 = vpop.permute.xlu0 %3815
        %3817 = vrot.lane.b32.xlu0 %v3683, 28
        %v3818 = vpop.permute.xlu0 %3817
        %3819 = vrot.lane.b32.xlu0 %v3684, 28
        %v3820 = vpop.permute.xlu0 %3819
        %3821 = vrot.lane.b32.xlu0 %v3685, 28
        %v3822 = vpop.permute.xlu0 %3821
        %3823 = vrot.lane.b32.xlu0 %v3686, 28
        %v3824 = vpop.permute.xlu0 %3823
        %3825 = vrot.lane.b32.xlu0 %v3687, 28
        %v3826 = vpop.permute.xlu0 %3825
        %3827 = vrot.lane.b32.xlu0 %v3688, 28
        %v3828 = vpop.permute.xlu0 %3827
        %3829 = vrot.lane.b32.xlu0 %v3689, 28
        %v3830 = vpop.permute.xlu0 %3829
        %3831 = vrot.lane.b32.xlu0 %v3690, 28
        %v3832 = vpop.permute.xlu0 %3831
        %3833 = vrot.lane.b32.xlu0 %v3691, 28
        %v3834 = vpop.permute.xlu0 %3833
        %3835 = vrot.lane.b32.xlu0 %v3692, 28
        %v3836 = vpop.permute.xlu0 %3835
        %3837 = vrot.lane.b32.xlu0 %v3693, 28
        %v3838 = vpop.permute.xlu0 %3837
        %3839 = vrot.lane.b32.xlu0 %v3694, 28
        %v3840 = vpop.permute.xlu0 %3839
        %3841 = vrot.lane.b32.xlu0 %v3695, 28
        %v3842 = vpop.permute.xlu0 %3841
        %3843 = vrot.lane.b32.xlu0 %v3696, 28
        %v3844 = vpop.permute.xlu0 %3843
        %3845 = vrot.lane.b32.xlu0 %v3697, 28
        %v3846 = vpop.permute.xlu0 %3845
        %3847 = vrot.lane.b32.xlu0 %v3698, 28
        %v3848 = vpop.permute.xlu0 %3847
        %3849 = vrot.lane.b32.xlu0 %v3699, 28
        %v3850 = vpop.permute.xlu0 %3849
        %3851 = vrot.lane.b32.xlu0 %v3700, 28
        %v3852 = vpop.permute.xlu0 %3851
        %3853 = vrot.lane.b32.xlu0 %v3701, 28
        %v3854 = vpop.permute.xlu0 %3853
        %3855 = vrot.lane.b32.xlu0 %v3702, 28
        %v3856 = vpop.permute.xlu0 %3855
        %3857 = vrot.lane.b32.xlu0 %v3703, 28
        %v3858 = vpop.permute.xlu0 %3857
        %3859 = vrot.lane.b32.xlu0 %v3704, 28
        %v3860 = vpop.permute.xlu0 %3859
        %3861 = vrot.lane.b32.xlu0 %v3705, 28
        %v3862 = vpop.permute.xlu0 %3861
        %3863 = vrot.lane.b32.xlu0 %v3706, 28
        %v3864 = vpop.permute.xlu0 %3863
        %3865 = vrot.lane.b32.xlu0 %v3707, 28
        %v3866 = vpop.permute.xlu0 %3865
        %3867 = vrot.lane.b32.xlu0 %v3708, 28
        %v3868 = vpop.permute.xlu0 %3867
        %3869 = vrot.lane.b32.xlu0 %v3709, 28
        %v3870 = vpop.permute.xlu0 %3869
        %3871 = vrot.lane.b32.xlu0 %v3710, 28
        %v3872 = vpop.permute.xlu0 %3871
        %3873 = vrot.lane.b32.xlu0 %v3711, 28
        %v3874 = vpop.permute.xlu0 %3873
        %3875 = vrot.lane.b32.xlu0 %v3712, 28
        %v3876 = vpop.permute.xlu0 %3875
        %3877 = vrot.lane.b32.xlu0 %v3713, 28
        %v3878 = vpop.permute.xlu0 %3877
        %3879 = vrot.lane.b32.xlu0 %v3714, 28
        %v3880 = vpop.permute.xlu0 %3879
        %3881 = vrot.lane.b32.xlu0 %v3715, 28
        %v3882 = vpop.permute.xlu0 %3881
        %3883 = vrot.lane.b32.xlu0 %v3716, 28
        %v3884 = vpop.permute.xlu0 %3883
        %3885 = vrot.lane.b32.xlu0 %v3717, 28
        %v3886 = vpop.permute.xlu0 %3885
        %3887 = vrot.lane.b32.xlu0 %v3718, 28
        %v3888 = vpop.permute.xlu0 %3887
        %3889 = vrot.lane.b32.xlu0 %v3719, 28
        %v3890 = vpop.permute.xlu0 %3889
        %3891 = vrot.lane.b32.xlu0 %v3720, 28
        %v3892 = vpop.permute.xlu0 %3891
        %3893 = vrot.lane.b32.xlu0 %v3721, 28
        %v3894 = vpop.permute.xlu0 %3893
        %3895 = vrot.lane.b32.xlu0 %v3722, 28
        %v3896 = vpop.permute.xlu0 %3895
        %3897 = vrot.lane.b32.xlu0 %v3723, 28
        %v3898 = vpop.permute.xlu0 %3897
        %3899 = vrot.lane.b32.xlu0 %v3724, 28
        %v3900 = vpop.permute.xlu0 %3899
        %3901 = vrot.lane.b32.xlu0 %v3725, 28
        %v3902 = vpop.permute.xlu0 %3901
        %3903 = vrot.lane.b32.xlu0 %v3726, 28
        %v3904 = vpop.permute.xlu0 %3903
        %3905 = vrot.lane.b32.xlu0 %v3727, 28
        %v3906 = vpop.permute.xlu0 %3905
        %3907 = vrot.lane.b32.xlu0 %v3728, 28
        %v3908 = vpop.permute.xlu0 %3907
        %3909 = vrot.lane.b32.xlu0 %v3729, 28
        %v3910 = vpop.permute.xlu0 %3909
        %3911 = vrot.lane.b32.xlu0 %v3730, 28
        %v3912 = vpop.permute.xlu0 %3911
        %3913 = vrot.lane.b32.xlu0 %v3731, 28
        %v3914 = vpop.permute.xlu0 %3913
        %3915 = vrot.lane.b32.xlu0 %v3732, 28
        %v3916 = vpop.permute.xlu0 %3915
        %3917 = vrot.lane.b32.xlu0 %v3733, 28
        %v3918 = vpop.permute.xlu0 %3917
        %3919 = vrot.lane.b32.xlu0 %v3734, 28
        %v3920 = vpop.permute.xlu0 %3919
        %3921 = vrot.lane.b32.xlu0 %v3735, 28
        %v3922 = vpop.permute.xlu0 %3921
        %3923 = vrot.lane.b32.xlu0 %v3736, 28
        %v3924 = vpop.permute.xlu0 %3923
        %3925 = vrot.lane.b32.xlu0 %v3737, 28
        %v3926 = vpop.permute.xlu0 %3925
        %3927 = vrot.lane.b32.xlu0 %v3738, 28
        %v3928 = vpop.permute.xlu0 %3927
        %3929 = vrot.lane.b32.xlu0 %v3739, 28
        %v3930 = vpop.permute.xlu0 %3929
        %3931 = vrot.lane.b32.xlu0 %v3740, 28
        %v3932 = vpop.permute.xlu0 %3931
        %vm3997 = vcmask 257248
        %3998 = vst.msk [vmem:[#allocation4] sm:$0xf] %vm3997, %v3806
        %3999 = vst.msk [vmem:[#allocation4 + $0x4] sm:$0xf] %vm3997, %v3808
        %4000 = vst.msk [vmem:[#allocation4 + $0x8] sm:$0xf] %vm3997, %v3810
        %4001 = vst.msk [vmem:[#allocation4 + $0xc] sm:$0xf] %vm3997, %v3812
        %4002 = vst.msk [vmem:[#allocation4 + $0x10] sm:$0xf] %vm3997, %v3814
        %4003 = vst.msk [vmem:[#allocation4 + $0x14] sm:$0xf] %vm3997, %v3816
        %4004 = vst.msk [vmem:[#allocation4 + $0x18] sm:$0xf] %vm3997, %v3818
        %4005 = vst.msk [vmem:[#allocation4 + $0x1c] sm:$0xf] %vm3997, %v3820
        %4006 = vst.msk [vmem:[#allocation4 + $0x20] sm:$0xf] %vm3997, %v3822
        %4007 = vst.msk [vmem:[#allocation4 + $0x24] sm:$0xf] %vm3997, %v3824
        %4008 = vst.msk [vmem:[#allocation4 + $0x28] sm:$0xf] %vm3997, %v3826
        %4009 = vst.msk [vmem:[#allocation4 + $0x2c] sm:$0xf] %vm3997, %v3828
        %4010 = vst.msk [vmem:[#allocation4 + $0x30] sm:$0xf] %vm3997, %v3830
        %4011 = vst.msk [vmem:[#allocation4 + $0x34] sm:$0xf] %vm3997, %v3832
        %4012 = vst.msk [vmem:[#allocation4 + $0x38] sm:$0xf] %vm3997, %v3834
        %4013 = vst.msk [vmem:[#allocation4 + $0x3c] sm:$0xf] %vm3997, %v3836
        %4014 = vst.msk [vmem:[#allocation4 + $0x40] sm:$0xf] %vm3997, %v3838
        %4015 = vst.msk [vmem:[#allocation4 + $0x44] sm:$0xf] %vm3997, %v3840
        %4016 = vst.msk [vmem:[#allocation4 + $0x48] sm:$0xf] %vm3997, %v3842
        %4017 = vst.msk [vmem:[#allocation4 + $0x4c] sm:$0xf] %vm3997, %v3844
        %4018 = vst.msk [vmem:[#allocation4 + $0x50] sm:$0xf] %vm3997, %v3846
        %4019 = vst.msk [vmem:[#allocation4 + $0x54] sm:$0xf] %vm3997, %v3848
        %4020 = vst.msk [vmem:[#allocation4 + $0x58] sm:$0xf] %vm3997, %v3850
        %4021 = vst.msk [vmem:[#allocation4 + $0x5c] sm:$0xf] %vm3997, %v3852
        %4022 = vst.msk [vmem:[#allocation4 + $0x60] sm:$0xf] %vm3997, %v3854
        %4023 = vst.msk [vmem:[#allocation4 + $0x64] sm:$0xf] %vm3997, %v3856
        %4024 = vst.msk [vmem:[#allocation4 + $0x68] sm:$0xf] %vm3997, %v3858
        %4025 = vst.msk [vmem:[#allocation4 + $0x6c] sm:$0xf] %vm3997, %v3860
        %4026 = vst.msk [vmem:[#allocation4 + $0x70] sm:$0xf] %vm3997, %v3862
        %4027 = vst.msk [vmem:[#allocation4 + $0x74] sm:$0xf] %vm3997, %v3864
        %4028 = vst.msk [vmem:[#allocation4 + $0x78] sm:$0xf] %vm3997, %v3866
        %4029 = vst.msk [vmem:[#allocation4 + $0x7c] sm:$0xf] %vm3997, %v3868
        %4030 = vst.msk [vmem:[#allocation4 + $0x80] sm:$0xf] %vm3997, %v3870
        %4031 = vst.msk [vmem:[#allocation4 + $0x84] sm:$0xf] %vm3997, %v3872
        %4032 = vst.msk [vmem:[#allocation4 + $0x88] sm:$0xf] %vm3997, %v3874
        %4033 = vst.msk [vmem:[#allocation4 + $0x8c] sm:$0xf] %vm3997, %v3876
        %4034 = vst.msk [vmem:[#allocation4 + $0x90] sm:$0xf] %vm3997, %v3878
        %4035 = vst.msk [vmem:[#allocation4 + $0x94] sm:$0xf] %vm3997, %v3880
        %4036 = vst.msk [vmem:[#allocation4 + $0x98] sm:$0xf] %vm3997, %v3882
        %4037 = vst.msk [vmem:[#allocation4 + $0x9c] sm:$0xf] %vm3997, %v3884
        %4038 = vst.msk [vmem:[#allocation4 + $0xa0] sm:$0xf] %vm3997, %v3886
        %4039 = vst.msk [vmem:[#allocation4 + $0xa4] sm:$0xf] %vm3997, %v3888
        %4040 = vst.msk [vmem:[#allocation4 + $0xa8] sm:$0xf] %vm3997, %v3890
        %4041 = vst.msk [vmem:[#allocation4 + $0xac] sm:$0xf] %vm3997, %v3892
        %4042 = vst.msk [vmem:[#allocation4 + $0xb0] sm:$0xf] %vm3997, %v3894
        %4043 = vst.msk [vmem:[#allocation4 + $0xb4] sm:$0xf] %vm3997, %v3896
        %4044 = vst.msk [vmem:[#allocation4 + $0xb8] sm:$0xf] %vm3997, %v3898
        %4045 = vst.msk [vmem:[#allocation4 + $0xbc] sm:$0xf] %vm3997, %v3900
        %4046 = vst.msk [vmem:[#allocation4 + $0xc0] sm:$0xf] %vm3997, %v3902
        %4047 = vst.msk [vmem:[#allocation4 + $0xc4] sm:$0xf] %vm3997, %v3904
        %4048 = vst.msk [vmem:[#allocation4 + $0xc8] sm:$0xf] %vm3997, %v3906
        %4049 = vst.msk [vmem:[#allocation4 + $0xcc] sm:$0xf] %vm3997, %v3908
        %4050 = vst.msk [vmem:[#allocation4 + $0xd0] sm:$0xf] %vm3997, %v3910
        %4051 = vst.msk [vmem:[#allocation4 + $0xd4] sm:$0xf] %vm3997, %v3912
        %4052 = vst.msk [vmem:[#allocation4 + $0xd8] sm:$0xf] %vm3997, %v3914
        %4053 = vst.msk [vmem:[#allocation4 + $0xdc] sm:$0xf] %vm3997, %v3916
        %4054 = vst.msk [vmem:[#allocation4 + $0xe0] sm:$0xf] %vm3997, %v3918
        %4055 = vst.msk [vmem:[#allocation4 + $0xe4] sm:$0xf] %vm3997, %v3920
        %4056 = vst.msk [vmem:[#allocation4 + $0xe8] sm:$0xf] %vm3997, %v3922
        %4057 = vst.msk [vmem:[#allocation4 + $0xec] sm:$0xf] %vm3997, %v3924
        %4058 = vst.msk [vmem:[#allocation4 + $0xf0] sm:$0xf] %vm3997, %v3926
        %4059 = vst.msk [vmem:[#allocation4 + $0xf4] sm:$0xf] %vm3997, %v3928
        %4060 = vst.msk [vmem:[#allocation4 + $0xf8] sm:$0xf] %vm3997, %v3930
        %4061 = vst.msk [vmem:[#allocation4 + $0xfc] sm:$0xf] %vm3997, %v3932
        %v4062 = vld [vmem:[%s3163 + $0x2] sm:$0xff]
        %v4063 = vld [vmem:[%s3163 + $0xa] sm:$0xff]
        %v4064 = vld [vmem:[%s3163 + $0x1a] sm:$0xff]
        %v4065 = vld [vmem:[%s3163 + $0x22] sm:$0xff]
        %v4066 = vld [vmem:[%s3163 + $0x32] sm:$0xff]
        %v4067 = vld [vmem:[%s3163 + $0x3a] sm:$0xff]
        %v4068 = vld [vmem:[%s3163 + $0x4a] sm:$0xff]
        %v4069 = vld [vmem:[%s3163 + $0x52] sm:$0xff]
        %v4070 = vld [vmem:[%s3163 + $0x62] sm:$0xff]
        %v4071 = vld [vmem:[%s3163 + $0x6a] sm:$0xff]
        %v4072 = vld [vmem:[%s3163 + $0x7a] sm:$0xff]
        %v4073 = vld [vmem:[%s3163 + $0x82] sm:$0xff]
        %v4074 = vld [vmem:[%s3163 + $0x92] sm:$0xff]
        %v4075 = vld [vmem:[%s3163 + $0x9a] sm:$0xff]
        %v4076 = vld [vmem:[%s3163 + $0xaa] sm:$0xff]
        %v4077 = vld [vmem:[%s3163 + $0xb2] sm:$0xff]
        %v4078 = vld [vmem:[%s3163 + $0xc2] sm:$0xff]
        %v4079 = vld [vmem:[%s3163 + $0xca] sm:$0xff]
        %v4080 = vld [vmem:[%s3163 + $0xda] sm:$0xff]
        %v4081 = vld [vmem:[%s3163 + $0xe2] sm:$0xff]
        %v4082 = vld [vmem:[%s3163 + $0xf2] sm:$0xff]
        %v4083 = vld [vmem:[%s3163 + $0xfa] sm:$0xff]
        %v4084 = vld [vmem:[%s3163 + $0x10a] sm:$0xff]
        %v4085 = vld [vmem:[%s3163 + $0x112] sm:$0xff]
        %v4086 = vld [vmem:[%s3163 + $0x122] sm:$0xff]
        %v4087 = vld [vmem:[%s3163 + $0x12a] sm:$0xff]
        %v4088 = vld [vmem:[%s3163 + $0x13a] sm:$0xff]
        %v4089 = vld [vmem:[%s3163 + $0x142] sm:$0xff]
        %v4090 = vld [vmem:[%s3163 + $0x152] sm:$0xff]
        %v4091 = vld [vmem:[%s3163 + $0x15a] sm:$0xff]
        %v4092 = vld [vmem:[%s3163 + $0x16a] sm:$0xff]
        %v4093 = vld [vmem:[%s3163 + $0x172] sm:$0xff]
        %v4094 = vld [vmem:[%s3163 + $0x1b2] sm:$0xff]
        %v4095 = vld [vmem:[%s3163 + $0x1ba] sm:$0xff]
        %v4096 = vld [vmem:[%s3163 + $0x1ca] sm:$0xff]
        %v4097 = vld [vmem:[%s3163 + $0x1d2] sm:$0xff]
        %v4098 = vld [vmem:[%s3163 + $0x1e2] sm:$0xff]
        %v4099 = vld [vmem:[%s3163 + $0x1ea] sm:$0xff]
        %v4100 = vld [vmem:[%s3163 + $0x1fa] sm:$0xff]
        %v4101 = vld [vmem:[%s3163 + $0x202] sm:$0xff]
        %v4102 = vld [vmem:[%s3163 + $0x212] sm:$0xff]
        %v4103 = vld [vmem:[%s3163 + $0x21a] sm:$0xff]
        %v4104 = vld [vmem:[%s3163 + $0x22a] sm:$0xff]
        %v4105 = vld [vmem:[%s3163 + $0x232] sm:$0xff]
        %v4106 = vld [vmem:[%s3163 + $0x242] sm:$0xff]
        %v4107 = vld [vmem:[%s3163 + $0x24a] sm:$0xff]
        %v4108 = vld [vmem:[%s3163 + $0x25a] sm:$0xff]
        %v4109 = vld [vmem:[%s3163 + $0x262] sm:$0xff]
        %v4110 = vld [vmem:[%s3163 + $0x272] sm:$0xff]
        %v4111 = vld [vmem:[%s3163 + $0x27a] sm:$0xff]
        %v4112 = vld [vmem:[%s3163 + $0x28a] sm:$0xff]
        %v4113 = vld [vmem:[%s3163 + $0x292] sm:$0xff]
        %v4114 = vld [vmem:[%s3163 + $0x2a2] sm:$0xff]
        %v4115 = vld [vmem:[%s3163 + $0x2aa] sm:$0xff]
        %v4116 = vld [vmem:[%s3163 + $0x2ba] sm:$0xff]
        %v4117 = vld [vmem:[%s3163 + $0x2c2] sm:$0xff]
        %v4118 = vld [vmem:[%s3163 + $0x2d2] sm:$0xff]
        %v4119 = vld [vmem:[%s3163 + $0x2da] sm:$0xff]
        %v4120 = vld [vmem:[%s3163 + $0x2ea] sm:$0xff]
        %v4121 = vld [vmem:[%s3163 + $0x2f2] sm:$0xff]
        %v4122 = vld [vmem:[%s3163 + $0x302] sm:$0xff]
        %v4123 = vld [vmem:[%s3163 + $0x30a] sm:$0xff]
        %v4124 = vld [vmem:[%s3163 + $0x31a] sm:$0xff]
        %v4125 = vld [vmem:[%s3163 + $0x322] sm:$0xff]
        %v4126 = vpack.c.bf16 %v4062, %v4062
        %v4127 = vpack.c.bf16 %v4063, %v4063
        %v4128 = vpack.c.bf16 %v4064, %v4064
        %v4129 = vpack.c.bf16 %v4065, %v4065
        %v4130 = vpack.c.bf16 %v4066, %v4066
        %v4131 = vpack.c.bf16 %v4067, %v4067
        %v4132 = vpack.c.bf16 %v4068, %v4068
        %v4133 = vpack.c.bf16 %v4069, %v4069
        %v4134 = vpack.c.bf16 %v4070, %v4070
        %v4135 = vpack.c.bf16 %v4071, %v4071
        %v4136 = vpack.c.bf16 %v4072, %v4072
        %v4137 = vpack.c.bf16 %v4073, %v4073
        %v4138 = vpack.c.bf16 %v4074, %v4074
        %v4139 = vpack.c.bf16 %v4075, %v4075
        %v4140 = vpack.c.bf16 %v4076, %v4076
        %v4141 = vpack.c.bf16 %v4077, %v4077
        %v4142 = vpack.c.bf16 %v4078, %v4078
        %v4143 = vpack.c.bf16 %v4079, %v4079
        %v4144 = vpack.c.bf16 %v4080, %v4080
        %v4145 = vpack.c.bf16 %v4081, %v4081
        %v4146 = vpack.c.bf16 %v4082, %v4082
        %v4147 = vpack.c.bf16 %v4083, %v4083
        %v4148 = vpack.c.bf16 %v4084, %v4084
        %v4149 = vpack.c.bf16 %v4085, %v4085
        %v4150 = vpack.c.bf16 %v4086, %v4086
        %v4151 = vpack.c.bf16 %v4087, %v4087
        %v4152 = vpack.c.bf16 %v4088, %v4088
        %v4153 = vpack.c.bf16 %v4089, %v4089
        %v4154 = vpack.c.bf16 %v4090, %v4090
        %v4155 = vpack.c.bf16 %v4091, %v4091
        %v4156 = vpack.c.bf16 %v4092, %v4092
        %v4157 = vpack.c.bf16 %v4093, %v4093
        %v4158 = vpack.c.bf16 %v4094, %v4094
        %v4159 = vpack.c.bf16 %v4095, %v4095
        %v4160 = vpack.c.bf16 %v4096, %v4096
        %v4161 = vpack.c.bf16 %v4097, %v4097
        %v4162 = vpack.c.bf16 %v4098, %v4098
        %v4163 = vpack.c.bf16 %v4099, %v4099
        %v4164 = vpack.c.bf16 %v4100, %v4100
        %v4165 = vpack.c.bf16 %v4101, %v4101
        %v4166 = vpack.c.bf16 %v4102, %v4102
        %v4167 = vpack.c.bf16 %v4103, %v4103
        %v4168 = vpack.c.bf16 %v4104, %v4104
        %v4169 = vpack.c.bf16 %v4105, %v4105
        %v4170 = vpack.c.bf16 %v4106, %v4106
        %v4171 = vpack.c.bf16 %v4107, %v4107
        %v4172 = vpack.c.bf16 %v4108, %v4108
        %v4173 = vpack.c.bf16 %v4109, %v4109
        %v4174 = vpack.c.bf16 %v4110, %v4110
        %v4175 = vpack.c.bf16 %v4111, %v4111
        %v4176 = vpack.c.bf16 %v4112, %v4112
        %v4177 = vpack.c.bf16 %v4113, %v4113
        %v4178 = vpack.c.bf16 %v4114, %v4114
        %v4179 = vpack.c.bf16 %v4115, %v4115
        %v4180 = vpack.c.bf16 %v4116, %v4116
        %v4181 = vpack.c.bf16 %v4117, %v4117
        %v4182 = vpack.c.bf16 %v4118, %v4118
        %v4183 = vpack.c.bf16 %v4119, %v4119
        %v4184 = vpack.c.bf16 %v4120, %v4120
        %v4185 = vpack.c.bf16 %v4121, %v4121
        %v4186 = vpack.c.bf16 %v4122, %v4122
        %v4187 = vpack.c.bf16 %v4123, %v4123
        %v4188 = vpack.c.bf16 %v4124, %v4124
        %v4189 = vpack.c.bf16 %v4125, %v4125
        %4254 = vrot.lane.b32.xlu0 %v4126, 32
        %v4255 = vpop.permute.xlu0 %4254
        %4256 = vrot.lane.b32.xlu0 %v4127, 32
        %v4257 = vpop.permute.xlu0 %4256
        %4258 = vrot.lane.b32.xlu0 %v4128, 32
        %v4259 = vpop.permute.xlu0 %4258
        %4260 = vrot.lane.b32.xlu0 %v4129, 32
        %v4261 = vpop.permute.xlu0 %4260
        %4262 = vrot.lane.b32.xlu0 %v4130, 32
        %v4263 = vpop.permute.xlu0 %4262
        %4264 = vrot.lane.b32.xlu0 %v4131, 32
        %v4265 = vpop.permute.xlu0 %4264
        %4266 = vrot.lane.b32.xlu0 %v4132, 32
        %v4267 = vpop.permute.xlu0 %4266
        %4268 = vrot.lane.b32.xlu0 %v4133, 32
        %v4269 = vpop.permute.xlu0 %4268
        %4270 = vrot.lane.b32.xlu0 %v4134, 32
        %v4271 = vpop.permute.xlu0 %4270
        %4272 = vrot.lane.b32.xlu0 %v4135, 32
        %v4273 = vpop.permute.xlu0 %4272
        %4274 = vrot.lane.b32.xlu0 %v4136, 32
        %v4275 = vpop.permute.xlu0 %4274
        %4276 = vrot.lane.b32.xlu0 %v4137, 32
        %v4277 = vpop.permute.xlu0 %4276
        %4278 = vrot.lane.b32.xlu0 %v4138, 32
        %v4279 = vpop.permute.xlu0 %4278
        %4280 = vrot.lane.b32.xlu0 %v4139, 32
        %v4281 = vpop.permute.xlu0 %4280
        %4282 = vrot.lane.b32.xlu0 %v4140, 32
        %v4283 = vpop.permute.xlu0 %4282
        %4284 = vrot.lane.b32.xlu0 %v4141, 32
        %v4285 = vpop.permute.xlu0 %4284
        %4286 = vrot.lane.b32.xlu0 %v4142, 32
        %v4287 = vpop.permute.xlu0 %4286
        %4288 = vrot.lane.b32.xlu0 %v4143, 32
        %v4289 = vpop.permute.xlu0 %4288
        %4290 = vrot.lane.b32.xlu0 %v4144, 32
        %v4291 = vpop.permute.xlu0 %4290
        %4292 = vrot.lane.b32.xlu0 %v4145, 32
        %v4293 = vpop.permute.xlu0 %4292
        %4294 = vrot.lane.b32.xlu0 %v4146, 32
        %v4295 = vpop.permute.xlu0 %4294
        %4296 = vrot.lane.b32.xlu0 %v4147, 32
        %v4297 = vpop.permute.xlu0 %4296
        %4298 = vrot.lane.b32.xlu0 %v4148, 32
        %v4299 = vpop.permute.xlu0 %4298
        %4300 = vrot.lane.b32.xlu0 %v4149, 32
        %v4301 = vpop.permute.xlu0 %4300
        %4302 = vrot.lane.b32.xlu0 %v4150, 32
        %v4303 = vpop.permute.xlu0 %4302
        %4304 = vrot.lane.b32.xlu0 %v4151, 32
        %v4305 = vpop.permute.xlu0 %4304
        %4306 = vrot.lane.b32.xlu0 %v4152, 32
        %v4307 = vpop.permute.xlu0 %4306
        %4308 = vrot.lane.b32.xlu0 %v4153, 32
        %v4309 = vpop.permute.xlu0 %4308
        %4310 = vrot.lane.b32.xlu0 %v4154, 32
        %v4311 = vpop.permute.xlu0 %4310
        %4312 = vrot.lane.b32.xlu0 %v4155, 32
        %v4313 = vpop.permute.xlu0 %4312
        %4314 = vrot.lane.b32.xlu0 %v4156, 32
        %v4315 = vpop.permute.xlu0 %4314
        %4316 = vrot.lane.b32.xlu0 %v4157, 32
        %v4317 = vpop.permute.xlu0 %4316
        %4318 = vrot.lane.b32.xlu0 %v4158, 32
        %v4319 = vpop.permute.xlu0 %4318
        %4320 = vrot.lane.b32.xlu0 %v4159, 32
        %v4321 = vpop.permute.xlu0 %4320
        %4322 = vrot.lane.b32.xlu0 %v4160, 32
        %v4323 = vpop.permute.xlu0 %4322
        %4324 = vrot.lane.b32.xlu0 %v4161, 32
        %v4325 = vpop.permute.xlu0 %4324
        %4326 = vrot.lane.b32.xlu0 %v4162, 32
        %v4327 = vpop.permute.xlu0 %4326
        %4328 = vrot.lane.b32.xlu0 %v4163, 32
        %v4329 = vpop.permute.xlu0 %4328
        %4330 = vrot.lane.b32.xlu0 %v4164, 32
        %v4331 = vpop.permute.xlu0 %4330
        %4332 = vrot.lane.b32.xlu0 %v4165, 32
        %v4333 = vpop.permute.xlu0 %4332
        %4334 = vrot.lane.b32.xlu0 %v4166, 32
        %v4335 = vpop.permute.xlu0 %4334
        %4336 = vrot.lane.b32.xlu0 %v4167, 32
        %v4337 = vpop.permute.xlu0 %4336
        %4338 = vrot.lane.b32.xlu0 %v4168, 32
        %v4339 = vpop.permute.xlu0 %4338
        %4340 = vrot.lane.b32.xlu0 %v4169, 32
        %v4341 = vpop.permute.xlu0 %4340
        %4342 = vrot.lane.b32.xlu0 %v4170, 32
        %v4343 = vpop.permute.xlu0 %4342
        %4344 = vrot.lane.b32.xlu0 %v4171, 32
        %v4345 = vpop.permute.xlu0 %4344
        %4346 = vrot.lane.b32.xlu0 %v4172, 32
        %v4347 = vpop.permute.xlu0 %4346
        %4348 = vrot.lane.b32.xlu0 %v4173, 32
        %v4349 = vpop.permute.xlu0 %4348
        %4350 = vrot.lane.b32.xlu0 %v4174, 32
        %v4351 = vpop.permute.xlu0 %4350
        %4352 = vrot.lane.b32.xlu0 %v4175, 32
        %v4353 = vpop.permute.xlu0 %4352
        %4354 = vrot.lane.b32.xlu0 %v4176, 32
        %v4355 = vpop.permute.xlu0 %4354
        %4356 = vrot.lane.b32.xlu0 %v4177, 32
        %v4357 = vpop.permute.xlu0 %4356
        %4358 = vrot.lane.b32.xlu0 %v4178, 32
        %v4359 = vpop.permute.xlu0 %4358
        %4360 = vrot.lane.b32.xlu0 %v4179, 32
        %v4361 = vpop.permute.xlu0 %4360
        %4362 = vrot.lane.b32.xlu0 %v4180, 32
        %v4363 = vpop.permute.xlu0 %4362
        %4364 = vrot.lane.b32.xlu0 %v4181, 32
        %v4365 = vpop.permute.xlu0 %4364
        %4366 = vrot.lane.b32.xlu0 %v4182, 32
        %v4367 = vpop.permute.xlu0 %4366
        %4368 = vrot.lane.b32.xlu0 %v4183, 32
        %v4369 = vpop.permute.xlu0 %4368
        %4370 = vrot.lane.b32.xlu0 %v4184, 32
        %v4371 = vpop.permute.xlu0 %4370
        %4372 = vrot.lane.b32.xlu0 %v4185, 32
        %v4373 = vpop.permute.xlu0 %4372
        %4374 = vrot.lane.b32.xlu0 %v4186, 32
        %v4375 = vpop.permute.xlu0 %4374
        %4376 = vrot.lane.b32.xlu0 %v4187, 32
        %v4377 = vpop.permute.xlu0 %4376
        %4378 = vrot.lane.b32.xlu0 %v4188, 32
        %v4379 = vpop.permute.xlu0 %4378
        %4380 = vrot.lane.b32.xlu0 %v4189, 32
        %v4381 = vpop.permute.xlu0 %4380
        %vm4446 = vcmask 290048
        %4447 = vst.msk [vmem:[#allocation4] sm:$0xf] %vm4446, %v4255
        %4448 = vst.msk [vmem:[#allocation4 + $0x4] sm:$0xf] %vm4446, %v4257
        %4449 = vst.msk [vmem:[#allocation4 + $0x8] sm:$0xf] %vm4446, %v4259
        %4450 = vst.msk [vmem:[#allocation4 + $0xc] sm:$0xf] %vm4446, %v4261
        %4451 = vst.msk [vmem:[#allocation4 + $0x10] sm:$0xf] %vm4446, %v4263
        %4452 = vst.msk [vmem:[#allocation4 + $0x14] sm:$0xf] %vm4446, %v4265
        %4453 = vst.msk [vmem:[#allocation4 + $0x18] sm:$0xf] %vm4446, %v4267
        %4454 = vst.msk [vmem:[#allocation4 + $0x1c] sm:$0xf] %vm4446, %v4269
        %4455 = vst.msk [vmem:[#allocation4 + $0x20] sm:$0xf] %vm4446, %v4271
        %4456 = vst.msk [vmem:[#allocation4 + $0x24] sm:$0xf] %vm4446, %v4273
        %4457 = vst.msk [vmem:[#allocation4 + $0x28] sm:$0xf] %vm4446, %v4275
        %4458 = vst.msk [vmem:[#allocation4 + $0x2c] sm:$0xf] %vm4446, %v4277
        %4459 = vst.msk [vmem:[#allocation4 + $0x30] sm:$0xf] %vm4446, %v4279
        %4460 = vst.msk [vmem:[#allocation4 + $0x34] sm:$0xf] %vm4446, %v4281
        %4461 = vst.msk [vmem:[#allocation4 + $0x38] sm:$0xf] %vm4446, %v4283
        %4462 = vst.msk [vmem:[#allocation4 + $0x3c] sm:$0xf] %vm4446, %v4285
        %4463 = vst.msk [vmem:[#allocation4 + $0x40] sm:$0xf] %vm4446, %v4287
        %4464 = vst.msk [vmem:[#allocation4 + $0x44] sm:$0xf] %vm4446, %v4289
        %4465 = vst.msk [vmem:[#allocation4 + $0x48] sm:$0xf] %vm4446, %v4291
        %4466 = vst.msk [vmem:[#allocation4 + $0x4c] sm:$0xf] %vm4446, %v4293
        %4467 = vst.msk [vmem:[#allocation4 + $0x50] sm:$0xf] %vm4446, %v4295
        %4468 = vst.msk [vmem:[#allocation4 + $0x54] sm:$0xf] %vm4446, %v4297
        %4469 = vst.msk [vmem:[#allocation4 + $0x58] sm:$0xf] %vm4446, %v4299
        %4470 = vst.msk [vmem:[#allocation4 + $0x5c] sm:$0xf] %vm4446, %v4301
        %4471 = vst.msk [vmem:[#allocation4 + $0x60] sm:$0xf] %vm4446, %v4303
        %4472 = vst.msk [vmem:[#allocation4 + $0x64] sm:$0xf] %vm4446, %v4305
        %4473 = vst.msk [vmem:[#allocation4 + $0x68] sm:$0xf] %vm4446, %v4307
        %4474 = vst.msk [vmem:[#allocation4 + $0x6c] sm:$0xf] %vm4446, %v4309
        %4475 = vst.msk [vmem:[#allocation4 + $0x70] sm:$0xf] %vm4446, %v4311
        %4476 = vst.msk [vmem:[#allocation4 + $0x74] sm:$0xf] %vm4446, %v4313
        %4477 = vst.msk [vmem:[#allocation4 + $0x78] sm:$0xf] %vm4446, %v4315
        %4478 = vst.msk [vmem:[#allocation4 + $0x7c] sm:$0xf] %vm4446, %v4317
        %4479 = vst.msk [vmem:[#allocation4 + $0x80] sm:$0xf] %vm4446, %v4319
        %4480 = vst.msk [vmem:[#allocation4 + $0x84] sm:$0xf] %vm4446, %v4321
        %4481 = vst.msk [vmem:[#allocation4 + $0x88] sm:$0xf] %vm4446, %v4323
        %4482 = vst.msk [vmem:[#allocation4 + $0x8c] sm:$0xf] %vm4446, %v4325
        %4483 = vst.msk [vmem:[#allocation4 + $0x90] sm:$0xf] %vm4446, %v4327
        %4484 = vst.msk [vmem:[#allocation4 + $0x94] sm:$0xf] %vm4446, %v4329
        %4485 = vst.msk [vmem:[#allocation4 + $0x98] sm:$0xf] %vm4446, %v4331
        %4486 = vst.msk [vmem:[#allocation4 + $0x9c] sm:$0xf] %vm4446, %v4333
        %4487 = vst.msk [vmem:[#allocation4 + $0xa0] sm:$0xf] %vm4446, %v4335
        %4488 = vst.msk [vmem:[#allocation4 + $0xa4] sm:$0xf] %vm4446, %v4337
        %4489 = vst.msk [vmem:[#allocation4 + $0xa8] sm:$0xf] %vm4446, %v4339
        %4490 = vst.msk [vmem:[#allocation4 + $0xac] sm:$0xf] %vm4446, %v4341
        %4491 = vst.msk [vmem:[#allocation4 + $0xb0] sm:$0xf] %vm4446, %v4343
        %4492 = vst.msk [vmem:[#allocation4 + $0xb4] sm:$0xf] %vm4446, %v4345
        %4493 = vst.msk [vmem:[#allocation4 + $0xb8] sm:$0xf] %vm4446, %v4347
        %4494 = vst.msk [vmem:[#allocation4 + $0xbc] sm:$0xf] %vm4446, %v4349
        %4495 = vst.msk [vmem:[#allocation4 + $0xc0] sm:$0xf] %vm4446, %v4351
        %4496 = vst.msk [vmem:[#allocation4 + $0xc4] sm:$0xf] %vm4446, %v4353
        %4497 = vst.msk [vmem:[#allocation4 + $0xc8] sm:$0xf] %vm4446, %v4355
        %4498 = vst.msk [vmem:[#allocation4 + $0xcc] sm:$0xf] %vm4446, %v4357
        %4499 = vst.msk [vmem:[#allocation4 + $0xd0] sm:$0xf] %vm4446, %v4359
        %4500 = vst.msk [vmem:[#allocation4 + $0xd4] sm:$0xf] %vm4446, %v4361
        %4501 = vst.msk [vmem:[#allocation4 + $0xd8] sm:$0xf] %vm4446, %v4363
        %4502 = vst.msk [vmem:[#allocation4 + $0xdc] sm:$0xf] %vm4446, %v4365
        %4503 = vst.msk [vmem:[#allocation4 + $0xe0] sm:$0xf] %vm4446, %v4367
        %4504 = vst.msk [vmem:[#allocation4 + $0xe4] sm:$0xf] %vm4446, %v4369
        %4505 = vst.msk [vmem:[#allocation4 + $0xe8] sm:$0xf] %vm4446, %v4371
        %4506 = vst.msk [vmem:[#allocation4 + $0xec] sm:$0xf] %vm4446, %v4373
        %4507 = vst.msk [vmem:[#allocation4 + $0xf0] sm:$0xf] %vm4446, %v4375
        %4508 = vst.msk [vmem:[#allocation4 + $0xf4] sm:$0xf] %vm4446, %v4377
        %4509 = vst.msk [vmem:[#allocation4 + $0xf8] sm:$0xf] %vm4446, %v4379
        %4510 = vst.msk [vmem:[#allocation4 + $0xfc] sm:$0xf] %vm4446, %v4381
        %v4511 = vld [vmem:[#allocation4] sm:$0xf]
        %v4512 = vld [vmem:[#allocation4 + $0x4] sm:$0xf]
        %v4513 = vld [vmem:[#allocation4 + $0x8] sm:$0xf]
        %v4514 = vld [vmem:[#allocation4 + $0xc] sm:$0xf]
        %v4515 = vld [vmem:[#allocation4 + $0x10] sm:$0xf]
        %v4516 = vld [vmem:[#allocation4 + $0x14] sm:$0xf]
        %v4517 = vld [vmem:[#allocation4 + $0x18] sm:$0xf]
        %v4518 = vld [vmem:[#allocation4 + $0x1c] sm:$0xf]
        %v4519 = vld [vmem:[#allocation4 + $0x20] sm:$0xf]
        %v4520 = vld [vmem:[#allocation4 + $0x24] sm:$0xf]
        %v4521 = vld [vmem:[#allocation4 + $0x28] sm:$0xf]
        %v4522 = vld [vmem:[#allocation4 + $0x2c] sm:$0xf]
        %v4523 = vld [vmem:[#allocation4 + $0x30] sm:$0xf]
        %v4524 = vld [vmem:[#allocation4 + $0x34] sm:$0xf]
        %v4525 = vld [vmem:[#allocation4 + $0x38] sm:$0xf]
        %v4526 = vld [vmem:[#allocation4 + $0x3c] sm:$0xf]
        %v4527 = vld [vmem:[#allocation4 + $0x40] sm:$0xf]
        %v4528 = vld [vmem:[#allocation4 + $0x44] sm:$0xf]
        %v4529 = vld [vmem:[#allocation4 + $0x48] sm:$0xf]
        %v4530 = vld [vmem:[#allocation4 + $0x4c] sm:$0xf]
        %v4531 = vld [vmem:[#allocation4 + $0x50] sm:$0xf]
        %v4532 = vld [vmem:[#allocation4 + $0x54] sm:$0xf]
        %v4533 = vld [vmem:[#allocation4 + $0x58] sm:$0xf]
        %v4534 = vld [vmem:[#allocation4 + $0x5c] sm:$0xf]
        %v4535 = vld [vmem:[#allocation4 + $0x60] sm:$0xf]
        %v4536 = vld [vmem:[#allocation4 + $0x64] sm:$0xf]
        %v4537 = vld [vmem:[#allocation4 + $0x68] sm:$0xf]
        %v4538 = vld [vmem:[#allocation4 + $0x6c] sm:$0xf]
        %v4539 = vld [vmem:[#allocation4 + $0x70] sm:$0xf]
        %v4540 = vld [vmem:[#allocation4 + $0x74] sm:$0xf]
        %v4541 = vld [vmem:[#allocation4 + $0x78] sm:$0xf]
        %v4542 = vld [vmem:[#allocation4 + $0x7c] sm:$0xf]
        %v4543 = vld [vmem:[#allocation4 + $0x80] sm:$0xf]
        %v4544 = vld [vmem:[#allocation4 + $0x84] sm:$0xf]
        %v4545 = vld [vmem:[#allocation4 + $0x88] sm:$0xf]
        %v4546 = vld [vmem:[#allocation4 + $0x8c] sm:$0xf]
        %v4547 = vld [vmem:[#allocation4 + $0x90] sm:$0xf]
        %v4548 = vld [vmem:[#allocation4 + $0x94] sm:$0xf]
        %v4549 = vld [vmem:[#allocation4 + $0x98] sm:$0xf]
        %v4550 = vld [vmem:[#allocation4 + $0x9c] sm:$0xf]
        %v4551 = vld [vmem:[#allocation4 + $0xa0] sm:$0xf]
        %v4552 = vld [vmem:[#allocation4 + $0xa4] sm:$0xf]
        %v4553 = vld [vmem:[#allocation4 + $0xa8] sm:$0xf]
        %v4554 = vld [vmem:[#allocation4 + $0xac] sm:$0xf]
        %v4555 = vld [vmem:[#allocation4 + $0xb0] sm:$0xf]
        %v4556 = vld [vmem:[#allocation4 + $0xb4] sm:$0xf]
        %v4557 = vld [vmem:[#allocation4 + $0xb8] sm:$0xf]
        %v4558 = vld [vmem:[#allocation4 + $0xbc] sm:$0xf]
        %v4559 = vld [vmem:[#allocation4 + $0xc0] sm:$0xf]
        %v4560 = vld [vmem:[#allocation4 + $0xc4] sm:$0xf]
        %v4561 = vld [vmem:[#allocation4 + $0xc8] sm:$0xf]
        %v4562 = vld [vmem:[#allocation4 + $0xcc] sm:$0xf]
        %v4563 = vld [vmem:[#allocation4 + $0xd0] sm:$0xf]
        %v4564 = vld [vmem:[#allocation4 + $0xd4] sm:$0xf]
        %v4565 = vld [vmem:[#allocation4 + $0xd8] sm:$0xf]
        %v4566 = vld [vmem:[#allocation4 + $0xdc] sm:$0xf]
        %v4567 = vld [vmem:[#allocation4 + $0xe0] sm:$0xf]
        %v4568 = vld [vmem:[#allocation4 + $0xe4] sm:$0xf]
        %v4569 = vld [vmem:[#allocation4 + $0xe8] sm:$0xf]
        %v4570 = vld [vmem:[#allocation4 + $0xec] sm:$0xf]
        %v4571 = vld [vmem:[#allocation4 + $0xf0] sm:$0xf]
        %v4572 = vld [vmem:[#allocation4 + $0xf4] sm:$0xf]
        %v4573 = vld [vmem:[#allocation4 + $0xf8] sm:$0xf]
        %v4574 = vld [vmem:[#allocation4 + $0xfc] sm:$0xf]
        %v4575 = vld [vmem:[%s3] sm:$0xf]
        %v4576 = vld [vmem:[%s3 + $0x4] sm:$0xf]
        %v4577 = vld [vmem:[%s3 + $0x8] sm:$0xf]
        %v4578 = vld [vmem:[%s3 + $0xc] sm:$0xf]
        %v4579 = vld [vmem:[%s3 + $0x10] sm:$0x3]
        %v4644 = vunpack.c.l.b16 %v4511
        %v4645 = vunpack.c.l.b16 %v4512
        %v4646 = vunpack.c.l.b16 %v4513
        %v4647 = vunpack.c.l.b16 %v4514
        %v4648 = vunpack.c.l.b16 %v4515
        %v4649 = vunpack.c.l.b16 %v4516
        %v4650 = vunpack.c.l.b16 %v4517
        %v4651 = vunpack.c.l.b16 %v4518
        %v4652 = vunpack.c.l.b16 %v4519
        %v4653 = vunpack.c.l.b16 %v4520
        %v4654 = vunpack.c.l.b16 %v4521
        %v4655 = vunpack.c.l.b16 %v4522
        %v4656 = vunpack.c.l.b16 %v4523
        %v4657 = vunpack.c.l.b16 %v4524
        %v4658 = vunpack.c.l.b16 %v4525
        %v4659 = vunpack.c.l.b16 %v4526
        %v4660 = vunpack.c.l.b16 %v4527
        %v4661 = vunpack.c.l.b16 %v4528
        %v4662 = vunpack.c.l.b16 %v4529
        %v4663 = vunpack.c.l.b16 %v4530
        %v4664 = vunpack.c.l.b16 %v4531
        %v4665 = vunpack.c.l.b16 %v4532
        %v4666 = vunpack.c.l.b16 %v4533
        %v4667 = vunpack.c.l.b16 %v4534
        %v4668 = vunpack.c.l.b16 %v4535
        %v4669 = vunpack.c.l.b16 %v4536
        %v4670 = vunpack.c.l.b16 %v4537
        %v4671 = vunpack.c.l.b16 %v4538
        %v4672 = vunpack.c.l.b16 %v4539
        %v4673 = vunpack.c.l.b16 %v4540
        %v4674 = vunpack.c.l.b16 %v4541
        %v4675 = vunpack.c.l.b16 %v4542
        %v4676 = vunpack.c.l.b16 %v4543
        %v4677 = vunpack.c.l.b16 %v4544
        %v4678 = vunpack.c.l.b16 %v4545
        %v4679 = vunpack.c.l.b16 %v4546
        %v4680 = vunpack.c.l.b16 %v4547
        %v4681 = vunpack.c.l.b16 %v4548
        %v4682 = vunpack.c.l.b16 %v4549
        %v4683 = vunpack.c.l.b16 %v4550
        %v4684 = vunpack.c.l.b16 %v4551
        %v4685 = vunpack.c.l.b16 %v4552
        %v4686 = vunpack.c.l.b16 %v4553
        %v4687 = vunpack.c.l.b16 %v4554
        %v4688 = vunpack.c.l.b16 %v4555
        %v4689 = vunpack.c.l.b16 %v4556
        %v4690 = vunpack.c.l.b16 %v4557
        %v4691 = vunpack.c.l.b16 %v4558
        %v4692 = vunpack.c.l.b16 %v4559
        %v4693 = vunpack.c.l.b16 %v4560
        %v4694 = vunpack.c.l.b16 %v4561
        %v4695 = vunpack.c.l.b16 %v4562
        %v4696 = vunpack.c.l.b16 %v4563
        %v4697 = vunpack.c.l.b16 %v4564
        %v4698 = vunpack.c.l.b16 %v4565
        %v4699 = vunpack.c.l.b16 %v4566
        %v4700 = vunpack.c.l.b16 %v4567
        %v4701 = vunpack.c.l.b16 %v4568
        %v4702 = vunpack.c.l.b16 %v4569
        %v4703 = vunpack.c.l.b16 %v4570
        %v4704 = vunpack.c.l.b16 %v4571
        %v4705 = vunpack.c.l.b16 %v4572
        %v4706 = vunpack.c.l.b16 %v4573
        %v4707 = vunpack.c.l.b16 %v4574
        %v4708 = vpack.c.b16 %v4645, %v4644
        %v4709 = vpack.c.b16 %v4647, %v4646
        %v4710 = vpack.c.b16 %v4649, %v4648
        %v4711 = vpack.c.b16 %v4651, %v4650
        %v4712 = vpack.c.b16 %v4653, %v4652
        %v4713 = vpack.c.b16 %v4655, %v4654
        %v4714 = vpack.c.b16 %v4657, %v4656
        %v4715 = vpack.c.b16 %v4659, %v4658
        %v4716 = vpack.c.b16 %v4661, %v4660
        %v4717 = vpack.c.b16 %v4663, %v4662
        %v4718 = vpack.c.b16 %v4665, %v4664
        %v4719 = vpack.c.b16 %v4667, %v4666
        %v4720 = vpack.c.b16 %v4669, %v4668
        %v4721 = vpack.c.b16 %v4671, %v4670
        %v4722 = vpack.c.b16 %v4673, %v4672
        %v4723 = vpack.c.b16 %v4675, %v4674
        %v4724 = vpack.c.b16 %v4677, %v4676
        %v4725 = vpack.c.b16 %v4679, %v4678
        %v4726 = vpack.c.b16 %v4681, %v4680
        %v4727 = vpack.c.b16 %v4683, %v4682
        %v4728 = vpack.c.b16 %v4685, %v4684
        %v4729 = vpack.c.b16 %v4687, %v4686
        %v4730 = vpack.c.b16 %v4689, %v4688
        %v4731 = vpack.c.b16 %v4691, %v4690
        %v4732 = vpack.c.b16 %v4693, %v4692
        %v4733 = vpack.c.b16 %v4695, %v4694
        %v4734 = vpack.c.b16 %v4697, %v4696
        %v4735 = vpack.c.b16 %v4699, %v4698
        %v4736 = vpack.c.b16 %v4701, %v4700
        %v4737 = vpack.c.b16 %v4703, %v4702
        %v4738 = vpack.c.b16 %v4705, %v4704
        %v4739 = vpack.c.b16 %v4707, %v4706
        %v4745 = vunpack.c.l.b16 %v4575
        %v4746 = vunpack.c.l.b16 %v4576
        %v4747 = vunpack.c.l.b16 %v4577
        %v4748 = vunpack.c.l.b16 %v4578
        %v4749 = vunpack.c.l.b16 %v4579
        %v4750 = vpack.c.b16 %v4746, %v4745
        %v4751 = vpack.c.b16 %v4748, %v4747
        %v4752 = vpack.c.b16 %v4749, %v4749
        %vm4755 = vcmask 293888
        %v4757 = vsel %vm4755, %v4708, 0
        %v4760 = vsel %vm4755, %v4709, 0
        %v4763 = vsel %vm4755, %v4710, 0
        %v4766 = vsel %vm4755, %v4711, 0
        %v4769 = vsel %vm4755, %v4712, 0
        %v4772 = vsel %vm4755, %v4713, 0
        %v4775 = vsel %vm4755, %v4714, 0
        %v4778 = vsel %vm4755, %v4715, 0
        %v4781 = vsel %vm4755, %v4716, 0
        %v4784 = vsel %vm4755, %v4717, 0
        %v4787 = vsel %vm4755, %v4718, 0
        %v4790 = vsel %vm4755, %v4719, 0
        %v4793 = vsel %vm4755, %v4720, 0
        %v4796 = vsel %vm4755, %v4721, 0
        %v4799 = vsel %vm4755, %v4722, 0
        %v4802 = vsel %vm4755, %v4723, 0
        %v4805 = vsel %vm4755, %v4724, 0
        %v4808 = vsel %vm4755, %v4725, 0
        %v4811 = vsel %vm4755, %v4726, 0
        %v4814 = vsel %vm4755, %v4727, 0
        %v4817 = vsel %vm4755, %v4728, 0
        %v4820 = vsel %vm4755, %v4729, 0
        %v4823 = vsel %vm4755, %v4730, 0
        %v4826 = vsel %vm4755, %v4731, 0
        %v4829 = vsel %vm4755, %v4732, 0
        %v4832 = vsel %vm4755, %v4733, 0
        %v4835 = vsel %vm4755, %v4734, 0
        %v4838 = vsel %vm4755, %v4735, 0
        %v4841 = vsel %vm4755, %v4736, 0
        %v4844 = vsel %vm4755, %v4737, 0
        %v4847 = vsel %vm4755, %v4738, 0
        %v4850 = vsel %vm4755, %v4739, 0
        %vm4852 = vcmask 1041408
        %v4854 = vsel %vm4852, %v4752, 0
        %4856 = vmatpush.bf16.msra.mxu0 0
        %4857 = vmatpush.bf16.msra.mxu0 0
        %4858 = vmatpush.bf16.msra.mxu0 0
        %4859 = vmatpush.bf16.msra.mxu0 0
        %4860 = vmatpush.bf16.msra.mxu0 0
        %4861 = vmatpush.bf16.msra.mxu0 %v4854
        %4862 = vmatpush.bf16.msra.mxu0 %v4751
        %4863 = vmatpush.bf16.msra.mxu0 %v4750
        %4864 = vmatmul.bf16.gmra.mxu0 %v4757
        %v4865 = vpop.f32.mrf.mxu0
        %v4866 = vadd.f32 0.0, %v4865
        %v4867 = vpop.f32.mrf.mxu0
        %v4868 = vadd.f32 0.0, %v4867
        %4869 = vmatmul.bf16.gmra.mxu0 %v4760
        %v4870 = vpop.f32.mrf.mxu0
        %v4871 = vadd.f32 0.0, %v4870
        %v4872 = vpop.f32.mrf.mxu0
        %v4873 = vadd.f32 0.0, %v4872
        %4874 = vmatmul.bf16.gmra.mxu0 %v4763
        %v4875 = vpop.f32.mrf.mxu0
        %v4876 = vadd.f32 0.0, %v4875
        %v4877 = vpop.f32.mrf.mxu0
        %v4878 = vadd.f32 0.0, %v4877
        %4879 = vmatmul.bf16.gmra.mxu0 %v4766
        %v4880 = vpop.f32.mrf.mxu0
        %v4881 = vadd.f32 0.0, %v4880
        %v4882 = vpop.f32.mrf.mxu0
        %v4883 = vadd.f32 0.0, %v4882
        %4884 = vmatmul.bf16.gmra.mxu0 %v4769
        %v4885 = vpop.f32.mrf.mxu0
        %v4886 = vadd.f32 0.0, %v4885
        %v4887 = vpop.f32.mrf.mxu0
        %v4888 = vadd.f32 0.0, %v4887
        %4889 = vmatmul.bf16.gmra.mxu0 %v4772
        %v4890 = vpop.f32.mrf.mxu0
        %v4891 = vadd.f32 0.0, %v4890
        %v4892 = vpop.f32.mrf.mxu0
        %v4893 = vadd.f32 0.0, %v4892
        %4894 = vmatmul.bf16.gmra.mxu0 %v4775
        %v4895 = vpop.f32.mrf.mxu0
        %v4896 = vadd.f32 0.0, %v4895
        %v4897 = vpop.f32.mrf.mxu0
        %v4898 = vadd.f32 0.0, %v4897
        %4899 = vmatmul.bf16.gmra.mxu0 %v4778
        %v4900 = vpop.f32.mrf.mxu0
        %v4901 = vadd.f32 0.0, %v4900
        %v4902 = vpop.f32.mrf.mxu0
        %v4903 = vadd.f32 0.0, %v4902
        %4904 = vmatmul.bf16.gmra.mxu0 %v4781
        %v4905 = vpop.f32.mrf.mxu0
        %v4906 = vadd.f32 0.0, %v4905
        %v4907 = vpop.f32.mrf.mxu0
        %v4908 = vadd.f32 0.0, %v4907
        %4909 = vmatmul.bf16.gmra.mxu0 %v4784
        %v4910 = vpop.f32.mrf.mxu0
        %v4911 = vadd.f32 0.0, %v4910
        %v4912 = vpop.f32.mrf.mxu0
        %v4913 = vadd.f32 0.0, %v4912
        %4914 = vmatmul.bf16.gmra.mxu0 %v4787
        %v4915 = vpop.f32.mrf.mxu0
        %v4916 = vadd.f32 0.0, %v4915
        %v4917 = vpop.f32.mrf.mxu0
        %v4918 = vadd.f32 0.0, %v4917
        %4919 = vmatmul.bf16.gmra.mxu0 %v4790
        %v4920 = vpop.f32.mrf.mxu0
        %v4921 = vadd.f32 0.0, %v4920
        %v4922 = vpop.f32.mrf.mxu0
        %v4923 = vadd.f32 0.0, %v4922
        %4924 = vmatmul.bf16.gmra.mxu0 %v4793
        %v4925 = vpop.f32.mrf.mxu0
        %v4926 = vadd.f32 0.0, %v4925
        %v4927 = vpop.f32.mrf.mxu0
        %v4928 = vadd.f32 0.0, %v4927
        %4929 = vmatmul.bf16.gmra.mxu0 %v4796
        %v4930 = vpop.f32.mrf.mxu0
        %v4931 = vadd.f32 0.0, %v4930
        %v4932 = vpop.f32.mrf.mxu0
        %v4933 = vadd.f32 0.0, %v4932
        %4934 = vmatmul.bf16.gmra.mxu0 %v4799
        %v4935 = vpop.f32.mrf.mxu0
        %v4936 = vadd.f32 0.0, %v4935
        %v4937 = vpop.f32.mrf.mxu0
        %v4938 = vadd.f32 0.0, %v4937
        %4939 = vmatmul.bf16.gmra.mxu0 %v4802
        %v4940 = vpop.f32.mrf.mxu0
        %v4941 = vadd.f32 0.0, %v4940
        %v4942 = vpop.f32.mrf.mxu0
        %v4943 = vadd.f32 0.0, %v4942
        %4944 = vmatmul.bf16.gmra.mxu0 %v4805
        %v4945 = vpop.f32.mrf.mxu0
        %v4946 = vadd.f32 0.0, %v4945
        %v4947 = vpop.f32.mrf.mxu0
        %v4948 = vadd.f32 0.0, %v4947
        %4949 = vmatmul.bf16.gmra.mxu0 %v4808
        %v4950 = vpop.f32.mrf.mxu0
        %v4951 = vadd.f32 0.0, %v4950
        %v4952 = vpop.f32.mrf.mxu0
        %v4953 = vadd.f32 0.0, %v4952
        %4954 = vmatmul.bf16.gmra.mxu0 %v4811
        %v4955 = vpop.f32.mrf.mxu0
        %v4956 = vadd.f32 0.0, %v4955
        %v4957 = vpop.f32.mrf.mxu0
        %v4958 = vadd.f32 0.0, %v4957
        %4959 = vmatmul.bf16.gmra.mxu0 %v4814
        %v4960 = vpop.f32.mrf.mxu0
        %v4961 = vadd.f32 0.0, %v4960
        %v4962 = vpop.f32.mrf.mxu0
        %v4963 = vadd.f32 0.0, %v4962
        %4964 = vmatmul.bf16.gmra.mxu0 %v4817
        %v4965 = vpop.f32.mrf.mxu0
        %v4966 = vadd.f32 0.0, %v4965
        %v4967 = vpop.f32.mrf.mxu0
        %v4968 = vadd.f32 0.0, %v4967
        %4969 = vmatmul.bf16.gmra.mxu0 %v4820
        %v4970 = vpop.f32.mrf.mxu0
        %v4971 = vadd.f32 0.0, %v4970
        %v4972 = vpop.f32.mrf.mxu0
        %v4973 = vadd.f32 0.0, %v4972
        %4974 = vmatmul.bf16.gmra.mxu0 %v4823
        %v4975 = vpop.f32.mrf.mxu0
        %v4976 = vadd.f32 0.0, %v4975
        %v4977 = vpop.f32.mrf.mxu0
        %v4978 = vadd.f32 0.0, %v4977
        %4979 = vmatmul.bf16.gmra.mxu0 %v4826
        %v4980 = vpop.f32.mrf.mxu0
        %v4981 = vadd.f32 0.0, %v4980
        %v4982 = vpop.f32.mrf.mxu0
        %v4983 = vadd.f32 0.0, %v4982
        %4984 = vmatmul.bf16.gmra.mxu0 %v4829
        %v4985 = vpop.f32.mrf.mxu0
        %v4986 = vadd.f32 0.0, %v4985
        %v4987 = vpop.f32.mrf.mxu0
        %v4988 = vadd.f32 0.0, %v4987
        %4989 = vmatmul.bf16.gmra.mxu0 %v4832
        %v4990 = vpop.f32.mrf.mxu0
        %v4991 = vadd.f32 0.0, %v4990
        %v4992 = vpop.f32.mrf.mxu0
        %v4993 = vadd.f32 0.0, %v4992
        %4994 = vmatmul.bf16.gmra.mxu0 %v4835
        %v4995 = vpop.f32.mrf.mxu0
        %v4996 = vadd.f32 0.0, %v4995
        %v4997 = vpop.f32.mrf.mxu0
        %v4998 = vadd.f32 0.0, %v4997
        %4999 = vmatmul.bf16.gmra.mxu0 %v4838
        %v5000 = vpop.f32.mrf.mxu0
        %v5001 = vadd.f32 0.0, %v5000
        %v5002 = vpop.f32.mrf.mxu0
        %v5003 = vadd.f32 0.0, %v5002
        %5004 = vmatmul.bf16.gmra.mxu0 %v4841
        %v5005 = vpop.f32.mrf.mxu0
        %v5006 = vadd.f32 0.0, %v5005
        %v5007 = vpop.f32.mrf.mxu0
        %v5008 = vadd.f32 0.0, %v5007
        %5009 = vmatmul.bf16.gmra.mxu0 %v4844
        %v5010 = vpop.f32.mrf.mxu0
        %v5011 = vadd.f32 0.0, %v5010
        %v5012 = vpop.f32.mrf.mxu0
        %v5013 = vadd.f32 0.0, %v5012
        %5014 = vmatmul.bf16.gmra.mxu0 %v4847
        %v5015 = vpop.f32.mrf.mxu0
        %v5016 = vadd.f32 0.0, %v5015
        %v5017 = vpop.f32.mrf.mxu0
        %v5018 = vadd.f32 0.0, %v5017
        %5019 = vmatmul.bf16.gmra.mxu0 %v4850
        %v5020 = vpop.f32.mrf.mxu0
        %v5021 = vadd.f32 0.0, %v5020
        %v5022 = vpop.f32.mrf.mxu0
        %v5023 = vadd.f32 0.0, %v5022
        %5024 = vdwg.mxu0
        %vm5025 = vcmp.ge.f32.partialorder %v4866, 0.0
        %vm5026 = vcmp.ge.f32.partialorder %v4868, 0.0
        %vm5027 = vcmp.ge.f32.partialorder %v4871, 0.0
        %vm5028 = vcmp.ge.f32.partialorder %v4873, 0.0
        %vm5029 = vcmp.ge.f32.partialorder %v4876, 0.0
        %vm5030 = vcmp.ge.f32.partialorder %v4878, 0.0
        %vm5031 = vcmp.ge.f32.partialorder %v4881, 0.0
        %vm5032 = vcmp.ge.f32.partialorder %v4883, 0.0
        %vm5033 = vcmp.ge.f32.partialorder %v4886, 0.0
        %vm5034 = vcmp.ge.f32.partialorder %v4888, 0.0
        %vm5035 = vcmp.ge.f32.partialorder %v4891, 0.0
        %vm5036 = vcmp.ge.f32.partialorder %v4893, 0.0
        %vm5037 = vcmp.ge.f32.partialorder %v4896, 0.0
        %vm5038 = vcmp.ge.f32.partialorder %v4898, 0.0
        %vm5039 = vcmp.ge.f32.partialorder %v4901, 0.0
        %vm5040 = vcmp.ge.f32.partialorder %v4903, 0.0
        %vm5041 = vcmp.ge.f32.partialorder %v4906, 0.0
        %vm5042 = vcmp.ge.f32.partialorder %v4908, 0.0
        %vm5043 = vcmp.ge.f32.partialorder %v4911, 0.0
        %vm5044 = vcmp.ge.f32.partialorder %v4913, 0.0
        %vm5045 = vcmp.ge.f32.partialorder %v4916, 0.0
        %vm5046 = vcmp.ge.f32.partialorder %v4918, 0.0
        %vm5047 = vcmp.ge.f32.partialorder %v4921, 0.0
        %vm5048 = vcmp.ge.f32.partialorder %v4923, 0.0
        %vm5049 = vcmp.ge.f32.partialorder %v4926, 0.0
        %vm5050 = vcmp.ge.f32.partialorder %v4928, 0.0
        %vm5051 = vcmp.ge.f32.partialorder %v4931, 0.0
        %vm5052 = vcmp.ge.f32.partialorder %v4933, 0.0
        %vm5053 = vcmp.ge.f32.partialorder %v4936, 0.0
        %vm5054 = vcmp.ge.f32.partialorder %v4938, 0.0
        %vm5055 = vcmp.ge.f32.partialorder %v4941, 0.0
        %vm5056 = vcmp.ge.f32.partialorder %v4943, 0.0
        %vm5057 = vcmp.ge.f32.partialorder %v4946, 0.0
        %vm5058 = vcmp.ge.f32.partialorder %v4948, 0.0
        %vm5059 = vcmp.ge.f32.partialorder %v4951, 0.0
        %vm5060 = vcmp.ge.f32.partialorder %v4953, 0.0
        %vm5061 = vcmp.ge.f32.partialorder %v4956, 0.0
        %vm5062 = vcmp.ge.f32.partialorder %v4958, 0.0
        %vm5063 = vcmp.ge.f32.partialorder %v4961, 0.0
        %vm5064 = vcmp.ge.f32.partialorder %v4963, 0.0
        %vm5065 = vcmp.ge.f32.partialorder %v4966, 0.0
        %vm5066 = vcmp.ge.f32.partialorder %v4968, 0.0
        %vm5067 = vcmp.ge.f32.partialorder %v4971, 0.0
        %vm5068 = vcmp.ge.f32.partialorder %v4973, 0.0
        %vm5069 = vcmp.ge.f32.partialorder %v4976, 0.0
        %vm5070 = vcmp.ge.f32.partialorder %v4978, 0.0
        %vm5071 = vcmp.ge.f32.partialorder %v4981, 0.0
        %vm5072 = vcmp.ge.f32.partialorder %v4983, 0.0
        %vm5073 = vcmp.ge.f32.partialorder %v4986, 0.0
        %vm5074 = vcmp.ge.f32.partialorder %v4988, 0.0
        %vm5075 = vcmp.ge.f32.partialorder %v4991, 0.0
        %vm5076 = vcmp.ge.f32.partialorder %v4993, 0.0
        %vm5077 = vcmp.ge.f32.partialorder %v4996, 0.0
        %vm5078 = vcmp.ge.f32.partialorder %v4998, 0.0
        %vm5079 = vcmp.ge.f32.partialorder %v5001, 0.0
        %vm5080 = vcmp.ge.f32.partialorder %v5003, 0.0
        %vm5081 = vcmp.ge.f32.partialorder %v5006, 0.0
        %vm5082 = vcmp.ge.f32.partialorder %v5008, 0.0
        %vm5083 = vcmp.ge.f32.partialorder %v5011, 0.0
        %vm5084 = vcmp.ge.f32.partialorder %v5013, 0.0
        %vm5085 = vcmp.ge.f32.partialorder %v5016, 0.0
        %vm5086 = vcmp.ge.f32.partialorder %v5018, 0.0
        %vm5087 = vcmp.ge.f32.partialorder %v5021, 0.0
        %vm5088 = vcmp.ge.f32.partialorder %v5023, 0.0
        %v5089 = vld [vmem:[%s4] sm:$0x1]
        %v5091 = vperm.slane %v5089, 0
        %v5093 = vmul.f32 %v5091, %v4866
        %v5094 = vmul.f32 %v5091, %v4868
        %v5095 = vmul.f32 %v5091, %v4871
        %v5096 = vmul.f32 %v5091, %v4873
        %v5097 = vmul.f32 %v5091, %v4876
        %v5098 = vmul.f32 %v5091, %v4878
        %v5099 = vmul.f32 %v5091, %v4881
        %v5100 = vmul.f32 %v5091, %v4883
        %v5101 = vmul.f32 %v5091, %v4886
        %v5102 = vmul.f32 %v5091, %v4888
        %v5103 = vmul.f32 %v5091, %v4891
        %v5104 = vmul.f32 %v5091, %v4893
        %v5105 = vmul.f32 %v5091, %v4896
        %v5106 = vmul.f32 %v5091, %v4898
        %v5107 = vmul.f32 %v5091, %v4901
        %v5108 = vmul.f32 %v5091, %v4903
        %v5109 = vmul.f32 %v5091, %v4906
        %v5110 = vmul.f32 %v5091, %v4908
        %v5111 = vmul.f32 %v5091, %v4911
        %v5112 = vmul.f32 %v5091, %v4913
        %v5113 = vmul.f32 %v5091, %v4916
        %v5114 = vmul.f32 %v5091, %v4918
        %v5115 = vmul.f32 %v5091, %v4921
        %v5116 = vmul.f32 %v5091, %v4923
        %v5117 = vmul.f32 %v5091, %v4926
        %v5118 = vmul.f32 %v5091, %v4928
        %v5119 = vmul.f32 %v5091, %v4931
        %v5120 = vmul.f32 %v5091, %v4933
        %v5121 = vmul.f32 %v5091, %v4936
        %v5122 = vmul.f32 %v5091, %v4938
        %v5123 = vmul.f32 %v5091, %v4941
        %v5124 = vmul.f32 %v5091, %v4943
        %v5125 = vmul.f32 %v5091, %v4946
        %v5126 = vmul.f32 %v5091, %v4948
        %v5127 = vmul.f32 %v5091, %v4951
        %v5128 = vmul.f32 %v5091, %v4953
        %v5129 = vmul.f32 %v5091, %v4956
        %v5130 = vmul.f32 %v5091, %v4958
        %v5131 = vmul.f32 %v5091, %v4961
        %v5132 = vmul.f32 %v5091, %v4963
        %v5133 = vmul.f32 %v5091, %v4966
        %v5134 = vmul.f32 %v5091, %v4968
        %v5135 = vmul.f32 %v5091, %v4971
        %v5136 = vmul.f32 %v5091, %v4973
        %v5137 = vmul.f32 %v5091, %v4976
        %v5138 = vmul.f32 %v5091, %v4978
        %v5139 = vmul.f32 %v5091, %v4981
        %v5140 = vmul.f32 %v5091, %v4983
        %v5141 = vmul.f32 %v5091, %v4986
        %v5142 = vmul.f32 %v5091, %v4988
        %v5143 = vmul.f32 %v5091, %v4991
        %v5144 = vmul.f32 %v5091, %v4993
        %v5145 = vmul.f32 %v5091, %v4996
        %v5146 = vmul.f32 %v5091, %v4998
        %v5147 = vmul.f32 %v5091, %v5001
        %v5148 = vmul.f32 %v5091, %v5003
        %v5149 = vmul.f32 %v5091, %v5006
        %v5150 = vmul.f32 %v5091, %v5008
        %v5151 = vmul.f32 %v5091, %v5011
        %v5152 = vmul.f32 %v5091, %v5013
        %v5153 = vmul.f32 %v5091, %v5016
        %v5154 = vmul.f32 %v5091, %v5018
        %v5155 = vmul.f32 %v5091, %v5021
        %v5156 = vmul.f32 %v5091, %v5023
        %v5157 = vsel %vm5025, %v4866, %v5093
        %v5158 = vsel %vm5026, %v4868, %v5094
        %v5159 = vsel %vm5027, %v4871, %v5095
        %v5160 = vsel %vm5028, %v4873, %v5096
        %v5161 = vsel %vm5029, %v4876, %v5097
        %v5162 = vsel %vm5030, %v4878, %v5098
        %v5163 = vsel %vm5031, %v4881, %v5099
        %v5164 = vsel %vm5032, %v4883, %v5100
        %v5165 = vsel %vm5033, %v4886, %v5101
        %v5166 = vsel %vm5034, %v4888, %v5102
        %v5167 = vsel %vm5035, %v4891, %v5103
        %v5168 = vsel %vm5036, %v4893, %v5104
        %v5169 = vsel %vm5037, %v4896, %v5105
        %v5170 = vsel %vm5038, %v4898, %v5106
        %v5171 = vsel %vm5039, %v4901, %v5107
        %v5172 = vsel %vm5040, %v4903, %v5108
        %v5173 = vsel %vm5041, %v4906, %v5109
        %v5174 = vsel %vm5042, %v4908, %v5110
        %v5175 = vsel %vm5043, %v4911, %v5111
        %v5176 = vsel %vm5044, %v4913, %v5112
        %v5177 = vsel %vm5045, %v4916, %v5113
        %v5178 = vsel %vm5046, %v4918, %v5114
        %v5179 = vsel %vm5047, %v4921, %v5115
        %v5180 = vsel %vm5048, %v4923, %v5116
        %v5181 = vsel %vm5049, %v4926, %v5117
        %v5182 = vsel %vm5050, %v4928, %v5118
        %v5183 = vsel %vm5051, %v4931, %v5119
        %v5184 = vsel %vm5052, %v4933, %v5120
        %v5185 = vsel %vm5053, %v4936, %v5121
        %v5186 = vsel %vm5054, %v4938, %v5122
        %v5187 = vsel %vm5055, %v4941, %v5123
        %v5188 = vsel %vm5056, %v4943, %v5124
        %v5189 = vsel %vm5057, %v4946, %v5125
        %v5190 = vsel %vm5058, %v4948, %v5126
        %v5191 = vsel %vm5059, %v4951, %v5127
        %v5192 = vsel %vm5060, %v4953, %v5128
        %v5193 = vsel %vm5061, %v4956, %v5129
        %v5194 = vsel %vm5062, %v4958, %v5130
        %v5195 = vsel %vm5063, %v4961, %v5131
        %v5196 = vsel %vm5064, %v4963, %v5132
        %v5197 = vsel %vm5065, %v4966, %v5133
        %v5198 = vsel %vm5066, %v4968, %v5134
        %v5199 = vsel %vm5067, %v4971, %v5135
        %v5200 = vsel %vm5068, %v4973, %v5136
        %v5201 = vsel %vm5069, %v4976, %v5137
        %v5202 = vsel %vm5070, %v4978, %v5138
        %v5203 = vsel %vm5071, %v4981, %v5139
        %v5204 = vsel %vm5072, %v4983, %v5140
        %v5205 = vsel %vm5073, %v4986, %v5141
        %v5206 = vsel %vm5074, %v4988, %v5142
        %v5207 = vsel %vm5075, %v4991, %v5143
        %v5208 = vsel %vm5076, %v4993, %v5144
        %v5209 = vsel %vm5077, %v4996, %v5145
        %v5210 = vsel %vm5078, %v4998, %v5146
        %v5211 = vsel %vm5079, %v5001, %v5147
        %v5212 = vsel %vm5080, %v5003, %v5148
        %v5213 = vsel %vm5081, %v5006, %v5149
        %v5214 = vsel %vm5082, %v5008, %v5150
        %v5215 = vsel %vm5083, %v5011, %v5151
        %v5216 = vsel %vm5084, %v5013, %v5152
        %v5217 = vsel %vm5085, %v5016, %v5153
        %v5218 = vsel %vm5086, %v5018, %v5154
        %v5219 = vsel %vm5087, %v5021, %v5155
        %v5220 = vsel %vm5088, %v5023, %v5156
        %s5221 = scalar_lea.vmem [#allocation3], 24
        %5222 = vst.msk [vmem:[%s5221 + $0x1] sm:$0xff] %vm372, %v5157
        %5223 = vst.msk [vmem:[%s5221 + $0x9] sm:$0xff] %vm372, %v5158
        %5224 = vst.msk [vmem:[%s5221 + $0x19] sm:$0xff] %vm372, %v5159
        %5225 = vst.msk [vmem:[%s5221 + $0x21] sm:$0xff] %vm372, %v5160
        %5226 = vst.msk [vmem:[%s5221 + $0x31] sm:$0xff] %vm372, %v5161
        %5227 = vst.msk [vmem:[%s5221 + $0x39] sm:$0xff] %vm372, %v5162
        %5228 = vst.msk [vmem:[%s5221 + $0x49] sm:$0xff] %vm372, %v5163
        %5229 = vst.msk [vmem:[%s5221 + $0x51] sm:$0xff] %vm372, %v5164
        %5230 = vst.msk [vmem:[%s5221 + $0x61] sm:$0xff] %vm372, %v5165
        %5231 = vst.msk [vmem:[%s5221 + $0x69] sm:$0xff] %vm372, %v5166
        %5232 = vst.msk [vmem:[%s5221 + $0x79] sm:$0xff] %vm372, %v5167
        %5233 = vst.msk [vmem:[%s5221 + $0x81] sm:$0xff] %vm372, %v5168
        %5234 = vst.msk [vmem:[%s5221 + $0x91] sm:$0xff] %vm372, %v5169
        %5235 = vst.msk [vmem:[%s5221 + $0x99] sm:$0xff] %vm372, %v5170
        %5236 = vst.msk [vmem:[%s5221 + $0xa9] sm:$0xff] %vm372, %v5171
        %5237 = vst.msk [vmem:[%s5221 + $0xb1] sm:$0xff] %vm372, %v5172
        %5238 = vst.msk [vmem:[%s5221 + $0xc1] sm:$0xff] %vm372, %v5173
        %5239 = vst.msk [vmem:[%s5221 + $0xc9] sm:$0xff] %vm372, %v5174
        %5240 = vst.msk [vmem:[%s5221 + $0xd9] sm:$0xff] %vm372, %v5175
        %5241 = vst.msk [vmem:[%s5221 + $0xe1] sm:$0xff] %vm372, %v5176
        %5242 = vst.msk [vmem:[%s5221 + $0xf1] sm:$0xff] %vm372, %v5177
        %5243 = vst.msk [vmem:[%s5221 + $0xf9] sm:$0xff] %vm372, %v5178
        %5244 = vst.msk [vmem:[%s5221 + $0x109] sm:$0xff] %vm372, %v5179
        %5245 = vst.msk [vmem:[%s5221 + $0x111] sm:$0xff] %vm372, %v5180
        %5246 = vst.msk [vmem:[%s5221 + $0x121] sm:$0xff] %vm372, %v5181
        %5247 = vst.msk [vmem:[%s5221 + $0x129] sm:$0xff] %vm372, %v5182
        %5248 = vst.msk [vmem:[%s5221 + $0x139] sm:$0xff] %vm372, %v5183
        %5249 = vst.msk [vmem:[%s5221 + $0x141] sm:$0xff] %vm372, %v5184
        %5250 = vst.msk [vmem:[%s5221 + $0x151] sm:$0xff] %vm372, %v5185
        %5251 = vst.msk [vmem:[%s5221 + $0x159] sm:$0xff] %vm372, %v5186
        %5252 = vst.msk [vmem:[%s5221 + $0x169] sm:$0xff] %vm372, %v5187
        %5253 = vst.msk [vmem:[%s5221 + $0x171] sm:$0xff] %vm372, %v5188
        %5254 = vst.msk [vmem:[%s5221 + $0x1b1] sm:$0xff] %vm372, %v5189
        %5255 = vst.msk [vmem:[%s5221 + $0x1b9] sm:$0xff] %vm372, %v5190
        %5256 = vst.msk [vmem:[%s5221 + $0x1c9] sm:$0xff] %vm372, %v5191
        %5257 = vst.msk [vmem:[%s5221 + $0x1d1] sm:$0xff] %vm372, %v5192
        %5258 = vst.msk [vmem:[%s5221 + $0x1e1] sm:$0xff] %vm372, %v5193
        %5259 = vst.msk [vmem:[%s5221 + $0x1e9] sm:$0xff] %vm372, %v5194
        %5260 = vst.msk [vmem:[%s5221 + $0x1f9] sm:$0xff] %vm372, %v5195
        %5261 = vst.msk [vmem:[%s5221 + $0x201] sm:$0xff] %vm372, %v5196
        %5262 = vst.msk [vmem:[%s5221 + $0x211] sm:$0xff] %vm372, %v5197
        %5263 = vst.msk [vmem:[%s5221 + $0x219] sm:$0xff] %vm372, %v5198
        %5264 = vst.msk [vmem:[%s5221 + $0x229] sm:$0xff] %vm372, %v5199
        %5265 = vst.msk [vmem:[%s5221 + $0x231] sm:$0xff] %vm372, %v5200
        %5266 = vst.msk [vmem:[%s5221 + $0x241] sm:$0xff] %vm372, %v5201
        %5267 = vst.msk [vmem:[%s5221 + $0x249] sm:$0xff] %vm372, %v5202
        %5268 = vst.msk [vmem:[%s5221 + $0x259] sm:$0xff] %vm372, %v5203
        %5269 = vst.msk [vmem:[%s5221 + $0x261] sm:$0xff] %vm372, %v5204
        %5270 = vst.msk [vmem:[%s5221 + $0x271] sm:$0xff] %vm372, %v5205
        %5271 = vst.msk [vmem:[%s5221 + $0x279] sm:$0xff] %vm372, %v5206
        %5272 = vst.msk [vmem:[%s5221 + $0x289] sm:$0xff] %vm372, %v5207
        %5273 = vst.msk [vmem:[%s5221 + $0x291] sm:$0xff] %vm372, %v5208
        %5274 = vst.msk [vmem:[%s5221 + $0x2a1] sm:$0xff] %vm372, %v5209
        %5275 = vst.msk [vmem:[%s5221 + $0x2a9] sm:$0xff] %vm372, %v5210
        %5276 = vst.msk [vmem:[%s5221 + $0x2b9] sm:$0xff] %vm372, %v5211
        %5277 = vst.msk [vmem:[%s5221 + $0x2c1] sm:$0xff] %vm372, %v5212
        %5278 = vst.msk [vmem:[%s5221 + $0x2d1] sm:$0xff] %vm372, %v5213
        %5279 = vst.msk [vmem:[%s5221 + $0x2d9] sm:$0xff] %vm372, %v5214
        %5280 = vst.msk [vmem:[%s5221 + $0x2e9] sm:$0xff] %vm372, %v5215
        %5281 = vst.msk [vmem:[%s5221 + $0x2f1] sm:$0xff] %vm372, %v5216
        %5282 = vst.msk [vmem:[%s5221 + $0x301] sm:$0xff] %vm372, %v5217
        %5283 = vst.msk [vmem:[%s5221 + $0x309] sm:$0xff] %vm372, %v5218
        %5284 = vst.msk [vmem:[%s5221 + $0x319] sm:$0xff] %vm372, %v5219
        %5285 = vst.msk [vmem:[%s5221 + $0x321] sm:$0xff] %vm372, %v5220
        %v5286 = vld [vmem:[#allocation3] ss:$2 sm:$0xff]
        %s5287 = scalar_lea.vmem [#allocation3], 48
        %v5288 = vld [vmem:[%s5287] ss:$2 sm:$0xff]
        %s5289 = scalar_lea.vmem [#allocation3], 96
        %v5290 = vld [vmem:[%s5289] ss:$2 sm:$0xff]
        %s5291 = scalar_lea.vmem [#allocation3], 144
        %v5292 = vld [vmem:[%s5291] ss:$2 sm:$0xff]
        %s5293 = scalar_lea.vmem [#allocation3], 192
        %v5294 = vld [vmem:[%s5293] ss:$2 sm:$0xff]
        %s5295 = scalar_lea.vmem [#allocation3], 240
        %v5296 = vld [vmem:[%s5295] ss:$2 sm:$0xff]
        %s5297 = scalar_lea.vmem [#allocation3], 288
        %v5298 = vld [vmem:[%s5297] ss:$2 sm:$0xff]
        %s5299 = scalar_lea.vmem [#allocation3], 336
        %v5300 = vld [vmem:[%s5299] ss:$2 sm:$0xff]
        %s5301 = scalar_lea.vmem [#allocation3], 432
        %v5302 = vld [vmem:[%s5301] ss:$2 sm:$0xff]
        %s5303 = scalar_lea.vmem [#allocation3], 480
        %v5304 = vld [vmem:[%s5303] ss:$2 sm:$0xff]
        %s5305 = scalar_lea.vmem [#allocation3], 528
        %v5306 = vld [vmem:[%s5305] ss:$2 sm:$0xff]
        %s5307 = scalar_lea.vmem [#allocation3], 576
        %v5308 = vld [vmem:[%s5307] ss:$2 sm:$0xff]
        %s5309 = scalar_lea.vmem [#allocation3], 624
        %v5310 = vld [vmem:[%s5309] ss:$2 sm:$0xff]
        %s5311 = scalar_lea.vmem [#allocation3], 672
        %v5312 = vld [vmem:[%s5311] ss:$2 sm:$0xff]
        %s5313 = scalar_lea.vmem [#allocation3], 720
        %v5314 = vld [vmem:[%s5313] ss:$2 sm:$0xff]
        %s5315 = scalar_lea.vmem [#allocation3], 768
        %v5316 = vld [vmem:[%s5315] ss:$2 sm:$0xff]
        %v5317 = vpack.c.bf16 %v5286, %v5286
        %v5318 = vpack.c.bf16 %v5288, %v5288
        %v5319 = vpack.c.bf16 %v5290, %v5290
        %v5320 = vpack.c.bf16 %v5292, %v5292
        %v5321 = vpack.c.bf16 %v5294, %v5294
        %v5322 = vpack.c.bf16 %v5296, %v5296
        %v5323 = vpack.c.bf16 %v5298, %v5298
        %v5324 = vpack.c.bf16 %v5300, %v5300
        %v5325 = vpack.c.bf16 %v5302, %v5302
        %v5326 = vpack.c.bf16 %v5304, %v5304
        %v5327 = vpack.c.bf16 %v5306, %v5306
        %v5328 = vpack.c.bf16 %v5308, %v5308
        %v5329 = vpack.c.bf16 %v5310, %v5310
        %v5330 = vpack.c.bf16 %v5312, %v5312
        %v5331 = vpack.c.bf16 %v5314, %v5314
        %v5332 = vpack.c.bf16 %v5316, %v5316
        %vm5333 = vcmask 60416
        %5334 = vst.msk [vmem:[#allocation5] sm:$0xf] %vm5333, %v5317
        %5335 = vst.msk [vmem:[#allocation5 + $0x4] sm:$0xf] %vm5333, %v5318
        %5336 = vst.msk [vmem:[#allocation5 + $0x8] sm:$0xf] %vm5333, %v5319
        %5337 = vst.msk [vmem:[#allocation5 + $0xc] sm:$0xf] %vm5333, %v5320
        %5338 = vst.msk [vmem:[#allocation5 + $0x10] sm:$0xf] %vm5333, %v5321
        %5339 = vst.msk [vmem:[#allocation5 + $0x14] sm:$0xf] %vm5333, %v5322
        %5340 = vst.msk [vmem:[#allocation5 + $0x18] sm:$0xf] %vm5333, %v5323
        %5341 = vst.msk [vmem:[#allocation5 + $0x1c] sm:$0xf] %vm5333, %v5324
        %5342 = vst.msk [vmem:[#allocation5 + $0x20] sm:$0xf] %vm5333, %v5325
        %5343 = vst.msk [vmem:[#allocation5 + $0x24] sm:$0xf] %vm5333, %v5326
        %5344 = vst.msk [vmem:[#allocation5 + $0x28] sm:$0xf] %vm5333, %v5327
        %5345 = vst.msk [vmem:[#allocation5 + $0x2c] sm:$0xf] %vm5333, %v5328
        %5346 = vst.msk [vmem:[#allocation5 + $0x30] sm:$0xf] %vm5333, %v5329
        %5347 = vst.msk [vmem:[#allocation5 + $0x34] sm:$0xf] %vm5333, %v5330
        %5348 = vst.msk [vmem:[#allocation5 + $0x38] sm:$0xf] %vm5333, %v5331
        %5349 = vst.msk [vmem:[#allocation5 + $0x3c] sm:$0xf] %vm5333, %v5332
        %s5350 = scalar_lea.vmem [#allocation3], 1
        %v5351 = vld [vmem:[%s5350] ss:$2 sm:$0xff]
        %s5352 = scalar_lea.vmem [#allocation3], 49
        %v5353 = vld [vmem:[%s5352] ss:$2 sm:$0xff]
        %s5354 = scalar_lea.vmem [#allocation3], 97
        %v5355 = vld [vmem:[%s5354] ss:$2 sm:$0xff]
        %s5356 = scalar_lea.vmem [#allocation3], 145
        %v5357 = vld [vmem:[%s5356] ss:$2 sm:$0xff]
        %s5358 = scalar_lea.vmem [#allocation3], 193
        %v5359 = vld [vmem:[%s5358] ss:$2 sm:$0xff]
        %s5360 = scalar_lea.vmem [#allocation3], 241
        %v5361 = vld [vmem:[%s5360] ss:$2 sm:$0xff]
        %s5362 = scalar_lea.vmem [#allocation3], 289
        %v5363 = vld [vmem:[%s5362] ss:$2 sm:$0xff]
        %s5364 = scalar_lea.vmem [#allocation3], 337
        %v5365 = vld [vmem:[%s5364] ss:$2 sm:$0xff]
        %s5366 = scalar_lea.vmem [#allocation3], 433
        %v5367 = vld [vmem:[%s5366] ss:$2 sm:$0xff]
        %s5368 = scalar_lea.vmem [#allocation3], 481
        %v5369 = vld [vmem:[%s5368] ss:$2 sm:$0xff]
        %s5370 = scalar_lea.vmem [#allocation3], 529
        %v5371 = vld [vmem:[%s5370] ss:$2 sm:$0xff]
        %s5372 = scalar_lea.vmem [#allocation3], 577
        %v5373 = vld [vmem:[%s5372] ss:$2 sm:$0xff]
        %s5374 = scalar_lea.vmem [#allocation3], 625
        %v5375 = vld [vmem:[%s5374] ss:$2 sm:$0xff]
        %s5376 = scalar_lea.vmem [#allocation3], 673
        %v5377 = vld [vmem:[%s5376] ss:$2 sm:$0xff]
        %s5378 = scalar_lea.vmem [#allocation3], 721
        %v5379 = vld [vmem:[%s5378] ss:$2 sm:$0xff]
        %s5380 = scalar_lea.vmem [#allocation3], 769
        %v5381 = vld [vmem:[%s5380] ss:$2 sm:$0xff]
        %v5382 = vpack.c.bf16 %v5351, %v5351
        %v5383 = vpack.c.bf16 %v5353, %v5353
        %v5384 = vpack.c.bf16 %v5355, %v5355
        %v5385 = vpack.c.bf16 %v5357, %v5357
        %v5386 = vpack.c.bf16 %v5359, %v5359
        %v5387 = vpack.c.bf16 %v5361, %v5361
        %v5388 = vpack.c.bf16 %v5363, %v5363
        %v5389 = vpack.c.bf16 %v5365, %v5365
        %v5390 = vpack.c.bf16 %v5367, %v5367
        %v5391 = vpack.c.bf16 %v5369, %v5369
        %v5392 = vpack.c.bf16 %v5371, %v5371
        %v5393 = vpack.c.bf16 %v5373, %v5373
        %v5394 = vpack.c.bf16 %v5375, %v5375
        %v5395 = vpack.c.bf16 %v5377, %v5377
        %v5396 = vpack.c.bf16 %v5379, %v5379
        %v5397 = vpack.c.bf16 %v5381, %v5381
        %5414 = vrot.lane.b32.xlu0 %v5382, 8
        %v5415 = vpop.permute.xlu0 %5414
        %5416 = vrot.lane.b32.xlu0 %v5383, 8
        %v5417 = vpop.permute.xlu0 %5416
        %5418 = vrot.lane.b32.xlu0 %v5384, 8
        %v5419 = vpop.permute.xlu0 %5418
        %5420 = vrot.lane.b32.xlu0 %v5385, 8
        %v5421 = vpop.permute.xlu0 %5420
        %5422 = vrot.lane.b32.xlu0 %v5386, 8
        %v5423 = vpop.permute.xlu0 %5422
        %5424 = vrot.lane.b32.xlu0 %v5387, 8
        %v5425 = vpop.permute.xlu0 %5424
        %5426 = vrot.lane.b32.xlu0 %v5388, 8
        %v5427 = vpop.permute.xlu0 %5426
        %5428 = vrot.lane.b32.xlu0 %v5389, 8
        %v5429 = vpop.permute.xlu0 %5428
        %5430 = vrot.lane.b32.xlu0 %v5390, 8
        %v5431 = vpop.permute.xlu0 %5430
        %5432 = vrot.lane.b32.xlu0 %v5391, 8
        %v5433 = vpop.permute.xlu0 %5432
        %5434 = vrot.lane.b32.xlu0 %v5392, 8
        %v5435 = vpop.permute.xlu0 %5434
        %5436 = vrot.lane.b32.xlu0 %v5393, 8
        %v5437 = vpop.permute.xlu0 %5436
        %5438 = vrot.lane.b32.xlu0 %v5394, 8
        %v5439 = vpop.permute.xlu0 %5438
        %5440 = vrot.lane.b32.xlu0 %v5395, 8
        %v5441 = vpop.permute.xlu0 %5440
        %5442 = vrot.lane.b32.xlu0 %v5396, 8
        %v5443 = vpop.permute.xlu0 %5442
        %5444 = vrot.lane.b32.xlu0 %v5397, 8
        %v5445 = vpop.permute.xlu0 %5444
        %vm5462 = vcmask 126016
        %5463 = vst.msk [vmem:[#allocation5] sm:$0xf] %vm5462, %v5415
        %5464 = vst.msk [vmem:[#allocation5 + $0x4] sm:$0xf] %vm5462, %v5417
        %5465 = vst.msk [vmem:[#allocation5 + $0x8] sm:$0xf] %vm5462, %v5419
        %5466 = vst.msk [vmem:[#allocation5 + $0xc] sm:$0xf] %vm5462, %v5421
        %5467 = vst.msk [vmem:[#allocation5 + $0x10] sm:$0xf] %vm5462, %v5423
        %5468 = vst.msk [vmem:[#allocation5 + $0x14] sm:$0xf] %vm5462, %v5425
        %5469 = vst.msk [vmem:[#allocation5 + $0x18] sm:$0xf] %vm5462, %v5427
        %5470 = vst.msk [vmem:[#allocation5 + $0x1c] sm:$0xf] %vm5462, %v5429
        %5471 = vst.msk [vmem:[#allocation5 + $0x20] sm:$0xf] %vm5462, %v5431
        %5472 = vst.msk [vmem:[#allocation5 + $0x24] sm:$0xf] %vm5462, %v5433
        %5473 = vst.msk [vmem:[#allocation5 + $0x28] sm:$0xf] %vm5462, %v5435
        %5474 = vst.msk [vmem:[#allocation5 + $0x2c] sm:$0xf] %vm5462, %v5437
        %5475 = vst.msk [vmem:[#allocation5 + $0x30] sm:$0xf] %vm5462, %v5439
        %5476 = vst.msk [vmem:[#allocation5 + $0x34] sm:$0xf] %vm5462, %v5441
        %5477 = vst.msk [vmem:[#allocation5 + $0x38] sm:$0xf] %vm5462, %v5443
        %5478 = vst.msk [vmem:[#allocation5 + $0x3c] sm:$0xf] %vm5462, %v5445
        %s5479 = scalar_lea.vmem [#allocation3], 2
        %v5480 = vld [vmem:[%s5479] ss:$2 sm:$0xff]
        %s5481 = scalar_lea.vmem [#allocation3], 50
        %v5482 = vld [vmem:[%s5481] ss:$2 sm:$0xff]
        %s5483 = scalar_lea.vmem [#allocation3], 98
        %v5484 = vld [vmem:[%s5483] ss:$2 sm:$0xff]
        %s5485 = scalar_lea.vmem [#allocation3], 146
        %v5486 = vld [vmem:[%s5485] ss:$2 sm:$0xff]
        %s5487 = scalar_lea.vmem [#allocation3], 194
        %v5488 = vld [vmem:[%s5487] ss:$2 sm:$0xff]
        %s5489 = scalar_lea.vmem [#allocation3], 242
        %v5490 = vld [vmem:[%s5489] ss:$2 sm:$0xff]
        %s5491 = scalar_lea.vmem [#allocation3], 290
        %v5492 = vld [vmem:[%s5491] ss:$2 sm:$0xff]
        %s5493 = scalar_lea.vmem [#allocation3], 338
        %v5494 = vld [vmem:[%s5493] ss:$2 sm:$0xff]
        %s5495 = scalar_lea.vmem [#allocation3], 434
        %v5496 = vld [vmem:[%s5495] ss:$2 sm:$0xff]
        %s5497 = scalar_lea.vmem [#allocation3], 482
        %v5498 = vld [vmem:[%s5497] ss:$2 sm:$0xff]
        %s5499 = scalar_lea.vmem [#allocation3], 530
        %v5500 = vld [vmem:[%s5499] ss:$2 sm:$0xff]
        %s5501 = scalar_lea.vmem [#allocation3], 578
        %v5502 = vld [vmem:[%s5501] ss:$2 sm:$0xff]
        %s5503 = scalar_lea.vmem [#allocation3], 626
        %v5504 = vld [vmem:[%s5503] ss:$2 sm:$0xff]
        %s5505 = scalar_lea.vmem [#allocation3], 674
        %v5506 = vld [vmem:[%s5505] ss:$2 sm:$0xff]
        %s5507 = scalar_lea.vmem [#allocation3], 722
        %v5508 = vld [vmem:[%s5507] ss:$2 sm:$0xff]
        %s5509 = scalar_lea.vmem [#allocation3], 770
        %v5510 = vld [vmem:[%s5509] ss:$2 sm:$0xff]
        %v5511 = vpack.c.bf16 %v5480, %v5480
        %v5512 = vpack.c.bf16 %v5482, %v5482
        %v5513 = vpack.c.bf16 %v5484, %v5484
        %v5514 = vpack.c.bf16 %v5486, %v5486
        %v5515 = vpack.c.bf16 %v5488, %v5488
        %v5516 = vpack.c.bf16 %v5490, %v5490
        %v5517 = vpack.c.bf16 %v5492, %v5492
        %v5518 = vpack.c.bf16 %v5494, %v5494
        %v5519 = vpack.c.bf16 %v5496, %v5496
        %v5520 = vpack.c.bf16 %v5498, %v5498
        %v5521 = vpack.c.bf16 %v5500, %v5500
        %v5522 = vpack.c.bf16 %v5502, %v5502
        %v5523 = vpack.c.bf16 %v5504, %v5504
        %v5524 = vpack.c.bf16 %v5506, %v5506
        %v5525 = vpack.c.bf16 %v5508, %v5508
        %v5526 = vpack.c.bf16 %v5510, %v5510
        %5543 = vrot.lane.b32.xlu0 %v5511, 16
        %v5544 = vpop.permute.xlu0 %5543
        %5545 = vrot.lane.b32.xlu0 %v5512, 16
        %v5546 = vpop.permute.xlu0 %5545
        %5547 = vrot.lane.b32.xlu0 %v5513, 16
        %v5548 = vpop.permute.xlu0 %5547
        %5549 = vrot.lane.b32.xlu0 %v5514, 16
        %v5550 = vpop.permute.xlu0 %5549
        %5551 = vrot.lane.b32.xlu0 %v5515, 16
        %v5552 = vpop.permute.xlu0 %5551
        %5553 = vrot.lane.b32.xlu0 %v5516, 16
        %v5554 = vpop.permute.xlu0 %5553
        %5555 = vrot.lane.b32.xlu0 %v5517, 16
        %v5556 = vpop.permute.xlu0 %5555
        %5557 = vrot.lane.b32.xlu0 %v5518, 16
        %v5558 = vpop.permute.xlu0 %5557
        %5559 = vrot.lane.b32.xlu0 %v5519, 16
        %v5560 = vpop.permute.xlu0 %5559
        %5561 = vrot.lane.b32.xlu0 %v5520, 16
        %v5562 = vpop.permute.xlu0 %5561
        %5563 = vrot.lane.b32.xlu0 %v5521, 16
        %v5564 = vpop.permute.xlu0 %5563
        %5565 = vrot.lane.b32.xlu0 %v5522, 16
        %v5566 = vpop.permute.xlu0 %5565
        %5567 = vrot.lane.b32.xlu0 %v5523, 16
        %v5568 = vpop.permute.xlu0 %5567
        %5569 = vrot.lane.b32.xlu0 %v5524, 16
        %v5570 = vpop.permute.xlu0 %5569
        %5571 = vrot.lane.b32.xlu0 %v5525, 16
        %v5572 = vpop.permute.xlu0 %5571
        %5573 = vrot.lane.b32.xlu0 %v5526, 16
        %v5574 = vpop.permute.xlu0 %5573
        %vm5591 = vcmask 191616
        %5592 = vst.msk [vmem:[#allocation5] sm:$0xf] %vm5591, %v5544
        %5593 = vst.msk [vmem:[#allocation5 + $0x4] sm:$0xf] %vm5591, %v5546
        %5594 = vst.msk [vmem:[#allocation5 + $0x8] sm:$0xf] %vm5591, %v5548
        %5595 = vst.msk [vmem:[#allocation5 + $0xc] sm:$0xf] %vm5591, %v5550
        %5596 = vst.msk [vmem:[#allocation5 + $0x10] sm:$0xf] %vm5591, %v5552
        %5597 = vst.msk [vmem:[#allocation5 + $0x14] sm:$0xf] %vm5591, %v5554
        %5598 = vst.msk [vmem:[#allocation5 + $0x18] sm:$0xf] %vm5591, %v5556
        %5599 = vst.msk [vmem:[#allocation5 + $0x1c] sm:$0xf] %vm5591, %v5558
        %5600 = vst.msk [vmem:[#allocation5 + $0x20] sm:$0xf] %vm5591, %v5560
        %5601 = vst.msk [vmem:[#allocation5 + $0x24] sm:$0xf] %vm5591, %v5562
        %5602 = vst.msk [vmem:[#allocation5 + $0x28] sm:$0xf] %vm5591, %v5564
        %5603 = vst.msk [vmem:[#allocation5 + $0x2c] sm:$0xf] %vm5591, %v5566
        %5604 = vst.msk [vmem:[#allocation5 + $0x30] sm:$0xf] %vm5591, %v5568
        %5605 = vst.msk [vmem:[#allocation5 + $0x34] sm:$0xf] %vm5591, %v5570
        %5606 = vst.msk [vmem:[#allocation5 + $0x38] sm:$0xf] %vm5591, %v5572
        %5607 = vst.msk [vmem:[#allocation5 + $0x3c] sm:$0xf] %vm5591, %v5574
        %v5608 = vld [vmem:[%s5221] ss:$2 sm:$0xff]
        %s5609 = scalar_lea.vmem %s5221, 48 [#allocation3]
        %v5610 = vld [vmem:[%s5609] ss:$2 sm:$0xff]
        %s5611 = scalar_lea.vmem %s5221, 96 [#allocation3]
        %v5612 = vld [vmem:[%s5611] ss:$2 sm:$0xff]
        %s5613 = scalar_lea.vmem %s5221, 144 [#allocation3]
        %v5614 = vld [vmem:[%s5613] ss:$2 sm:$0xff]
        %s5615 = scalar_lea.vmem %s5221, 192 [#allocation3]
        %v5616 = vld [vmem:[%s5615] ss:$2 sm:$0xff]
        %s5617 = scalar_lea.vmem %s5221, 240 [#allocation3]
        %v5618 = vld [vmem:[%s5617] ss:$2 sm:$0xff]
        %s5619 = scalar_lea.vmem %s5221, 288 [#allocation3]
        %v5620 = vld [vmem:[%s5619] ss:$2 sm:$0xff]
        %s5621 = scalar_lea.vmem %s5221, 336 [#allocation3]
        %v5622 = vld [vmem:[%s5621] ss:$2 sm:$0xff]
        %s5623 = scalar_lea.vmem %s5221, 432 [#allocation3]
        %v5624 = vld [vmem:[%s5623] ss:$2 sm:$0xff]
        %s5625 = scalar_lea.vmem %s5221, 480 [#allocation3]
        %v5626 = vld [vmem:[%s5625] ss:$2 sm:$0xff]
        %s5627 = scalar_lea.vmem %s5221, 528 [#allocation3]
        %v5628 = vld [vmem:[%s5627] ss:$2 sm:$0xff]
        %s5629 = scalar_lea.vmem %s5221, 576 [#allocation3]
        %v5630 = vld [vmem:[%s5629] ss:$2 sm:$0xff]
        %s5631 = scalar_lea.vmem %s5221, 624 [#allocation3]
        %v5632 = vld [vmem:[%s5631] ss:$2 sm:$0xff]
        %s5633 = scalar_lea.vmem %s5221, 672 [#allocation3]
        %v5634 = vld [vmem:[%s5633] ss:$2 sm:$0xff]
        %s5635 = scalar_lea.vmem %s5221, 720 [#allocation3]
        %v5636 = vld [vmem:[%s5635] ss:$2 sm:$0xff]
        %s5637 = scalar_lea.vmem %s5221, 768 [#allocation3]
        %v5638 = vld [vmem:[%s5637] ss:$2 sm:$0xff]
        %v5639 = vpack.c.bf16 %v5608, %v5608
        %v5640 = vpack.c.bf16 %v5610, %v5610
        %v5641 = vpack.c.bf16 %v5612, %v5612
        %v5642 = vpack.c.bf16 %v5614, %v5614
        %v5643 = vpack.c.bf16 %v5616, %v5616
        %v5644 = vpack.c.bf16 %v5618, %v5618
        %v5645 = vpack.c.bf16 %v5620, %v5620
        %v5646 = vpack.c.bf16 %v5622, %v5622
        %v5647 = vpack.c.bf16 %v5624, %v5624
        %v5648 = vpack.c.bf16 %v5626, %v5626
        %v5649 = vpack.c.bf16 %v5628, %v5628
        %v5650 = vpack.c.bf16 %v5630, %v5630
        %v5651 = vpack.c.bf16 %v5632, %v5632
        %v5652 = vpack.c.bf16 %v5634, %v5634
        %v5653 = vpack.c.bf16 %v5636, %v5636
        %v5654 = vpack.c.bf16 %v5638, %v5638
        %5671 = vrot.lane.b32.xlu0 %v5639, 24
        %v5672 = vpop.permute.xlu0 %5671
        %5673 = vrot.lane.b32.xlu0 %v5640, 24
        %v5674 = vpop.permute.xlu0 %5673
        %5675 = vrot.lane.b32.xlu0 %v5641, 24
        %v5676 = vpop.permute.xlu0 %5675
        %5677 = vrot.lane.b32.xlu0 %v5642, 24
        %v5678 = vpop.permute.xlu0 %5677
        %5679 = vrot.lane.b32.xlu0 %v5643, 24
        %v5680 = vpop.permute.xlu0 %5679
        %5681 = vrot.lane.b32.xlu0 %v5644, 24
        %v5682 = vpop.permute.xlu0 %5681
        %5683 = vrot.lane.b32.xlu0 %v5645, 24
        %v5684 = vpop.permute.xlu0 %5683
        %5685 = vrot.lane.b32.xlu0 %v5646, 24
        %v5686 = vpop.permute.xlu0 %5685
        %5687 = vrot.lane.b32.xlu0 %v5647, 24
        %v5688 = vpop.permute.xlu0 %5687
        %5689 = vrot.lane.b32.xlu0 %v5648, 24
        %v5690 = vpop.permute.xlu0 %5689
        %5691 = vrot.lane.b32.xlu0 %v5649, 24
        %v5692 = vpop.permute.xlu0 %5691
        %5693 = vrot.lane.b32.xlu0 %v5650, 24
        %v5694 = vpop.permute.xlu0 %5693
        %5695 = vrot.lane.b32.xlu0 %v5651, 24
        %v5696 = vpop.permute.xlu0 %5695
        %5697 = vrot.lane.b32.xlu0 %v5652, 24
        %v5698 = vpop.permute.xlu0 %5697
        %5699 = vrot.lane.b32.xlu0 %v5653, 24
        %v5700 = vpop.permute.xlu0 %5699
        %5701 = vrot.lane.b32.xlu0 %v5654, 24
        %v5702 = vpop.permute.xlu0 %5701
        %vm5719 = vcmask 257216
        %5720 = vst.msk [vmem:[#allocation5] sm:$0xf] %vm5719, %v5672
        %5721 = vst.msk [vmem:[#allocation5 + $0x4] sm:$0xf] %vm5719, %v5674
        %5722 = vst.msk [vmem:[#allocation5 + $0x8] sm:$0xf] %vm5719, %v5676
        %5723 = vst.msk [vmem:[#allocation5 + $0xc] sm:$0xf] %vm5719, %v5678
        %5724 = vst.msk [vmem:[#allocation5 + $0x10] sm:$0xf] %vm5719, %v5680
        %5725 = vst.msk [vmem:[#allocation5 + $0x14] sm:$0xf] %vm5719, %v5682
        %5726 = vst.msk [vmem:[#allocation5 + $0x18] sm:$0xf] %vm5719, %v5684
        %5727 = vst.msk [vmem:[#allocation5 + $0x1c] sm:$0xf] %vm5719, %v5686
        %5728 = vst.msk [vmem:[#allocation5 + $0x20] sm:$0xf] %vm5719, %v5688
        %5729 = vst.msk [vmem:[#allocation5 + $0x24] sm:$0xf] %vm5719, %v5690
        %5730 = vst.msk [vmem:[#allocation5 + $0x28] sm:$0xf] %vm5719, %v5692
        %5731 = vst.msk [vmem:[#allocation5 + $0x2c] sm:$0xf] %vm5719, %v5694
        %5732 = vst.msk [vmem:[#allocation5 + $0x30] sm:$0xf] %vm5719, %v5696
        %5733 = vst.msk [vmem:[#allocation5 + $0x34] sm:$0xf] %vm5719, %v5698
        %5734 = vst.msk [vmem:[#allocation5 + $0x38] sm:$0xf] %vm5719, %v5700
        %5735 = vst.msk [vmem:[#allocation5 + $0x3c] sm:$0xf] %vm5719, %v5702
        %s5736 = scalar_lea.vmem %s5221, 1 [#allocation3]
        %v5737 = vld [vmem:[%s5736] ss:$2 sm:$0xff]
        %s5738 = scalar_lea.vmem %s5221, 49 [#allocation3]
        %v5739 = vld [vmem:[%s5738] ss:$2 sm:$0xff]
        %s5740 = scalar_lea.vmem %s5221, 97 [#allocation3]
        %v5741 = vld [vmem:[%s5740] ss:$2 sm:$0xff]
        %s5742 = scalar_lea.vmem %s5221, 145 [#allocation3]
        %v5743 = vld [vmem:[%s5742] ss:$2 sm:$0xff]
        %s5744 = scalar_lea.vmem %s5221, 193 [#allocation3]
        %v5745 = vld [vmem:[%s5744] ss:$2 sm:$0xff]
        %s5746 = scalar_lea.vmem %s5221, 241 [#allocation3]
        %v5747 = vld [vmem:[%s5746] ss:$2 sm:$0xff]
        %s5748 = scalar_lea.vmem %s5221, 289 [#allocation3]
        %v5749 = vld [vmem:[%s5748] ss:$2 sm:$0xff]
        %s5750 = scalar_lea.vmem %s5221, 337 [#allocation3]
        %v5751 = vld [vmem:[%s5750] ss:$2 sm:$0xff]
        %s5752 = scalar_lea.vmem %s5221, 433 [#allocation3]
        %v5753 = vld [vmem:[%s5752] ss:$2 sm:$0xff]
        %s5754 = scalar_lea.vmem %s5221, 481 [#allocation3]
        %v5755 = vld [vmem:[%s5754] ss:$2 sm:$0xff]
        %s5756 = scalar_lea.vmem %s5221, 529 [#allocation3]
        %v5757 = vld [vmem:[%s5756] ss:$2 sm:$0xff]
        %s5758 = scalar_lea.vmem %s5221, 577 [#allocation3]
        %v5759 = vld [vmem:[%s5758] ss:$2 sm:$0xff]
        %s5760 = scalar_lea.vmem %s5221, 625 [#allocation3]
        %v5761 = vld [vmem:[%s5760] ss:$2 sm:$0xff]
        %s5762 = scalar_lea.vmem %s5221, 673 [#allocation3]
        %v5763 = vld [vmem:[%s5762] ss:$2 sm:$0xff]
        %s5764 = scalar_lea.vmem %s5221, 721 [#allocation3]
        %v5765 = vld [vmem:[%s5764] ss:$2 sm:$0xff]
        %s5766 = scalar_lea.vmem %s5221, 769 [#allocation3]
        %v5767 = vld [vmem:[%s5766] ss:$2 sm:$0xff]
        %v5768 = vpack.c.bf16 %v5737, %v5737
        %v5769 = vpack.c.bf16 %v5739, %v5739
        %v5770 = vpack.c.bf16 %v5741, %v5741
        %v5771 = vpack.c.bf16 %v5743, %v5743
        %v5772 = vpack.c.bf16 %v5745, %v5745
        %v5773 = vpack.c.bf16 %v5747, %v5747
        %v5774 = vpack.c.bf16 %v5749, %v5749
        %v5775 = vpack.c.bf16 %v5751, %v5751
        %v5776 = vpack.c.bf16 %v5753, %v5753
        %v5777 = vpack.c.bf16 %v5755, %v5755
        %v5778 = vpack.c.bf16 %v5757, %v5757
        %v5779 = vpack.c.bf16 %v5759, %v5759
        %v5780 = vpack.c.bf16 %v5761, %v5761
        %v5781 = vpack.c.bf16 %v5763, %v5763
        %v5782 = vpack.c.bf16 %v5765, %v5765
        %v5783 = vpack.c.bf16 %v5767, %v5767
        %5800 = vrot.lane.b32.xlu0 %v5768, 32
        %v5801 = vpop.permute.xlu0 %5800
        %5802 = vrot.lane.b32.xlu0 %v5769, 32
        %v5803 = vpop.permute.xlu0 %5802
        %5804 = vrot.lane.b32.xlu0 %v5770, 32
        %v5805 = vpop.permute.xlu0 %5804
        %5806 = vrot.lane.b32.xlu0 %v5771, 32
        %v5807 = vpop.permute.xlu0 %5806
        %5808 = vrot.lane.b32.xlu0 %v5772, 32
        %v5809 = vpop.permute.xlu0 %5808
        %5810 = vrot.lane.b32.xlu0 %v5773, 32
        %v5811 = vpop.permute.xlu0 %5810
        %5812 = vrot.lane.b32.xlu0 %v5774, 32
        %v5813 = vpop.permute.xlu0 %5812
        %5814 = vrot.lane.b32.xlu0 %v5775, 32
        %v5815 = vpop.permute.xlu0 %5814
        %5816 = vrot.lane.b32.xlu0 %v5776, 32
        %v5817 = vpop.permute.xlu0 %5816
        %5818 = vrot.lane.b32.xlu0 %v5777, 32
        %v5819 = vpop.permute.xlu0 %5818
        %5820 = vrot.lane.b32.xlu0 %v5778, 32
        %v5821 = vpop.permute.xlu0 %5820
        %5822 = vrot.lane.b32.xlu0 %v5779, 32
        %v5823 = vpop.permute.xlu0 %5822
        %5824 = vrot.lane.b32.xlu0 %v5780, 32
        %v5825 = vpop.permute.xlu0 %5824
        %5826 = vrot.lane.b32.xlu0 %v5781, 32
        %v5827 = vpop.permute.xlu0 %5826
        %5828 = vrot.lane.b32.xlu0 %v5782, 32
        %v5829 = vpop.permute.xlu0 %5828
        %5830 = vrot.lane.b32.xlu0 %v5783, 32
        %v5831 = vpop.permute.xlu0 %5830
        %vm5848 = vcmask 322816
        %5849 = vst.msk [vmem:[#allocation5] sm:$0xf] %vm5848, %v5801
        %5850 = vst.msk [vmem:[#allocation5 + $0x4] sm:$0xf] %vm5848, %v5803
        %5851 = vst.msk [vmem:[#allocation5 + $0x8] sm:$0xf] %vm5848, %v5805
        %5852 = vst.msk [vmem:[#allocation5 + $0xc] sm:$0xf] %vm5848, %v5807
        %5853 = vst.msk [vmem:[#allocation5 + $0x10] sm:$0xf] %vm5848, %v5809
        %5854 = vst.msk [vmem:[#allocation5 + $0x14] sm:$0xf] %vm5848, %v5811
        %5855 = vst.msk [vmem:[#allocation5 + $0x18] sm:$0xf] %vm5848, %v5813
        %5856 = vst.msk [vmem:[#allocation5 + $0x1c] sm:$0xf] %vm5848, %v5815
        %5857 = vst.msk [vmem:[#allocation5 + $0x20] sm:$0xf] %vm5848, %v5817
        %5858 = vst.msk [vmem:[#allocation5 + $0x24] sm:$0xf] %vm5848, %v5819
        %5859 = vst.msk [vmem:[#allocation5 + $0x28] sm:$0xf] %vm5848, %v5821
        %5860 = vst.msk [vmem:[#allocation5 + $0x2c] sm:$0xf] %vm5848, %v5823
        %5861 = vst.msk [vmem:[#allocation5 + $0x30] sm:$0xf] %vm5848, %v5825
        %5862 = vst.msk [vmem:[#allocation5 + $0x34] sm:$0xf] %vm5848, %v5827
        %5863 = vst.msk [vmem:[#allocation5 + $0x38] sm:$0xf] %vm5848, %v5829
        %5864 = vst.msk [vmem:[#allocation5 + $0x3c] sm:$0xf] %vm5848, %v5831
        %s5865 = scalar_lea.vmem %s5221, 2 [#allocation3]
        %v5866 = vld [vmem:[%s5865] ss:$2 sm:$0xff]
        %s5867 = scalar_lea.vmem %s5221, 50 [#allocation3]
        %v5868 = vld [vmem:[%s5867] ss:$2 sm:$0xff]
        %s5869 = scalar_lea.vmem %s5221, 98 [#allocation3]
        %v5870 = vld [vmem:[%s5869] ss:$2 sm:$0xff]
        %s5871 = scalar_lea.vmem %s5221, 146 [#allocation3]
        %v5872 = vld [vmem:[%s5871] ss:$2 sm:$0xff]
        %s5873 = scalar_lea.vmem %s5221, 194 [#allocation3]
        %v5874 = vld [vmem:[%s5873] ss:$2 sm:$0xff]
        %s5875 = scalar_lea.vmem %s5221, 242 [#allocation3]
        %v5876 = vld [vmem:[%s5875] ss:$2 sm:$0xff]
        %s5877 = scalar_lea.vmem %s5221, 290 [#allocation3]
        %v5878 = vld [vmem:[%s5877] ss:$2 sm:$0xff]
        %s5879 = scalar_lea.vmem %s5221, 338 [#allocation3]
        %v5880 = vld [vmem:[%s5879] ss:$2 sm:$0xff]
        %s5881 = scalar_lea.vmem %s5221, 434 [#allocation3]
        %v5882 = vld [vmem:[%s5881] ss:$2 sm:$0xff]
        %s5883 = scalar_lea.vmem %s5221, 482 [#allocation3]
        %v5884 = vld [vmem:[%s5883] ss:$2 sm:$0xff]
        %s5885 = scalar_lea.vmem %s5221, 530 [#allocation3]
        %v5886 = vld [vmem:[%s5885] ss:$2 sm:$0xff]
        %s5887 = scalar_lea.vmem %s5221, 578 [#allocation3]
        %v5888 = vld [vmem:[%s5887] ss:$2 sm:$0xff]
        %s5889 = scalar_lea.vmem %s5221, 626 [#allocation3]
        %v5890 = vld [vmem:[%s5889] ss:$2 sm:$0xff]
        %s5891 = scalar_lea.vmem %s5221, 674 [#allocation3]
        %v5892 = vld [vmem:[%s5891] ss:$2 sm:$0xff]
        %s5893 = scalar_lea.vmem %s5221, 722 [#allocation3]
        %v5894 = vld [vmem:[%s5893] ss:$2 sm:$0xff]
        %s5895 = scalar_lea.vmem %s5221, 770 [#allocation3]
        %v5896 = vld [vmem:[%s5895] ss:$2 sm:$0xff]
        %v5897 = vpack.c.bf16 %v5866, %v5866
        %v5898 = vpack.c.bf16 %v5868, %v5868
        %v5899 = vpack.c.bf16 %v5870, %v5870
        %v5900 = vpack.c.bf16 %v5872, %v5872
        %v5901 = vpack.c.bf16 %v5874, %v5874
        %v5902 = vpack.c.bf16 %v5876, %v5876
        %v5903 = vpack.c.bf16 %v5878, %v5878
        %v5904 = vpack.c.bf16 %v5880, %v5880
        %v5905 = vpack.c.bf16 %v5882, %v5882
        %v5906 = vpack.c.bf16 %v5884, %v5884
        %v5907 = vpack.c.bf16 %v5886, %v5886
        %v5908 = vpack.c.bf16 %v5888, %v5888
        %v5909 = vpack.c.bf16 %v5890, %v5890
        %v5910 = vpack.c.bf16 %v5892, %v5892
        %v5911 = vpack.c.bf16 %v5894, %v5894
        %v5912 = vpack.c.bf16 %v5896, %v5896
        %5929 = vrot.lane.b32.xlu0 %v5897, 40
        %v5930 = vpop.permute.xlu0 %5929
        %5931 = vrot.lane.b32.xlu0 %v5898, 40
        %v5932 = vpop.permute.xlu0 %5931
        %5933 = vrot.lane.b32.xlu0 %v5899, 40
        %v5934 = vpop.permute.xlu0 %5933
        %5935 = vrot.lane.b32.xlu0 %v5900, 40
        %v5936 = vpop.permute.xlu0 %5935
        %5937 = vrot.lane.b32.xlu0 %v5901, 40
        %v5938 = vpop.permute.xlu0 %5937
        %5939 = vrot.lane.b32.xlu0 %v5902, 40
        %v5940 = vpop.permute.xlu0 %5939
        %5941 = vrot.lane.b32.xlu0 %v5903, 40
        %v5942 = vpop.permute.xlu0 %5941
        %5943 = vrot.lane.b32.xlu0 %v5904, 40
        %v5944 = vpop.permute.xlu0 %5943
        %5945 = vrot.lane.b32.xlu0 %v5905, 40
        %v5946 = vpop.permute.xlu0 %5945
        %5947 = vrot.lane.b32.xlu0 %v5906, 40
        %v5948 = vpop.permute.xlu0 %5947
        %5949 = vrot.lane.b32.xlu0 %v5907, 40
        %v5950 = vpop.permute.xlu0 %5949
        %5951 = vrot.lane.b32.xlu0 %v5908, 40
        %v5952 = vpop.permute.xlu0 %5951
        %5953 = vrot.lane.b32.xlu0 %v5909, 40
        %v5954 = vpop.permute.xlu0 %5953
        %5955 = vrot.lane.b32.xlu0 %v5910, 40
        %v5956 = vpop.permute.xlu0 %5955
        %5957 = vrot.lane.b32.xlu0 %v5911, 40
        %v5958 = vpop.permute.xlu0 %5957
        %5959 = vrot.lane.b32.xlu0 %v5912, 40
        %v5960 = vpop.permute.xlu0 %5959
        %vm5977 = vcmask 388416
        %5978 = vst.msk [vmem:[#allocation5] sm:$0xf] %vm5977, %v5930
        %5979 = vst.msk [vmem:[#allocation5 + $0x4] sm:$0xf] %vm5977, %v5932
        %5980 = vst.msk [vmem:[#allocation5 + $0x8] sm:$0xf] %vm5977, %v5934
        %5981 = vst.msk [vmem:[#allocation5 + $0xc] sm:$0xf] %vm5977, %v5936
        %5982 = vst.msk [vmem:[#allocation5 + $0x10] sm:$0xf] %vm5977, %v5938
        %5983 = vst.msk [vmem:[#allocation5 + $0x14] sm:$0xf] %vm5977, %v5940
        %5984 = vst.msk [vmem:[#allocation5 + $0x18] sm:$0xf] %vm5977, %v5942
        %5985 = vst.msk [vmem:[#allocation5 + $0x1c] sm:$0xf] %vm5977, %v5944
        %5986 = vst.msk [vmem:[#allocation5 + $0x20] sm:$0xf] %vm5977, %v5946
        %5987 = vst.msk [vmem:[#allocation5 + $0x24] sm:$0xf] %vm5977, %v5948
        %5988 = vst.msk [vmem:[#allocation5 + $0x28] sm:$0xf] %vm5977, %v5950
        %5989 = vst.msk [vmem:[#allocation5 + $0x2c] sm:$0xf] %vm5977, %v5952
        %5990 = vst.msk [vmem:[#allocation5 + $0x30] sm:$0xf] %vm5977, %v5954
        %5991 = vst.msk [vmem:[#allocation5 + $0x34] sm:$0xf] %vm5977, %v5956
        %5992 = vst.msk [vmem:[#allocation5 + $0x38] sm:$0xf] %vm5977, %v5958
        %5993 = vst.msk [vmem:[#allocation5 + $0x3c] sm:$0xf] %vm5977, %v5960
        %s5994 = scalar_lea.vmem [#allocation3], 48
        %v5995 = vld [vmem:[%s5994] ss:$2 sm:$0xff]
        %s5996 = scalar_lea.vmem %s5994, 48 [#allocation3]
        %v5997 = vld [vmem:[%s5996] ss:$2 sm:$0xff]
        %s5998 = scalar_lea.vmem %s5994, 96 [#allocation3]
        %v5999 = vld [vmem:[%s5998] ss:$2 sm:$0xff]
        %s6000 = scalar_lea.vmem %s5994, 144 [#allocation3]
        %v6001 = vld [vmem:[%s6000] ss:$2 sm:$0xff]
        %s6002 = scalar_lea.vmem %s5994, 192 [#allocation3]
        %v6003 = vld [vmem:[%s6002] ss:$2 sm:$0xff]
        %s6004 = scalar_lea.vmem %s5994, 240 [#allocation3]
        %v6005 = vld [vmem:[%s6004] ss:$2 sm:$0xff]
        %s6006 = scalar_lea.vmem %s5994, 288 [#allocation3]
        %v6007 = vld [vmem:[%s6006] ss:$2 sm:$0xff]
        %s6008 = scalar_lea.vmem %s5994, 336 [#allocation3]
        %v6009 = vld [vmem:[%s6008] ss:$2 sm:$0xff]
        %s6010 = scalar_lea.vmem %s5994, 432 [#allocation3]
        %v6011 = vld [vmem:[%s6010] ss:$2 sm:$0xff]
        %s6012 = scalar_lea.vmem %s5994, 480 [#allocation3]
        %v6013 = vld [vmem:[%s6012] ss:$2 sm:$0xff]
        %s6014 = scalar_lea.vmem %s5994, 528 [#allocation3]
        %v6015 = vld [vmem:[%s6014] ss:$2 sm:$0xff]
        %s6016 = scalar_lea.vmem %s5994, 576 [#allocation3]
        %v6017 = vld [vmem:[%s6016] ss:$2 sm:$0xff]
        %s6018 = scalar_lea.vmem %s5994, 624 [#allocation3]
        %v6019 = vld [vmem:[%s6018] ss:$2 sm:$0xff]
        %s6020 = scalar_lea.vmem %s5994, 672 [#allocation3]
        %v6021 = vld [vmem:[%s6020] ss:$2 sm:$0xff]
        %s6022 = scalar_lea.vmem %s5994, 720 [#allocation3]
        %v6023 = vld [vmem:[%s6022] ss:$2 sm:$0xff]
        %s6024 = scalar_lea.vmem %s5994, 768 [#allocation3]
        %v6025 = vld [vmem:[%s6024] ss:$2 sm:$0xff]
        %v6026 = vpack.c.bf16 %v5995, %v5995
        %v6027 = vpack.c.bf16 %v5997, %v5997
        %v6028 = vpack.c.bf16 %v5999, %v5999
        %v6029 = vpack.c.bf16 %v6001, %v6001
        %v6030 = vpack.c.bf16 %v6003, %v6003
        %v6031 = vpack.c.bf16 %v6005, %v6005
        %v6032 = vpack.c.bf16 %v6007, %v6007
        %v6033 = vpack.c.bf16 %v6009, %v6009
        %v6034 = vpack.c.bf16 %v6011, %v6011
        %v6035 = vpack.c.bf16 %v6013, %v6013
        %v6036 = vpack.c.bf16 %v6015, %v6015
        %v6037 = vpack.c.bf16 %v6017, %v6017
        %v6038 = vpack.c.bf16 %v6019, %v6019
        %v6039 = vpack.c.bf16 %v6021, %v6021
        %v6040 = vpack.c.bf16 %v6023, %v6023
        %v6041 = vpack.c.bf16 %v6025, %v6025
        %6058 = vrot.lane.b32.xlu0 %v6026, 48
        %v6059 = vpop.permute.xlu0 %6058
        %6060 = vrot.lane.b32.xlu0 %v6027, 48
        %v6061 = vpop.permute.xlu0 %6060
        %6062 = vrot.lane.b32.xlu0 %v6028, 48
        %v6063 = vpop.permute.xlu0 %6062
        %6064 = vrot.lane.b32.xlu0 %v6029, 48
        %v6065 = vpop.permute.xlu0 %6064
        %6066 = vrot.lane.b32.xlu0 %v6030, 48
        %v6067 = vpop.permute.xlu0 %6066
        %6068 = vrot.lane.b32.xlu0 %v6031, 48
        %v6069 = vpop.permute.xlu0 %6068
        %6070 = vrot.lane.b32.xlu0 %v6032, 48
        %v6071 = vpop.permute.xlu0 %6070
        %6072 = vrot.lane.b32.xlu0 %v6033, 48
        %v6073 = vpop.permute.xlu0 %6072
        %6074 = vrot.lane.b32.xlu0 %v6034, 48
        %v6075 = vpop.permute.xlu0 %6074
        %6076 = vrot.lane.b32.xlu0 %v6035, 48
        %v6077 = vpop.permute.xlu0 %6076
        %6078 = vrot.lane.b32.xlu0 %v6036, 48
        %v6079 = vpop.permute.xlu0 %6078
        %6080 = vrot.lane.b32.xlu0 %v6037, 48
        %v6081 = vpop.permute.xlu0 %6080
        %6082 = vrot.lane.b32.xlu0 %v6038, 48
        %v6083 = vpop.permute.xlu0 %6082
        %6084 = vrot.lane.b32.xlu0 %v6039, 48
        %v6085 = vpop.permute.xlu0 %6084
        %6086 = vrot.lane.b32.xlu0 %v6040, 48
        %v6087 = vpop.permute.xlu0 %6086
        %6088 = vrot.lane.b32.xlu0 %v6041, 48
        %v6089 = vpop.permute.xlu0 %6088
        %vm6106 = vcmask 454016
        %6107 = vst.msk [vmem:[#allocation5] sm:$0xf] %vm6106, %v6059
        %6108 = vst.msk [vmem:[#allocation5 + $0x4] sm:$0xf] %vm6106, %v6061
        %6109 = vst.msk [vmem:[#allocation5 + $0x8] sm:$0xf] %vm6106, %v6063
        %6110 = vst.msk [vmem:[#allocation5 + $0xc] sm:$0xf] %vm6106, %v6065
        %6111 = vst.msk [vmem:[#allocation5 + $0x10] sm:$0xf] %vm6106, %v6067
        %6112 = vst.msk [vmem:[#allocation5 + $0x14] sm:$0xf] %vm6106, %v6069
        %6113 = vst.msk [vmem:[#allocation5 + $0x18] sm:$0xf] %vm6106, %v6071
        %6114 = vst.msk [vmem:[#allocation5 + $0x1c] sm:$0xf] %vm6106, %v6073
        %6115 = vst.msk [vmem:[#allocation5 + $0x20] sm:$0xf] %vm6106, %v6075
        %6116 = vst.msk [vmem:[#allocation5 + $0x24] sm:$0xf] %vm6106, %v6077
        %6117 = vst.msk [vmem:[#allocation5 + $0x28] sm:$0xf] %vm6106, %v6079
        %6118 = vst.msk [vmem:[#allocation5 + $0x2c] sm:$0xf] %vm6106, %v6081
        %6119 = vst.msk [vmem:[#allocation5 + $0x30] sm:$0xf] %vm6106, %v6083
        %6120 = vst.msk [vmem:[#allocation5 + $0x34] sm:$0xf] %vm6106, %v6085
        %6121 = vst.msk [vmem:[#allocation5 + $0x38] sm:$0xf] %vm6106, %v6087
        %6122 = vst.msk [vmem:[#allocation5 + $0x3c] sm:$0xf] %vm6106, %v6089
        %s6123 = scalar_lea.vmem %s5994, 1 [#allocation3]
        %v6124 = vld [vmem:[%s6123] ss:$2 sm:$0xff]
        %s6125 = scalar_lea.vmem %s5994, 49 [#allocation3]
        %v6126 = vld [vmem:[%s6125] ss:$2 sm:$0xff]
        %s6127 = scalar_lea.vmem %s5994, 97 [#allocation3]
        %v6128 = vld [vmem:[%s6127] ss:$2 sm:$0xff]
        %s6129 = scalar_lea.vmem %s5994, 145 [#allocation3]
        %v6130 = vld [vmem:[%s6129] ss:$2 sm:$0xff]
        %s6131 = scalar_lea.vmem %s5994, 193 [#allocation3]
        %v6132 = vld [vmem:[%s6131] ss:$2 sm:$0xff]
        %s6133 = scalar_lea.vmem %s5994, 241 [#allocation3]
        %v6134 = vld [vmem:[%s6133] ss:$2 sm:$0xff]
        %s6135 = scalar_lea.vmem %s5994, 289 [#allocation3]
        %v6136 = vld [vmem:[%s6135] ss:$2 sm:$0xff]
        %s6137 = scalar_lea.vmem %s5994, 337 [#allocation3]
        %v6138 = vld [vmem:[%s6137] ss:$2 sm:$0xff]
        %s6139 = scalar_lea.vmem %s5994, 433 [#allocation3]
        %v6140 = vld [vmem:[%s6139] ss:$2 sm:$0xff]
        %s6141 = scalar_lea.vmem %s5994, 481 [#allocation3]
        %v6142 = vld [vmem:[%s6141] ss:$2 sm:$0xff]
        %s6143 = scalar_lea.vmem %s5994, 529 [#allocation3]
        %v6144 = vld [vmem:[%s6143] ss:$2 sm:$0xff]
        %s6145 = scalar_lea.vmem %s5994, 577 [#allocation3]
        %v6146 = vld [vmem:[%s6145] ss:$2 sm:$0xff]
        %s6147 = scalar_lea.vmem %s5994, 625 [#allocation3]
        %v6148 = vld [vmem:[%s6147] ss:$2 sm:$0xff]
        %s6149 = scalar_lea.vmem %s5994, 673 [#allocation3]
        %v6150 = vld [vmem:[%s6149] ss:$2 sm:$0xff]
        %s6151 = scalar_lea.vmem %s5994, 721 [#allocation3]
        %v6152 = vld [vmem:[%s6151] ss:$2 sm:$0xff]
        %s6153 = scalar_lea.vmem %s5994, 769 [#allocation3]
        %v6154 = vld [vmem:[%s6153] ss:$2 sm:$0xff]
        %v6155 = vpack.c.bf16 %v6124, %v6124
        %v6156 = vpack.c.bf16 %v6126, %v6126
        %v6157 = vpack.c.bf16 %v6128, %v6128
        %v6158 = vpack.c.bf16 %v6130, %v6130
        %v6159 = vpack.c.bf16 %v6132, %v6132
        %v6160 = vpack.c.bf16 %v6134, %v6134
        %v6161 = vpack.c.bf16 %v6136, %v6136
        %v6162 = vpack.c.bf16 %v6138, %v6138
        %v6163 = vpack.c.bf16 %v6140, %v6140
        %v6164 = vpack.c.bf16 %v6142, %v6142
        %v6165 = vpack.c.bf16 %v6144, %v6144
        %v6166 = vpack.c.bf16 %v6146, %v6146
        %v6167 = vpack.c.bf16 %v6148, %v6148
        %v6168 = vpack.c.bf16 %v6150, %v6150
        %v6169 = vpack.c.bf16 %v6152, %v6152
        %v6170 = vpack.c.bf16 %v6154, %v6154
        %6187 = vrot.lane.b32.xlu0 %v6155, 56
        %v6188 = vpop.permute.xlu0 %6187
        %6189 = vrot.lane.b32.xlu0 %v6156, 56
        %v6190 = vpop.permute.xlu0 %6189
        %6191 = vrot.lane.b32.xlu0 %v6157, 56
        %v6192 = vpop.permute.xlu0 %6191
        %6193 = vrot.lane.b32.xlu0 %v6158, 56
        %v6194 = vpop.permute.xlu0 %6193
        %6195 = vrot.lane.b32.xlu0 %v6159, 56
        %v6196 = vpop.permute.xlu0 %6195
        %6197 = vrot.lane.b32.xlu0 %v6160, 56
        %v6198 = vpop.permute.xlu0 %6197
        %6199 = vrot.lane.b32.xlu0 %v6161, 56
        %v6200 = vpop.permute.xlu0 %6199
        %6201 = vrot.lane.b32.xlu0 %v6162, 56
        %v6202 = vpop.permute.xlu0 %6201
        %6203 = vrot.lane.b32.xlu0 %v6163, 56
        %v6204 = vpop.permute.xlu0 %6203
        %6205 = vrot.lane.b32.xlu0 %v6164, 56
        %v6206 = vpop.permute.xlu0 %6205
        %6207 = vrot.lane.b32.xlu0 %v6165, 56
        %v6208 = vpop.permute.xlu0 %6207
        %6209 = vrot.lane.b32.xlu0 %v6166, 56
        %v6210 = vpop.permute.xlu0 %6209
        %6211 = vrot.lane.b32.xlu0 %v6167, 56
        %v6212 = vpop.permute.xlu0 %6211
        %6213 = vrot.lane.b32.xlu0 %v6168, 56
        %v6214 = vpop.permute.xlu0 %6213
        %6215 = vrot.lane.b32.xlu0 %v6169, 56
        %v6216 = vpop.permute.xlu0 %6215
        %6217 = vrot.lane.b32.xlu0 %v6170, 56
        %v6218 = vpop.permute.xlu0 %6217
        %vm6235 = vcmask 519616
        %6236 = vst.msk [vmem:[#allocation5] sm:$0xf] %vm6235, %v6188
        %6237 = vst.msk [vmem:[#allocation5 + $0x4] sm:$0xf] %vm6235, %v6190
        %6238 = vst.msk [vmem:[#allocation5 + $0x8] sm:$0xf] %vm6235, %v6192
        %6239 = vst.msk [vmem:[#allocation5 + $0xc] sm:$0xf] %vm6235, %v6194
        %6240 = vst.msk [vmem:[#allocation5 + $0x10] sm:$0xf] %vm6235, %v6196
        %6241 = vst.msk [vmem:[#allocation5 + $0x14] sm:$0xf] %vm6235, %v6198
        %6242 = vst.msk [vmem:[#allocation5 + $0x18] sm:$0xf] %vm6235, %v6200
        %6243 = vst.msk [vmem:[#allocation5 + $0x1c] sm:$0xf] %vm6235, %v6202
        %6244 = vst.msk [vmem:[#allocation5 + $0x20] sm:$0xf] %vm6235, %v6204
        %6245 = vst.msk [vmem:[#allocation5 + $0x24] sm:$0xf] %vm6235, %v6206
        %6246 = vst.msk [vmem:[#allocation5 + $0x28] sm:$0xf] %vm6235, %v6208
        %6247 = vst.msk [vmem:[#allocation5 + $0x2c] sm:$0xf] %vm6235, %v6210
        %6248 = vst.msk [vmem:[#allocation5 + $0x30] sm:$0xf] %vm6235, %v6212
        %6249 = vst.msk [vmem:[#allocation5 + $0x34] sm:$0xf] %vm6235, %v6214
        %6250 = vst.msk [vmem:[#allocation5 + $0x38] sm:$0xf] %vm6235, %v6216
        %6251 = vst.msk [vmem:[#allocation5 + $0x3c] sm:$0xf] %vm6235, %v6218
        %s6252 = scalar_lea.vmem %s5994, 2 [#allocation3]
        %v6253 = vld [vmem:[%s6252] ss:$2 sm:$0xff]
        %s6254 = scalar_lea.vmem %s5994, 50 [#allocation3]
        %v6255 = vld [vmem:[%s6254] ss:$2 sm:$0xff]
        %s6256 = scalar_lea.vmem %s5994, 98 [#allocation3]
        %v6257 = vld [vmem:[%s6256] ss:$2 sm:$0xff]
        %s6258 = scalar_lea.vmem %s5994, 146 [#allocation3]
        %v6259 = vld [vmem:[%s6258] ss:$2 sm:$0xff]
        %s6260 = scalar_lea.vmem %s5994, 194 [#allocation3]
        %v6261 = vld [vmem:[%s6260] ss:$2 sm:$0xff]
        %s6262 = scalar_lea.vmem %s5994, 242 [#allocation3]
        %v6263 = vld [vmem:[%s6262] ss:$2 sm:$0xff]
        %s6264 = scalar_lea.vmem %s5994, 290 [#allocation3]
        %v6265 = vld [vmem:[%s6264] ss:$2 sm:$0xff]
        %s6266 = scalar_lea.vmem %s5994, 338 [#allocation3]
        %v6267 = vld [vmem:[%s6266] ss:$2 sm:$0xff]
        %s6268 = scalar_lea.vmem %s5994, 434 [#allocation3]
        %v6269 = vld [vmem:[%s6268] ss:$2 sm:$0xff]
        %s6270 = scalar_lea.vmem %s5994, 482 [#allocation3]
        %v6271 = vld [vmem:[%s6270] ss:$2 sm:$0xff]
        %s6272 = scalar_lea.vmem %s5994, 530 [#allocation3]
        %v6273 = vld [vmem:[%s6272] ss:$2 sm:$0xff]
        %s6274 = scalar_lea.vmem %s5994, 578 [#allocation3]
        %v6275 = vld [vmem:[%s6274] ss:$2 sm:$0xff]
        %s6276 = scalar_lea.vmem %s5994, 626 [#allocation3]
        %v6277 = vld [vmem:[%s6276] ss:$2 sm:$0xff]
        %s6278 = scalar_lea.vmem %s5994, 674 [#allocation3]
        %v6279 = vld [vmem:[%s6278] ss:$2 sm:$0xff]
        %s6280 = scalar_lea.vmem %s5994, 722 [#allocation3]
        %v6281 = vld [vmem:[%s6280] ss:$2 sm:$0xff]
        %s6282 = scalar_lea.vmem %s5994, 770 [#allocation3]
        %v6283 = vld [vmem:[%s6282] ss:$2 sm:$0xff]
        %v6284 = vpack.c.bf16 %v6253, %v6253
        %v6285 = vpack.c.bf16 %v6255, %v6255
        %v6286 = vpack.c.bf16 %v6257, %v6257
        %v6287 = vpack.c.bf16 %v6259, %v6259
        %v6288 = vpack.c.bf16 %v6261, %v6261
        %v6289 = vpack.c.bf16 %v6263, %v6263
        %v6290 = vpack.c.bf16 %v6265, %v6265
        %v6291 = vpack.c.bf16 %v6267, %v6267
        %v6292 = vpack.c.bf16 %v6269, %v6269
        %v6293 = vpack.c.bf16 %v6271, %v6271
        %v6294 = vpack.c.bf16 %v6273, %v6273
        %v6295 = vpack.c.bf16 %v6275, %v6275
        %v6296 = vpack.c.bf16 %v6277, %v6277
        %v6297 = vpack.c.bf16 %v6279, %v6279
        %v6298 = vpack.c.bf16 %v6281, %v6281
        %v6299 = vpack.c.bf16 %v6283, %v6283
        %6316 = vrot.lane.b32.xlu0 %v6284, 64
        %v6317 = vpop.permute.xlu0 %6316
        %6318 = vrot.lane.b32.xlu0 %v6285, 64
        %v6319 = vpop.permute.xlu0 %6318
        %6320 = vrot.lane.b32.xlu0 %v6286, 64
        %v6321 = vpop.permute.xlu0 %6320
        %6322 = vrot.lane.b32.xlu0 %v6287, 64
        %v6323 = vpop.permute.xlu0 %6322
        %6324 = vrot.lane.b32.xlu0 %v6288, 64
        %v6325 = vpop.permute.xlu0 %6324
        %6326 = vrot.lane.b32.xlu0 %v6289, 64
        %v6327 = vpop.permute.xlu0 %6326
        %6328 = vrot.lane.b32.xlu0 %v6290, 64
        %v6329 = vpop.permute.xlu0 %6328
        %6330 = vrot.lane.b32.xlu0 %v6291, 64
        %v6331 = vpop.permute.xlu0 %6330
        %6332 = vrot.lane.b32.xlu0 %v6292, 64
        %v6333 = vpop.permute.xlu0 %6332
        %6334 = vrot.lane.b32.xlu0 %v6293, 64
        %v6335 = vpop.permute.xlu0 %6334
        %6336 = vrot.lane.b32.xlu0 %v6294, 64
        %v6337 = vpop.permute.xlu0 %6336
        %6338 = vrot.lane.b32.xlu0 %v6295, 64
        %v6339 = vpop.permute.xlu0 %6338
        %6340 = vrot.lane.b32.xlu0 %v6296, 64
        %v6341 = vpop.permute.xlu0 %6340
        %6342 = vrot.lane.b32.xlu0 %v6297, 64
        %v6343 = vpop.permute.xlu0 %6342
        %6344 = vrot.lane.b32.xlu0 %v6298, 64
        %v6345 = vpop.permute.xlu0 %6344
        %6346 = vrot.lane.b32.xlu0 %v6299, 64
        %v6347 = vpop.permute.xlu0 %6346
        %vm6364 = vcmask 585216
        %6365 = vst.msk [vmem:[#allocation5] sm:$0xf] %vm6364, %v6317
        %6366 = vst.msk [vmem:[#allocation5 + $0x4] sm:$0xf] %vm6364, %v6319
        %6367 = vst.msk [vmem:[#allocation5 + $0x8] sm:$0xf] %vm6364, %v6321
        %6368 = vst.msk [vmem:[#allocation5 + $0xc] sm:$0xf] %vm6364, %v6323
        %6369 = vst.msk [vmem:[#allocation5 + $0x10] sm:$0xf] %vm6364, %v6325
        %6370 = vst.msk [vmem:[#allocation5 + $0x14] sm:$0xf] %vm6364, %v6327
        %6371 = vst.msk [vmem:[#allocation5 + $0x18] sm:$0xf] %vm6364, %v6329
        %6372 = vst.msk [vmem:[#allocation5 + $0x1c] sm:$0xf] %vm6364, %v6331
        %6373 = vst.msk [vmem:[#allocation5 + $0x20] sm:$0xf] %vm6364, %v6333
        %6374 = vst.msk [vmem:[#allocation5 + $0x24] sm:$0xf] %vm6364, %v6335
        %6375 = vst.msk [vmem:[#allocation5 + $0x28] sm:$0xf] %vm6364, %v6337
        %6376 = vst.msk [vmem:[#allocation5 + $0x2c] sm:$0xf] %vm6364, %v6339
        %6377 = vst.msk [vmem:[#allocation5 + $0x30] sm:$0xf] %vm6364, %v6341
        %6378 = vst.msk [vmem:[#allocation5 + $0x34] sm:$0xf] %vm6364, %v6343
        %6379 = vst.msk [vmem:[#allocation5 + $0x38] sm:$0xf] %vm6364, %v6345
        %6380 = vst.msk [vmem:[#allocation5 + $0x3c] sm:$0xf] %vm6364, %v6347
        %v6381 = vld [vmem:[%s280] ss:$2 sm:$0xff]
        %s6382 = scalar_lea.vmem %s280, 32
        %v6383 = vld [vmem:[%s6382] ss:$2 sm:$0xff]
        %s6384 = scalar_lea.vmem %s280, 64
        %v6385 = vld [vmem:[%s6384] ss:$2 sm:$0xff]
        %s6386 = scalar_lea.vmem %s280, 96
        %v6387 = vld [vmem:[%s6386] ss:$2 sm:$0xff]
        %s6388 = scalar_lea.vmem %s280, 128
        %v6389 = vld [vmem:[%s6388] ss:$2 sm:$0xff]
        %s6390 = scalar_lea.vmem %s280, 160
        %v6391 = vld [vmem:[%s6390] ss:$2 sm:$0xff]
        %s6392 = scalar_lea.vmem %s280, 192
        %v6393 = vld [vmem:[%s6392] ss:$2 sm:$0xff]
        %s6394 = scalar_lea.vmem %s280, 224
        %v6395 = vld [vmem:[%s6394] ss:$2 sm:$0xff]
        %s6396 = scalar_lea.vmem %s280, 256
        %v6397 = vld [vmem:[%s6396] ss:$2 sm:$0xff]
        %s6398 = scalar_lea.vmem %s280, 288
        %v6399 = vld [vmem:[%s6398] ss:$2 sm:$0xff]
        %s6400 = scalar_lea.vmem %s280, 320
        %v6401 = vld [vmem:[%s6400] ss:$2 sm:$0xff]
        %s6402 = scalar_lea.vmem %s280, 352
        %v6403 = vld [vmem:[%s6402] ss:$2 sm:$0xff]
        %s6404 = scalar_lea.vmem %s280, 384
        %v6405 = vld [vmem:[%s6404] ss:$2 sm:$0xff]
        %s6406 = scalar_lea.vmem %s280, 416
        %v6407 = vld [vmem:[%s6406] ss:$2 sm:$0xff]
        %s6408 = scalar_lea.vmem %s280, 448
        %v6409 = vld [vmem:[%s6408] ss:$2 sm:$0xff]
        %s6410 = scalar_lea.vmem %s280, 480
        %v6411 = vld [vmem:[%s6410] ss:$2 sm:$0xff]
        %v6412 = vpack.c.bf16 %v6381, %v6381
        %v6413 = vpack.c.bf16 %v6383, %v6383
        %v6414 = vpack.c.bf16 %v6385, %v6385
        %v6415 = vpack.c.bf16 %v6387, %v6387
        %v6416 = vpack.c.bf16 %v6389, %v6389
        %v6417 = vpack.c.bf16 %v6391, %v6391
        %v6418 = vpack.c.bf16 %v6393, %v6393
        %v6419 = vpack.c.bf16 %v6395, %v6395
        %v6420 = vpack.c.bf16 %v6397, %v6397
        %v6421 = vpack.c.bf16 %v6399, %v6399
        %v6422 = vpack.c.bf16 %v6401, %v6401
        %v6423 = vpack.c.bf16 %v6403, %v6403
        %v6424 = vpack.c.bf16 %v6405, %v6405
        %v6425 = vpack.c.bf16 %v6407, %v6407
        %v6426 = vpack.c.bf16 %v6409, %v6409
        %v6427 = vpack.c.bf16 %v6411, %v6411
        %6444 = vrot.lane.b32.xlu0 %v6412, 72
        %v6445 = vpop.permute.xlu0 %6444
        %6446 = vrot.lane.b32.xlu0 %v6413, 72
        %v6447 = vpop.permute.xlu0 %6446
        %6448 = vrot.lane.b32.xlu0 %v6414, 72
        %v6449 = vpop.permute.xlu0 %6448
        %6450 = vrot.lane.b32.xlu0 %v6415, 72
        %v6451 = vpop.permute.xlu0 %6450
        %6452 = vrot.lane.b32.xlu0 %v6416, 72
        %v6453 = vpop.permute.xlu0 %6452
        %6454 = vrot.lane.b32.xlu0 %v6417, 72
        %v6455 = vpop.permute.xlu0 %6454
        %6456 = vrot.lane.b32.xlu0 %v6418, 72
        %v6457 = vpop.permute.xlu0 %6456
        %6458 = vrot.lane.b32.xlu0 %v6419, 72
        %v6459 = vpop.permute.xlu0 %6458
        %6460 = vrot.lane.b32.xlu0 %v6420, 72
        %v6461 = vpop.permute.xlu0 %6460
        %6462 = vrot.lane.b32.xlu0 %v6421, 72
        %v6463 = vpop.permute.xlu0 %6462
        %6464 = vrot.lane.b32.xlu0 %v6422, 72
        %v6465 = vpop.permute.xlu0 %6464
        %6466 = vrot.lane.b32.xlu0 %v6423, 72
        %v6467 = vpop.permute.xlu0 %6466
        %6468 = vrot.lane.b32.xlu0 %v6424, 72
        %v6469 = vpop.permute.xlu0 %6468
        %6470 = vrot.lane.b32.xlu0 %v6425, 72
        %v6471 = vpop.permute.xlu0 %6470
        %6472 = vrot.lane.b32.xlu0 %v6426, 72
        %v6473 = vpop.permute.xlu0 %6472
        %6474 = vrot.lane.b32.xlu0 %v6427, 72
        %v6475 = vpop.permute.xlu0 %6474
        %vm6492 = vcmask 618048
        %6493 = vst.msk [vmem:[#allocation5] sm:$0xf] %vm6492, %v6445
        %6494 = vst.msk [vmem:[#allocation5 + $0x4] sm:$0xf] %vm6492, %v6447
        %6495 = vst.msk [vmem:[#allocation5 + $0x8] sm:$0xf] %vm6492, %v6449
        %6496 = vst.msk [vmem:[#allocation5 + $0xc] sm:$0xf] %vm6492, %v6451
        %6497 = vst.msk [vmem:[#allocation5 + $0x10] sm:$0xf] %vm6492, %v6453
        %6498 = vst.msk [vmem:[#allocation5 + $0x14] sm:$0xf] %vm6492, %v6455
        %6499 = vst.msk [vmem:[#allocation5 + $0x18] sm:$0xf] %vm6492, %v6457
        %6500 = vst.msk [vmem:[#allocation5 + $0x1c] sm:$0xf] %vm6492, %v6459
        %6501 = vst.msk [vmem:[#allocation5 + $0x20] sm:$0xf] %vm6492, %v6461
        %6502 = vst.msk [vmem:[#allocation5 + $0x24] sm:$0xf] %vm6492, %v6463
        %6503 = vst.msk [vmem:[#allocation5 + $0x28] sm:$0xf] %vm6492, %v6465
        %6504 = vst.msk [vmem:[#allocation5 + $0x2c] sm:$0xf] %vm6492, %v6467
        %6505 = vst.msk [vmem:[#allocation5 + $0x30] sm:$0xf] %vm6492, %v6469
        %6506 = vst.msk [vmem:[#allocation5 + $0x34] sm:$0xf] %vm6492, %v6471
        %6507 = vst.msk [vmem:[#allocation5 + $0x38] sm:$0xf] %vm6492, %v6473
        %6508 = vst.msk [vmem:[#allocation5 + $0x3c] sm:$0xf] %vm6492, %v6475
        %v6509 = vld [vmem:[#allocation5] sm:$0xf]
        %v6510 = vld [vmem:[#allocation5 + $0x4] sm:$0xf]
        %v6511 = vld [vmem:[#allocation5 + $0x8] sm:$0xf]
        %v6512 = vld [vmem:[#allocation5 + $0xc] sm:$0xf]
        %v6513 = vld [vmem:[#allocation5 + $0x10] sm:$0xf]
        %v6514 = vld [vmem:[#allocation5 + $0x14] sm:$0xf]
        %v6515 = vld [vmem:[#allocation5 + $0x18] sm:$0xf]
        %v6516 = vld [vmem:[#allocation5 + $0x1c] sm:$0xf]
        %v6517 = vld [vmem:[#allocation5 + $0x20] sm:$0xf]
        %v6518 = vld [vmem:[#allocation5 + $0x24] sm:$0xf]
        %v6519 = vld [vmem:[#allocation5 + $0x28] sm:$0xf]
        %v6520 = vld [vmem:[#allocation5 + $0x2c] sm:$0xf]
        %v6521 = vld [vmem:[#allocation5 + $0x30] sm:$0xf]
        %v6522 = vld [vmem:[#allocation5 + $0x34] sm:$0xf]
        %v6523 = vld [vmem:[#allocation5 + $0x38] sm:$0xf]
        %v6524 = vld [vmem:[#allocation5 + $0x3c] sm:$0xf]
        %v6525 = vld [vmem:[%s5] sm:$0xf]
        %v6526 = vld [vmem:[%s5 + $0x4] sm:$0xf]
        %v6527 = vld [vmem:[%s5 + $0x8] sm:$0xf]
        %v6528 = vld [vmem:[%s5 + $0xc] sm:$0xf]
        %v6529 = vld [vmem:[%s5 + $0x10] sm:$0xf]
        %v6530 = vld [vmem:[%s5 + $0x14] sm:$0xf]
        %v6531 = vld [vmem:[%s5 + $0x18] sm:$0xf]
        %v6532 = vld [vmem:[%s5 + $0x1c] sm:$0xf]
        %v6533 = vld [vmem:[%s5 + $0x20] sm:$0xf]
        %v6534 = vld [vmem:[%s5 + $0x24] sm:$0x3]
        %v6535 = vld [vmem:[%s6] sm:$0x1]
        %v6537 = vperm.slane %v6535, 0
        %v6555 = vunpack.c.l.b16 %v6509
        %v6556 = vunpack.c.l.b16 %v6510
        %v6557 = vunpack.c.l.b16 %v6511
        %v6558 = vunpack.c.l.b16 %v6512
        %v6559 = vunpack.c.l.b16 %v6513
        %v6560 = vunpack.c.l.b16 %v6514
        %v6561 = vunpack.c.l.b16 %v6515
        %v6562 = vunpack.c.l.b16 %v6516
        %v6563 = vunpack.c.l.b16 %v6517
        %v6564 = vunpack.c.l.b16 %v6518
        %v6565 = vunpack.c.l.b16 %v6519
        %v6566 = vunpack.c.l.b16 %v6520
        %v6567 = vunpack.c.l.b16 %v6521
        %v6568 = vunpack.c.l.b16 %v6522
        %v6569 = vunpack.c.l.b16 %v6523
        %v6570 = vunpack.c.l.b16 %v6524
        %v6571 = vpack.c.b16 %v6556, %v6555
        %v6572 = vpack.c.b16 %v6558, %v6557
        %v6573 = vpack.c.b16 %v6560, %v6559
        %v6574 = vpack.c.b16 %v6562, %v6561
        %v6575 = vpack.c.b16 %v6564, %v6563
        %v6576 = vpack.c.b16 %v6566, %v6565
        %v6577 = vpack.c.b16 %v6568, %v6567
        %v6578 = vpack.c.b16 %v6570, %v6569
        %v6589 = vunpack.c.l.b16 %v6525
        %v6590 = vunpack.c.l.b16 %v6526
        %v6591 = vunpack.c.l.b16 %v6527
        %v6592 = vunpack.c.l.b16 %v6528
        %v6593 = vunpack.c.l.b16 %v6529
        %v6594 = vunpack.c.l.b16 %v6530
        %v6595 = vunpack.c.l.b16 %v6531
        %v6596 = vunpack.c.l.b16 %v6532
        %v6597 = vunpack.c.l.b16 %v6533
        %v6598 = vunpack.c.l.b16 %v6534
        %v6599 = vpack.c.b16 %v6590, %v6589
        %v6600 = vpack.c.b16 %v6592, %v6591
        %v6601 = vpack.c.b16 %v6594, %v6593
        %v6602 = vpack.c.b16 %v6596, %v6595
        %v6603 = vpack.c.b16 %v6598, %v6597
        %vm6608 = vcmask 621568
        %v6610 = vsel %vm6608, %v6571, 0
        %v6613 = vsel %vm6608, %v6572, 0
        %v6616 = vsel %vm6608, %v6573, 0
        %v6619 = vsel %vm6608, %v6574, 0
        %v6622 = vsel %vm6608, %v6575, 0
        %v6625 = vsel %vm6608, %v6576, 0
        %v6628 = vsel %vm6608, %v6577, 0
        %v6631 = vsel %vm6608, %v6578, 0
        %vm6633 = vcmask 1045504
        %v6635 = vsel %vm6633, %v6603, 0
        %6637 = vmatpush.bf16.msra.mxu0 0
        %6638 = vmatpush.bf16.msra.mxu0 0
        %6639 = vmatpush.bf16.msra.mxu0 0
        %6640 = vmatpush.bf16.msra.mxu0 %v6635
        %6641 = vmatpush.bf16.msra.mxu0 %v6602
        %6642 = vmatpush.bf16.msra.mxu0 %v6601
        %6643 = vmatpush.bf16.msra.mxu0 %v6600
        %6644 = vmatpush.bf16.msra.mxu0 %v6599
        %6645 = vmatmul.bf16.gmra.mxu0 %v6610
        %v6646 = vpop.f32.mrf.mxu0
        %v6647 = vadd.f32 %v6537, %v6646
        %v6648 = vpop.f32.mrf.mxu0
        %v6649 = vadd.f32 %v6537, %v6648
        %6650 = vmatmul.bf16.gmra.mxu0 %v6613
        %v6651 = vpop.f32.mrf.mxu0
        %v6652 = vadd.f32 %v6537, %v6651
        %v6653 = vpop.f32.mrf.mxu0
        %v6654 = vadd.f32 %v6537, %v6653
        %6655 = vmatmul.bf16.gmra.mxu0 %v6616
        %v6656 = vpop.f32.mrf.mxu0
        %v6657 = vadd.f32 %v6537, %v6656
        %v6658 = vpop.f32.mrf.mxu0
        %v6659 = vadd.f32 %v6537, %v6658
        %6660 = vmatmul.bf16.gmra.mxu0 %v6619
        %v6661 = vpop.f32.mrf.mxu0
        %v6662 = vadd.f32 %v6537, %v6661
        %v6663 = vpop.f32.mrf.mxu0
        %v6664 = vadd.f32 %v6537, %v6663
        %6665 = vmatmul.bf16.gmra.mxu0 %v6622
        %v6666 = vpop.f32.mrf.mxu0
        %v6667 = vadd.f32 %v6537, %v6666
        %v6668 = vpop.f32.mrf.mxu0
        %v6669 = vadd.f32 %v6537, %v6668
        %6670 = vmatmul.bf16.gmra.mxu0 %v6625
        %v6671 = vpop.f32.mrf.mxu0
        %v6672 = vadd.f32 %v6537, %v6671
        %v6673 = vpop.f32.mrf.mxu0
        %v6674 = vadd.f32 %v6537, %v6673
        %6675 = vmatmul.bf16.gmra.mxu0 %v6628
        %v6676 = vpop.f32.mrf.mxu0
        %v6677 = vadd.f32 %v6537, %v6676
        %v6678 = vpop.f32.mrf.mxu0
        %v6679 = vadd.f32 %v6537, %v6678
        %6680 = vmatmul.bf16.gmra.mxu0 %v6631
        %v6681 = vpop.f32.mrf.mxu0
        %v6682 = vadd.f32 %v6537, %v6681
        %v6683 = vpop.f32.mrf.mxu0
        %v6684 = vadd.f32 %v6537, %v6683
        %6685 = vdwg.mxu0
        %6686 = vxpose.xlu0.b32.start [1/16] %v6647, 128
        %6687 = vxpose.xlu0.b32.cont [2/16] %v6649, 128
        %6688 = vxpose.xlu0.b32.cont [3/16] %v6652, 128
        %6689 = vxpose.xlu0.b32.cont [4/16] %v6654, 128
        %6690 = vxpose.xlu0.b32.cont [5/16] %v6657, 128
        %6691 = vxpose.xlu0.b32.cont [6/16] %v6659, 128
        %6692 = vxpose.xlu0.b32.cont [7/16] %v6662, 128
        %6693 = vxpose.xlu0.b32.cont [8/16] %v6664, 128
        %6694 = vxpose.xlu0.b32.cont [9/16] 0.0, 128
        %6695 = vxpose.xlu0.b32.cont [10/16] 0.0, 128
        %6696 = vxpose.xlu0.b32.cont [11/16] 0.0, 128
        %6697 = vxpose.xlu0.b32.cont [12/16] 0.0, 128
        %6698 = vxpose.xlu0.b32.cont [13/16] 0.0, 128
        %6699 = vxpose.xlu0.b32.cont [14/16] 0.0, 128
        %6700 = vxpose.xlu0.b32.cont [15/16] 0.0, 128
        %6701 = vxpose.xlu0.b32.end [16/16] 0.0, 128
        %v6702 = vpop.trf.xlu0
        %v6703 = vpop.trf.xlu0
        %v6704 = vpop.trf.xlu0
        %v6705 = vpop.trf.xlu0
        %v6706 = vpop.trf.xlu0
        %v6707 = vpop.trf.xlu0
        %v6708 = vpop.trf.xlu0
        %v6709 = vpop.trf.xlu0
        %v6710 = vpop.trf.xlu0
        %v6711 = vpop.trf.xlu0
        %v6712 = vpop.trf.xlu0
        %v6713 = vpop.trf.xlu0
        %v6714 = vpop.trf.xlu0
        %v6715 = vpop.trf.xlu0
        %v6716 = vpop.trf.xlu0
        %v6717 = vpop.trf.xlu0
        %vm6718 = vcmask 523264
        %6719 = vst.msk [vmem:[%s274] sm:$0xff] %vm6718, %v6702
        %6720 = vxpose.xlu0.b32.start [1/16] %v6667, 128
        %6721 = vxpose.xlu0.b32.cont [2/16] %v6669, 128
        %6722 = vxpose.xlu0.b32.cont [3/16] %v6672, 128
        %6723 = vxpose.xlu0.b32.cont [4/16] %v6674, 128
        %6724 = vxpose.xlu0.b32.cont [5/16] %v6677, 128
        %6725 = vxpose.xlu0.b32.cont [6/16] %v6679, 128
        %6726 = vxpose.xlu0.b32.cont [7/16] %v6682, 128
        %6727 = vxpose.xlu0.b32.cont [8/16] %v6684, 128
        %6728 = vxpose.xlu0.b32.cont [9/16] 0.0, 128
        %6729 = vxpose.xlu0.b32.cont [10/16] 0.0, 128
        %6730 = vxpose.xlu0.b32.cont [11/16] 0.0, 128
        %6731 = vxpose.xlu0.b32.cont [12/16] 0.0, 128
        %6732 = vxpose.xlu0.b32.cont [13/16] 0.0, 128
        %6733 = vxpose.xlu0.b32.cont [14/16] 0.0, 128
        %6734 = vxpose.xlu0.b32.cont [15/16] 0.0, 128
        %6735 = vxpose.xlu0.b32.end [16/16] 0.0, 128
        %v6736 = vpop.trf.xlu0
        %v6737 = vpop.trf.xlu0
        %v6738 = vpop.trf.xlu0
        %v6739 = vpop.trf.xlu0
        %v6740 = vpop.trf.xlu0
        %v6741 = vpop.trf.xlu0
        %v6742 = vpop.trf.xlu0
        %v6743 = vpop.trf.xlu0
        %v6744 = vpop.trf.xlu0
        %v6745 = vpop.trf.xlu0
        %v6746 = vpop.trf.xlu0
        %v6747 = vpop.trf.xlu0
        %v6748 = vpop.trf.xlu0
        %v6749 = vpop.trf.xlu0
        %v6750 = vpop.trf.xlu0
        %v6751 = vpop.trf.xlu0
        %s6752 = scalar_lea.vmem %s274, 8 [#allocation6]
        %6753 = vst.msk [vmem:[%s6752] sm:$0xff] %vm6718, %v6736
        %s6754 = sand.u32 %s181, 1
        %s6755 = scalar_lea.sflag [#allocation7], %s6754
        %s6756 = sand.u32 %s181, 1
        %s6757 = smul.addr %s6756, 16
        %s6758 = scalar_lea.vmem [#allocation6], %s6757
        // Predicated region
        $region49: #{tpu_custom_call.1} parent=47 // pred_check
          %p6759 = pneg %p191
        $region50: #{tpu_custom_call.1} parent=47 // pred_check_branch
          %6761 = sbr.rel (%p6759) target = $region52
        $region51: #{tpu_custom_call.1} parent=47 // pred_region
          %s6762 = smul.u32 2, %s21
          %6764 = vsyncadd %s6755, 0
          %s6765 = smul.addr %s6762, 8
          %s6766 = scalar_lea.hbm %s7, %s6765
          %s6767 = sshll.u32 %s6758, 4
          %s6768 = int_to_ptr.vmem [resolvable:$true] %s6767
          %s6769 = sshll.u32 %s6766, 4
          %s6770 = int_to_ptr.hbm [resolvable:$true] %s6769
          %6775 = dma.vmem_to_hbm [thread:$0]  %s6768, 256, %s6770, %s6755, 128, 128, 8
        $region52: #{tpu_custom_call.1} parent=47 // pred_fallthru
          _
      $region48: #{tpu_custom_call.1} parent=5 // pred_fallthru
        _
      %p6776 = scmp.le.s32.totalorder 2, %s16
      // Predicated region
      $region53: #{tpu_custom_call.1} parent=5 // pred_check
        %p6777 = pneg %p6776
      $region54: #{tpu_custom_call.1} parent=5 // pred_check_branch
        %6779 = sbr.rel (%p6777) target = $region56
      $region55: #{tpu_custom_call.1} parent=5 // pred_region
        %s6780 = ssub.s32 %s16, 2
        // Predicated region
        $region57: #{tpu_custom_call.1} parent=55 // pred_check
          %p6781 = pneg %p197
        $region58: #{tpu_custom_call.1} parent=55 // pred_check_branch
          %6783 = sbr.rel (%p6781) target = $region60
        $region59: #{tpu_custom_call.1} parent=55 // pred_region
          %s6784 = sand.u32 %s182, 1
          %s6785 = scalar_lea.sflag [#allocation7], %s6784
          %s6786 = sand.u32 %s182, 1
          %s6787 = smul.addr %s6786, 16
          %s6788 = scalar_lea.vmem [#allocation6], %s6787
          %6790 = dma.done %s6785, 256
        $region60: #{tpu_custom_call.1} parent=55 // pred_fallthru
          _
      $region56: #{tpu_custom_call.1} parent=5 // pred_fallthru
        _
    $region6: #{tpu_custom_call.1} parent=1 // loop_footer
      %s20 = sadd.s32 1, %s16
    $region7: #{tpu_custom_call.1} parent=1 // loop_footer_branch
      %15 = sbr.rel target = $region3
    $region8: #{tpu_custom_call.1} parent=1 // loop_exit
      _
    %6791 = vsyncpa [#allocation7], 1
    %s6792 = scalar_lea.sflag [#allocation7], 1
    %6793 = vsyncpa %s6792, 1

</llo_original>
